<compile_context>
chip_gen: v7x
topology: tpu7x:2x2x1
jax: 0.10.0
libtpu: 0.0.40
codegen_flags: <defaults>
</compile_context>

<pallas_src>
import functools

import jax
import jax.numpy as jnp
from jax import lax
from jax.experimental import pallas as pl
from jax.experimental.pallas import tpu as pltpu

HIDDEN = 32          # stands in for config.LSTM_HIDDEN_SIZE
HEADS = 8
OUT = 3
NUM_MODELS = 3


# ----------------------------------------------------------------------------
# The fused kernel.
# ----------------------------------------------------------------------------
def ensemble_lstm_kernel(
    x_ref,                                    # (T*B, I)          rows = t*B + b
    wih_f_ref, whh_f_ref, b_f_ref,            # (I,12H) (3H,12H) (1,12H)   fwd LSTM (packed)
    wih_b_ref, whh_b_ref, b_b_ref,            # reverse LSTM (packed)
    wpf_ref, wpb_ref, bproj_ref,              # (3H,24) (3H,24) (1,24)     attention_projection
    eexp_ref, gf_ref, gb_ref,                 # 0/1 expansion constants
    sel_ref, selt_ref,                        # (B,T*B) (T*B,B) 0/1 time-sum/expand
    wcomb_ref, bcomb_ref,                     # (M,512,2H) (M,1,2H)        attention_combine
    wfe_ref, bfe_ref, g1_ref, be1_ref,        # feature_extractor (Linear + LayerNorm)
    wres_ref, bres_ref,                       # residual_projection
    w1_ref, b1_ref, g2_ref, be2_ref,          # fc1 + layer_norm
    w2_ref, b2_ref,                           # fc2
    mw1_ref, mb1_ref, mw2_ref, mb2_ref,       # meta-learner
    ensw_ref,                                 # (1, M) ensemble weights
    temp_ref,                                 # (1,)   temperature (SMEM)
    out_ref,                                  # (B, OUT)
    *, T, B,
):
    f32 = jnp.float32
    H = HIDDEN
    H2 = 2 * H
    HM = NUM_MODELS * H            # packed hidden width (96)
    Q = HEADS * H2                 # per-model head-context width (512)

    def dot(a, b):
        return jnp.dot(a, b, preferred_element_type=f32)

    # ---- hoisted input projections: one lane-dense matmul per direction ----
    x2d = x_ref[...]                                          # (T*B, I)
    gx_f = dot(x2d, wih_f_ref[...]) + b_f_ref[...]            # (T*B, 4*3H)
    gx_b = dot(x2d, wih_b_ref[...]) + b_b_ref[...]            # (T*B, 4*3H)

    whh_f = whh_f_ref[...]
    whh_b = whh_b_ref[...]

    def cell(gx_t, h, c, whh):
        gates = gx_t + dot(h, whh)                            # (B, 4*3H), gate-major
        i = jax.nn.sigmoid(gates[:, 0 * HM:1 * HM])
        f = jax.nn.sigmoid(gates[:, 1 * HM:2 * HM])
        g = jnp.tanh(gates[:, 2 * HM:3 * HM])
        o = jax.nn.sigmoid(gates[:, 3 * HM:4 * HM])
        c_new = f * c + i * g
        h_new = o * jnp.tanh(c_new)
        return h_new, c_new

    h_f = jnp.zeros((B, HM), f32)
    c_f = jnp.zeros((B, HM), f32)
    h_b = jnp.zeros((B, HM), f32)
    c_b = jnp.zeros((B, HM), f32)
    fwd_rows = []
    bwd_rows = []
    # Fully unrolled recurrence (T is small & static); only h@W_hh + gate math remain
    # on the serial chain, and the two independent directions interleave.
    for t in range(T):
        tb = T - 1 - t
        h_f, c_f = cell(gx_f[t * B:(t + 1) * B, :], h_f, c_f, whh_f)
        h_b, c_b = cell(gx_b[tb * B:(tb + 1) * B, :], h_b, c_b, whh_b)
        fwd_rows.append(h_f)                  # output at time t
        bwd_rows.append(h_b)                  # output at time T-1-t
    fwd2d = jnp.concatenate(fwd_rows, axis=0)                       # (T*B, 3H)
    bwd2d = jnp.concatenate(list(reversed(bwd_rows)), axis=0)       # (T*B, 3H)

    # ---- multi-head attention, fused over models & heads (all 2D matmuls) ----
    # scores[r, m*8+h] for r = t*B + b  (block-diag projection weights)
    scores = dot(fwd2d, wpf_ref[...]) + dot(bwd2d, wpb_ref[...]) + bproj_ref[...]
    mx = jnp.max(scores, axis=1, keepdims=True)
    mx = jnp.max(mx, axis=0, keepdims=True)          # global max: constant over t -> valid
    e = jnp.exp(scores - mx)
    sel = sel_ref[...]                               # (B, T*B): sums over t per batch row
    denom = dot(sel, e)                              # (B, 24)
    inv = pl.reciprocal(denom, approx=True)
    attn = e * dot(selt_ref[...], inv)               # softmax over the sequence axis
    # per-head context: ctx[b, (m*8+h)*2H + d] = sum_t attn[t,b,m*8+h] * lstm_out_m[t,b,d]
    attn_exp = dot(attn, eexp_ref[...])                             # (T*B, M*HEADS*2H)
    seq_exp = dot(fwd2d, gf_ref[...]) + dot(bwd2d, gb_ref[...])     # (T*B, M*HEADS*2H)
    ctx = dot(sel, attn_exp * seq_exp)                              # (B,   M*HEADS*2H)

    def layernorm(v, gamma, beta):
        mu = jnp.mean(v, axis=-1, keepdims=True)
        xc = v - mu
        var = jnp.mean(xc * xc, axis=-1, keepdims=True)
        return xc * lax.rsqrt(var + 1e-5) * gamma + beta

    def softmax_rows(logits):
        m_ = jnp.max(logits, axis=-1, keepdims=True)
        e_ = jnp.exp(logits - m_)
        return e_ * pl.reciprocal(jnp.sum(e_, axis=-1, keepdims=True), approx=True)

    # ---- per-model MLP head (tiny; static 3-iteration loop over stacked weights) ----
    probs = []
    for m in range(NUM_MODELS):
        ctx_m = ctx[:, m * Q:(m + 1) * Q]                                   # (B, 512)
        context = dot(ctx_m, wcomb_ref[m]) + bcomb_ref[m]                   # (B, 2H)
        feat = dot(context, wfe_ref[m]) + bfe_ref[m]                        # (B, H)
        feat = jax.nn.relu(layernorm(feat, g1_ref[m], be1_ref[m]))
        feat = feat + dot(context, wres_ref[m]) + bres_ref[m]               # + residual
        h1 = jax.nn.relu(dot(feat, w1_ref[m]) + b1_ref[m])                  # (B, H/2)
        h1 = layernorm(h1, g2_ref[m], be2_ref[m])
        logits = dot(h1, w2_ref[m]) + b2_ref[m]                             # (B, OUT)
        probs.append(softmax_rows(logits))

    # ---- stacking meta-learner + temperature-softmax weighted mixture ----
    probs_cat = jnp.concatenate(probs, axis=1)                              # (B, M*OUT)
    hmeta = jax.nn.relu(dot(probs_cat, mw1_ref[...]) + mb1_ref[...])
    meta = softmax_rows(dot(hmeta, mw2_ref[...]) + mb2_ref[...])            # (B, OUT)

    w = softmax_rows(ensw_ref[...] / temp_ref[0])                           # (1, M)
    weighted = (w[:, 0:1] * probs[0] + w[:, 1:2] * probs[1] + w[:, 2:3] * probs[2])
    out_ref[...] = 0.7 * meta + 0.3 * weighted


# ----------------------------------------------------------------------------
# Wrapper: pack per-model parameters into the fused block layouts and call Pallas.
# ----------------------------------------------------------------------------
def _build_kernel_inputs(x_bti, params):
    B, T, I = x_bti.shape
    H = HIDDEN
    H2 = 2 * H
    HM = NUM_MODELS * H
    K = NUM_MODELS * HEADS
    Q = HEADS * H2
    per_model = params["models"]

    # batch-first -> time-major rows (row index = t*B + b)
    x2d = jnp.transpose(x_bti, (1, 0, 2)).reshape(T * B, I)

    def pack_input_proj(wkey, bkey):
        # columns: gate*3H + m*H + j   (x is shared -> plain column concat)
        w_blocks, b_blocks = [], []
        for g in range(4):
            w_blocks.append(jnp.concatenate(
                [pm[wkey][:, g * H:(g + 1) * H] for pm in per_model], axis=1))
            b_blocks.append(jnp.concatenate(
                [pm[bkey][:, g * H:(g + 1) * H] for pm in per_model], axis=1))
        return jnp.concatenate(w_blocks, axis=1), jnp.concatenate(b_blocks, axis=1)

    def pack_hidden_proj(wkey):
        # block-diagonal over models: rows m*H.. only feed columns gate*3H + m*H..
        W = jnp.zeros((HM, 4 * HM), jnp.float32)
        for m, pm in enumerate(per_model):
            for g in range(4):
                W = W.at[m * H:(m + 1) * H,
                         g * HM + m * H: g * HM + (m + 1) * H].set(
                             pm[wkey][:, g * H:(g + 1) * H])
        return W

    wih_f, b_f = pack_input_proj("wih_f", "b_f")
    wih_b, b_b = pack_input_proj("wih_b", "b_b")
    whh_f = pack_hidden_proj("whh_f")
    whh_b = pack_hidden_proj("whh_b")

    # attention projection, block-diagonal (fwd / bwd halves of the 2H input dim)
    wpf = jnp.zeros((HM, K), jnp.float32)
    wpb = jnp.zeros((HM, K), jnp.float32)
    for m, pm in enumerate(per_model):
        wpf = wpf.at[m * H:(m + 1) * H, m * HEADS:(m + 1) * HEADS].set(pm["wproj"][:H, :])
        wpb = wpb.at[m * H:(m + 1) * H, m * HEADS:(m + 1) * HEADS].set(pm["wproj"][H:, :])
    bproj = jnp.concatenate([pm["bproj"] for pm in per_model], axis=1)       # (1, K)

    # 0/1 expansion / selection constants (built once; they turn the per-head
    # attention-weighted sums into lane-dense matmuls inside the kernel)
    q = jnp.arange(NUM_MODELS * Q)                     # q = (m*8+h)*2H + d
    k = jnp.arange(K)[:, None]
    eexp = ((q[None, :] // H2) == k).astype(jnp.float32)                    # (K,  M*Q)
    p = jnp.arange(HM)[:, None]                        # p = m*H + j
    same_model = (q[None, :] // Q) == (p // H)
    gf = (same_model & ((q[None, :] % H2) == (p % H))).astype(jnp.float32)  # (3H, M*Q)
    gb = (same_model & ((q[None, :] % H2) == ((p % H) + H))).astype(jnp.float32)
    r = jnp.arange(T * B)
    sel = ((r[None, :] % B) == jnp.arange(B)[:, None]).astype(jnp.float32)  # (B, T*B)
    selt = jnp.transpose(sel)                                               # (T*B, B)

    def stack(key):
        return jnp.stack([pm[key] for pm in per_model], axis=0)

    args = [
        x2d,
        wih_f, whh_f, b_f,
        wih_b, whh_b, b_b,
        wpf, wpb, bproj,
        eexp, gf, gb, sel, selt,
        stack("wcomb"), stack("bcomb"),
        stack("wfe"), stack("bfe"), stack("g1"), stack("be1"),
        stack("wres"), stack("bres"),
        stack("w1"), stack("b1"), stack("g2"), stack("be2"),
        stack("w2"), stack("b2"),
        params["meta_w1"], params["meta_b1"], params["meta_w2"], params["meta_b2"],
        params["ens_w"], params["temperature"],
    ]
    return args


def ensemble_forward(x_bti, params):
    B, T, _ = x_bti.shape
    args = _build_kernel_inputs(x_bti, params)
    kernel = functools.partial(ensemble_lstm_kernel, T=T, B=B)
    in_specs = ([pl.BlockSpec(memory_space=pltpu.MemorySpace.VMEM)] * (len(args) - 1)
                + [pl.BlockSpec(memory_space=pltpu.MemorySpace.SMEM)])
    return pl.pallas_call(
        kernel,
        out_shape=jax.ShapeDtypeStruct((B, OUT), jnp.float32),
        in_specs=in_specs,
        out_specs=pl.BlockSpec(memory_space=pltpu.MemorySpace.VMEM),
    )(*args)


# ----------------------------------------------------------------------------
# Deterministic parameter init (shapes follow the nn.Module __init__).
# Weights are stored pre-transposed for "activation @ weight" use in-kernel.
# ----------------------------------------------------------------------------
def _uniform(key, shape, scale):
    return jax.random.uniform(key, shape, jnp.float32, minval=-scale, maxval=scale)


def init_trading_lstm_params(key, input_size, hidden=HIDDEN):
    H, I = hidden, input_size
    H2, Hh = 2 * H, H // 2
    ks = iter(jax.random.split(key, 20))
    s_lstm = 1.0 / (H ** 0.5)
    p = {}
    p["wih_f"] = _uniform(next(ks), (I, 4 * H), s_lstm)     # W_ih^T (gate order i,f,g,o)
    p["whh_f"] = _uniform(next(ks), (H, 4 * H), s_lstm)     # W_hh^T
    p["b_f"] = _uniform(next(ks), (1, 4 * H), s_lstm)       # b_ih + b_hh
    p["wih_b"] = _uniform(next(ks), (I, 4 * H), s_lstm)
    p["whh_b"] = _uniform(next(ks), (H, 4 * H), s_lstm)
    p["b_b"] = _uniform(next(ks), (1, 4 * H), s_lstm)
    sp = 1.0 / (H2 ** 0.5)
    p["wproj"] = _uniform(next(ks), (H2, HEADS), sp)        # attention_projection W^T
    p["bproj"] = _uniform(next(ks), (1, HEADS), sp)
    sc = 1.0 / ((HEADS * H2) ** 0.5)
    p["wcomb"] = _uniform(next(ks), (HEADS * H2, H2), sc)   # attention_combine W^T (head-major rows)
    p["bcomb"] = _uniform(next(ks), (1, H2), sc)
    p["wfe"] = _uniform(next(ks), (H2, H), sp)
    p["bfe"] = _uniform(next(ks), (1, H), sp)
    p["g1"] = jnp.ones((1, H), jnp.float32)
    p["be1"] = jnp.zeros((1, H), jnp.float32)
    p["wres"] = _uniform(next(ks), (H2, H), sp)
    p["bres"] = _uniform(next(ks), (1, H), sp)
    s1 = 1.0 / (H ** 0.5)
    p["w1"] = _uniform(next(ks), (H, Hh), s1)
    p["b1"] = _uniform(next(ks), (1, Hh), s1)
    p["g2"] = jnp.ones((1, Hh), jnp.float32)
    p["be2"] = jnp.zeros((1, Hh), jnp.float32)
    s2 = 1.0 / (Hh ** 0.5)
    p["w2"] = _uniform(next(ks), (Hh, OUT), s2)
    p["b2"] = _uniform(next(ks), (1, OUT), s2)
    return p


def init_ensemble_params(key, input_size):
    km, k1, k2 = jax.random.split(key, 3)
    model_keys = jax.random.split(km, NUM_MODELS)
    models = [init_trading_lstm_params(k, input_size) for k in model_keys]
    meta_in = NUM_MODELS * OUT
    return {
        "models": models,
        "meta_w1": _uniform(k1, (meta_in, 32), 1.0 / (meta_in ** 0.5)),
        "meta_b1": jnp.zeros((1, 32), jnp.float32),
        "meta_w2": _uniform(k2, (32, OUT), 1.0 / (32 ** 0.5)),
        "meta_b2": jnp.zeros((1, OUT), jnp.float32),
        "ens_w": jnp.full((1, NUM_MODELS), 1.0 / NUM_MODELS, jnp.float32),
        "temperature": jnp.ones((1,), jnp.float32),
    }


if __name__ == "__main__":
    B, T, I = 2, 8, 16        # batch, seq len, input_size (batch_first like PyTorch)
    key = jax.random.PRNGKey(0)
    kx, kp = jax.random.split(key)
    x = jax.random.normal(kx, (B, T, I), jnp.float32)
    params = init_ensemble_params(kp, I)

    y = ensemble_forward(x, params)
    y = jax.block_until_ready(y)

    assert y.shape == (B, OUT), y.shape
    # final output is 0.7*softmax + 0.3*(convex combo of softmaxes) -> rows sum to ~1
    # (tolerance accounts for pl.reciprocal(approx=True) in the softmax denominators)
    assert bool(jnp.all(jnp.abs(jnp.sum(y, axis=1) - 1.0) < 5e-3))
    print("KERNEL_OK")
</pallas_src>

<mosaic_0001>
module attributes {stable_mosaic.version = 11 : i64} {
  func.func @ensemble_lstm_kernel(%arg0: memref<16x16xf32, #tpu.memory_space<vmem>>, %arg1: memref<16x384xf32, #tpu.memory_space<vmem>>, %arg2: memref<96x384xf32, #tpu.memory_space<vmem>>, %arg3: memref<1x384xf32, #tpu.memory_space<vmem>>, %arg4: memref<16x384xf32, #tpu.memory_space<vmem>>, %arg5: memref<96x384xf32, #tpu.memory_space<vmem>>, %arg6: memref<1x384xf32, #tpu.memory_space<vmem>>, %arg7: memref<96x24xf32, #tpu.memory_space<vmem>>, %arg8: memref<96x24xf32, #tpu.memory_space<vmem>>, %arg9: memref<1x24xf32, #tpu.memory_space<vmem>>, %arg10: memref<24x1536xf32, #tpu.memory_space<vmem>>, %arg11: memref<96x1536xf32, #tpu.memory_space<vmem>>, %arg12: memref<96x1536xf32, #tpu.memory_space<vmem>>, %arg13: memref<2x16xf32, #tpu.memory_space<vmem>>, %arg14: memref<16x2xf32, #tpu.memory_space<vmem>>, %arg15: memref<3x512x64xf32, #tpu.memory_space<vmem>>, %arg16: memref<3x1x64xf32, #tpu.memory_space<vmem>>, %arg17: memref<3x64x32xf32, #tpu.memory_space<vmem>>, %arg18: memref<3x1x32xf32, #tpu.memory_space<vmem>>, %arg19: memref<3x1x32xf32, #tpu.memory_space<vmem>>, %arg20: memref<3x1x32xf32, #tpu.memory_space<vmem>>, %arg21: memref<3x64x32xf32, #tpu.memory_space<vmem>>, %arg22: memref<3x1x32xf32, #tpu.memory_space<vmem>>, %arg23: memref<3x32x16xf32, #tpu.memory_space<vmem>>, %arg24: memref<3x1x16xf32, #tpu.memory_space<vmem>>, %arg25: memref<3x1x16xf32, #tpu.memory_space<vmem>>, %arg26: memref<3x1x16xf32, #tpu.memory_space<vmem>>, %arg27: memref<3x16x3xf32, #tpu.memory_space<vmem>>, %arg28: memref<3x1x3xf32, #tpu.memory_space<vmem>>, %arg29: memref<9x32xf32, #tpu.memory_space<vmem>>, %arg30: memref<1x32xf32, #tpu.memory_space<vmem>>, %arg31: memref<32x3xf32, #tpu.memory_space<vmem>>, %arg32: memref<1x3xf32, #tpu.memory_space<vmem>>, %arg33: memref<1x3xf32, #tpu.memory_space<vmem>>, %arg34: memref<1xf32, #tpu.memory_space<smem>>, %arg35: memref<2x3xf32, #tpu.memory_space<vmem>>) attributes {dimension_semantics = [], scalar_prefetch = 0 : i64, scratch_operands = 0 : i64, tpu.core_type = #tpu.core_type<tc>} {
    %c0 = arith.constant 0 : index
    %c0_0 = arith.constant 0 : index
    %0 = vector.load %arg0[%c0, %c0_0] : memref<16x16xf32, #tpu.memory_space<vmem>>, vector<16x16xf32>
    %c0_1 = arith.constant 0 : index
    %c0_2 = arith.constant 0 : index
    %1 = vector.load %arg1[%c0_1, %c0_2] : memref<16x384xf32, #tpu.memory_space<vmem>>, vector<16x384xf32>
    %cst = arith.constant dense<0.000000e+00> : vector<16x384xf32>
    %2 = tpu.matmul %0, %1, %cst {dimension_numbers = #tpu.dot_dimension_numbers<[1], [0], [0], [1], [0, 0, 1, 1], [], []>} : vector<16x16xf32>, vector<16x384xf32>, vector<16x384xf32> -> vector<16x384xf32>
    %c0_3 = arith.constant 0 : index
    %c0_4 = arith.constant 0 : index
    %3 = vector.load %arg3[%c0_3, %c0_4] : memref<1x384xf32, #tpu.memory_space<vmem>>, vector<1x384xf32>
    %4 = vector.broadcast %3 : vector<1x384xf32> to vector<16x384xf32>
    %5 = arith.addf %2, %4 : vector<16x384xf32>
    %c0_5 = arith.constant 0 : index
    %c0_6 = arith.constant 0 : index
    %6 = vector.load %arg4[%c0_5, %c0_6] : memref<16x384xf32, #tpu.memory_space<vmem>>, vector<16x384xf32>
    %cst_7 = arith.constant dense<0.000000e+00> : vector<16x384xf32>
    %7 = tpu.matmul %0, %6, %cst_7 {dimension_numbers = #tpu.dot_dimension_numbers<[1], [0], [0], [1], [0, 0, 1, 1], [], []>} : vector<16x16xf32>, vector<16x384xf32>, vector<16x384xf32> -> vector<16x384xf32>
    %c0_8 = arith.constant 0 : index
    %c0_9 = arith.constant 0 : index
    %8 = vector.load %arg6[%c0_8, %c0_9] : memref<1x384xf32, #tpu.memory_space<vmem>>, vector<1x384xf32>
    %9 = vector.broadcast %8 : vector<1x384xf32> to vector<16x384xf32>
    %10 = arith.addf %7, %9 : vector<16x384xf32>
    %c0_10 = arith.constant 0 : index
    %c0_11 = arith.constant 0 : index
    %11 = vector.load %arg2[%c0_10, %c0_11] : memref<96x384xf32, #tpu.memory_space<vmem>>, vector<96x384xf32>
    %c0_12 = arith.constant 0 : index
    %c0_13 = arith.constant 0 : index
    %12 = vector.load %arg5[%c0_12, %c0_13] : memref<96x384xf32, #tpu.memory_space<vmem>>, vector<96x384xf32>
    %cst_14 = arith.constant 0.000000e+00 : f32
    %13 = vector.broadcast %cst_14 : f32 to vector<2x96xf32>
    %cst_15 = arith.constant 0.000000e+00 : f32
    %14 = vector.broadcast %cst_15 : f32 to vector<2x96xf32>
    %cst_16 = arith.constant 0.000000e+00 : f32
    %15 = vector.broadcast %cst_16 : f32 to vector<2x96xf32>
    %cst_17 = arith.constant 0.000000e+00 : f32
    %16 = vector.broadcast %cst_17 : f32 to vector<2x96xf32>
    %17 = vector.extract_strided_slice %5 {offsets = [0, 0], sizes = [2, 384], strides = [1, 1]} : vector<16x384xf32> to vector<2x384xf32>
    %cst_18 = arith.constant dense<0.000000e+00> : vector<2x384xf32>
    %18 = tpu.matmul %13, %11, %cst_18 {dimension_numbers = #tpu.dot_dimension_numbers<[1], [0], [0], [1], [0, 0, 1, 1], [], []>} : vector<2x96xf32>, vector<96x384xf32>, vector<2x384xf32> -> vector<2x384xf32>
    %19 = arith.addf %17, %18 : vector<2x384xf32>
    %20 = vector.extract_strided_slice %19 {offsets = [0, 0], sizes = [2, 96], strides = [1, 1]} : vector<2x384xf32> to vector<2x96xf32>
    %21 = arith.negf %20 : vector<2x96xf32>
    %22 = math.exp %21 : vector<2x96xf32>
    %cst_19 = arith.constant 1.000000e+00 : f32
    %23 = vector.broadcast %cst_19 : f32 to vector<2x96xf32>
    %24 = arith.addf %23, %22 : vector<2x96xf32>
    %25 = arith.divf %23, %24 : vector<2x96xf32>
    %26 = vector.extract_strided_slice %19 {offsets = [0, 96], sizes = [2, 96], strides = [1, 1]} : vector<2x384xf32> to vector<2x96xf32>
    %27 = arith.negf %26 : vector<2x96xf32>
    %28 = math.exp %27 : vector<2x96xf32>
    %cst_20 = arith.constant 1.000000e+00 : f32
    %29 = vector.broadcast %cst_20 : f32 to vector<2x96xf32>
    %30 = arith.addf %29, %28 : vector<2x96xf32>
    %31 = arith.divf %29, %30 : vector<2x96xf32>
    %32 = vector.extract_strided_slice %19 {offsets = [0, 192], sizes = [2, 96], strides = [1, 1]} : vector<2x384xf32> to vector<2x96xf32>
    %33 = math.tanh %32 : vector<2x96xf32>
    %34 = vector.extract_strided_slice %19 {offsets = [0, 288], sizes = [2, 96], strides = [1, 1]} : vector<2x384xf32> to vector<2x96xf32>
    %35 = arith.negf %34 : vector<2x96xf32>
    %36 = math.exp %35 : vector<2x96xf32>
    %cst_21 = arith.constant 1.000000e+00 : f32
    %37 = vector.broadcast %cst_21 : f32 to vector<2x96xf32>
    %38 = arith.addf %37, %36 : vector<2x96xf32>
    %39 = arith.divf %37, %38 : vector<2x96xf32>
    %40 = arith.mulf %31, %14 : vector<2x96xf32>
    %41 = arith.mulf %25, %33 : vector<2x96xf32>
    %42 = arith.addf %40, %41 : vector<2x96xf32>
    %43 = math.tanh %42 : vector<2x96xf32>
    %44 = arith.mulf %39, %43 : vector<2x96xf32>
    %45 = vector.extract_strided_slice %10 {offsets = [14, 0], sizes = [2, 384], strides = [1, 1]} : vector<16x384xf32> to vector<2x384xf32>
    %cst_22 = arith.constant dense<0.000000e+00> : vector<2x384xf32>
    %46 = tpu.matmul %15, %12, %cst_22 {dimension_numbers = #tpu.dot_dimension_numbers<[1], [0], [0], [1], [0, 0, 1, 1], [], []>} : vector<2x96xf32>, vector<96x384xf32>, vector<2x384xf32> -> vector<2x384xf32>
    %47 = arith.addf %45, %46 : vector<2x384xf32>
    %48 = vector.extract_strided_slice %47 {offsets = [0, 0], sizes = [2, 96], strides = [1, 1]} : vector<2x384xf32> to vector<2x96xf32>
    %49 = arith.negf %48 : vector<2x96xf32>
    %50 = math.exp %49 : vector<2x96xf32>
    %cst_23 = arith.constant 1.000000e+00 : f32
    %51 = vector.broadcast %cst_23 : f32 to vector<2x96xf32>
    %52 = arith.addf %51, %50 : vector<2x96xf32>
    %53 = arith.divf %51, %52 : vector<2x96xf32>
    %54 = vector.extract_strided_slice %47 {offsets = [0, 96], sizes = [2, 96], strides = [1, 1]} : vector<2x384xf32> to vector<2x96xf32>
    %55 = arith.negf %54 : vector<2x96xf32>
    %56 = math.exp %55 : vector<2x96xf32>
    %cst_24 = arith.constant 1.000000e+00 : f32
    %57 = vector.broadcast %cst_24 : f32 to vector<2x96xf32>
    %58 = arith.addf %57, %56 : vector<2x96xf32>
    %59 = arith.divf %57, %58 : vector<2x96xf32>
    %60 = vector.extract_strided_slice %47 {offsets = [0, 192], sizes = [2, 96], strides = [1, 1]} : vector<2x384xf32> to vector<2x96xf32>
    %61 = math.tanh %60 : vector<2x96xf32>
    %62 = vector.extract_strided_slice %47 {offsets = [0, 288], sizes = [2, 96], strides = [1, 1]} : vector<2x384xf32> to vector<2x96xf32>
    %63 = arith.negf %62 : vector<2x96xf32>
    %64 = math.exp %63 : vector<2x96xf32>
    %cst_25 = arith.constant 1.000000e+00 : f32
    %65 = vector.broadcast %cst_25 : f32 to vector<2x96xf32>
    %66 = arith.addf %65, %64 : vector<2x96xf32>
    %67 = arith.divf %65, %66 : vector<2x96xf32>
    %68 = arith.mulf %59, %16 : vector<2x96xf32>
    %69 = arith.mulf %53, %61 : vector<2x96xf32>
    %70 = arith.addf %68, %69 : vector<2x96xf32>
    %71 = math.tanh %70 : vector<2x96xf32>
    %72 = arith.mulf %67, %71 : vector<2x96xf32>
    %73 = vector.extract_strided_slice %5 {offsets = [2, 0], sizes = [2, 384], strides = [1, 1]} : vector<16x384xf32> to vector<2x384xf32>
    %cst_26 = arith.constant dense<0.000000e+00> : vector<2x384xf32>
    %74 = tpu.matmul %44, %11, %cst_26 {dimension_numbers = #tpu.dot_dimension_numbers<[1], [0], [0], [1], [0, 0, 1, 1], [], []>} : vector<2x96xf32>, vector<96x384xf32>, vector<2x384xf32> -> vector<2x384xf32>
    %75 = arith.addf %73, %74 : vector<2x384xf32>
    %76 = vector.extract_strided_slice %75 {offsets = [0, 0], sizes = [2, 96], strides = [1, 1]} : vector<2x384xf32> to vector<2x96xf32>
    %77 = arith.negf %76 : vector<2x96xf32>
    %78 = math.exp %77 : vector<2x96xf32>
    %cst_27 = arith.constant 1.000000e+00 : f32
    %79 = vector.broadcast %cst_27 : f32 to vector<2x96xf32>
    %80 = arith.addf %79, %78 : vector<2x96xf32>
    %81 = arith.divf %79, %80 : vector<2x96xf32>
    %82 = vector.extract_strided_slice %75 {offsets = [0, 96], sizes = [2, 96], strides = [1, 1]} : vector<2x384xf32> to vector<2x96xf32>
    %83 = arith.negf %82 : vector<2x96xf32>
    %84 = math.exp %83 : vector<2x96xf32>
    %cst_28 = arith.constant 1.000000e+00 : f32
    %85 = vector.broadcast %cst_28 : f32 to vector<2x96xf32>
    %86 = arith.addf %85, %84 : vector<2x96xf32>
    %87 = arith.divf %85, %86 : vector<2x96xf32>
    %88 = vector.extract_strided_slice %75 {offsets = [0, 192], sizes = [2, 96], strides = [1, 1]} : vector<2x384xf32> to vector<2x96xf32>
    %89 = math.tanh %88 : vector<2x96xf32>
    %90 = vector.extract_strided_slice %75 {offsets = [0, 288], sizes = [2, 96], strides = [1, 1]} : vector<2x384xf32> to vector<2x96xf32>
    %91 = arith.negf %90 : vector<2x96xf32>
    %92 = math.exp %91 : vector<2x96xf32>
    %cst_29 = arith.constant 1.000000e+00 : f32
    %93 = vector.broadcast %cst_29 : f32 to vector<2x96xf32>
    %94 = arith.addf %93, %92 : vector<2x96xf32>
    %95 = arith.divf %93, %94 : vector<2x96xf32>
    %96 = arith.mulf %87, %42 : vector<2x96xf32>
    %97 = arith.mulf %81, %89 : vector<2x96xf32>
    %98 = arith.addf %96, %97 : vector<2x96xf32>
    %99 = math.tanh %98 : vector<2x96xf32>
    %100 = arith.mulf %95, %99 : vector<2x96xf32>
    %101 = vector.extract_strided_slice %10 {offsets = [12, 0], sizes = [2, 384], strides = [1, 1]} : vector<16x384xf32> to vector<2x384xf32>
    %cst_30 = arith.constant dense<0.000000e+00> : vector<2x384xf32>
    %102 = tpu.matmul %72, %12, %cst_30 {dimension_numbers = #tpu.dot_dimension_numbers<[1], [0], [0], [1], [0, 0, 1, 1], [], []>} : vector<2x96xf32>, vector<96x384xf32>, vector<2x384xf32> -> vector<2x384xf32>
    %103 = arith.addf %101, %102 : vector<2x384xf32>
    %104 = vector.extract_strided_slice %103 {offsets = [0, 0], sizes = [2, 96], strides = [1, 1]} : vector<2x384xf32> to vector<2x96xf32>
    %105 = arith.negf %104 : vector<2x96xf32>
    %106 = math.exp %105 : vector<2x96xf32>
    %cst_31 = arith.constant 1.000000e+00 : f32
    %107 = vector.broadcast %cst_31 : f32 to vector<2x96xf32>
    %108 = arith.addf %107, %106 : vector<2x96xf32>
    %109 = arith.divf %107, %108 : vector<2x96xf32>
    %110 = vector.extract_strided_slice %103 {offsets = [0, 96], sizes = [2, 96], strides = [1, 1]} : vector<2x384xf32> to vector<2x96xf32>
    %111 = arith.negf %110 : vector<2x96xf32>
    %112 = math.exp %111 : vector<2x96xf32>
    %cst_32 = arith.constant 1.000000e+00 : f32
    %113 = vector.broadcast %cst_32 : f32 to vector<2x96xf32>
    %114 = arith.addf %113, %112 : vector<2x96xf32>
    %115 = arith.divf %113, %114 : vector<2x96xf32>
    %116 = vector.extract_strided_slice %103 {offsets = [0, 192], sizes = [2, 96], strides = [1, 1]} : vector<2x384xf32> to vector<2x96xf32>
    %117 = math.tanh %116 : vector<2x96xf32>
    %118 = vector.extract_strided_slice %103 {offsets = [0, 288], sizes = [2, 96], strides = [1, 1]} : vector<2x384xf32> to vector<2x96xf32>
    %119 = arith.negf %118 : vector<2x96xf32>
    %120 = math.exp %119 : vector<2x96xf32>
    %cst_33 = arith.constant 1.000000e+00 : f32
    %121 = vector.broadcast %cst_33 : f32 to vector<2x96xf32>
    %122 = arith.addf %121, %120 : vector<2x96xf32>
    %123 = arith.divf %121, %122 : vector<2x96xf32>
    %124 = arith.mulf %115, %70 : vector<2x96xf32>
    %125 = arith.mulf %109, %117 : vector<2x96xf32>
    %126 = arith.addf %124, %125 : vector<2x96xf32>
    %127 = math.tanh %126 : vector<2x96xf32>
    %128 = arith.mulf %123, %127 : vector<2x96xf32>
    %129 = vector.extract_strided_slice %5 {offsets = [4, 0], sizes = [2, 384], strides = [1, 1]} : vector<16x384xf32> to vector<2x384xf32>
    %cst_34 = arith.constant dense<0.000000e+00> : vector<2x384xf32>
    %130 = tpu.matmul %100, %11, %cst_34 {dimension_numbers = #tpu.dot_dimension_numbers<[1], [0], [0], [1], [0, 0, 1, 1], [], []>} : vector<2x96xf32>, vector<96x384xf32>, vector<2x384xf32> -> vector<2x384xf32>
    %131 = arith.addf %129, %130 : vector<2x384xf32>
    %132 = vector.extract_strided_slice %131 {offsets = [0, 0], sizes = [2, 96], strides = [1, 1]} : vector<2x384xf32> to vector<2x96xf32>
    %133 = arith.negf %132 : vector<2x96xf32>
    %134 = math.exp %133 : vector<2x96xf32>
    %cst_35 = arith.constant 1.000000e+00 : f32
    %135 = vector.broadcast %cst_35 : f32 to vector<2x96xf32>
    %136 = arith.addf %135, %134 : vector<2x96xf32>
    %137 = arith.divf %135, %136 : vector<2x96xf32>
    %138 = vector.extract_strided_slice %131 {offsets = [0, 96], sizes = [2, 96], strides = [1, 1]} : vector<2x384xf32> to vector<2x96xf32>
    %139 = arith.negf %138 : vector<2x96xf32>
    %140 = math.exp %139 : vector<2x96xf32>
    %cst_36 = arith.constant 1.000000e+00 : f32
    %141 = vector.broadcast %cst_36 : f32 to vector<2x96xf32>
    %142 = arith.addf %141, %140 : vector<2x96xf32>
    %143 = arith.divf %141, %142 : vector<2x96xf32>
    %144 = vector.extract_strided_slice %131 {offsets = [0, 192], sizes = [2, 96], strides = [1, 1]} : vector<2x384xf32> to vector<2x96xf32>
    %145 = math.tanh %144 : vector<2x96xf32>
    %146 = vector.extract_strided_slice %131 {offsets = [0, 288], sizes = [2, 96], strides = [1, 1]} : vector<2x384xf32> to vector<2x96xf32>
    %147 = arith.negf %146 : vector<2x96xf32>
    %148 = math.exp %147 : vector<2x96xf32>
    %cst_37 = arith.constant 1.000000e+00 : f32
    %149 = vector.broadcast %cst_37 : f32 to vector<2x96xf32>
    %150 = arith.addf %149, %148 : vector<2x96xf32>
    %151 = arith.divf %149, %150 : vector<2x96xf32>
    %152 = arith.mulf %143, %98 : vector<2x96xf32>
    %153 = arith.mulf %137, %145 : vector<2x96xf32>
    %154 = arith.addf %152, %153 : vector<2x96xf32>
    %155 = math.tanh %154 : vector<2x96xf32>
    %156 = arith.mulf %151, %155 : vector<2x96xf32>
    %157 = vector.extract_strided_slice %10 {offsets = [10, 0], sizes = [2, 384], strides = [1, 1]} : vector<16x384xf32> to vector<2x384xf32>
    %cst_38 = arith.constant dense<0.000000e+00> : vector<2x384xf32>
    %158 = tpu.matmul %128, %12, %cst_38 {dimension_numbers = #tpu.dot_dimension_numbers<[1], [0], [0], [1], [0, 0, 1, 1], [], []>} : vector<2x96xf32>, vector<96x384xf32>, vector<2x384xf32> -> vector<2x384xf32>
    %159 = arith.addf %157, %158 : vector<2x384xf32>
    %160 = vector.extract_strided_slice %159 {offsets = [0, 0], sizes = [2, 96], strides = [1, 1]} : vector<2x384xf32> to vector<2x96xf32>
    %161 = arith.negf %160 : vector<2x96xf32>
    %162 = math.exp %161 : vector<2x96xf32>
    %cst_39 = arith.constant 1.000000e+00 : f32
    %163 = vector.broadcast %cst_39 : f32 to vector<2x96xf32>
    %164 = arith.addf %163, %162 : vector<2x96xf32>
    %165 = arith.divf %163, %164 : vector<2x96xf32>
    %166 = vector.extract_strided_slice %159 {offsets = [0, 96], sizes = [2, 96], strides = [1, 1]} : vector<2x384xf32> to vector<2x96xf32>
    %167 = arith.negf %166 : vector<2x96xf32>
    %168 = math.exp %167 : vector<2x96xf32>
    %cst_40 = arith.constant 1.000000e+00 : f32
    %169 = vector.broadcast %cst_40 : f32 to vector<2x96xf32>
    %170 = arith.addf %169, %168 : vector<2x96xf32>
    %171 = arith.divf %169, %170 : vector<2x96xf32>
    %172 = vector.extract_strided_slice %159 {offsets = [0, 192], sizes = [2, 96], strides = [1, 1]} : vector<2x384xf32> to vector<2x96xf32>
    %173 = math.tanh %172 : vector<2x96xf32>
    %174 = vector.extract_strided_slice %159 {offsets = [0, 288], sizes = [2, 96], strides = [1, 1]} : vector<2x384xf32> to vector<2x96xf32>
    %175 = arith.negf %174 : vector<2x96xf32>
    %176 = math.exp %175 : vector<2x96xf32>
    %cst_41 = arith.constant 1.000000e+00 : f32
    %177 = vector.broadcast %cst_41 : f32 to vector<2x96xf32>
    %178 = arith.addf %177, %176 : vector<2x96xf32>
    %179 = arith.divf %177, %178 : vector<2x96xf32>
    %180 = arith.mulf %171, %126 : vector<2x96xf32>
    %181 = arith.mulf %165, %173 : vector<2x96xf32>
    %182 = arith.addf %180, %181 : vector<2x96xf32>
    %183 = math.tanh %182 : vector<2x96xf32>
    %184 = arith.mulf %179, %183 : vector<2x96xf32>
    %185 = vector.extract_strided_slice %5 {offsets = [6, 0], sizes = [2, 384], strides = [1, 1]} : vector<16x384xf32> to vector<2x384xf32>
    %cst_42 = arith.constant dense<0.000000e+00> : vector<2x384xf32>
    %186 = tpu.matmul %156, %11, %cst_42 {dimension_numbers = #tpu.dot_dimension_numbers<[1], [0], [0], [1], [0, 0, 1, 1], [], []>} : vector<2x96xf32>, vector<96x384xf32>, vector<2x384xf32> -> vector<2x384xf32>
    %187 = arith.addf %185, %186 : vector<2x384xf32>
    %188 = vector.extract_strided_slice %187 {offsets = [0, 0], sizes = [2, 96], strides = [1, 1]} : vector<2x384xf32> to vector<2x96xf32>
    %189 = arith.negf %188 : vector<2x96xf32>
    %190 = math.exp %189 : vector<2x96xf32>
    %cst_43 = arith.constant 1.000000e+00 : f32
    %191 = vector.broadcast %cst_43 : f32 to vector<2x96xf32>
    %192 = arith.addf %191, %190 : vector<2x96xf32>
    %193 = arith.divf %191, %192 : vector<2x96xf32>
    %194 = vector.extract_strided_slice %187 {offsets = [0, 96], sizes = [2, 96], strides = [1, 1]} : vector<2x384xf32> to vector<2x96xf32>
    %195 = arith.negf %194 : vector<2x96xf32>
    %196 = math.exp %195 : vector<2x96xf32>
    %cst_44 = arith.constant 1.000000e+00 : f32
    %197 = vector.broadcast %cst_44 : f32 to vector<2x96xf32>
    %198 = arith.addf %197, %196 : vector<2x96xf32>
    %199 = arith.divf %197, %198 : vector<2x96xf32>
    %200 = vector.extract_strided_slice %187 {offsets = [0, 192], sizes = [2, 96], strides = [1, 1]} : vector<2x384xf32> to vector<2x96xf32>
    %201 = math.tanh %200 : vector<2x96xf32>
    %202 = vector.extract_strided_slice %187 {offsets = [0, 288], sizes = [2, 96], strides = [1, 1]} : vector<2x384xf32> to vector<2x96xf32>
    %203 = arith.negf %202 : vector<2x96xf32>
    %204 = math.exp %203 : vector<2x96xf32>
    %cst_45 = arith.constant 1.000000e+00 : f32
    %205 = vector.broadcast %cst_45 : f32 to vector<2x96xf32>
    %206 = arith.addf %205, %204 : vector<2x96xf32>
    %207 = arith.divf %205, %206 : vector<2x96xf32>
    %208 = arith.mulf %199, %154 : vector<2x96xf32>
    %209 = arith.mulf %193, %201 : vector<2x96xf32>
    %210 = arith.addf %208, %209 : vector<2x96xf32>
    %211 = math.tanh %210 : vector<2x96xf32>
    %212 = arith.mulf %207, %211 : vector<2x96xf32>
    %213 = vector.extract_strided_slice %10 {offsets = [8, 0], sizes = [2, 384], strides = [1, 1]} : vector<16x384xf32> to vector<2x384xf32>
    %cst_46 = arith.constant dense<0.000000e+00> : vector<2x384xf32>
    %214 = tpu.matmul %184, %12, %cst_46 {dimension_numbers = #tpu.dot_dimension_numbers<[1], [0], [0], [1], [0, 0, 1, 1], [], []>} : vector<2x96xf32>, vector<96x384xf32>, vector<2x384xf32> -> vector<2x384xf32>
    %215 = arith.addf %213, %214 : vector<2x384xf32>
    %216 = vector.extract_strided_slice %215 {offsets = [0, 0], sizes = [2, 96], strides = [1, 1]} : vector<2x384xf32> to vector<2x96xf32>
    %217 = arith.negf %216 : vector<2x96xf32>
    %218 = math.exp %217 : vector<2x96xf32>
    %cst_47 = arith.constant 1.000000e+00 : f32
    %219 = vector.broadcast %cst_47 : f32 to vector<2x96xf32>
    %220 = arith.addf %219, %218 : vector<2x96xf32>
    %221 = arith.divf %219, %220 : vector<2x96xf32>
    %222 = vector.extract_strided_slice %215 {offsets = [0, 96], sizes = [2, 96], strides = [1, 1]} : vector<2x384xf32> to vector<2x96xf32>
    %223 = arith.negf %222 : vector<2x96xf32>
    %224 = math.exp %223 : vector<2x96xf32>
    %cst_48 = arith.constant 1.000000e+00 : f32
    %225 = vector.broadcast %cst_48 : f32 to vector<2x96xf32>
    %226 = arith.addf %225, %224 : vector<2x96xf32>
    %227 = arith.divf %225, %226 : vector<2x96xf32>
    %228 = vector.extract_strided_slice %215 {offsets = [0, 192], sizes = [2, 96], strides = [1, 1]} : vector<2x384xf32> to vector<2x96xf32>
    %229 = math.tanh %228 : vector<2x96xf32>
    %230 = vector.extract_strided_slice %215 {offsets = [0, 288], sizes = [2, 96], strides = [1, 1]} : vector<2x384xf32> to vector<2x96xf32>
    %231 = arith.negf %230 : vector<2x96xf32>
    %232 = math.exp %231 : vector<2x96xf32>
    %cst_49 = arith.constant 1.000000e+00 : f32
    %233 = vector.broadcast %cst_49 : f32 to vector<2x96xf32>
    %234 = arith.addf %233, %232 : vector<2x96xf32>
    %235 = arith.divf %233, %234 : vector<2x96xf32>
    %236 = arith.mulf %227, %182 : vector<2x96xf32>
    %237 = arith.mulf %221, %229 : vector<2x96xf32>
    %238 = arith.addf %236, %237 : vector<2x96xf32>
    %239 = math.tanh %238 : vector<2x96xf32>
    %240 = arith.mulf %235, %239 : vector<2x96xf32>
    %241 = vector.extract_strided_slice %5 {offsets = [8, 0], sizes = [2, 384], strides = [1, 1]} : vector<16x384xf32> to vector<2x384xf32>
    %cst_50 = arith.constant dense<0.000000e+00> : vector<2x384xf32>
    %242 = tpu.matmul %212, %11, %cst_50 {dimension_numbers = #tpu.dot_dimension_numbers<[1], [0], [0], [1], [0, 0, 1, 1], [], []>} : vector<2x96xf32>, vector<96x384xf32>, vector<2x384xf32> -> vector<2x384xf32>
    %243 = arith.addf %241, %242 : vector<2x384xf32>
    %244 = vector.extract_strided_slice %243 {offsets = [0, 0], sizes = [2, 96], strides = [1, 1]} : vector<2x384xf32> to vector<2x96xf32>
    %245 = arith.negf %244 : vector<2x96xf32>
    %246 = math.exp %245 : vector<2x96xf32>
    %cst_51 = arith.constant 1.000000e+00 : f32
    %247 = vector.broadcast %cst_51 : f32 to vector<2x96xf32>
    %248 = arith.addf %247, %246 : vector<2x96xf32>
    %249 = arith.divf %247, %248 : vector<2x96xf32>
    %250 = vector.extract_strided_slice %243 {offsets = [0, 96], sizes = [2, 96], strides = [1, 1]} : vector<2x384xf32> to vector<2x96xf32>
    %251 = arith.negf %250 : vector<2x96xf32>
    %252 = math.exp %251 : vector<2x96xf32>
    %cst_52 = arith.constant 1.000000e+00 : f32
    %253 = vector.broadcast %cst_52 : f32 to vector<2x96xf32>
    %254 = arith.addf %253, %252 : vector<2x96xf32>
    %255 = arith.divf %253, %254 : vector<2x96xf32>
    %256 = vector.extract_strided_slice %243 {offsets = [0, 192], sizes = [2, 96], strides = [1, 1]} : vector<2x384xf32> to vector<2x96xf32>
    %257 = math.tanh %256 : vector<2x96xf32>
    %258 = vector.extract_strided_slice %243 {offsets = [0, 288], sizes = [2, 96], strides = [1, 1]} : vector<2x384xf32> to vector<2x96xf32>
    %259 = arith.negf %258 : vector<2x96xf32>
    %260 = math.exp %259 : vector<2x96xf32>
    %cst_53 = arith.constant 1.000000e+00 : f32
    %261 = vector.broadcast %cst_53 : f32 to vector<2x96xf32>
    %262 = arith.addf %261, %260 : vector<2x96xf32>
    %263 = arith.divf %261, %262 : vector<2x96xf32>
    %264 = arith.mulf %255, %210 : vector<2x96xf32>
    %265 = arith.mulf %249, %257 : vector<2x96xf32>
    %266 = arith.addf %264, %265 : vector<2x96xf32>
    %267 = math.tanh %266 : vector<2x96xf32>
    %268 = arith.mulf %263, %267 : vector<2x96xf32>
    %269 = vector.extract_strided_slice %10 {offsets = [6, 0], sizes = [2, 384], strides = [1, 1]} : vector<16x384xf32> to vector<2x384xf32>
    %cst_54 = arith.constant dense<0.000000e+00> : vector<2x384xf32>
    %270 = tpu.matmul %240, %12, %cst_54 {dimension_numbers = #tpu.dot_dimension_numbers<[1], [0], [0], [1], [0, 0, 1, 1], [], []>} : vector<2x96xf32>, vector<96x384xf32>, vector<2x384xf32> -> vector<2x384xf32>
    %271 = arith.addf %269, %270 : vector<2x384xf32>
    %272 = vector.extract_strided_slice %271 {offsets = [0, 0], sizes = [2, 96], strides = [1, 1]} : vector<2x384xf32> to vector<2x96xf32>
    %273 = arith.negf %272 : vector<2x96xf32>
    %274 = math.exp %273 : vector<2x96xf32>
    %cst_55 = arith.constant 1.000000e+00 : f32
    %275 = vector.broadcast %cst_55 : f32 to vector<2x96xf32>
    %276 = arith.addf %275, %274 : vector<2x96xf32>
    %277 = arith.divf %275, %276 : vector<2x96xf32>
    %278 = vector.extract_strided_slice %271 {offsets = [0, 96], sizes = [2, 96], strides = [1, 1]} : vector<2x384xf32> to vector<2x96xf32>
    %279 = arith.negf %278 : vector<2x96xf32>
    %280 = math.exp %279 : vector<2x96xf32>
    %cst_56 = arith.constant 1.000000e+00 : f32
    %281 = vector.broadcast %cst_56 : f32 to vector<2x96xf32>
    %282 = arith.addf %281, %280 : vector<2x96xf32>
    %283 = arith.divf %281, %282 : vector<2x96xf32>
    %284 = vector.extract_strided_slice %271 {offsets = [0, 192], sizes = [2, 96], strides = [1, 1]} : vector<2x384xf32> to vector<2x96xf32>
    %285 = math.tanh %284 : vector<2x96xf32>
    %286 = vector.extract_strided_slice %271 {offsets = [0, 288], sizes = [2, 96], strides = [1, 1]} : vector<2x384xf32> to vector<2x96xf32>
    %287 = arith.negf %286 : vector<2x96xf32>
    %288 = math.exp %287 : vector<2x96xf32>
    %cst_57 = arith.constant 1.000000e+00 : f32
    %289 = vector.broadcast %cst_57 : f32 to vector<2x96xf32>
    %290 = arith.addf %289, %288 : vector<2x96xf32>
    %291 = arith.divf %289, %290 : vector<2x96xf32>
    %292 = arith.mulf %283, %238 : vector<2x96xf32>
    %293 = arith.mulf %277, %285 : vector<2x96xf32>
    %294 = arith.addf %292, %293 : vector<2x96xf32>
    %295 = math.tanh %294 : vector<2x96xf32>
    %296 = arith.mulf %291, %295 : vector<2x96xf32>
    %297 = vector.extract_strided_slice %5 {offsets = [10, 0], sizes = [2, 384], strides = [1, 1]} : vector<16x384xf32> to vector<2x384xf32>
    %cst_58 = arith.constant dense<0.000000e+00> : vector<2x384xf32>
    %298 = tpu.matmul %268, %11, %cst_58 {dimension_numbers = #tpu.dot_dimension_numbers<[1], [0], [0], [1], [0, 0, 1, 1], [], []>} : vector<2x96xf32>, vector<96x384xf32>, vector<2x384xf32> -> vector<2x384xf32>
    %299 = arith.addf %297, %298 : vector<2x384xf32>
    %300 = vector.extract_strided_slice %299 {offsets = [0, 0], sizes = [2, 96], strides = [1, 1]} : vector<2x384xf32> to vector<2x96xf32>
    %301 = arith.negf %300 : vector<2x96xf32>
    %302 = math.exp %301 : vector<2x96xf32>
    %cst_59 = arith.constant 1.000000e+00 : f32
    %303 = vector.broadcast %cst_59 : f32 to vector<2x96xf32>
    %304 = arith.addf %303, %302 : vector<2x96xf32>
    %305 = arith.divf %303, %304 : vector<2x96xf32>
    %306 = vector.extract_strided_slice %299 {offsets = [0, 96], sizes = [2, 96], strides = [1, 1]} : vector<2x384xf32> to vector<2x96xf32>
    %307 = arith.negf %306 : vector<2x96xf32>
    %308 = math.exp %307 : vector<2x96xf32>
    %cst_60 = arith.constant 1.000000e+00 : f32
    %309 = vector.broadcast %cst_60 : f32 to vector<2x96xf32>
    %310 = arith.addf %309, %308 : vector<2x96xf32>
    %311 = arith.divf %309, %310 : vector<2x96xf32>
    %312 = vector.extract_strided_slice %299 {offsets = [0, 192], sizes = [2, 96], strides = [1, 1]} : vector<2x384xf32> to vector<2x96xf32>
    %313 = math.tanh %312 : vector<2x96xf32>
    %314 = vector.extract_strided_slice %299 {offsets = [0, 288], sizes = [2, 96], strides = [1, 1]} : vector<2x384xf32> to vector<2x96xf32>
    %315 = arith.negf %314 : vector<2x96xf32>
    %316 = math.exp %315 : vector<2x96xf32>
    %cst_61 = arith.constant 1.000000e+00 : f32
    %317 = vector.broadcast %cst_61 : f32 to vector<2x96xf32>
    %318 = arith.addf %317, %316 : vector<2x96xf32>
    %319 = arith.divf %317, %318 : vector<2x96xf32>
    %320 = arith.mulf %311, %266 : vector<2x96xf32>
    %321 = arith.mulf %305, %313 : vector<2x96xf32>
    %322 = arith.addf %320, %321 : vector<2x96xf32>
    %323 = math.tanh %322 : vector<2x96xf32>
    %324 = arith.mulf %319, %323 : vector<2x96xf32>
    %325 = vector.extract_strided_slice %10 {offsets = [4, 0], sizes = [2, 384], strides = [1, 1]} : vector<16x384xf32> to vector<2x384xf32>
    %cst_62 = arith.constant dense<0.000000e+00> : vector<2x384xf32>
    %326 = tpu.matmul %296, %12, %cst_62 {dimension_numbers = #tpu.dot_dimension_numbers<[1], [0], [0], [1], [0, 0, 1, 1], [], []>} : vector<2x96xf32>, vector<96x384xf32>, vector<2x384xf32> -> vector<2x384xf32>
    %327 = arith.addf %325, %326 : vector<2x384xf32>
    %328 = vector.extract_strided_slice %327 {offsets = [0, 0], sizes = [2, 96], strides = [1, 1]} : vector<2x384xf32> to vector<2x96xf32>
    %329 = arith.negf %328 : vector<2x96xf32>
    %330 = math.exp %329 : vector<2x96xf32>
    %cst_63 = arith.constant 1.000000e+00 : f32
    %331 = vector.broadcast %cst_63 : f32 to vector<2x96xf32>
    %332 = arith.addf %331, %330 : vector<2x96xf32>
    %333 = arith.divf %331, %332 : vector<2x96xf32>
    %334 = vector.extract_strided_slice %327 {offsets = [0, 96], sizes = [2, 96], strides = [1, 1]} : vector<2x384xf32> to vector<2x96xf32>
    %335 = arith.negf %334 : vector<2x96xf32>
    %336 = math.exp %335 : vector<2x96xf32>
    %cst_64 = arith.constant 1.000000e+00 : f32
    %337 = vector.broadcast %cst_64 : f32 to vector<2x96xf32>
    %338 = arith.addf %337, %336 : vector<2x96xf32>
    %339 = arith.divf %337, %338 : vector<2x96xf32>
    %340 = vector.extract_strided_slice %327 {offsets = [0, 192], sizes = [2, 96], strides = [1, 1]} : vector<2x384xf32> to vector<2x96xf32>
    %341 = math.tanh %340 : vector<2x96xf32>
    %342 = vector.extract_strided_slice %327 {offsets = [0, 288], sizes = [2, 96], strides = [1, 1]} : vector<2x384xf32> to vector<2x96xf32>
    %343 = arith.negf %342 : vector<2x96xf32>
    %344 = math.exp %343 : vector<2x96xf32>
    %cst_65 = arith.constant 1.000000e+00 : f32
    %345 = vector.broadcast %cst_65 : f32 to vector<2x96xf32>
    %346 = arith.addf %345, %344 : vector<2x96xf32>
    %347 = arith.divf %345, %346 : vector<2x96xf32>
    %348 = arith.mulf %339, %294 : vector<2x96xf32>
    %349 = arith.mulf %333, %341 : vector<2x96xf32>
    %350 = arith.addf %348, %349 : vector<2x96xf32>
    %351 = math.tanh %350 : vector<2x96xf32>
    %352 = arith.mulf %347, %351 : vector<2x96xf32>
    %353 = vector.extract_strided_slice %5 {offsets = [12, 0], sizes = [2, 384], strides = [1, 1]} : vector<16x384xf32> to vector<2x384xf32>
    %cst_66 = arith.constant dense<0.000000e+00> : vector<2x384xf32>
    %354 = tpu.matmul %324, %11, %cst_66 {dimension_numbers = #tpu.dot_dimension_numbers<[1], [0], [0], [1], [0, 0, 1, 1], [], []>} : vector<2x96xf32>, vector<96x384xf32>, vector<2x384xf32> -> vector<2x384xf32>
    %355 = arith.addf %353, %354 : vector<2x384xf32>
    %356 = vector.extract_strided_slice %355 {offsets = [0, 0], sizes = [2, 96], strides = [1, 1]} : vector<2x384xf32> to vector<2x96xf32>
    %357 = arith.negf %356 : vector<2x96xf32>
    %358 = math.exp %357 : vector<2x96xf32>
    %cst_67 = arith.constant 1.000000e+00 : f32
    %359 = vector.broadcast %cst_67 : f32 to vector<2x96xf32>
    %360 = arith.addf %359, %358 : vector<2x96xf32>
    %361 = arith.divf %359, %360 : vector<2x96xf32>
    %362 = vector.extract_strided_slice %355 {offsets = [0, 96], sizes = [2, 96], strides = [1, 1]} : vector<2x384xf32> to vector<2x96xf32>
    %363 = arith.negf %362 : vector<2x96xf32>
    %364 = math.exp %363 : vector<2x96xf32>
    %cst_68 = arith.constant 1.000000e+00 : f32
    %365 = vector.broadcast %cst_68 : f32 to vector<2x96xf32>
    %366 = arith.addf %365, %364 : vector<2x96xf32>
    %367 = arith.divf %365, %366 : vector<2x96xf32>
    %368 = vector.extract_strided_slice %355 {offsets = [0, 192], sizes = [2, 96], strides = [1, 1]} : vector<2x384xf32> to vector<2x96xf32>
    %369 = math.tanh %368 : vector<2x96xf32>
    %370 = vector.extract_strided_slice %355 {offsets = [0, 288], sizes = [2, 96], strides = [1, 1]} : vector<2x384xf32> to vector<2x96xf32>
    %371 = arith.negf %370 : vector<2x96xf32>
    %372 = math.exp %371 : vector<2x96xf32>
    %cst_69 = arith.constant 1.000000e+00 : f32
    %373 = vector.broadcast %cst_69 : f32 to vector<2x96xf32>
    %374 = arith.addf %373, %372 : vector<2x96xf32>
    %375 = arith.divf %373, %374 : vector<2x96xf32>
    %376 = arith.mulf %367, %322 : vector<2x96xf32>
    %377 = arith.mulf %361, %369 : vector<2x96xf32>
    %378 = arith.addf %376, %377 : vector<2x96xf32>
    %379 = math.tanh %378 : vector<2x96xf32>
    %380 = arith.mulf %375, %379 : vector<2x96xf32>
    %381 = vector.extract_strided_slice %10 {offsets = [2, 0], sizes = [2, 384], strides = [1, 1]} : vector<16x384xf32> to vector<2x384xf32>
    %cst_70 = arith.constant dense<0.000000e+00> : vector<2x384xf32>
    %382 = tpu.matmul %352, %12, %cst_70 {dimension_numbers = #tpu.dot_dimension_numbers<[1], [0], [0], [1], [0, 0, 1, 1], [], []>} : vector<2x96xf32>, vector<96x384xf32>, vector<2x384xf32> -> vector<2x384xf32>
    %383 = arith.addf %381, %382 : vector<2x384xf32>
    %384 = vector.extract_strided_slice %383 {offsets = [0, 0], sizes = [2, 96], strides = [1, 1]} : vector<2x384xf32> to vector<2x96xf32>
    %385 = arith.negf %384 : vector<2x96xf32>
    %386 = math.exp %385 : vector<2x96xf32>
    %cst_71 = arith.constant 1.000000e+00 : f32
    %387 = vector.broadcast %cst_71 : f32 to vector<2x96xf32>
    %388 = arith.addf %387, %386 : vector<2x96xf32>
    %389 = arith.divf %387, %388 : vector<2x96xf32>
    %390 = vector.extract_strided_slice %383 {offsets = [0, 96], sizes = [2, 96], strides = [1, 1]} : vector<2x384xf32> to vector<2x96xf32>
    %391 = arith.negf %390 : vector<2x96xf32>
    %392 = math.exp %391 : vector<2x96xf32>
    %cst_72 = arith.constant 1.000000e+00 : f32
    %393 = vector.broadcast %cst_72 : f32 to vector<2x96xf32>
    %394 = arith.addf %393, %392 : vector<2x96xf32>
    %395 = arith.divf %393, %394 : vector<2x96xf32>
    %396 = vector.extract_strided_slice %383 {offsets = [0, 192], sizes = [2, 96], strides = [1, 1]} : vector<2x384xf32> to vector<2x96xf32>
    %397 = math.tanh %396 : vector<2x96xf32>
    %398 = vector.extract_strided_slice %383 {offsets = [0, 288], sizes = [2, 96], strides = [1, 1]} : vector<2x384xf32> to vector<2x96xf32>
    %399 = arith.negf %398 : vector<2x96xf32>
    %400 = math.exp %399 : vector<2x96xf32>
    %cst_73 = arith.constant 1.000000e+00 : f32
    %401 = vector.broadcast %cst_73 : f32 to vector<2x96xf32>
    %402 = arith.addf %401, %400 : vector<2x96xf32>
    %403 = arith.divf %401, %402 : vector<2x96xf32>
    %404 = arith.mulf %395, %350 : vector<2x96xf32>
    %405 = arith.mulf %389, %397 : vector<2x96xf32>
    %406 = arith.addf %404, %405 : vector<2x96xf32>
    %407 = math.tanh %406 : vector<2x96xf32>
    %408 = arith.mulf %403, %407 : vector<2x96xf32>
    %409 = vector.extract_strided_slice %5 {offsets = [14, 0], sizes = [2, 384], strides = [1, 1]} : vector<16x384xf32> to vector<2x384xf32>
    %cst_74 = arith.constant dense<0.000000e+00> : vector<2x384xf32>
    %410 = tpu.matmul %380, %11, %cst_74 {dimension_numbers = #tpu.dot_dimension_numbers<[1], [0], [0], [1], [0, 0, 1, 1], [], []>} : vector<2x96xf32>, vector<96x384xf32>, vector<2x384xf32> -> vector<2x384xf32>
    %411 = arith.addf %409, %410 : vector<2x384xf32>
    %412 = vector.extract_strided_slice %411 {offsets = [0, 0], sizes = [2, 96], strides = [1, 1]} : vector<2x384xf32> to vector<2x96xf32>
    %413 = arith.negf %412 : vector<2x96xf32>
    %414 = math.exp %413 : vector<2x96xf32>
    %cst_75 = arith.constant 1.000000e+00 : f32
    %415 = vector.broadcast %cst_75 : f32 to vector<2x96xf32>
    %416 = arith.addf %415, %414 : vector<2x96xf32>
    %417 = arith.divf %415, %416 : vector<2x96xf32>
    %418 = vector.extract_strided_slice %411 {offsets = [0, 96], sizes = [2, 96], strides = [1, 1]} : vector<2x384xf32> to vector<2x96xf32>
    %419 = arith.negf %418 : vector<2x96xf32>
    %420 = math.exp %419 : vector<2x96xf32>
    %cst_76 = arith.constant 1.000000e+00 : f32
    %421 = vector.broadcast %cst_76 : f32 to vector<2x96xf32>
    %422 = arith.addf %421, %420 : vector<2x96xf32>
    %423 = arith.divf %421, %422 : vector<2x96xf32>
    %424 = vector.extract_strided_slice %411 {offsets = [0, 192], sizes = [2, 96], strides = [1, 1]} : vector<2x384xf32> to vector<2x96xf32>
    %425 = math.tanh %424 : vector<2x96xf32>
    %426 = vector.extract_strided_slice %411 {offsets = [0, 288], sizes = [2, 96], strides = [1, 1]} : vector<2x384xf32> to vector<2x96xf32>
    %427 = arith.negf %426 : vector<2x96xf32>
    %428 = math.exp %427 : vector<2x96xf32>
    %cst_77 = arith.constant 1.000000e+00 : f32
    %429 = vector.broadcast %cst_77 : f32 to vector<2x96xf32>
    %430 = arith.addf %429, %428 : vector<2x96xf32>
    %431 = arith.divf %429, %430 : vector<2x96xf32>
    %432 = arith.mulf %423, %378 : vector<2x96xf32>
    %433 = arith.mulf %417, %425 : vector<2x96xf32>
    %434 = arith.addf %432, %433 : vector<2x96xf32>
    %435 = math.tanh %434 : vector<2x96xf32>
    %436 = arith.mulf %431, %435 : vector<2x96xf32>
    %437 = vector.extract_strided_slice %10 {offsets = [0, 0], sizes = [2, 384], strides = [1, 1]} : vector<16x384xf32> to vector<2x384xf32>
    %cst_78 = arith.constant dense<0.000000e+00> : vector<2x384xf32>
    %438 = tpu.matmul %408, %12, %cst_78 {dimension_numbers = #tpu.dot_dimension_numbers<[1], [0], [0], [1], [0, 0, 1, 1], [], []>} : vector<2x96xf32>, vector<96x384xf32>, vector<2x384xf32> -> vector<2x384xf32>
    %439 = arith.addf %437, %438 : vector<2x384xf32>
    %440 = vector.extract_strided_slice %439 {offsets = [0, 0], sizes = [2, 96], strides = [1, 1]} : vector<2x384xf32> to vector<2x96xf32>
    %441 = arith.negf %440 : vector<2x96xf32>
    %442 = math.exp %441 : vector<2x96xf32>
    %cst_79 = arith.constant 1.000000e+00 : f32
    %443 = vector.broadcast %cst_79 : f32 to vector<2x96xf32>
    %444 = arith.addf %443, %442 : vector<2x96xf32>
    %445 = arith.divf %443, %444 : vector<2x96xf32>
    %446 = vector.extract_strided_slice %439 {offsets = [0, 96], sizes = [2, 96], strides = [1, 1]} : vector<2x384xf32> to vector<2x96xf32>
    %447 = arith.negf %446 : vector<2x96xf32>
    %448 = math.exp %447 : vector<2x96xf32>
    %cst_80 = arith.constant 1.000000e+00 : f32
    %449 = vector.broadcast %cst_80 : f32 to vector<2x96xf32>
    %450 = arith.addf %449, %448 : vector<2x96xf32>
    %451 = arith.divf %449, %450 : vector<2x96xf32>
    %452 = vector.extract_strided_slice %439 {offsets = [0, 192], sizes = [2, 96], strides = [1, 1]} : vector<2x384xf32> to vector<2x96xf32>
    %453 = math.tanh %452 : vector<2x96xf32>
    %454 = vector.extract_strided_slice %439 {offsets = [0, 288], sizes = [2, 96], strides = [1, 1]} : vector<2x384xf32> to vector<2x96xf32>
    %455 = arith.negf %454 : vector<2x96xf32>
    %456 = math.exp %455 : vector<2x96xf32>
    %cst_81 = arith.constant 1.000000e+00 : f32
    %457 = vector.broadcast %cst_81 : f32 to vector<2x96xf32>
    %458 = arith.addf %457, %456 : vector<2x96xf32>
    %459 = arith.divf %457, %458 : vector<2x96xf32>
    %460 = arith.mulf %451, %406 : vector<2x96xf32>
    %461 = arith.mulf %445, %453 : vector<2x96xf32>
    %462 = arith.addf %460, %461 : vector<2x96xf32>
    %463 = math.tanh %462 : vector<2x96xf32>
    %464 = arith.mulf %459, %463 : vector<2x96xf32>
    %465 = tpu.concatenate %44, %100, %156, %212, %268, %324, %380, %436 in 0 : vector<2x96xf32>, vector<2x96xf32>, vector<2x96xf32>, vector<2x96xf32>, vector<2x96xf32>, vector<2x96xf32>, vector<2x96xf32>, vector<2x96xf32> -> vector<16x96xf32>
    %466 = tpu.concatenate %464, %408, %352, %296, %240, %184, %128, %72 in 0 : vector<2x96xf32>, vector<2x96xf32>, vector<2x96xf32>, vector<2x96xf32>, vector<2x96xf32>, vector<2x96xf32>, vector<2x96xf32>, vector<2x96xf32> -> vector<16x96xf32>
    %c0_82 = arith.constant 0 : index
    %c0_83 = arith.constant 0 : index
    %467 = vector.load %arg7[%c0_82, %c0_83] : memref<96x24xf32, #tpu.memory_space<vmem>>, vector<96x24xf32>
    %cst_84 = arith.constant dense<0.000000e+00> : vector<16x24xf32>
    %468 = tpu.matmul %465, %467, %cst_84 {dimension_numbers = #tpu.dot_dimension_numbers<[1], [0], [0], [1], [0, 0, 1, 1], [], []>} : vector<16x96xf32>, vector<96x24xf32>, vector<16x24xf32> -> vector<16x24xf32>
    %c0_85 = arith.constant 0 : index
    %c0_86 = arith.constant 0 : index
    %469 = vector.load %arg8[%c0_85, %c0_86] : memref<96x24xf32, #tpu.memory_space<vmem>>, vector<96x24xf32>
    %cst_87 = arith.constant dense<0.000000e+00> : vector<16x24xf32>
    %470 = tpu.matmul %466, %469, %cst_87 {dimension_numbers = #tpu.dot_dimension_numbers<[1], [0], [0], [1], [0, 0, 1, 1], [], []>} : vector<16x96xf32>, vector<96x24xf32>, vector<16x24xf32> -> vector<16x24xf32>
    %471 = arith.addf %468, %470 : vector<16x24xf32>
    %c0_88 = arith.constant 0 : index
    %c0_89 = arith.constant 0 : index
    %472 = vector.load %arg9[%c0_88, %c0_89] : memref<1x24xf32, #tpu.memory_space<vmem>>, vector<1x24xf32>
    %473 = vector.broadcast %472 : vector<1x24xf32> to vector<16x24xf32>
    %474 = arith.addf %471, %473 : vector<16x24xf32>
    %cst_90 = arith.constant dense<0xFF800000> : vector<16xf32>
    %475 = vector.multi_reduction <maximumf>, %474, %cst_90 [1] : vector<16x24xf32> to vector<16xf32>
    %476 = vector.shape_cast %475 : vector<16xf32> to vector<16x1xf32>
    %cst_91 = arith.constant dense<0xFF800000> : vector<1xf32>
    %477 = vector.multi_reduction <maximumf>, %476, %cst_91 [0] : vector<16x1xf32> to vector<1xf32>
    %478 = vector.shape_cast %477 : vector<1xf32> to vector<1x1xf32>
    %479 = vector.broadcast %478 : vector<1x1xf32> to vector<16x24xf32>
    %480 = arith.subf %474, %479 : vector<16x24xf32>
    %481 = math.exp %480 : vector<16x24xf32>
    %c0_92 = arith.constant 0 : index
    %c0_93 = arith.constant 0 : index
    %482 = vector.load %arg13[%c0_92, %c0_93] : memref<2x16xf32, #tpu.memory_space<vmem>>, vector<2x16xf32>
    %cst_94 = arith.constant dense<0.000000e+00> : vector<2x24xf32>
    %483 = tpu.matmul %482, %481, %cst_94 {dimension_numbers = #tpu.dot_dimension_numbers<[1], [0], [0], [1], [0, 0, 1, 1], [], []>} : vector<2x16xf32>, vector<16x24xf32>, vector<2x24xf32> -> vector<2x24xf32>
    %484 = tpu.reciprocal %483 {approx = true} : vector<2x24xf32> -> vector<2x24xf32>
    %c0_95 = arith.constant 0 : index
    %c0_96 = arith.constant 0 : index
    %485 = vector.load %arg14[%c0_95, %c0_96] : memref<16x2xf32, #tpu.memory_space<vmem>>, vector<16x2xf32>
    %cst_97 = arith.constant dense<0.000000e+00> : vector<16x24xf32>
    %486 = tpu.matmul %485, %484, %cst_97 {dimension_numbers = #tpu.dot_dimension_numbers<[1], [0], [0], [1], [0, 0, 1, 1], [], []>} : vector<16x2xf32>, vector<2x24xf32>, vector<16x24xf32> -> vector<16x24xf32>
    %487 = arith.mulf %481, %486 : vector<16x24xf32>
    %c0_98 = arith.constant 0 : index
    %c0_99 = arith.constant 0 : index
    %488 = vector.load %arg10[%c0_98, %c0_99] : memref<24x1536xf32, #tpu.memory_space<vmem>>, vector<24x1536xf32>
    %cst_100 = arith.constant dense<0.000000e+00> : vector<16x1536xf32>
    %489 = tpu.matmul %487, %488, %cst_100 {dimension_numbers = #tpu.dot_dimension_numbers<[1], [0], [0], [1], [0, 0, 1, 1], [], []>} : vector<16x24xf32>, vector<24x1536xf32>, vector<16x1536xf32> -> vector<16x1536xf32>
    %c0_101 = arith.constant 0 : index
    %c0_102 = arith.constant 0 : index
    %490 = vector.load %arg11[%c0_101, %c0_102] : memref<96x1536xf32, #tpu.memory_space<vmem>>, vector<96x1536xf32>
    %cst_103 = arith.constant dense<0.000000e+00> : vector<16x1536xf32>
    %491 = tpu.matmul %465, %490, %cst_103 {dimension_numbers = #tpu.dot_dimension_numbers<[1], [0], [0], [1], [0, 0, 1, 1], [], []>} : vector<16x96xf32>, vector<96x1536xf32>, vector<16x1536xf32> -> vector<16x1536xf32>
    %c0_104 = arith.constant 0 : index
    %c0_105 = arith.constant 0 : index
    %492 = vector.load %arg12[%c0_104, %c0_105] : memref<96x1536xf32, #tpu.memory_space<vmem>>, vector<96x1536xf32>
    %cst_106 = arith.constant dense<0.000000e+00> : vector<16x1536xf32>
    %493 = tpu.matmul %466, %492, %cst_106 {dimension_numbers = #tpu.dot_dimension_numbers<[1], [0], [0], [1], [0, 0, 1, 1], [], []>} : vector<16x96xf32>, vector<96x1536xf32>, vector<16x1536xf32> -> vector<16x1536xf32>
    %494 = arith.addf %491, %493 : vector<16x1536xf32>
    %495 = arith.mulf %489, %494 : vector<16x1536xf32>
    %cst_107 = arith.constant dense<0.000000e+00> : vector<2x1536xf32>
    %496 = tpu.matmul %482, %495, %cst_107 {dimension_numbers = #tpu.dot_dimension_numbers<[1], [0], [0], [1], [0, 0, 1, 1], [], []>} : vector<2x16xf32>, vector<16x1536xf32>, vector<2x1536xf32> -> vector<2x1536xf32>
    %497 = vector.extract_strided_slice %496 {offsets = [0, 0], sizes = [2, 512], strides = [1, 1]} : vector<2x1536xf32> to vector<2x512xf32>
    %c0_108 = arith.constant 0 : index
    %c0_109 = arith.constant 0 : index
    %c0_110 = arith.constant 0 : index
    %498 = vector.load %arg15[%c0_108, %c0_109, %c0_110] : memref<3x512x64xf32, #tpu.memory_space<vmem>>, vector<1x512x64xf32>
    %499 = vector.shape_cast %498 : vector<1x512x64xf32> to vector<512x64xf32>
    %cst_111 = arith.constant dense<0.000000e+00> : vector<2x64xf32>
    %500 = tpu.matmul %497, %499, %cst_111 {dimension_numbers = #tpu.dot_dimension_numbers<[1], [0], [0], [1], [0, 0, 1, 1], [], []>} : vector<2x512xf32>, vector<512x64xf32>, vector<2x64xf32> -> vector<2x64xf32>
    %c0_112 = arith.constant 0 : index
    %c0_113 = arith.constant 0 : index
    %c0_114 = arith.constant 0 : index
    %501 = vector.load %arg16[%c0_112, %c0_113, %c0_114] : memref<3x1x64xf32, #tpu.memory_space<vmem>>, vector<1x1x64xf32>
    %502 = vector.shape_cast %501 : vector<1x1x64xf32> to vector<1x64xf32>
    %503 = vector.broadcast %502 : vector<1x64xf32> to vector<2x64xf32>
    %504 = arith.addf %500, %503 : vector<2x64xf32>
    %c0_115 = arith.constant 0 : index
    %c0_116 = arith.constant 0 : index
    %c0_117 = arith.constant 0 : index
    %505 = vector.load %arg17[%c0_115, %c0_116, %c0_117] : memref<3x64x32xf32, #tpu.memory_space<vmem>>, vector<1x64x32xf32>
    %506 = vector.shape_cast %505 : vector<1x64x32xf32> to vector<64x32xf32>
    %cst_118 = arith.constant dense<0.000000e+00> : vector<2x32xf32>
    %507 = tpu.matmul %504, %506, %cst_118 {dimension_numbers = #tpu.dot_dimension_numbers<[1], [0], [0], [1], [0, 0, 1, 1], [], []>} : vector<2x64xf32>, vector<64x32xf32>, vector<2x32xf32> -> vector<2x32xf32>
    %c0_119 = arith.constant 0 : index
    %c0_120 = arith.constant 0 : index
    %c0_121 = arith.constant 0 : index
    %508 = vector.load %arg18[%c0_119, %c0_120, %c0_121] : memref<3x1x32xf32, #tpu.memory_space<vmem>>, vector<1x1x32xf32>
    %509 = vector.shape_cast %508 : vector<1x1x32xf32> to vector<1x32xf32>
    %510 = vector.broadcast %509 : vector<1x32xf32> to vector<2x32xf32>
    %511 = arith.addf %507, %510 : vector<2x32xf32>
    %c0_122 = arith.constant 0 : index
    %c0_123 = arith.constant 0 : index
    %c0_124 = arith.constant 0 : index
    %512 = vector.load %arg19[%c0_122, %c0_123, %c0_124] : memref<3x1x32xf32, #tpu.memory_space<vmem>>, vector<1x1x32xf32>
    %513 = vector.shape_cast %512 : vector<1x1x32xf32> to vector<1x32xf32>
    %c0_125 = arith.constant 0 : index
    %c0_126 = arith.constant 0 : index
    %c0_127 = arith.constant 0 : index
    %514 = vector.load %arg20[%c0_125, %c0_126, %c0_127] : memref<3x1x32xf32, #tpu.memory_space<vmem>>, vector<1x1x32xf32>
    %515 = vector.shape_cast %514 : vector<1x1x32xf32> to vector<1x32xf32>
    %cst_128 = arith.constant dense<0.000000e+00> : vector<2xf32>
    %516 = vector.multi_reduction <add>, %511, %cst_128 [1] : vector<2x32xf32> to vector<2xf32>
    %517 = vector.shape_cast %516 : vector<2xf32> to vector<2x1xf32>
    %cst_129 = arith.constant 3.200000e+01 : f32
    %518 = vector.broadcast %cst_129 : f32 to vector<2x1xf32>
    %519 = arith.divf %517, %518 : vector<2x1xf32>
    %520 = vector.broadcast %519 : vector<2x1xf32> to vector<2x32xf32>
    %521 = arith.subf %511, %520 : vector<2x32xf32>
    %522 = arith.mulf %521, %521 : vector<2x32xf32>
    %cst_130 = arith.constant dense<0.000000e+00> : vector<2xf32>
    %523 = vector.multi_reduction <add>, %522, %cst_130 [1] : vector<2x32xf32> to vector<2xf32>
    %524 = vector.shape_cast %523 : vector<2xf32> to vector<2x1xf32>
    %cst_131 = arith.constant 3.200000e+01 : f32
    %525 = vector.broadcast %cst_131 : f32 to vector<2x1xf32>
    %526 = arith.divf %524, %525 : vector<2x1xf32>
    %cst_132 = arith.constant 9.99999974E-6 : f32
    %527 = vector.broadcast %cst_132 : f32 to vector<2x1xf32>
    %528 = arith.addf %526, %527 : vector<2x1xf32>
    %529 = math.rsqrt %528 : vector<2x1xf32>
    %530 = vector.broadcast %529 : vector<2x1xf32> to vector<2x32xf32>
    %531 = arith.mulf %521, %530 : vector<2x32xf32>
    %532 = vector.broadcast %513 : vector<1x32xf32> to vector<2x32xf32>
    %533 = arith.mulf %531, %532 : vector<2x32xf32>
    %534 = vector.broadcast %515 : vector<1x32xf32> to vector<2x32xf32>
    %535 = arith.addf %533, %534 : vector<2x32xf32>
    %cst_133 = arith.constant 0.000000e+00 : f32
    %536 = vector.broadcast %cst_133 : f32 to vector<2x32xf32>
    %537 = arith.maximumf %535, %536 : vector<2x32xf32>
    %c0_134 = arith.constant 0 : index
    %c0_135 = arith.constant 0 : index
    %c0_136 = arith.constant 0 : index
    %538 = vector.load %arg21[%c0_134, %c0_135, %c0_136] : memref<3x64x32xf32, #tpu.memory_space<vmem>>, vector<1x64x32xf32>
    %539 = vector.shape_cast %538 : vector<1x64x32xf32> to vector<64x32xf32>
    %cst_137 = arith.constant dense<0.000000e+00> : vector<2x32xf32>
    %540 = tpu.matmul %504, %539, %cst_137 {dimension_numbers = #tpu.dot_dimension_numbers<[1], [0], [0], [1], [0, 0, 1, 1], [], []>} : vector<2x64xf32>, vector<64x32xf32>, vector<2x32xf32> -> vector<2x32xf32>
    %541 = arith.addf %537, %540 : vector<2x32xf32>
    %c0_138 = arith.constant 0 : index
    %c0_139 = arith.constant 0 : index
    %c0_140 = arith.constant 0 : index
    %542 = vector.load %arg22[%c0_138, %c0_139, %c0_140] : memref<3x1x32xf32, #tpu.memory_space<vmem>>, vector<1x1x32xf32>
    %543 = vector.shape_cast %542 : vector<1x1x32xf32> to vector<1x32xf32>
    %544 = vector.broadcast %543 : vector<1x32xf32> to vector<2x32xf32>
    %545 = arith.addf %541, %544 : vector<2x32xf32>
    %c0_141 = arith.constant 0 : index
    %c0_142 = arith.constant 0 : index
    %c0_143 = arith.constant 0 : index
    %546 = vector.load %arg23[%c0_141, %c0_142, %c0_143] : memref<3x32x16xf32, #tpu.memory_space<vmem>>, vector<1x32x16xf32>
    %547 = vector.shape_cast %546 : vector<1x32x16xf32> to vector<32x16xf32>
    %cst_144 = arith.constant dense<0.000000e+00> : vector<2x16xf32>
    %548 = tpu.matmul %545, %547, %cst_144 {dimension_numbers = #tpu.dot_dimension_numbers<[1], [0], [0], [1], [0, 0, 1, 1], [], []>} : vector<2x32xf32>, vector<32x16xf32>, vector<2x16xf32> -> vector<2x16xf32>
    %c0_145 = arith.constant 0 : index
    %c0_146 = arith.constant 0 : index
    %c0_147 = arith.constant 0 : index
    %549 = vector.load %arg24[%c0_145, %c0_146, %c0_147] : memref<3x1x16xf32, #tpu.memory_space<vmem>>, vector<1x1x16xf32>
    %550 = vector.shape_cast %549 : vector<1x1x16xf32> to vector<1x16xf32>
    %551 = vector.broadcast %550 : vector<1x16xf32> to vector<2x16xf32>
    %552 = arith.addf %548, %551 : vector<2x16xf32>
    %cst_148 = arith.constant 0.000000e+00 : f32
    %553 = vector.broadcast %cst_148 : f32 to vector<2x16xf32>
    %554 = arith.maximumf %552, %553 : vector<2x16xf32>
    %c0_149 = arith.constant 0 : index
    %c0_150 = arith.constant 0 : index
    %c0_151 = arith.constant 0 : index
    %555 = vector.load %arg25[%c0_149, %c0_150, %c0_151] : memref<3x1x16xf32, #tpu.memory_space<vmem>>, vector<1x1x16xf32>
    %556 = vector.shape_cast %555 : vector<1x1x16xf32> to vector<1x16xf32>
    %c0_152 = arith.constant 0 : index
    %c0_153 = arith.constant 0 : index
    %c0_154 = arith.constant 0 : index
    %557 = vector.load %arg26[%c0_152, %c0_153, %c0_154] : memref<3x1x16xf32, #tpu.memory_space<vmem>>, vector<1x1x16xf32>
    %558 = vector.shape_cast %557 : vector<1x1x16xf32> to vector<1x16xf32>
    %cst_155 = arith.constant dense<0.000000e+00> : vector<2xf32>
    %559 = vector.multi_reduction <add>, %554, %cst_155 [1] : vector<2x16xf32> to vector<2xf32>
    %560 = vector.shape_cast %559 : vector<2xf32> to vector<2x1xf32>
    %cst_156 = arith.constant 1.600000e+01 : f32
    %561 = vector.broadcast %cst_156 : f32 to vector<2x1xf32>
    %562 = arith.divf %560, %561 : vector<2x1xf32>
    %563 = vector.broadcast %562 : vector<2x1xf32> to vector<2x16xf32>
    %564 = arith.subf %554, %563 : vector<2x16xf32>
    %565 = arith.mulf %564, %564 : vector<2x16xf32>
    %cst_157 = arith.constant dense<0.000000e+00> : vector<2xf32>
    %566 = vector.multi_reduction <add>, %565, %cst_157 [1] : vector<2x16xf32> to vector<2xf32>
    %567 = vector.shape_cast %566 : vector<2xf32> to vector<2x1xf32>
    %cst_158 = arith.constant 1.600000e+01 : f32
    %568 = vector.broadcast %cst_158 : f32 to vector<2x1xf32>
    %569 = arith.divf %567, %568 : vector<2x1xf32>
    %cst_159 = arith.constant 9.99999974E-6 : f32
    %570 = vector.broadcast %cst_159 : f32 to vector<2x1xf32>
    %571 = arith.addf %569, %570 : vector<2x1xf32>
    %572 = math.rsqrt %571 : vector<2x1xf32>
    %573 = vector.broadcast %572 : vector<2x1xf32> to vector<2x16xf32>
    %574 = arith.mulf %564, %573 : vector<2x16xf32>
    %575 = vector.broadcast %556 : vector<1x16xf32> to vector<2x16xf32>
    %576 = arith.mulf %574, %575 : vector<2x16xf32>
    %577 = vector.broadcast %558 : vector<1x16xf32> to vector<2x16xf32>
    %578 = arith.addf %576, %577 : vector<2x16xf32>
    %c0_160 = arith.constant 0 : index
    %c0_161 = arith.constant 0 : index
    %c0_162 = arith.constant 0 : index
    %579 = vector.load %arg27[%c0_160, %c0_161, %c0_162] : memref<3x16x3xf32, #tpu.memory_space<vmem>>, vector<1x16x3xf32>
    %580 = vector.shape_cast %579 : vector<1x16x3xf32> to vector<16x3xf32>
    %cst_163 = arith.constant dense<0.000000e+00> : vector<2x3xf32>
    %581 = tpu.matmul %578, %580, %cst_163 {dimension_numbers = #tpu.dot_dimension_numbers<[1], [0], [0], [1], [0, 0, 1, 1], [], []>} : vector<2x16xf32>, vector<16x3xf32>, vector<2x3xf32> -> vector<2x3xf32>
    %c0_164 = arith.constant 0 : index
    %c0_165 = arith.constant 0 : index
    %c0_166 = arith.constant 0 : index
    %582 = vector.load %arg28[%c0_164, %c0_165, %c0_166] : memref<3x1x3xf32, #tpu.memory_space<vmem>>, vector<1x1x3xf32>
    %583 = vector.shape_cast %582 : vector<1x1x3xf32> to vector<1x3xf32>
    %584 = vector.broadcast %583 : vector<1x3xf32> to vector<2x3xf32>
    %585 = arith.addf %581, %584 : vector<2x3xf32>
    %cst_167 = arith.constant dense<0xFF800000> : vector<2xf32>
    %586 = vector.multi_reduction <maximumf>, %585, %cst_167 [1] : vector<2x3xf32> to vector<2xf32>
    %587 = vector.shape_cast %586 : vector<2xf32> to vector<2x1xf32>
    %588 = vector.broadcast %587 : vector<2x1xf32> to vector<2x3xf32>
    %589 = arith.subf %585, %588 : vector<2x3xf32>
    %590 = math.exp %589 : vector<2x3xf32>
    %cst_168 = arith.constant dense<0.000000e+00> : vector<2xf32>
    %591 = vector.multi_reduction <add>, %590, %cst_168 [1] : vector<2x3xf32> to vector<2xf32>
    %592 = vector.shape_cast %591 : vector<2xf32> to vector<2x1xf32>
    %593 = tpu.reciprocal %592 {approx = true} : vector<2x1xf32> -> vector<2x1xf32>
    %594 = vector.broadcast %593 : vector<2x1xf32> to vector<2x3xf32>
    %595 = arith.mulf %590, %594 : vector<2x3xf32>
    %596 = vector.extract_strided_slice %496 {offsets = [0, 512], sizes = [2, 512], strides = [1, 1]} : vector<2x1536xf32> to vector<2x512xf32>
    %c1 = arith.constant 1 : index
    %c0_169 = arith.constant 0 : index
    %c0_170 = arith.constant 0 : index
    %597 = vector.load %arg15[%c1, %c0_169, %c0_170] : memref<3x512x64xf32, #tpu.memory_space<vmem>>, vector<1x512x64xf32>
    %598 = vector.shape_cast %597 : vector<1x512x64xf32> to vector<512x64xf32>
    %cst_171 = arith.constant dense<0.000000e+00> : vector<2x64xf32>
    %599 = tpu.matmul %596, %598, %cst_171 {dimension_numbers = #tpu.dot_dimension_numbers<[1], [0], [0], [1], [0, 0, 1, 1], [], []>} : vector<2x512xf32>, vector<512x64xf32>, vector<2x64xf32> -> vector<2x64xf32>
    %c1_172 = arith.constant 1 : index
    %c0_173 = arith.constant 0 : index
    %c0_174 = arith.constant 0 : index
    %600 = vector.load %arg16[%c1_172, %c0_173, %c0_174] : memref<3x1x64xf32, #tpu.memory_space<vmem>>, vector<1x1x64xf32>
    %601 = vector.shape_cast %600 : vector<1x1x64xf32> to vector<1x64xf32>
    %602 = vector.broadcast %601 : vector<1x64xf32> to vector<2x64xf32>
    %603 = arith.addf %599, %602 : vector<2x64xf32>
    %c1_175 = arith.constant 1 : index
    %c0_176 = arith.constant 0 : index
    %c0_177 = arith.constant 0 : index
    %604 = vector.load %arg17[%c1_175, %c0_176, %c0_177] : memref<3x64x32xf32, #tpu.memory_space<vmem>>, vector<1x64x32xf32>
    %605 = vector.shape_cast %604 : vector<1x64x32xf32> to vector<64x32xf32>
    %cst_178 = arith.constant dense<0.000000e+00> : vector<2x32xf32>
    %606 = tpu.matmul %603, %605, %cst_178 {dimension_numbers = #tpu.dot_dimension_numbers<[1], [0], [0], [1], [0, 0, 1, 1], [], []>} : vector<2x64xf32>, vector<64x32xf32>, vector<2x32xf32> -> vector<2x32xf32>
    %c1_179 = arith.constant 1 : index
    %c0_180 = arith.constant 0 : index
    %c0_181 = arith.constant 0 : index
    %607 = vector.load %arg18[%c1_179, %c0_180, %c0_181] : memref<3x1x32xf32, #tpu.memory_space<vmem>>, vector<1x1x32xf32>
    %608 = vector.shape_cast %607 : vector<1x1x32xf32> to vector<1x32xf32>
    %609 = vector.broadcast %608 : vector<1x32xf32> to vector<2x32xf32>
    %610 = arith.addf %606, %609 : vector<2x32xf32>
    %c1_182 = arith.constant 1 : index
    %c0_183 = arith.constant 0 : index
    %c0_184 = arith.constant 0 : index
    %611 = vector.load %arg19[%c1_182, %c0_183, %c0_184] : memref<3x1x32xf32, #tpu.memory_space<vmem>>, vector<1x1x32xf32>
    %612 = vector.shape_cast %611 : vector<1x1x32xf32> to vector<1x32xf32>
    %c1_185 = arith.constant 1 : index
    %c0_186 = arith.constant 0 : index
    %c0_187 = arith.constant 0 : index
    %613 = vector.load %arg20[%c1_185, %c0_186, %c0_187] : memref<3x1x32xf32, #tpu.memory_space<vmem>>, vector<1x1x32xf32>
    %614 = vector.shape_cast %613 : vector<1x1x32xf32> to vector<1x32xf32>
    %cst_188 = arith.constant dense<0.000000e+00> : vector<2xf32>
    %615 = vector.multi_reduction <add>, %610, %cst_188 [1] : vector<2x32xf32> to vector<2xf32>
    %616 = vector.shape_cast %615 : vector<2xf32> to vector<2x1xf32>
    %cst_189 = arith.constant 3.200000e+01 : f32
    %617 = vector.broadcast %cst_189 : f32 to vector<2x1xf32>
    %618 = arith.divf %616, %617 : vector<2x1xf32>
    %619 = vector.broadcast %618 : vector<2x1xf32> to vector<2x32xf32>
    %620 = arith.subf %610, %619 : vector<2x32xf32>
    %621 = arith.mulf %620, %620 : vector<2x32xf32>
    %cst_190 = arith.constant dense<0.000000e+00> : vector<2xf32>
    %622 = vector.multi_reduction <add>, %621, %cst_190 [1] : vector<2x32xf32> to vector<2xf32>
    %623 = vector.shape_cast %622 : vector<2xf32> to vector<2x1xf32>
    %cst_191 = arith.constant 3.200000e+01 : f32
    %624 = vector.broadcast %cst_191 : f32 to vector<2x1xf32>
    %625 = arith.divf %623, %624 : vector<2x1xf32>
    %cst_192 = arith.constant 9.99999974E-6 : f32
    %626 = vector.broadcast %cst_192 : f32 to vector<2x1xf32>
    %627 = arith.addf %625, %626 : vector<2x1xf32>
    %628 = math.rsqrt %627 : vector<2x1xf32>
    %629 = vector.broadcast %628 : vector<2x1xf32> to vector<2x32xf32>
    %630 = arith.mulf %620, %629 : vector<2x32xf32>
    %631 = vector.broadcast %612 : vector<1x32xf32> to vector<2x32xf32>
    %632 = arith.mulf %630, %631 : vector<2x32xf32>
    %633 = vector.broadcast %614 : vector<1x32xf32> to vector<2x32xf32>
    %634 = arith.addf %632, %633 : vector<2x32xf32>
    %cst_193 = arith.constant 0.000000e+00 : f32
    %635 = vector.broadcast %cst_193 : f32 to vector<2x32xf32>
    %636 = arith.maximumf %634, %635 : vector<2x32xf32>
    %c1_194 = arith.constant 1 : index
    %c0_195 = arith.constant 0 : index
    %c0_196 = arith.constant 0 : index
    %637 = vector.load %arg21[%c1_194, %c0_195, %c0_196] : memref<3x64x32xf32, #tpu.memory_space<vmem>>, vector<1x64x32xf32>
    %638 = vector.shape_cast %637 : vector<1x64x32xf32> to vector<64x32xf32>
    %cst_197 = arith.constant dense<0.000000e+00> : vector<2x32xf32>
    %639 = tpu.matmul %603, %638, %cst_197 {dimension_numbers = #tpu.dot_dimension_numbers<[1], [0], [0], [1], [0, 0, 1, 1], [], []>} : vector<2x64xf32>, vector<64x32xf32>, vector<2x32xf32> -> vector<2x32xf32>
    %640 = arith.addf %636, %639 : vector<2x32xf32>
    %c1_198 = arith.constant 1 : index
    %c0_199 = arith.constant 0 : index
    %c0_200 = arith.constant 0 : index
    %641 = vector.load %arg22[%c1_198, %c0_199, %c0_200] : memref<3x1x32xf32, #tpu.memory_space<vmem>>, vector<1x1x32xf32>
    %642 = vector.shape_cast %641 : vector<1x1x32xf32> to vector<1x32xf32>
    %643 = vector.broadcast %642 : vector<1x32xf32> to vector<2x32xf32>
    %644 = arith.addf %640, %643 : vector<2x32xf32>
    %c1_201 = arith.constant 1 : index
    %c0_202 = arith.constant 0 : index
    %c0_203 = arith.constant 0 : index
    %645 = vector.load %arg23[%c1_201, %c0_202, %c0_203] : memref<3x32x16xf32, #tpu.memory_space<vmem>>, vector<1x32x16xf32>
    %646 = vector.shape_cast %645 : vector<1x32x16xf32> to vector<32x16xf32>
    %cst_204 = arith.constant dense<0.000000e+00> : vector<2x16xf32>
    %647 = tpu.matmul %644, %646, %cst_204 {dimension_numbers = #tpu.dot_dimension_numbers<[1], [0], [0], [1], [0, 0, 1, 1], [], []>} : vector<2x32xf32>, vector<32x16xf32>, vector<2x16xf32> -> vector<2x16xf32>
    %c1_205 = arith.constant 1 : index
    %c0_206 = arith.constant 0 : index
    %c0_207 = arith.constant 0 : index
    %648 = vector.load %arg24[%c1_205, %c0_206, %c0_207] : memref<3x1x16xf32, #tpu.memory_space<vmem>>, vector<1x1x16xf32>
    %649 = vector.shape_cast %648 : vector<1x1x16xf32> to vector<1x16xf32>
    %650 = vector.broadcast %649 : vector<1x16xf32> to vector<2x16xf32>
    %651 = arith.addf %647, %650 : vector<2x16xf32>
    %cst_208 = arith.constant 0.000000e+00 : f32
    %652 = vector.broadcast %cst_208 : f32 to vector<2x16xf32>
    %653 = arith.maximumf %651, %652 : vector<2x16xf32>
    %c1_209 = arith.constant 1 : index
    %c0_210 = arith.constant 0 : index
    %c0_211 = arith.constant 0 : index
    %654 = vector.load %arg25[%c1_209, %c0_210, %c0_211] : memref<3x1x16xf32, #tpu.memory_space<vmem>>, vector<1x1x16xf32>
    %655 = vector.shape_cast %654 : vector<1x1x16xf32> to vector<1x16xf32>
    %c1_212 = arith.constant 1 : index
    %c0_213 = arith.constant 0 : index
    %c0_214 = arith.constant 0 : index
    %656 = vector.load %arg26[%c1_212, %c0_213, %c0_214] : memref<3x1x16xf32, #tpu.memory_space<vmem>>, vector<1x1x16xf32>
    %657 = vector.shape_cast %656 : vector<1x1x16xf32> to vector<1x16xf32>
    %cst_215 = arith.constant dense<0.000000e+00> : vector<2xf32>
    %658 = vector.multi_reduction <add>, %653, %cst_215 [1] : vector<2x16xf32> to vector<2xf32>
    %659 = vector.shape_cast %658 : vector<2xf32> to vector<2x1xf32>
    %cst_216 = arith.constant 1.600000e+01 : f32
    %660 = vector.broadcast %cst_216 : f32 to vector<2x1xf32>
    %661 = arith.divf %659, %660 : vector<2x1xf32>
    %662 = vector.broadcast %661 : vector<2x1xf32> to vector<2x16xf32>
    %663 = arith.subf %653, %662 : vector<2x16xf32>
    %664 = arith.mulf %663, %663 : vector<2x16xf32>
    %cst_217 = arith.constant dense<0.000000e+00> : vector<2xf32>
    %665 = vector.multi_reduction <add>, %664, %cst_217 [1] : vector<2x16xf32> to vector<2xf32>
    %666 = vector.shape_cast %665 : vector<2xf32> to vector<2x1xf32>
    %cst_218 = arith.constant 1.600000e+01 : f32
    %667 = vector.broadcast %cst_218 : f32 to vector<2x1xf32>
    %668 = arith.divf %666, %667 : vector<2x1xf32>
    %cst_219 = arith.constant 9.99999974E-6 : f32
    %669 = vector.broadcast %cst_219 : f32 to vector<2x1xf32>
    %670 = arith.addf %668, %669 : vector<2x1xf32>
    %671 = math.rsqrt %670 : vector<2x1xf32>
    %672 = vector.broadcast %671 : vector<2x1xf32> to vector<2x16xf32>
    %673 = arith.mulf %663, %672 : vector<2x16xf32>
    %674 = vector.broadcast %655 : vector<1x16xf32> to vector<2x16xf32>
    %675 = arith.mulf %673, %674 : vector<2x16xf32>
    %676 = vector.broadcast %657 : vector<1x16xf32> to vector<2x16xf32>
    %677 = arith.addf %675, %676 : vector<2x16xf32>
    %c1_220 = arith.constant 1 : index
    %c0_221 = arith.constant 0 : index
    %c0_222 = arith.constant 0 : index
    %678 = vector.load %arg27[%c1_220, %c0_221, %c0_222] : memref<3x16x3xf32, #tpu.memory_space<vmem>>, vector<1x16x3xf32>
    %679 = vector.shape_cast %678 : vector<1x16x3xf32> to vector<16x3xf32>
    %cst_223 = arith.constant dense<0.000000e+00> : vector<2x3xf32>
    %680 = tpu.matmul %677, %679, %cst_223 {dimension_numbers = #tpu.dot_dimension_numbers<[1], [0], [0], [1], [0, 0, 1, 1], [], []>} : vector<2x16xf32>, vector<16x3xf32>, vector<2x3xf32> -> vector<2x3xf32>
    %c1_224 = arith.constant 1 : index
    %c0_225 = arith.constant 0 : index
    %c0_226 = arith.constant 0 : index
    %681 = vector.load %arg28[%c1_224, %c0_225, %c0_226] : memref<3x1x3xf32, #tpu.memory_space<vmem>>, vector<1x1x3xf32>
    %682 = vector.shape_cast %681 : vector<1x1x3xf32> to vector<1x3xf32>
    %683 = vector.broadcast %682 : vector<1x3xf32> to vector<2x3xf32>
    %684 = arith.addf %680, %683 : vector<2x3xf32>
    %cst_227 = arith.constant dense<0xFF800000> : vector<2xf32>
    %685 = vector.multi_reduction <maximumf>, %684, %cst_227 [1] : vector<2x3xf32> to vector<2xf32>
    %686 = vector.shape_cast %685 : vector<2xf32> to vector<2x1xf32>
    %687 = vector.broadcast %686 : vector<2x1xf32> to vector<2x3xf32>
    %688 = arith.subf %684, %687 : vector<2x3xf32>
    %689 = math.exp %688 : vector<2x3xf32>
    %cst_228 = arith.constant dense<0.000000e+00> : vector<2xf32>
    %690 = vector.multi_reduction <add>, %689, %cst_228 [1] : vector<2x3xf32> to vector<2xf32>
    %691 = vector.shape_cast %690 : vector<2xf32> to vector<2x1xf32>
    %692 = tpu.reciprocal %691 {approx = true} : vector<2x1xf32> -> vector<2x1xf32>
    %693 = vector.broadcast %692 : vector<2x1xf32> to vector<2x3xf32>
    %694 = arith.mulf %689, %693 : vector<2x3xf32>
    %695 = vector.extract_strided_slice %496 {offsets = [0, 1024], sizes = [2, 512], strides = [1, 1]} : vector<2x1536xf32> to vector<2x512xf32>
    %c2 = arith.constant 2 : index
    %c0_229 = arith.constant 0 : index
    %c0_230 = arith.constant 0 : index
    %696 = vector.load %arg15[%c2, %c0_229, %c0_230] : memref<3x512x64xf32, #tpu.memory_space<vmem>>, vector<1x512x64xf32>
    %697 = vector.shape_cast %696 : vector<1x512x64xf32> to vector<512x64xf32>
    %cst_231 = arith.constant dense<0.000000e+00> : vector<2x64xf32>
    %698 = tpu.matmul %695, %697, %cst_231 {dimension_numbers = #tpu.dot_dimension_numbers<[1], [0], [0], [1], [0, 0, 1, 1], [], []>} : vector<2x512xf32>, vector<512x64xf32>, vector<2x64xf32> -> vector<2x64xf32>
    %c2_232 = arith.constant 2 : index
    %c0_233 = arith.constant 0 : index
    %c0_234 = arith.constant 0 : index
    %699 = vector.load %arg16[%c2_232, %c0_233, %c0_234] : memref<3x1x64xf32, #tpu.memory_space<vmem>>, vector<1x1x64xf32>
    %700 = vector.shape_cast %699 : vector<1x1x64xf32> to vector<1x64xf32>
    %701 = vector.broadcast %700 : vector<1x64xf32> to vector<2x64xf32>
    %702 = arith.addf %698, %701 : vector<2x64xf32>
    %c2_235 = arith.constant 2 : index
    %c0_236 = arith.constant 0 : index
    %c0_237 = arith.constant 0 : index
    %703 = vector.load %arg17[%c2_235, %c0_236, %c0_237] : memref<3x64x32xf32, #tpu.memory_space<vmem>>, vector<1x64x32xf32>
    %704 = vector.shape_cast %703 : vector<1x64x32xf32> to vector<64x32xf32>
    %cst_238 = arith.constant dense<0.000000e+00> : vector<2x32xf32>
    %705 = tpu.matmul %702, %704, %cst_238 {dimension_numbers = #tpu.dot_dimension_numbers<[1], [0], [0], [1], [0, 0, 1, 1], [], []>} : vector<2x64xf32>, vector<64x32xf32>, vector<2x32xf32> -> vector<2x32xf32>
    %c2_239 = arith.constant 2 : index
    %c0_240 = arith.constant 0 : index
    %c0_241 = arith.constant 0 : index
    %706 = vector.load %arg18[%c2_239, %c0_240, %c0_241] : memref<3x1x32xf32, #tpu.memory_space<vmem>>, vector<1x1x32xf32>
    %707 = vector.shape_cast %706 : vector<1x1x32xf32> to vector<1x32xf32>
    %708 = vector.broadcast %707 : vector<1x32xf32> to vector<2x32xf32>
    %709 = arith.addf %705, %708 : vector<2x32xf32>
    %c2_242 = arith.constant 2 : index
    %c0_243 = arith.constant 0 : index
    %c0_244 = arith.constant 0 : index
    %710 = vector.load %arg19[%c2_242, %c0_243, %c0_244] : memref<3x1x32xf32, #tpu.memory_space<vmem>>, vector<1x1x32xf32>
    %711 = vector.shape_cast %710 : vector<1x1x32xf32> to vector<1x32xf32>
    %c2_245 = arith.constant 2 : index
    %c0_246 = arith.constant 0 : index
    %c0_247 = arith.constant 0 : index
    %712 = vector.load %arg20[%c2_245, %c0_246, %c0_247] : memref<3x1x32xf32, #tpu.memory_space<vmem>>, vector<1x1x32xf32>
    %713 = vector.shape_cast %712 : vector<1x1x32xf32> to vector<1x32xf32>
    %cst_248 = arith.constant dense<0.000000e+00> : vector<2xf32>
    %714 = vector.multi_reduction <add>, %709, %cst_248 [1] : vector<2x32xf32> to vector<2xf32>
    %715 = vector.shape_cast %714 : vector<2xf32> to vector<2x1xf32>
    %cst_249 = arith.constant 3.200000e+01 : f32
    %716 = vector.broadcast %cst_249 : f32 to vector<2x1xf32>
    %717 = arith.divf %715, %716 : vector<2x1xf32>
    %718 = vector.broadcast %717 : vector<2x1xf32> to vector<2x32xf32>
    %719 = arith.subf %709, %718 : vector<2x32xf32>
    %720 = arith.mulf %719, %719 : vector<2x32xf32>
    %cst_250 = arith.constant dense<0.000000e+00> : vector<2xf32>
    %721 = vector.multi_reduction <add>, %720, %cst_250 [1] : vector<2x32xf32> to vector<2xf32>
    %722 = vector.shape_cast %721 : vector<2xf32> to vector<2x1xf32>
    %cst_251 = arith.constant 3.200000e+01 : f32
    %723 = vector.broadcast %cst_251 : f32 to vector<2x1xf32>
    %724 = arith.divf %722, %723 : vector<2x1xf32>
    %cst_252 = arith.constant 9.99999974E-6 : f32
    %725 = vector.broadcast %cst_252 : f32 to vector<2x1xf32>
    %726 = arith.addf %724, %725 : vector<2x1xf32>
    %727 = math.rsqrt %726 : vector<2x1xf32>
    %728 = vector.broadcast %727 : vector<2x1xf32> to vector<2x32xf32>
    %729 = arith.mulf %719, %728 : vector<2x32xf32>
    %730 = vector.broadcast %711 : vector<1x32xf32> to vector<2x32xf32>
    %731 = arith.mulf %729, %730 : vector<2x32xf32>
    %732 = vector.broadcast %713 : vector<1x32xf32> to vector<2x32xf32>
    %733 = arith.addf %731, %732 : vector<2x32xf32>
    %cst_253 = arith.constant 0.000000e+00 : f32
    %734 = vector.broadcast %cst_253 : f32 to vector<2x32xf32>
    %735 = arith.maximumf %733, %734 : vector<2x32xf32>
    %c2_254 = arith.constant 2 : index
    %c0_255 = arith.constant 0 : index
    %c0_256 = arith.constant 0 : index
    %736 = vector.load %arg21[%c2_254, %c0_255, %c0_256] : memref<3x64x32xf32, #tpu.memory_space<vmem>>, vector<1x64x32xf32>
    %737 = vector.shape_cast %736 : vector<1x64x32xf32> to vector<64x32xf32>
    %cst_257 = arith.constant dense<0.000000e+00> : vector<2x32xf32>
    %738 = tpu.matmul %702, %737, %cst_257 {dimension_numbers = #tpu.dot_dimension_numbers<[1], [0], [0], [1], [0, 0, 1, 1], [], []>} : vector<2x64xf32>, vector<64x32xf32>, vector<2x32xf32> -> vector<2x32xf32>
    %739 = arith.addf %735, %738 : vector<2x32xf32>
    %c2_258 = arith.constant 2 : index
    %c0_259 = arith.constant 0 : index
    %c0_260 = arith.constant 0 : index
    %740 = vector.load %arg22[%c2_258, %c0_259, %c0_260] : memref<3x1x32xf32, #tpu.memory_space<vmem>>, vector<1x1x32xf32>
    %741 = vector.shape_cast %740 : vector<1x1x32xf32> to vector<1x32xf32>
    %742 = vector.broadcast %741 : vector<1x32xf32> to vector<2x32xf32>
    %743 = arith.addf %739, %742 : vector<2x32xf32>
    %c2_261 = arith.constant 2 : index
    %c0_262 = arith.constant 0 : index
    %c0_263 = arith.constant 0 : index
    %744 = vector.load %arg23[%c2_261, %c0_262, %c0_263] : memref<3x32x16xf32, #tpu.memory_space<vmem>>, vector<1x32x16xf32>
    %745 = vector.shape_cast %744 : vector<1x32x16xf32> to vector<32x16xf32>
    %cst_264 = arith.constant dense<0.000000e+00> : vector<2x16xf32>
    %746 = tpu.matmul %743, %745, %cst_264 {dimension_numbers = #tpu.dot_dimension_numbers<[1], [0], [0], [1], [0, 0, 1, 1], [], []>} : vector<2x32xf32>, vector<32x16xf32>, vector<2x16xf32> -> vector<2x16xf32>
    %c2_265 = arith.constant 2 : index
    %c0_266 = arith.constant 0 : index
    %c0_267 = arith.constant 0 : index
    %747 = vector.load %arg24[%c2_265, %c0_266, %c0_267] : memref<3x1x16xf32, #tpu.memory_space<vmem>>, vector<1x1x16xf32>
    %748 = vector.shape_cast %747 : vector<1x1x16xf32> to vector<1x16xf32>
    %749 = vector.broadcast %748 : vector<1x16xf32> to vector<2x16xf32>
    %750 = arith.addf %746, %749 : vector<2x16xf32>
    %cst_268 = arith.constant 0.000000e+00 : f32
    %751 = vector.broadcast %cst_268 : f32 to vector<2x16xf32>
    %752 = arith.maximumf %750, %751 : vector<2x16xf32>
    %c2_269 = arith.constant 2 : index
    %c0_270 = arith.constant 0 : index
    %c0_271 = arith.constant 0 : index
    %753 = vector.load %arg25[%c2_269, %c0_270, %c0_271] : memref<3x1x16xf32, #tpu.memory_space<vmem>>, vector<1x1x16xf32>
    %754 = vector.shape_cast %753 : vector<1x1x16xf32> to vector<1x16xf32>
    %c2_272 = arith.constant 2 : index
    %c0_273 = arith.constant 0 : index
    %c0_274 = arith.constant 0 : index
    %755 = vector.load %arg26[%c2_272, %c0_273, %c0_274] : memref<3x1x16xf32, #tpu.memory_space<vmem>>, vector<1x1x16xf32>
    %756 = vector.shape_cast %755 : vector<1x1x16xf32> to vector<1x16xf32>
    %cst_275 = arith.constant dense<0.000000e+00> : vector<2xf32>
    %757 = vector.multi_reduction <add>, %752, %cst_275 [1] : vector<2x16xf32> to vector<2xf32>
    %758 = vector.shape_cast %757 : vector<2xf32> to vector<2x1xf32>
    %cst_276 = arith.constant 1.600000e+01 : f32
    %759 = vector.broadcast %cst_276 : f32 to vector<2x1xf32>
    %760 = arith.divf %758, %759 : vector<2x1xf32>
    %761 = vector.broadcast %760 : vector<2x1xf32> to vector<2x16xf32>
    %762 = arith.subf %752, %761 : vector<2x16xf32>
    %763 = arith.mulf %762, %762 : vector<2x16xf32>
    %cst_277 = arith.constant dense<0.000000e+00> : vector<2xf32>
    %764 = vector.multi_reduction <add>, %763, %cst_277 [1] : vector<2x16xf32> to vector<2xf32>
    %765 = vector.shape_cast %764 : vector<2xf32> to vector<2x1xf32>
    %cst_278 = arith.constant 1.600000e+01 : f32
    %766 = vector.broadcast %cst_278 : f32 to vector<2x1xf32>
    %767 = arith.divf %765, %766 : vector<2x1xf32>
    %cst_279 = arith.constant 9.99999974E-6 : f32
    %768 = vector.broadcast %cst_279 : f32 to vector<2x1xf32>
    %769 = arith.addf %767, %768 : vector<2x1xf32>
    %770 = math.rsqrt %769 : vector<2x1xf32>
    %771 = vector.broadcast %770 : vector<2x1xf32> to vector<2x16xf32>
    %772 = arith.mulf %762, %771 : vector<2x16xf32>
    %773 = vector.broadcast %754 : vector<1x16xf32> to vector<2x16xf32>
    %774 = arith.mulf %772, %773 : vector<2x16xf32>
    %775 = vector.broadcast %756 : vector<1x16xf32> to vector<2x16xf32>
    %776 = arith.addf %774, %775 : vector<2x16xf32>
    %c2_280 = arith.constant 2 : index
    %c0_281 = arith.constant 0 : index
    %c0_282 = arith.constant 0 : index
    %777 = vector.load %arg27[%c2_280, %c0_281, %c0_282] : memref<3x16x3xf32, #tpu.memory_space<vmem>>, vector<1x16x3xf32>
    %778 = vector.shape_cast %777 : vector<1x16x3xf32> to vector<16x3xf32>
    %cst_283 = arith.constant dense<0.000000e+00> : vector<2x3xf32>
    %779 = tpu.matmul %776, %778, %cst_283 {dimension_numbers = #tpu.dot_dimension_numbers<[1], [0], [0], [1], [0, 0, 1, 1], [], []>} : vector<2x16xf32>, vector<16x3xf32>, vector<2x3xf32> -> vector<2x3xf32>
    %c2_284 = arith.constant 2 : index
    %c0_285 = arith.constant 0 : index
    %c0_286 = arith.constant 0 : index
    %780 = vector.load %arg28[%c2_284, %c0_285, %c0_286] : memref<3x1x3xf32, #tpu.memory_space<vmem>>, vector<1x1x3xf32>
    %781 = vector.shape_cast %780 : vector<1x1x3xf32> to vector<1x3xf32>
    %782 = vector.broadcast %781 : vector<1x3xf32> to vector<2x3xf32>
    %783 = arith.addf %779, %782 : vector<2x3xf32>
    %cst_287 = arith.constant dense<0xFF800000> : vector<2xf32>
    %784 = vector.multi_reduction <maximumf>, %783, %cst_287 [1] : vector<2x3xf32> to vector<2xf32>
    %785 = vector.shape_cast %784 : vector<2xf32> to vector<2x1xf32>
    %786 = vector.broadcast %785 : vector<2x1xf32> to vector<2x3xf32>
    %787 = arith.subf %783, %786 : vector<2x3xf32>
    %788 = math.exp %787 : vector<2x3xf32>
    %cst_288 = arith.constant dense<0.000000e+00> : vector<2xf32>
    %789 = vector.multi_reduction <add>, %788, %cst_288 [1] : vector<2x3xf32> to vector<2xf32>
    %790 = vector.shape_cast %789 : vector<2xf32> to vector<2x1xf32>
    %791 = tpu.reciprocal %790 {approx = true} : vector<2x1xf32> -> vector<2x1xf32>
    %792 = vector.broadcast %791 : vector<2x1xf32> to vector<2x3xf32>
    %793 = arith.mulf %788, %792 : vector<2x3xf32>
    %794 = tpu.concatenate %595, %694, %793 in 1 : vector<2x3xf32>, vector<2x3xf32>, vector<2x3xf32> -> vector<2x9xf32>
    %c0_289 = arith.constant 0 : index
    %c0_290 = arith.constant 0 : index
    %795 = vector.load %arg29[%c0_289, %c0_290] : memref<9x32xf32, #tpu.memory_space<vmem>>, vector<9x32xf32>
    %cst_291 = arith.constant dense<0.000000e+00> : vector<2x32xf32>
    %796 = tpu.matmul %794, %795, %cst_291 {dimension_numbers = #tpu.dot_dimension_numbers<[1], [0], [0], [1], [0, 0, 1, 1], [], []>} : vector<2x9xf32>, vector<9x32xf32>, vector<2x32xf32> -> vector<2x32xf32>
    %c0_292 = arith.constant 0 : index
    %c0_293 = arith.constant 0 : index
    %797 = vector.load %arg30[%c0_292, %c0_293] : memref<1x32xf32, #tpu.memory_space<vmem>>, vector<1x32xf32>
    %798 = vector.broadcast %797 : vector<1x32xf32> to vector<2x32xf32>
    %799 = arith.addf %796, %798 : vector<2x32xf32>
    %cst_294 = arith.constant 0.000000e+00 : f32
    %800 = vector.broadcast %cst_294 : f32 to vector<2x32xf32>
    %801 = arith.maximumf %799, %800 : vector<2x32xf32>
    %c0_295 = arith.constant 0 : index
    %c0_296 = arith.constant 0 : index
    %802 = vector.load %arg31[%c0_295, %c0_296] : memref<32x3xf32, #tpu.memory_space<vmem>>, vector<32x3xf32>
    %cst_297 = arith.constant dense<0.000000e+00> : vector<2x3xf32>
    %803 = tpu.matmul %801, %802, %cst_297 {dimension_numbers = #tpu.dot_dimension_numbers<[1], [0], [0], [1], [0, 0, 1, 1], [], []>} : vector<2x32xf32>, vector<32x3xf32>, vector<2x3xf32> -> vector<2x3xf32>
    %c0_298 = arith.constant 0 : index
    %c0_299 = arith.constant 0 : index
    %804 = vector.load %arg32[%c0_298, %c0_299] : memref<1x3xf32, #tpu.memory_space<vmem>>, vector<1x3xf32>
    %805 = vector.broadcast %804 : vector<1x3xf32> to vector<2x3xf32>
    %806 = arith.addf %803, %805 : vector<2x3xf32>
    %cst_300 = arith.constant dense<0xFF800000> : vector<2xf32>
    %807 = vector.multi_reduction <maximumf>, %806, %cst_300 [1] : vector<2x3xf32> to vector<2xf32>
    %808 = vector.shape_cast %807 : vector<2xf32> to vector<2x1xf32>
    %809 = vector.broadcast %808 : vector<2x1xf32> to vector<2x3xf32>
    %810 = arith.subf %806, %809 : vector<2x3xf32>
    %811 = math.exp %810 : vector<2x3xf32>
    %cst_301 = arith.constant dense<0.000000e+00> : vector<2xf32>
    %812 = vector.multi_reduction <add>, %811, %cst_301 [1] : vector<2x3xf32> to vector<2xf32>
    %813 = vector.shape_cast %812 : vector<2xf32> to vector<2x1xf32>
    %814 = tpu.reciprocal %813 {approx = true} : vector<2x1xf32> -> vector<2x1xf32>
    %815 = vector.broadcast %814 : vector<2x1xf32> to vector<2x3xf32>
    %816 = arith.mulf %811, %815 : vector<2x3xf32>
    %c0_302 = arith.constant 0 : index
    %c0_303 = arith.constant 0 : index
    %817 = vector.load %arg33[%c0_302, %c0_303] : memref<1x3xf32, #tpu.memory_space<vmem>>, vector<1x3xf32>
    %c0_304 = arith.constant 0 : index
    %818 = memref.load %arg34[%c0_304] : memref<1xf32, #tpu.memory_space<smem>>
    %819 = vector.broadcast %818 : f32 to vector<1x3xf32>
    %820 = arith.divf %817, %819 : vector<1x3xf32>
    %cst_305 = arith.constant dense<0xFF800000> : vector<1xf32>
    %821 = vector.multi_reduction <maximumf>, %820, %cst_305 [1] : vector<1x3xf32> to vector<1xf32>
    %822 = vector.shape_cast %821 : vector<1xf32> to vector<1x1xf32>
    %823 = vector.broadcast %822 : vector<1x1xf32> to vector<1x3xf32>
    %824 = arith.subf %820, %823 : vector<1x3xf32>
    %825 = math.exp %824 : vector<1x3xf32>
    %cst_306 = arith.constant dense<0.000000e+00> : vector<1xf32>
    %826 = vector.multi_reduction <add>, %825, %cst_306 [1] : vector<1x3xf32> to vector<1xf32>
    %827 = vector.shape_cast %826 : vector<1xf32> to vector<1x1xf32>
    %828 = tpu.reciprocal %827 {approx = true} : vector<1x1xf32> -> vector<1x1xf32>
    %829 = vector.broadcast %828 : vector<1x1xf32> to vector<1x3xf32>
    %830 = arith.mulf %825, %829 : vector<1x3xf32>
    %831 = vector.extract_strided_slice %830 {offsets = [0, 0], sizes = [1, 1], strides = [1, 1]} : vector<1x3xf32> to vector<1x1xf32>
    %832 = vector.broadcast %831 : vector<1x1xf32> to vector<2x3xf32>
    %833 = arith.mulf %832, %595 : vector<2x3xf32>
    %834 = vector.extract_strided_slice %830 {offsets = [0, 1], sizes = [1, 1], strides = [1, 1]} : vector<1x3xf32> to vector<1x1xf32>
    %835 = vector.broadcast %834 : vector<1x1xf32> to vector<2x3xf32>
    %836 = arith.mulf %835, %694 : vector<2x3xf32>
    %837 = arith.addf %833, %836 : vector<2x3xf32>
    %838 = vector.extract_strided_slice %830 {offsets = [0, 2], sizes = [1, 1], strides = [1, 1]} : vector<1x3xf32> to vector<1x1xf32>
    %839 = vector.broadcast %838 : vector<1x1xf32> to vector<2x3xf32>
    %840 = arith.mulf %839, %793 : vector<2x3xf32>
    %841 = arith.addf %837, %840 : vector<2x3xf32>
    %cst_307 = arith.constant 0.699999988 : f32
    %842 = vector.broadcast %cst_307 : f32 to vector<2x3xf32>
    %843 = arith.mulf %842, %816 : vector<2x3xf32>
    %cst_308 = arith.constant 3.000000e-01 : f32
    %844 = vector.broadcast %cst_308 : f32 to vector<2x3xf32>
    %845 = arith.mulf %844, %841 : vector<2x3xf32>
    %846 = arith.addf %843, %845 : vector<2x3xf32>
    %c0_309 = arith.constant 0 : index
    %c0_310 = arith.constant 0 : index
    %847 = vector.load %arg35[%c0_309, %c0_310] : memref<2x3xf32, #tpu.memory_space<vmem>>, vector<2x3xf32>
    tpu.vector_store %arg35[%c0_309, %c0_310], %846 {strides = array<i32>} : memref<2x3xf32, #tpu.memory_space<vmem>>, vector<2x3xf32>,
    return
  }
}

</mosaic_0001>

<llo_original>
// kernel: tpu_custom_call.1
$region0: #{tpu_custom_call.1}
  #allocation0 [shape = 'u32[]', space=smem, size = 0x4, offset = 0x4, fixed_abs, tag = 'smem constant byte address 0x4 - core index']
  #allocation1 [shape = 'u32[144,128]{1,0:T(1,128)}', space=vmem, size = 0x12000, scoped, tag = 'internal scratch']
  #allocation2 [shape = 'f32[1]{0:T(128)S(6)}', space=smem, size = 0x200, scoped, tag = 'scoped memory for tpu_custom_call.1']
  %s0 = inlined_call_operand.smem [shape: u32[36], index: -1, kind: input, shape index: {}]
  %s1 = sld [smem:[%s0]]
  %s2 = scalar_lea.smem %s0, 1
  %s3 = sld [smem:[%s2]]
  %s4 = scalar_lea.smem %s0, 2
  %s5 = sld [smem:[%s4]]
  %s6 = scalar_lea.smem %s0, 3
  %s7 = sld [smem:[%s6]]
  %s8 = scalar_lea.smem %s0, 4
  %s9 = sld [smem:[%s8]]
  %s10 = scalar_lea.smem %s0, 5
  %s11 = sld [smem:[%s10]]
  %s12 = scalar_lea.smem %s0, 6
  %s13 = sld [smem:[%s12]]
  %s14 = scalar_lea.smem %s0, 7
  %s15 = sld [smem:[%s14]]
  %s16 = scalar_lea.smem %s0, 8
  %s17 = sld [smem:[%s16]]
  %s18 = scalar_lea.smem %s0, 9
  %s19 = sld [smem:[%s18]]
  %s20 = scalar_lea.smem %s0, 10
  %s21 = sld [smem:[%s20]]
  %s22 = scalar_lea.smem %s0, 11
  %s23 = sld [smem:[%s22]]
  %s24 = scalar_lea.smem %s0, 12
  %s25 = sld [smem:[%s24]]
  %s26 = scalar_lea.smem %s0, 13
  %s27 = sld [smem:[%s26]]
  %s28 = scalar_lea.smem %s0, 14
  %s29 = sld [smem:[%s28]]
  %s30 = scalar_lea.smem %s0, 15
  %s31 = sld [smem:[%s30]]
  %s32 = scalar_lea.smem %s0, 16
  %s33 = sld [smem:[%s32]]
  %s34 = scalar_lea.smem %s0, 17
  %s35 = sld [smem:[%s34]]
  %s36 = scalar_lea.smem %s0, 18
  %s37 = sld [smem:[%s36]]
  %s38 = scalar_lea.smem %s0, 19
  %s39 = sld [smem:[%s38]]
  %s40 = scalar_lea.smem %s0, 20
  %s41 = sld [smem:[%s40]]
  %s42 = scalar_lea.smem %s0, 21
  %s43 = sld [smem:[%s42]]
  %s44 = scalar_lea.smem %s0, 22
  %s45 = sld [smem:[%s44]]
  %s46 = scalar_lea.smem %s0, 23
  %s47 = sld [smem:[%s46]]
  %s48 = scalar_lea.smem %s0, 24
  %s49 = sld [smem:[%s48]]
  %s50 = scalar_lea.smem %s0, 25
  %s51 = sld [smem:[%s50]]
  %s52 = scalar_lea.smem %s0, 26
  %s53 = sld [smem:[%s52]]
  %s54 = scalar_lea.smem %s0, 27
  %s55 = sld [smem:[%s54]]
  %s56 = scalar_lea.smem %s0, 28
  %s57 = sld [smem:[%s56]]
  %s58 = scalar_lea.smem %s0, 29
  %s59 = sld [smem:[%s58]]
  %s60 = scalar_lea.smem %s0, 30
  %s61 = sld [smem:[%s60]]
  %s62 = scalar_lea.smem %s0, 31
  %s63 = sld [smem:[%s62]]
  %s64 = scalar_lea.smem %s0, 32
  %s65 = sld [smem:[%s64]]
  %s66 = scalar_lea.smem %s0, 33
  %s67 = sld [smem:[%s66]]
  %s68 = scalar_lea.smem %s0, 34
  %s69 = sld [smem:[%s68]]
  %s70 = scalar_lea.smem %s0, 35
  %s71 = sld [smem:[%s70]]
  %s72 = sld [smem:[#allocation0]]
  $region234: #{tpu_custom_call.1} parent=0
    _
  %s74 = ssub.s32 1, %s72
  %s75 = scalar_select 0, %s74, %s72
  %76 = sst [smem:[#allocation2]] %s69
  $region1: #{tpu_custom_call.1} parent=0
    #allocation3 [shape = 'u8[8192]{0}', space=vmem, size = 0x2000, scoped, tag = 'input window, operand 0, single buffered']
    #allocation4 [shape = 's32[1]{0}', space=sflag, size = 0x4, scoped, tag = 'scoped memory for tpu_custom_call.1']
    #allocation5 [shape = 's32[1]{0}', space=sflag, size = 0x4, scoped, tag = 'scoped memory for tpu_custom_call.1']
    #allocation6 [shape = 'u8[24576]{0}', space=vmem, size = 0x6000, scoped, tag = 'input window, operand 1, single buffered']
    #allocation7 [shape = 's32[1]{0}', space=sflag, size = 0x4, scoped, tag = 'scoped memory for tpu_custom_call.1']
    #allocation8 [shape = 'u8[1536]{0}', space=vmem, size = 0x800, scoped, tag = 'input window, operand 3, single buffered']
    #allocation9 [shape = 'u8[24576]{0}', space=vmem, size = 0x6000, scoped, tag = 'input window, operand 4, single buffered']
    #allocation10 [shape = 's32[1]{0}', space=sflag, size = 0x4, scoped, tag = 'scoped memory for tpu_custom_call.1']
    #allocation11 [shape = 'u8[147456]{0}', space=vmem, size = 0x24000, scoped, tag = 'input window, operand 5, single buffered']
    #allocation12 [shape = 'u8[1536]{0}', space=vmem, size = 0x800, scoped, tag = 'input window, operand 6, single buffered']
    #allocation13 [shape = 's32[1]{0}', space=sflag, size = 0x4, scoped, tag = 'scoped memory for tpu_custom_call.1']
    #allocation14 [shape = 'u8[512]{0}', space=vmem, size = 0x400, scoped, tag = 'input window, operand 9, single buffered']
    #allocation15 [shape = 'u8[147456]{0}', space=vmem, size = 0x24000, scoped, tag = 'input window, operand 10, single buffered']
    #allocation16 [shape = 's32[1]{0}', space=sflag, size = 0x4, scoped, tag = 'scoped memory for tpu_custom_call.1']
    #allocation17 [shape = 'u8[1024]{0}', space=vmem, size = 0x400, scoped, tag = 'input window, operand 13, single buffered']
    #allocation18 [shape = 'u8[1536]{0}', space=vmem, size = 0x800, scoped, tag = 'input window, operand 16, single buffered']
    #allocation19 [shape = 's32[1]{0}', space=sflag, size = 0x4, scoped, tag = 'scoped memory for tpu_custom_call.1']
    #allocation20 [shape = 'u8[1536]{0}', space=vmem, size = 0x800, scoped, tag = 'input window, operand 18, single buffered']
    #allocation21 [shape = 'u8[1536]{0}', space=vmem, size = 0x800, scoped, tag = 'input window, operand 19, single buffered']
    #allocation22 [shape = 's32[1]{0}', space=sflag, size = 0x4, scoped, tag = 'scoped memory for tpu_custom_call.1']
    #allocation23 [shape = 'u8[1536]{0}', space=vmem, size = 0x800, scoped, tag = 'input window, operand 20, single buffered']
    #allocation24 [shape = 'u8[1536]{0}', space=vmem, size = 0x800, scoped, tag = 'input window, operand 22, single buffered']
    #allocation25 [shape = 's32[1]{0}', space=sflag, size = 0x4, scoped, tag = 'scoped memory for tpu_custom_call.1']
    #allocation26 [shape = 'u8[1536]{0}', space=vmem, size = 0x800, scoped, tag = 'input window, operand 24, single buffered']
    #allocation27 [shape = 'u8[1536]{0}', space=vmem, size = 0x800, scoped, tag = 'input window, operand 25, single buffered']
    #allocation28 [shape = 's32[1]{0}', space=sflag, size = 0x4, scoped, tag = 'scoped memory for tpu_custom_call.1']
    #allocation29 [shape = 'u8[1536]{0}', space=vmem, size = 0x800, scoped, tag = 'input window, operand 26, single buffered']
    #allocation30 [shape = 'u8[1536]{0}', space=vmem, size = 0x800, scoped, tag = 'input window, operand 28, single buffered']
    #allocation31 [shape = 's32[1]{0}', space=sflag, size = 0x4, scoped, tag = 'scoped memory for tpu_custom_call.1']
    #allocation32 [shape = 'u8[512]{0}', space=vmem, size = 0x400, scoped, tag = 'input window, operand 30, single buffered']
    #allocation33 [shape = 'u8[512]{0}', space=vmem, size = 0x400, scoped, tag = 'input window, operand 32, single buffered']
    #allocation34 [shape = 's32[1]{0}', space=sflag, size = 0x4, scoped, tag = 'scoped memory for tpu_custom_call.1']
    #allocation35 [shape = 'u8[512]{0}', space=vmem, size = 0x400, scoped, tag = 'input window, operand 33, single buffered']
    #allocation36 [shape = 'u8[1024]{0}', space=vmem, size = 0x400, scoped, tag = 'output window, operand 0, single buffered']
    %77 = vsyncpa [#allocation4], 0
    %78 = vsyncpa [#allocation7], 0
    %79 = vsyncpa [#allocation10], 0
    %80 = vsyncpa [#allocation13], 0
    %81 = vsyncpa [#allocation16], 0
    %82 = vsyncpa [#allocation19], 0
    %83 = vsyncpa [#allocation22], 0
    %84 = vsyncpa [#allocation25], 0
    %85 = vsyncpa [#allocation28], 0
    %86 = vsyncpa [#allocation31], 0
    %87 = vsyncpa [#allocation34], 0
    %88 = vsyncpa [#allocation5], 0
    // Predicated region
    $region2: #{tpu_custom_call.1} parent=1 // pred_check
      _
    $region3: #{tpu_custom_call.1} parent=1 // pred_check_branch
      %90 = sbr.rel (0) target = $region5
    $region4: #{tpu_custom_call.1} parent=1 // pred_region
      %s92 = ssub.s32 256, 256
      %93 = vsyncadd [#allocation4], %s92
      %s94 = sshll.u32 [#allocation3], 4
      %s95 = int_to_ptr.vmem [resolvable:$true] %s94
      %100 = dma.hbm_to_vmem [thread:$0]  %s1, 256, %s95, [#allocation4], 128, 128, 8
    $region5: #{tpu_custom_call.1} parent=1 // pred_fallthru
      _
    // Predicated region
    $region6: #{tpu_custom_call.1} parent=1 // pred_check
      _
    $region7: #{tpu_custom_call.1} parent=1 // pred_check_branch
      %102 = sbr.rel (0) target = $region9
    $region8: #{tpu_custom_call.1} parent=1 // pred_region
      %s104 = ssub.s32 768, 768
      %105 = vsyncadd [#allocation7], %s104
      %s106 = sshll.u32 [#allocation6], 4
      %s107 = int_to_ptr.vmem [resolvable:$true] %s106
      %112 = dma.hbm_to_vmem [thread:$0]  %s3, 768, %s107, [#allocation7], 384, 384, 24
    $region9: #{tpu_custom_call.1} parent=1 // pred_fallthru
      _
    // Predicated region
    $region10: #{tpu_custom_call.1} parent=1 // pred_check
      _
    $region11: #{tpu_custom_call.1} parent=1 // pred_check_branch
      %114 = sbr.rel (0) target = $region13
    $region12: #{tpu_custom_call.1} parent=1 // pred_region
      _
    $region13: #{tpu_custom_call.1} parent=1 // pred_fallthru
      _
    // Predicated region
    $region14: #{tpu_custom_call.1} parent=1 // pred_check
      _
    $region15: #{tpu_custom_call.1} parent=1 // pred_check_branch
      %116 = sbr.rel (0) target = $region17
    $region16: #{tpu_custom_call.1} parent=1 // pred_region
      %s118 = ssub.s32 48, 48
      %119 = vsyncadd [#allocation7], %s118
      %s121 = sshll.u32 [#allocation8], 4
      %s122 = int_to_ptr.vmem [resolvable:$true] %s121
      %124 = dma.hbm_to_vmem [thread:$0]  %s7, 48, %s122, [#allocation7]
    $region17: #{tpu_custom_call.1} parent=1 // pred_fallthru
      _
    // Predicated region
    $region18: #{tpu_custom_call.1} parent=1 // pred_check
      _
    $region19: #{tpu_custom_call.1} parent=1 // pred_check_branch
      %126 = sbr.rel (0) target = $region21
    $region20: #{tpu_custom_call.1} parent=1 // pred_region
      %s128 = ssub.s32 768, 768
      %129 = vsyncadd [#allocation10], %s128
      %s130 = sshll.u32 [#allocation9], 4
      %s131 = int_to_ptr.vmem [resolvable:$true] %s130
      %136 = dma.hbm_to_vmem [thread:$0]  %s9, 768, %s131, [#allocation10], 384, 384, 24
    $region21: #{tpu_custom_call.1} parent=1 // pred_fallthru
      _
    // Predicated region
    $region22: #{tpu_custom_call.1} parent=1 // pred_check
      _
    $region23: #{tpu_custom_call.1} parent=1 // pred_check_branch
      %138 = sbr.rel (0) target = $region25
    $region24: #{tpu_custom_call.1} parent=1 // pred_region
      %s140 = ssub.s32 4608, 4608
      %141 = vsyncadd [#allocation10], %s140
      %s142 = sshll.u32 [#allocation11], 4
      %s143 = int_to_ptr.vmem [resolvable:$true] %s142
      %148 = dma.hbm_to_vmem [thread:$0]  %s11, 4608, %s143, [#allocation10], 384, 384, 24
    $region25: #{tpu_custom_call.1} parent=1 // pred_fallthru
      _
    // Predicated region
    $region26: #{tpu_custom_call.1} parent=1 // pred_check
      _
    $region27: #{tpu_custom_call.1} parent=1 // pred_check_branch
      %150 = sbr.rel (0) target = $region29
    $region28: #{tpu_custom_call.1} parent=1 // pred_region
      %s152 = ssub.s32 48, 48
      %153 = vsyncadd [#allocation13], %s152
      %s155 = sshll.u32 [#allocation12], 4
      %s156 = int_to_ptr.vmem [resolvable:$true] %s155
      %158 = dma.hbm_to_vmem [thread:$0]  %s13, 48, %s156, [#allocation13]
    $region29: #{tpu_custom_call.1} parent=1 // pred_fallthru
      _
    // Predicated region
    $region30: #{tpu_custom_call.1} parent=1 // pred_check
      _
    $region31: #{tpu_custom_call.1} parent=1 // pred_check_branch
      %160 = sbr.rel (0) target = $region33
    $region32: #{tpu_custom_call.1} parent=1 // pred_region
      _
    $region33: #{tpu_custom_call.1} parent=1 // pred_fallthru
      _
    // Predicated region
    $region34: #{tpu_custom_call.1} parent=1 // pred_check
      _
    $region35: #{tpu_custom_call.1} parent=1 // pred_check_branch
      %162 = sbr.rel (0) target = $region37
    $region36: #{tpu_custom_call.1} parent=1 // pred_region
      _
    $region37: #{tpu_custom_call.1} parent=1 // pred_fallthru
      _
    // Predicated region
    $region38: #{tpu_custom_call.1} parent=1 // pred_check
      _
    $region39: #{tpu_custom_call.1} parent=1 // pred_check_branch
      %164 = sbr.rel (0) target = $region41
    $region40: #{tpu_custom_call.1} parent=1 // pred_region
      %s166 = ssub.s32 16, 16
      %167 = vsyncadd [#allocation13], %s166
      %s169 = sshll.u32 [#allocation14], 4
      %s170 = int_to_ptr.vmem [resolvable:$true] %s169
      %172 = dma.hbm_to_vmem [thread:$0]  %s19, 16, %s170, [#allocation13]
    $region41: #{tpu_custom_call.1} parent=1 // pred_fallthru
      _
    // Predicated region
    $region42: #{tpu_custom_call.1} parent=1 // pred_check
      _
    $region43: #{tpu_custom_call.1} parent=1 // pred_check_branch
      %174 = sbr.rel (0) target = $region45
    $region44: #{tpu_custom_call.1} parent=1 // pred_region
      %s176 = ssub.s32 4608, 4608
      %177 = vsyncadd [#allocation16], %s176
      %s178 = sshll.u32 [#allocation15], 4
      %s179 = int_to_ptr.vmem [resolvable:$true] %s178
      %184 = dma.hbm_to_vmem [thread:$0]  %s21, 4608, %s179, [#allocation16], 1536, 1536, 96
    $region45: #{tpu_custom_call.1} parent=1 // pred_fallthru
      _
    // Predicated region
    $region46: #{tpu_custom_call.1} parent=1 // pred_check
      _
    $region47: #{tpu_custom_call.1} parent=1 // pred_check_branch
      %186 = sbr.rel (0) target = $region49
    $region48: #{tpu_custom_call.1} parent=1 // pred_region
      _
    $region49: #{tpu_custom_call.1} parent=1 // pred_fallthru
      _
    // Predicated region
    $region50: #{tpu_custom_call.1} parent=1 // pred_check
      _
    $region51: #{tpu_custom_call.1} parent=1 // pred_check_branch
      %188 = sbr.rel (0) target = $region53
    $region52: #{tpu_custom_call.1} parent=1 // pred_region
      _
    $region53: #{tpu_custom_call.1} parent=1 // pred_fallthru
      _
    // Predicated region
    $region54: #{tpu_custom_call.1} parent=1 // pred_check
      _
    $region55: #{tpu_custom_call.1} parent=1 // pred_check_branch
      %190 = sbr.rel (0) target = $region57
    $region56: #{tpu_custom_call.1} parent=1 // pred_region
      %s192 = ssub.s32 32, 32
      %193 = vsyncadd [#allocation16], %s192
      %s195 = sshll.u32 [#allocation17], 4
      %s196 = int_to_ptr.vmem [resolvable:$true] %s195
      %198 = dma.hbm_to_vmem [thread:$0]  %s27, 32, %s196, [#allocation16]
    $region57: #{tpu_custom_call.1} parent=1 // pred_fallthru
      _
    // Predicated region
    $region58: #{tpu_custom_call.1} parent=1 // pred_check
      _
    $region59: #{tpu_custom_call.1} parent=1 // pred_check_branch
      %200 = sbr.rel (0) target = $region61
    $region60: #{tpu_custom_call.1} parent=1 // pred_region
      _
    $region61: #{tpu_custom_call.1} parent=1 // pred_fallthru
      _
    // Predicated region
    $region62: #{tpu_custom_call.1} parent=1 // pred_check
      _
    $region63: #{tpu_custom_call.1} parent=1 // pred_check_branch
      %202 = sbr.rel (0) target = $region65
    $region64: #{tpu_custom_call.1} parent=1 // pred_region
      _
    $region65: #{tpu_custom_call.1} parent=1 // pred_fallthru
      _
    // Predicated region
    $region66: #{tpu_custom_call.1} parent=1 // pred_check
      _
    $region67: #{tpu_custom_call.1} parent=1 // pred_check_branch
      %204 = sbr.rel (0) target = $region69
    $region68: #{tpu_custom_call.1} parent=1 // pred_region
      %s206 = ssub.s32 48, 48
      %207 = vsyncadd [#allocation19], %s206
      %s208 = sshll.u32 [#allocation18], 4
      %s209 = int_to_ptr.vmem [resolvable:$true] %s208
      %214 = dma.hbm_to_vmem [thread:$0]  %s33, 48, %s209, [#allocation19], 16, 16, 1
    $region69: #{tpu_custom_call.1} parent=1 // pred_fallthru
      _
    // Predicated region
    $region70: #{tpu_custom_call.1} parent=1 // pred_check
      _
    $region71: #{tpu_custom_call.1} parent=1 // pred_check_branch
      %216 = sbr.rel (0) target = $region73
    $region72: #{tpu_custom_call.1} parent=1 // pred_region
      _
    $region73: #{tpu_custom_call.1} parent=1 // pred_fallthru
      _
    // Predicated region
    $region74: #{tpu_custom_call.1} parent=1 // pred_check
      _
    $region75: #{tpu_custom_call.1} parent=1 // pred_check_branch
      %218 = sbr.rel (0) target = $region77
    $region76: #{tpu_custom_call.1} parent=1 // pred_region
      %s220 = ssub.s32 48, 48
      %221 = vsyncadd [#allocation19], %s220
      %s222 = sshll.u32 [#allocation20], 4
      %s223 = int_to_ptr.vmem [resolvable:$true] %s222
      %228 = dma.hbm_to_vmem [thread:$0]  %s37, 48, %s223, [#allocation19], 16, 16, 1
    $region77: #{tpu_custom_call.1} parent=1 // pred_fallthru
      _
    // Predicated region
    $region78: #{tpu_custom_call.1} parent=1 // pred_check
      _
    $region79: #{tpu_custom_call.1} parent=1 // pred_check_branch
      %230 = sbr.rel (0) target = $region81
    $region80: #{tpu_custom_call.1} parent=1 // pred_region
      %s232 = ssub.s32 48, 48
      %233 = vsyncadd [#allocation22], %s232
      %s234 = sshll.u32 [#allocation21], 4
      %s235 = int_to_ptr.vmem [resolvable:$true] %s234
      %240 = dma.hbm_to_vmem [thread:$0]  %s39, 48, %s235, [#allocation22], 16, 16, 1
    $region81: #{tpu_custom_call.1} parent=1 // pred_fallthru
      _
    // Predicated region
    $region82: #{tpu_custom_call.1} parent=1 // pred_check
      _
    $region83: #{tpu_custom_call.1} parent=1 // pred_check_branch
      %242 = sbr.rel (0) target = $region85
    $region84: #{tpu_custom_call.1} parent=1 // pred_region
      %s244 = ssub.s32 48, 48
      %245 = vsyncadd [#allocation22], %s244
      %s246 = sshll.u32 [#allocation23], 4
      %s247 = int_to_ptr.vmem [resolvable:$true] %s246
      %252 = dma.hbm_to_vmem [thread:$0]  %s41, 48, %s247, [#allocation22], 16, 16, 1
    $region85: #{tpu_custom_call.1} parent=1 // pred_fallthru
      _
    // Predicated region
    $region86: #{tpu_custom_call.1} parent=1 // pred_check
      _
    $region87: #{tpu_custom_call.1} parent=1 // pred_check_branch
      %254 = sbr.rel (0) target = $region89
    $region88: #{tpu_custom_call.1} parent=1 // pred_region
      _
    $region89: #{tpu_custom_call.1} parent=1 // pred_fallthru
      _
    // Predicated region
    $region90: #{tpu_custom_call.1} parent=1 // pred_check
      _
    $region91: #{tpu_custom_call.1} parent=1 // pred_check_branch
      %256 = sbr.rel (0) target = $region93
    $region92: #{tpu_custom_call.1} parent=1 // pred_region
      %s258 = ssub.s32 48, 48
      %259 = vsyncadd [#allocation25], %s258
      %s260 = sshll.u32 [#allocation24], 4
      %s261 = int_to_ptr.vmem [resolvable:$true] %s260
      %266 = dma.hbm_to_vmem [thread:$0]  %s45, 48, %s261, [#allocation25], 16, 16, 1
    $region93: #{tpu_custom_call.1} parent=1 // pred_fallthru
      _
    // Predicated region
    $region94: #{tpu_custom_call.1} parent=1 // pred_check
      _
    $region95: #{tpu_custom_call.1} parent=1 // pred_check_branch
      %268 = sbr.rel (0) target = $region97
    $region96: #{tpu_custom_call.1} parent=1 // pred_region
      _
    $region97: #{tpu_custom_call.1} parent=1 // pred_fallthru
      _
    // Predicated region
    $region98: #{tpu_custom_call.1} parent=1 // pred_check
      _
    $region99: #{tpu_custom_call.1} parent=1 // pred_check_branch
      %270 = sbr.rel (0) target = $region101
    $region100: #{tpu_custom_call.1} parent=1 // pred_region
      %s272 = ssub.s32 48, 48
      %273 = vsyncadd [#allocation25], %s272
      %s274 = sshll.u32 [#allocation26], 4
      %s275 = int_to_ptr.vmem [resolvable:$true] %s274
      %280 = dma.hbm_to_vmem [thread:$0]  %s49, 48, %s275, [#allocation25], 16, 16, 1
    $region101: #{tpu_custom_call.1} parent=1 // pred_fallthru
      _
    // Predicated region
    $region102: #{tpu_custom_call.1} parent=1 // pred_check
      _
    $region103: #{tpu_custom_call.1} parent=1 // pred_check_branch
      %282 = sbr.rel (0) target = $region105
    $region104: #{tpu_custom_call.1} parent=1 // pred_region
      %s284 = ssub.s32 48, 48
      %285 = vsyncadd [#allocation28], %s284
      %s286 = sshll.u32 [#allocation27], 4
      %s287 = int_to_ptr.vmem [resolvable:$true] %s286
      %292 = dma.hbm_to_vmem [thread:$0]  %s51, 48, %s287, [#allocation28], 16, 16, 1
    $region105: #{tpu_custom_call.1} parent=1 // pred_fallthru
      _
    // Predicated region
    $region106: #{tpu_custom_call.1} parent=1 // pred_check
      _
    $region107: #{tpu_custom_call.1} parent=1 // pred_check_branch
      %294 = sbr.rel (0) target = $region109
    $region108: #{tpu_custom_call.1} parent=1 // pred_region
      %s296 = ssub.s32 48, 48
      %297 = vsyncadd [#allocation28], %s296
      %s298 = sshll.u32 [#allocation29], 4
      %s299 = int_to_ptr.vmem [resolvable:$true] %s298
      %304 = dma.hbm_to_vmem [thread:$0]  %s53, 48, %s299, [#allocation28], 16, 16, 1
    $region109: #{tpu_custom_call.1} parent=1 // pred_fallthru
      _
    // Predicated region
    $region110: #{tpu_custom_call.1} parent=1 // pred_check
      _
    $region111: #{tpu_custom_call.1} parent=1 // pred_check_branch
      %306 = sbr.rel (0) target = $region113
    $region112: #{tpu_custom_call.1} parent=1 // pred_region
      _
    $region113: #{tpu_custom_call.1} parent=1 // pred_fallthru
      _
    // Predicated region
    $region114: #{tpu_custom_call.1} parent=1 // pred_check
      _
    $region115: #{tpu_custom_call.1} parent=1 // pred_check_branch
      %308 = sbr.rel (0) target = $region117
    $region116: #{tpu_custom_call.1} parent=1 // pred_region
      %s310 = ssub.s32 48, 48
      %311 = vsyncadd [#allocation31], %s310
      %s312 = sshll.u32 [#allocation30], 4
      %s313 = int_to_ptr.vmem [resolvable:$true] %s312
      %318 = dma.hbm_to_vmem [thread:$0]  %s57, 48, %s313, [#allocation31], 16, 16, 1
    $region117: #{tpu_custom_call.1} parent=1 // pred_fallthru
      _
    // Predicated region
    $region118: #{tpu_custom_call.1} parent=1 // pred_check
      _
    $region119: #{tpu_custom_call.1} parent=1 // pred_check_branch
      %320 = sbr.rel (0) target = $region121
    $region120: #{tpu_custom_call.1} parent=1 // pred_region
      _
    $region121: #{tpu_custom_call.1} parent=1 // pred_fallthru
      _
    // Predicated region
    $region122: #{tpu_custom_call.1} parent=1 // pred_check
      _
    $region123: #{tpu_custom_call.1} parent=1 // pred_check_branch
      %322 = sbr.rel (0) target = $region125
    $region124: #{tpu_custom_call.1} parent=1 // pred_region
      %s324 = ssub.s32 16, 16
      %325 = vsyncadd [#allocation31], %s324
      %s327 = sshll.u32 [#allocation32], 4
      %s328 = int_to_ptr.vmem [resolvable:$true] %s327
      %330 = dma.hbm_to_vmem [thread:$0]  %s61, 16, %s328, [#allocation31]
    $region125: #{tpu_custom_call.1} parent=1 // pred_fallthru
      _
    // Predicated region
    $region126: #{tpu_custom_call.1} parent=1 // pred_check
      _
    $region127: #{tpu_custom_call.1} parent=1 // pred_check_branch
      %332 = sbr.rel (0) target = $region129
    $region128: #{tpu_custom_call.1} parent=1 // pred_region
      _
    $region129: #{tpu_custom_call.1} parent=1 // pred_fallthru
      _
    // Predicated region
    $region130: #{tpu_custom_call.1} parent=1 // pred_check
      _
    $region131: #{tpu_custom_call.1} parent=1 // pred_check_branch
      %334 = sbr.rel (0) target = $region133
    $region132: #{tpu_custom_call.1} parent=1 // pred_region
      %s336 = ssub.s32 16, 16
      %337 = vsyncadd [#allocation34], %s336
      %s339 = sshll.u32 [#allocation33], 4
      %s340 = int_to_ptr.vmem [resolvable:$true] %s339
      %342 = dma.hbm_to_vmem [thread:$0]  %s65, 16, %s340, [#allocation34]
    $region133: #{tpu_custom_call.1} parent=1 // pred_fallthru
      _
    // Predicated region
    $region134: #{tpu_custom_call.1} parent=1 // pred_check
      _
    $region135: #{tpu_custom_call.1} parent=1 // pred_check_branch
      %344 = sbr.rel (0) target = $region137
    $region136: #{tpu_custom_call.1} parent=1 // pred_region
      %s346 = ssub.s32 16, 16
      %347 = vsyncadd [#allocation34], %s346
      %s349 = sshll.u32 [#allocation35], 4
      %s350 = int_to_ptr.vmem [resolvable:$true] %s349
      %352 = dma.hbm_to_vmem [thread:$0]  %s67, 16, %s350, [#allocation34]
    $region137: #{tpu_custom_call.1} parent=1 // pred_fallthru
      _
    // Predicated region
    $region138: #{tpu_custom_call.1} parent=1 // pred_check
      _
    $region139: #{tpu_custom_call.1} parent=1 // pred_check_branch
      %354 = sbr.rel (0) target = $region141
    $region140: #{tpu_custom_call.1} parent=1 // pred_region
      _
    $region141: #{tpu_custom_call.1} parent=1 // pred_fallthru
      _
    // Predicated region
    $region142: #{tpu_custom_call.1} parent=1 // pred_check
      _
    $region143: #{tpu_custom_call.1} parent=1 // pred_check_branch
      %356 = sbr.rel (0) target = $region145
    $region144: #{tpu_custom_call.1} parent=1 // pred_region
      %357 = dma.done [#allocation4], 256
    $region145: #{tpu_custom_call.1} parent=1 // pred_fallthru
      _
    // Predicated region
    $region146: #{tpu_custom_call.1} parent=1 // pred_check
      _
    $region147: #{tpu_custom_call.1} parent=1 // pred_check_branch
      %359 = sbr.rel (0) target = $region149
    $region148: #{tpu_custom_call.1} parent=1 // pred_region
      %360 = dma.done [#allocation7], 768
    $region149: #{tpu_custom_call.1} parent=1 // pred_fallthru
      _
    // Predicated region
    $region150: #{tpu_custom_call.1} parent=1 // pred_check
      _
    $region151: #{tpu_custom_call.1} parent=1 // pred_check_branch
      %362 = sbr.rel (0) target = $region153
    $region152: #{tpu_custom_call.1} parent=1 // pred_region
      %363 = dma.done [#allocation7], 48
    $region153: #{tpu_custom_call.1} parent=1 // pred_fallthru
      _
    // Predicated region
    $region154: #{tpu_custom_call.1} parent=1 // pred_check
      _
    $region155: #{tpu_custom_call.1} parent=1 // pred_check_branch
      %365 = sbr.rel (0) target = $region157
    $region156: #{tpu_custom_call.1} parent=1 // pred_region
      %366 = dma.done [#allocation10], 768
    $region157: #{tpu_custom_call.1} parent=1 // pred_fallthru
      _
    // Predicated region
    $region158: #{tpu_custom_call.1} parent=1 // pred_check
      _
    $region159: #{tpu_custom_call.1} parent=1 // pred_check_branch
      %368 = sbr.rel (0) target = $region161
    $region160: #{tpu_custom_call.1} parent=1 // pred_region
      %369 = dma.done [#allocation10], 4608
    $region161: #{tpu_custom_call.1} parent=1 // pred_fallthru
      _
    // Predicated region
    $region162: #{tpu_custom_call.1} parent=1 // pred_check
      _
    $region163: #{tpu_custom_call.1} parent=1 // pred_check_branch
      %371 = sbr.rel (0) target = $region165
    $region164: #{tpu_custom_call.1} parent=1 // pred_region
      %372 = dma.done [#allocation13], 48
    $region165: #{tpu_custom_call.1} parent=1 // pred_fallthru
      _
    // Predicated region
    $region166: #{tpu_custom_call.1} parent=1 // pred_check
      _
    $region167: #{tpu_custom_call.1} parent=1 // pred_check_branch
      %374 = sbr.rel (0) target = $region169
    $region168: #{tpu_custom_call.1} parent=1 // pred_region
      %375 = dma.done [#allocation13], 16
    $region169: #{tpu_custom_call.1} parent=1 // pred_fallthru
      _
    // Predicated region
    $region170: #{tpu_custom_call.1} parent=1 // pred_check
      _
    $region171: #{tpu_custom_call.1} parent=1 // pred_check_branch
      %377 = sbr.rel (0) target = $region173
    $region172: #{tpu_custom_call.1} parent=1 // pred_region
      %378 = dma.done [#allocation16], 4608
    $region173: #{tpu_custom_call.1} parent=1 // pred_fallthru
      _
    // Predicated region
    $region174: #{tpu_custom_call.1} parent=1 // pred_check
      _
    $region175: #{tpu_custom_call.1} parent=1 // pred_check_branch
      %380 = sbr.rel (0) target = $region177
    $region176: #{tpu_custom_call.1} parent=1 // pred_region
      %381 = dma.done [#allocation16], 32
    $region177: #{tpu_custom_call.1} parent=1 // pred_fallthru
      _
    // Predicated region
    $region178: #{tpu_custom_call.1} parent=1 // pred_check
      _
    $region179: #{tpu_custom_call.1} parent=1 // pred_check_branch
      %383 = sbr.rel (0) target = $region181
    $region180: #{tpu_custom_call.1} parent=1 // pred_region
      %384 = dma.done [#allocation19], 48
    $region181: #{tpu_custom_call.1} parent=1 // pred_fallthru
      _
    // Predicated region
    $region182: #{tpu_custom_call.1} parent=1 // pred_check
      _
    $region183: #{tpu_custom_call.1} parent=1 // pred_check_branch
      %386 = sbr.rel (0) target = $region185
    $region184: #{tpu_custom_call.1} parent=1 // pred_region
      %387 = dma.done [#allocation19], 48
    $region185: #{tpu_custom_call.1} parent=1 // pred_fallthru
      _
    // Predicated region
    $region186: #{tpu_custom_call.1} parent=1 // pred_check
      _
    $region187: #{tpu_custom_call.1} parent=1 // pred_check_branch
      %389 = sbr.rel (0) target = $region189
    $region188: #{tpu_custom_call.1} parent=1 // pred_region
      %390 = dma.done [#allocation22], 48
    $region189: #{tpu_custom_call.1} parent=1 // pred_fallthru
      _
    // Predicated region
    $region190: #{tpu_custom_call.1} parent=1 // pred_check
      _
    $region191: #{tpu_custom_call.1} parent=1 // pred_check_branch
      %392 = sbr.rel (0) target = $region193
    $region192: #{tpu_custom_call.1} parent=1 // pred_region
      %393 = dma.done [#allocation22], 48
    $region193: #{tpu_custom_call.1} parent=1 // pred_fallthru
      _
    // Predicated region
    $region194: #{tpu_custom_call.1} parent=1 // pred_check
      _
    $region195: #{tpu_custom_call.1} parent=1 // pred_check_branch
      %395 = sbr.rel (0) target = $region197
    $region196: #{tpu_custom_call.1} parent=1 // pred_region
      %396 = dma.done [#allocation25], 48
    $region197: #{tpu_custom_call.1} parent=1 // pred_fallthru
      _
    // Predicated region
    $region198: #{tpu_custom_call.1} parent=1 // pred_check
      _
    $region199: #{tpu_custom_call.1} parent=1 // pred_check_branch
      %398 = sbr.rel (0) target = $region201
    $region200: #{tpu_custom_call.1} parent=1 // pred_region
      %399 = dma.done [#allocation25], 48
    $region201: #{tpu_custom_call.1} parent=1 // pred_fallthru
      _
    // Predicated region
    $region202: #{tpu_custom_call.1} parent=1 // pred_check
      _
    $region203: #{tpu_custom_call.1} parent=1 // pred_check_branch
      %401 = sbr.rel (0) target = $region205
    $region204: #{tpu_custom_call.1} parent=1 // pred_region
      %402 = dma.done [#allocation28], 48
    $region205: #{tpu_custom_call.1} parent=1 // pred_fallthru
      _
    // Predicated region
    $region206: #{tpu_custom_call.1} parent=1 // pred_check
      _
    $region207: #{tpu_custom_call.1} parent=1 // pred_check_branch
      %404 = sbr.rel (0) target = $region209
    $region208: #{tpu_custom_call.1} parent=1 // pred_region
      %405 = dma.done [#allocation28], 48
    $region209: #{tpu_custom_call.1} parent=1 // pred_fallthru
      _
    // Predicated region
    $region210: #{tpu_custom_call.1} parent=1 // pred_check
      _
    $region211: #{tpu_custom_call.1} parent=1 // pred_check_branch
      %407 = sbr.rel (0) target = $region213
    $region212: #{tpu_custom_call.1} parent=1 // pred_region
      %408 = dma.done [#allocation31], 48
    $region213: #{tpu_custom_call.1} parent=1 // pred_fallthru
      _
    // Predicated region
    $region214: #{tpu_custom_call.1} parent=1 // pred_check
      _
    $region215: #{tpu_custom_call.1} parent=1 // pred_check_branch
      %410 = sbr.rel (0) target = $region217
    $region216: #{tpu_custom_call.1} parent=1 // pred_region
      %411 = dma.done [#allocation31], 16
    $region217: #{tpu_custom_call.1} parent=1 // pred_fallthru
      _
    // Predicated region
    $region218: #{tpu_custom_call.1} parent=1 // pred_check
      _
    $region219: #{tpu_custom_call.1} parent=1 // pred_check_branch
      %413 = sbr.rel (0) target = $region221
    $region220: #{tpu_custom_call.1} parent=1 // pred_region
      %414 = dma.done [#allocation34], 16
    $region221: #{tpu_custom_call.1} parent=1 // pred_fallthru
      _
    // Predicated region
    $region222: #{tpu_custom_call.1} parent=1 // pred_check
      _
    $region223: #{tpu_custom_call.1} parent=1 // pred_check_branch
      %416 = sbr.rel (0) target = $region225
    $region224: #{tpu_custom_call.1} parent=1 // pred_region
      %417 = dma.done [#allocation34], 16
    $region225: #{tpu_custom_call.1} parent=1 // pred_fallthru
      _
    %v418 = vld [vmem:[#allocation3] sm:$0xff]
    %v419 = vld [vmem:[#allocation3 + $0x8] sm:$0xff]
    %v420 = vld [vmem:[#allocation6] sm:$0xff]
    %v421 = vld [vmem:[#allocation6 + $0x8] sm:$0xff]
    %v422 = vld [vmem:[#allocation6 + $0x10] sm:$0xff]
    %v423 = vld [vmem:[#allocation6 + $0x18] sm:$0xff]
    %v424 = vld [vmem:[#allocation6 + $0x20] sm:$0xff]
    %v425 = vld [vmem:[#allocation6 + $0x28] sm:$0xff]
    %v426 = vld [vmem:[#allocation8] sm:$0x7]
    %v428 = vlaneseq
    %v429 = vshrl.u32 %v428, 7
    %v430 = vsub.s32 0, %v429
    %v431 = vrot.slane %v426, %v430
    %v432 = vlaneseq
    %v433 = vshrl.u32 %v432, 7
    %v434 = vsub.s32 1, %v433
    %v435 = vrot.slane %v426, %v434
    %v436 = vlaneseq
    %v437 = vshrl.u32 %v436, 7
    %v438 = vsub.s32 2, %v437
    %v439 = vrot.slane %v426, %v438
    %vm443 = vcmask 130048
    %v445 = vsel %vm443, %v418, 0
    %v448 = vsel %vm443, %v419, 0
    %450 = vmatprep.subr.mxu0 %v421
    %451 = vmatpush1.msra.mxu0 %v420
    %452 = vmatprep.subr.mxu0 %v424
    %453 = vmatpush1.msra.mxu0 %v423
    %454 = vmatprep.subr.mxu0 0.0
    %455 = vmatpush1.msra.mxu0 0.0
    %456 = vmatprep.subr.mxu0 0.0
    %457 = vmatpush1.msra.mxu0 0.0
    %458 = vmatprep.subr.mxu0 0.0
    %459 = vmatpush1.msra.mxu0 0.0
    %460 = vmatprep.subr.mxu0 0.0
    %461 = vmatpush1.msra.mxu0 0.0
    %462 = vmatprep.subr.mxu0 0.0
    %463 = vmatpush1.msra.mxu0 0.0
    %464 = vmatprep.subr.mxu0 0.0
    %465 = vmatpush1.msra.mxu0 0.0
    %466 = vmatprep.subr.mxu0 0.0
    %467 = vmatpush1.msra.mxu0 0.0
    %468 = vmatprep.subr.mxu0 0.0
    %469 = vmatpush1.msra.mxu0 0.0
    %470 = vmatprep.subr.mxu0 0.0
    %471 = vmatpush1.msra.mxu0 0.0
    %472 = vmatprep.subr.mxu0 0.0
    %473 = vmatpush1.msra.mxu0 0.0
    %474 = vmatprep.subr.mxu0 0.0
    %475 = vmatpush1.msra.mxu0 0.0
    %476 = vmatprep.subr.mxu0 0.0
    %477 = vmatpush1.msra.mxu0 0.0
    %478 = vmatprep.subr.mxu0 0.0
    %479 = vmatpush1.msra.mxu0 0.0
    %480 = vmatprep.subr.mxu0 0.0
    %481 = vmatpush1.msra.mxu0 0.0
    %482 = vmatprep.subr.mxu0 0.0
    %483 = vmatpush1.msra.mxu0 0.0
    %484 = vmatprep.subr.mxu0 0.0
    %485 = vmatpush1.msra.mxu0 0.0
    %486 = vmatprep.subr.mxu0 0.0
    %487 = vmatpush1.msra.mxu0 0.0
    %488 = vmatprep.subr.mxu0 0.0
    %489 = vmatpush1.msra.mxu0 0.0
    %490 = vmatprep.subr.mxu0 0.0
    %491 = vmatpush1.msra.mxu0 0.0
    %492 = vmatprep.subr.mxu0 0.0
    %493 = vmatpush1.msra.mxu0 0.0
    %494 = vmatprep.subr.mxu0 0.0
    %495 = vmatpush1.msra.mxu0 0.0
    %496 = vmatprep.subr.mxu0 0.0
    %497 = vmatpush1.msra.mxu0 0.0
    %498 = vmatprep.subr.mxu0 0.0
    %499 = vmatpush1.msra.mxu0 0.0
    %500 = vmatprep.subr.mxu0 0.0
    %501 = vmatpush1.msra.mxu0 0.0
    %502 = vmatprep.subr.mxu0 0.0
    %503 = vmatpush1.msra.mxu0 0.0
    %504 = vmatprep.subr.mxu0 0.0
    %505 = vmatpush1.msra.mxu0 0.0
    %506 = vmatprep.subr.mxu0 0.0
    %507 = vmatpush1.msra.mxu0 0.0
    %508 = vmatprep.subr.mxu0 0.0
    %509 = vmatpush1.msra.mxu0 0.0
    %510 = vmatprep.subr.mxu0 0.0
    %511 = vmatpush1.msra.mxu0 0.0
    %512 = vmatprep.subr.mxu0 0.0
    %513 = vmatpush1.msra.mxu0 0.0
    %514 = vmatprep.mubr.f32.mxu0 0.0
    %515 = vmatmul.mubr.f32.gmra.mrb[0].mxu0 %v445
    %v516 = vpop.f32.mrb[0].mxu0
    %v517 = vadd.f32 %v431, %v516
    %v518 = vpop.f32.mrb[0].mxu0
    %v519 = vadd.f32 %v435, %v518
    %520 = vmatprep.mubr.f32.mxu0 0.0
    %521 = vmatmul.mubr.f32.gmra.mrb[0].mxu0 %v448
    %v522 = vpop.f32.mrb[0].mxu0
    %v523 = vadd.f32 %v431, %v522
    %v524 = vpop.f32.mrb[0].mxu0
    %v525 = vadd.f32 %v435, %v524
    %526 = vdwg.mxu0
    %527 = vmatprep.subr.mxu0 0.0
    %528 = vmatpush1.msra.mxu0 %v422
    %529 = vmatprep.subr.mxu0 0.0
    %530 = vmatpush1.msra.mxu0 %v425
    %531 = vmatprep.subr.mxu0 0.0
    %532 = vmatpush1.msra.mxu0 0.0
    %533 = vmatprep.subr.mxu0 0.0
    %534 = vmatpush1.msra.mxu0 0.0
    %535 = vmatprep.subr.mxu0 0.0
    %536 = vmatpush1.msra.mxu0 0.0
    %537 = vmatprep.subr.mxu0 0.0
    %538 = vmatpush1.msra.mxu0 0.0
    %539 = vmatprep.subr.mxu0 0.0
    %540 = vmatpush1.msra.mxu0 0.0
    %541 = vmatprep.subr.mxu0 0.0
    %542 = vmatpush1.msra.mxu0 0.0
    %543 = vmatprep.subr.mxu0 0.0
    %544 = vmatpush1.msra.mxu0 0.0
    %545 = vmatprep.subr.mxu0 0.0
    %546 = vmatpush1.msra.mxu0 0.0
    %547 = vmatprep.subr.mxu0 0.0
    %548 = vmatpush1.msra.mxu0 0.0
    %549 = vmatprep.subr.mxu0 0.0
    %550 = vmatpush1.msra.mxu0 0.0
    %551 = vmatprep.subr.mxu0 0.0
    %552 = vmatpush1.msra.mxu0 0.0
    %553 = vmatprep.subr.mxu0 0.0
    %554 = vmatpush1.msra.mxu0 0.0
    %555 = vmatprep.subr.mxu0 0.0
    %556 = vmatpush1.msra.mxu0 0.0
    %557 = vmatprep.subr.mxu0 0.0
    %558 = vmatpush1.msra.mxu0 0.0
    %559 = vmatprep.subr.mxu0 0.0
    %560 = vmatpush1.msra.mxu0 0.0
    %561 = vmatprep.subr.mxu0 0.0
    %562 = vmatpush1.msra.mxu0 0.0
    %563 = vmatprep.subr.mxu0 0.0
    %564 = vmatpush1.msra.mxu0 0.0
    %565 = vmatprep.subr.mxu0 0.0
    %566 = vmatpush1.msra.mxu0 0.0
    %567 = vmatprep.subr.mxu0 0.0
    %568 = vmatpush1.msra.mxu0 0.0
    %569 = vmatprep.subr.mxu0 0.0
    %570 = vmatpush1.msra.mxu0 0.0
    %571 = vmatprep.subr.mxu0 0.0
    %572 = vmatpush1.msra.mxu0 0.0
    %573 = vmatprep.subr.mxu0 0.0
    %574 = vmatpush1.msra.mxu0 0.0
    %575 = vmatprep.subr.mxu0 0.0
    %576 = vmatpush1.msra.mxu0 0.0
    %577 = vmatprep.subr.mxu0 0.0
    %578 = vmatpush1.msra.mxu0 0.0
    %579 = vmatprep.subr.mxu0 0.0
    %580 = vmatpush1.msra.mxu0 0.0
    %581 = vmatprep.subr.mxu0 0.0
    %582 = vmatpush1.msra.mxu0 0.0
    %583 = vmatprep.subr.mxu0 0.0
    %584 = vmatpush1.msra.mxu0 0.0
    %585 = vmatprep.subr.mxu0 0.0
    %586 = vmatpush1.msra.mxu0 0.0
    %587 = vmatprep.subr.mxu0 0.0
    %588 = vmatpush1.msra.mxu0 0.0
    %589 = vmatprep.subr.mxu0 0.0
    %590 = vmatpush1.msra.mxu0 0.0
    %591 = vmatprep.mubr.f32.mxu0 0.0
    %592 = vmatmul.mubr.f32.gmra.mrb[0].mxu0 %v445
    %v593 = vpop.f32.mrb[0].mxu0
    %v594 = vadd.f32 %v439, %v593
    %v595 = vpop.f32.mrb[0].mxu0
    %596 = vmatprep.mubr.f32.mxu0 0.0
    %597 = vmatmul.mubr.f32.gmra.mrb[0].mxu0 %v448
    %v598 = vpop.f32.mrb[0].mxu0
    %v599 = vadd.f32 %v439, %v598
    %v600 = vpop.f32.mrb[0].mxu0
    %601 = vdwg.mxu0
    %v602 = vld [vmem:[#allocation9] sm:$0xff]
    %v603 = vld [vmem:[#allocation9 + $0x8] sm:$0xff]
    %v604 = vld [vmem:[#allocation9 + $0x10] sm:$0xff]
    %v605 = vld [vmem:[#allocation9 + $0x18] sm:$0xff]
    %v606 = vld [vmem:[#allocation9 + $0x20] sm:$0xff]
    %v607 = vld [vmem:[#allocation9 + $0x28] sm:$0xff]
    %v608 = vld [vmem:[#allocation12] sm:$0x7]
    %v610 = vlaneseq
    %v611 = vshrl.u32 %v610, 7
    %v612 = vsub.s32 0, %v611
    %v613 = vrot.slane %v608, %v612
    %v614 = vlaneseq
    %v615 = vshrl.u32 %v614, 7
    %v616 = vsub.s32 1, %v615
    %v617 = vrot.slane %v608, %v616
    %v618 = vlaneseq
    %v619 = vshrl.u32 %v618, 7
    %v620 = vsub.s32 2, %v619
    %v621 = vrot.slane %v608, %v620
    %625 = vmatprep.subr.mxu0 %v603
    %626 = vmatpush1.msra.mxu0 %v602
    %627 = vmatprep.subr.mxu0 %v606
    %628 = vmatpush1.msra.mxu0 %v605
    %629 = vmatprep.subr.mxu0 0.0
    %630 = vmatpush1.msra.mxu0 0.0
    %631 = vmatprep.subr.mxu0 0.0
    %632 = vmatpush1.msra.mxu0 0.0
    %633 = vmatprep.subr.mxu0 0.0
    %634 = vmatpush1.msra.mxu0 0.0
    %635 = vmatprep.subr.mxu0 0.0
    %636 = vmatpush1.msra.mxu0 0.0
    %637 = vmatprep.subr.mxu0 0.0
    %638 = vmatpush1.msra.mxu0 0.0
    %639 = vmatprep.subr.mxu0 0.0
    %640 = vmatpush1.msra.mxu0 0.0
    %641 = vmatprep.subr.mxu0 0.0
    %642 = vmatpush1.msra.mxu0 0.0
    %643 = vmatprep.subr.mxu0 0.0
    %644 = vmatpush1.msra.mxu0 0.0
    %645 = vmatprep.subr.mxu0 0.0
    %646 = vmatpush1.msra.mxu0 0.0
    %647 = vmatprep.subr.mxu0 0.0
    %648 = vmatpush1.msra.mxu0 0.0
    %649 = vmatprep.subr.mxu0 0.0
    %650 = vmatpush1.msra.mxu0 0.0
    %651 = vmatprep.subr.mxu0 0.0
    %652 = vmatpush1.msra.mxu0 0.0
    %653 = vmatprep.subr.mxu0 0.0
    %654 = vmatpush1.msra.mxu0 0.0
    %655 = vmatprep.subr.mxu0 0.0
    %656 = vmatpush1.msra.mxu0 0.0
    %657 = vmatprep.subr.mxu0 0.0
    %658 = vmatpush1.msra.mxu0 0.0
    %659 = vmatprep.subr.mxu0 0.0
    %660 = vmatpush1.msra.mxu0 0.0
    %661 = vmatprep.subr.mxu0 0.0
    %662 = vmatpush1.msra.mxu0 0.0
    %663 = vmatprep.subr.mxu0 0.0
    %664 = vmatpush1.msra.mxu0 0.0
    %665 = vmatprep.subr.mxu0 0.0
    %666 = vmatpush1.msra.mxu0 0.0
    %667 = vmatprep.subr.mxu0 0.0
    %668 = vmatpush1.msra.mxu0 0.0
    %669 = vmatprep.subr.mxu0 0.0
    %670 = vmatpush1.msra.mxu0 0.0
    %671 = vmatprep.subr.mxu0 0.0
    %672 = vmatpush1.msra.mxu0 0.0
    %673 = vmatprep.subr.mxu0 0.0
    %674 = vmatpush1.msra.mxu0 0.0
    %675 = vmatprep.subr.mxu0 0.0
    %676 = vmatpush1.msra.mxu0 0.0
    %677 = vmatprep.subr.mxu0 0.0
    %678 = vmatpush1.msra.mxu0 0.0
    %679 = vmatprep.subr.mxu0 0.0
    %680 = vmatpush1.msra.mxu0 0.0
    %681 = vmatprep.subr.mxu0 0.0
    %682 = vmatpush1.msra.mxu0 0.0
    %683 = vmatprep.subr.mxu0 0.0
    %684 = vmatpush1.msra.mxu0 0.0
    %685 = vmatprep.subr.mxu0 0.0
    %686 = vmatpush1.msra.mxu0 0.0
    %687 = vmatprep.subr.mxu0 0.0
    %688 = vmatpush1.msra.mxu0 0.0
    %689 = vmatprep.mubr.f32.mxu0 0.0
    %690 = vmatmul.mubr.f32.gmra.mrb[0].mxu0 %v445
    %v691 = vpop.f32.mrb[0].mxu0
    %v692 = vadd.f32 %v613, %v691
    %v693 = vpop.f32.mrb[0].mxu0
    %v694 = vadd.f32 %v617, %v693
    %695 = vmatprep.mubr.f32.mxu0 0.0
    %696 = vmatmul.mubr.f32.gmra.mrb[0].mxu0 %v448
    %v697 = vpop.f32.mrb[0].mxu0
    %v698 = vadd.f32 %v613, %v697
    %v699 = vpop.f32.mrb[0].mxu0
    %v700 = vadd.f32 %v617, %v699
    %701 = vdwg.mxu0
    %702 = vmatprep.subr.mxu0 0.0
    %703 = vmatpush1.msra.mxu0 %v604
    %704 = vmatprep.subr.mxu0 0.0
    %705 = vmatpush1.msra.mxu0 %v607
    %706 = vmatprep.subr.mxu0 0.0
    %707 = vmatpush1.msra.mxu0 0.0
    %708 = vmatprep.subr.mxu0 0.0
    %709 = vmatpush1.msra.mxu0 0.0
    %710 = vmatprep.subr.mxu0 0.0
    %711 = vmatpush1.msra.mxu0 0.0
    %712 = vmatprep.subr.mxu0 0.0
    %713 = vmatpush1.msra.mxu0 0.0
    %714 = vmatprep.subr.mxu0 0.0
    %715 = vmatpush1.msra.mxu0 0.0
    %716 = vmatprep.subr.mxu0 0.0
    %717 = vmatpush1.msra.mxu0 0.0
    %718 = vmatprep.subr.mxu0 0.0
    %719 = vmatpush1.msra.mxu0 0.0
    %720 = vmatprep.subr.mxu0 0.0
    %721 = vmatpush1.msra.mxu0 0.0
    %722 = vmatprep.subr.mxu0 0.0
    %723 = vmatpush1.msra.mxu0 0.0
    %724 = vmatprep.subr.mxu0 0.0
    %725 = vmatpush1.msra.mxu0 0.0
    %726 = vmatprep.subr.mxu0 0.0
    %727 = vmatpush1.msra.mxu0 0.0
    %728 = vmatprep.subr.mxu0 0.0
    %729 = vmatpush1.msra.mxu0 0.0
    %730 = vmatprep.subr.mxu0 0.0
    %731 = vmatpush1.msra.mxu0 0.0
    %732 = vmatprep.subr.mxu0 0.0
    %733 = vmatpush1.msra.mxu0 0.0
    %734 = vmatprep.subr.mxu0 0.0
    %735 = vmatpush1.msra.mxu0 0.0
    %736 = vmatprep.subr.mxu0 0.0
    %737 = vmatpush1.msra.mxu0 0.0
    %738 = vmatprep.subr.mxu0 0.0
    %739 = vmatpush1.msra.mxu0 0.0
    %740 = vmatprep.subr.mxu0 0.0
    %741 = vmatpush1.msra.mxu0 0.0
    %742 = vmatprep.subr.mxu0 0.0
    %743 = vmatpush1.msra.mxu0 0.0
    %744 = vmatprep.subr.mxu0 0.0
    %745 = vmatpush1.msra.mxu0 0.0
    %746 = vmatprep.subr.mxu0 0.0
    %747 = vmatpush1.msra.mxu0 0.0
    %748 = vmatprep.subr.mxu0 0.0
    %749 = vmatpush1.msra.mxu0 0.0
    %750 = vmatprep.subr.mxu0 0.0
    %751 = vmatpush1.msra.mxu0 0.0
    %752 = vmatprep.subr.mxu0 0.0
    %753 = vmatpush1.msra.mxu0 0.0
    %754 = vmatprep.subr.mxu0 0.0
    %755 = vmatpush1.msra.mxu0 0.0
    %756 = vmatprep.subr.mxu0 0.0
    %757 = vmatpush1.msra.mxu0 0.0
    %758 = vmatprep.subr.mxu0 0.0
    %759 = vmatpush1.msra.mxu0 0.0
    %760 = vmatprep.subr.mxu0 0.0
    %761 = vmatpush1.msra.mxu0 0.0
    %762 = vmatprep.subr.mxu0 0.0
    %763 = vmatpush1.msra.mxu0 0.0
    %764 = vmatprep.subr.mxu0 0.0
    %765 = vmatpush1.msra.mxu0 0.0
    %766 = vmatprep.mubr.f32.mxu0 0.0
    %767 = vmatmul.mubr.f32.gmra.mrb[0].mxu0 %v445
    %v768 = vpop.f32.mrb[0].mxu0
    %v769 = vadd.f32 %v621, %v768
    %v770 = vpop.f32.mrb[0].mxu0
    %771 = vmatprep.mubr.f32.mxu0 0.0
    %772 = vmatmul.mubr.f32.gmra.mrb[0].mxu0 %v448
    %v773 = vpop.f32.mrb[0].mxu0
    %v774 = vadd.f32 %v621, %v773
    %v775 = vpop.f32.mrb[0].mxu0
    %776 = vdwg.mxu0
    %v777 = vld [vmem:[%s5] sm:$0xff]
    %v778 = vld [vmem:[%s5 + $0x8] sm:$0xff]
    %v779 = vld [vmem:[%s5 + $0x10] sm:$0xff]
    %v780 = vld [vmem:[%s5 + $0x18] sm:$0xff]
    %v781 = vld [vmem:[%s5 + $0x20] sm:$0xff]
    %v782 = vld [vmem:[%s5 + $0x28] sm:$0xff]
    %v783 = vld [vmem:[%s5 + $0x30] sm:$0xff]
    %v784 = vld [vmem:[%s5 + $0x38] sm:$0xff]
    %v785 = vld [vmem:[%s5 + $0x40] sm:$0xff]
    %v786 = vld [vmem:[%s5 + $0x48] sm:$0xff]
    %v787 = vld [vmem:[%s5 + $0x50] sm:$0xff]
    %v788 = vld [vmem:[%s5 + $0x58] sm:$0xff]
    %v789 = vld [vmem:[%s5 + $0x60] sm:$0xff]
    %v790 = vld [vmem:[%s5 + $0x68] sm:$0xff]
    %v791 = vld [vmem:[%s5 + $0x70] sm:$0xff]
    %v792 = vld [vmem:[%s5 + $0x78] sm:$0xff]
    %v793 = vld [vmem:[%s5 + $0x80] sm:$0xff]
    %v794 = vld [vmem:[%s5 + $0x88] sm:$0xff]
    %v795 = vld [vmem:[%s5 + $0x90] sm:$0xff]
    %v796 = vld [vmem:[%s5 + $0x98] sm:$0xff]
    %v797 = vld [vmem:[%s5 + $0xa0] sm:$0xff]
    %v798 = vld [vmem:[%s5 + $0xa8] sm:$0xff]
    %v799 = vld [vmem:[%s5 + $0xb0] sm:$0xff]
    %v800 = vld [vmem:[%s5 + $0xb8] sm:$0xff]
    %v801 = vld [vmem:[%s5 + $0xc0] sm:$0xff]
    %v802 = vld [vmem:[%s5 + $0xc8] sm:$0xff]
    %v803 = vld [vmem:[%s5 + $0xd0] sm:$0xff]
    %v804 = vld [vmem:[%s5 + $0xd8] sm:$0xff]
    %v805 = vld [vmem:[%s5 + $0xe0] sm:$0xff]
    %v806 = vld [vmem:[%s5 + $0xe8] sm:$0xff]
    %v807 = vld [vmem:[%s5 + $0xf0] sm:$0xff]
    %v808 = vld [vmem:[%s5 + $0xf8] sm:$0xff]
    %v809 = vld [vmem:[%s5 + $0x100] sm:$0xff]
    %v810 = vld [vmem:[%s5 + $0x108] sm:$0xff]
    %v811 = vld [vmem:[%s5 + $0x110] sm:$0xff]
    %v812 = vld [vmem:[%s5 + $0x118] sm:$0xff]
    %v813 = vld [vmem:[#allocation11] sm:$0xff]
    %v814 = vld [vmem:[#allocation11 + $0x8] sm:$0xff]
    %v815 = vld [vmem:[#allocation11 + $0x10] sm:$0xff]
    %v816 = vld [vmem:[#allocation11 + $0x18] sm:$0xff]
    %v817 = vld [vmem:[#allocation11 + $0x20] sm:$0xff]
    %v818 = vld [vmem:[#allocation11 + $0x28] sm:$0xff]
    %v819 = vld [vmem:[#allocation11 + $0x30] sm:$0xff]
    %v820 = vld [vmem:[#allocation11 + $0x38] sm:$0xff]
    %v821 = vld [vmem:[#allocation11 + $0x40] sm:$0xff]
    %v822 = vld [vmem:[#allocation11 + $0x48] sm:$0xff]
    %v823 = vld [vmem:[#allocation11 + $0x50] sm:$0xff]
    %v824 = vld [vmem:[#allocation11 + $0x58] sm:$0xff]
    %v825 = vld [vmem:[#allocation11 + $0x60] sm:$0xff]
    %v826 = vld [vmem:[#allocation11 + $0x68] sm:$0xff]
    %v827 = vld [vmem:[#allocation11 + $0x70] sm:$0xff]
    %v828 = vld [vmem:[#allocation11 + $0x78] sm:$0xff]
    %v829 = vld [vmem:[#allocation11 + $0x80] sm:$0xff]
    %v830 = vld [vmem:[#allocation11 + $0x88] sm:$0xff]
    %v831 = vld [vmem:[#allocation11 + $0x90] sm:$0xff]
    %v832 = vld [vmem:[#allocation11 + $0x98] sm:$0xff]
    %v833 = vld [vmem:[#allocation11 + $0xa0] sm:$0xff]
    %v834 = vld [vmem:[#allocation11 + $0xa8] sm:$0xff]
    %v835 = vld [vmem:[#allocation11 + $0xb0] sm:$0xff]
    %v836 = vld [vmem:[#allocation11 + $0xb8] sm:$0xff]
    %v837 = vld [vmem:[#allocation11 + $0xc0] sm:$0xff]
    %v838 = vld [vmem:[#allocation11 + $0xc8] sm:$0xff]
    %v839 = vld [vmem:[#allocation11 + $0xd0] sm:$0xff]
    %v840 = vld [vmem:[#allocation11 + $0xd8] sm:$0xff]
    %v841 = vld [vmem:[#allocation11 + $0xe0] sm:$0xff]
    %v842 = vld [vmem:[#allocation11 + $0xe8] sm:$0xff]
    %v843 = vld [vmem:[#allocation11 + $0xf0] sm:$0xff]
    %v844 = vld [vmem:[#allocation11 + $0xf8] sm:$0xff]
    %v845 = vld [vmem:[#allocation11 + $0x100] sm:$0xff]
    %v846 = vld [vmem:[#allocation11 + $0x108] sm:$0xff]
    %v847 = vld [vmem:[#allocation11 + $0x110] sm:$0xff]
    %v848 = vld [vmem:[#allocation11 + $0x118] sm:$0xff]
    %vm849 = vcmask 785408
    %v851 = vsel %vm849, 0.0, 0
    %853 = vmatprep.subr.mxu0 %v778
    %854 = vmatpush1.msra.mxu0 %v777
    %855 = vmatprep.subr.mxu0 %v781
    %856 = vmatpush1.msra.mxu0 %v780
    %857 = vmatprep.subr.mxu0 %v784
    %858 = vmatpush1.msra.mxu0 %v783
    %859 = vmatprep.subr.mxu0 %v787
    %860 = vmatpush1.msra.mxu0 %v786
    %861 = vmatprep.subr.mxu0 %v790
    %862 = vmatpush1.msra.mxu0 %v789
    %863 = vmatprep.subr.mxu0 %v793
    %864 = vmatpush1.msra.mxu0 %v792
    %865 = vmatprep.subr.mxu0 %v796
    %866 = vmatpush1.msra.mxu0 %v795
    %867 = vmatprep.subr.mxu0 %v799
    %868 = vmatpush1.msra.mxu0 %v798
    %869 = vmatprep.subr.mxu0 %v802
    %870 = vmatpush1.msra.mxu0 %v801
    %871 = vmatprep.subr.mxu0 %v805
    %872 = vmatpush1.msra.mxu0 %v804
    %873 = vmatprep.subr.mxu0 %v808
    %874 = vmatpush1.msra.mxu0 %v807
    %875 = vmatprep.subr.mxu0 %v811
    %876 = vmatpush1.msra.mxu0 %v810
    %877 = vmatprep.subr.mxu0 0.0
    %878 = vmatpush1.msra.mxu0 0.0
    %879 = vmatprep.subr.mxu0 0.0
    %880 = vmatpush1.msra.mxu0 0.0
    %881 = vmatprep.subr.mxu0 0.0
    %882 = vmatpush1.msra.mxu0 0.0
    %883 = vmatprep.subr.mxu0 0.0
    %884 = vmatpush1.msra.mxu0 0.0
    %885 = vmatprep.subr.mxu0 0.0
    %886 = vmatpush1.msra.mxu0 0.0
    %887 = vmatprep.subr.mxu0 0.0
    %888 = vmatpush1.msra.mxu0 0.0
    %889 = vmatprep.subr.mxu0 0.0
    %890 = vmatpush1.msra.mxu0 0.0
    %891 = vmatprep.subr.mxu0 0.0
    %892 = vmatpush1.msra.mxu0 0.0
    %893 = vmatprep.subr.mxu0 0.0
    %894 = vmatpush1.msra.mxu0 0.0
    %895 = vmatprep.subr.mxu0 0.0
    %896 = vmatpush1.msra.mxu0 0.0
    %897 = vmatprep.subr.mxu0 0.0
    %898 = vmatpush1.msra.mxu0 0.0
    %899 = vmatprep.subr.mxu0 0.0
    %900 = vmatpush1.msra.mxu0 0.0
    %901 = vmatprep.subr.mxu0 0.0
    %902 = vmatpush1.msra.mxu0 0.0
    %903 = vmatprep.subr.mxu0 0.0
    %904 = vmatpush1.msra.mxu0 0.0
    %905 = vmatprep.subr.mxu0 0.0
    %906 = vmatpush1.msra.mxu0 0.0
    %907 = vmatprep.subr.mxu0 0.0
    %908 = vmatpush1.msra.mxu0 0.0
    %909 = vmatprep.subr.mxu0 0.0
    %910 = vmatpush1.msra.mxu0 0.0
    %911 = vmatprep.subr.mxu0 0.0
    %912 = vmatpush1.msra.mxu0 0.0
    %913 = vmatprep.subr.mxu0 0.0
    %914 = vmatpush1.msra.mxu0 0.0
    %915 = vmatprep.subr.mxu0 0.0
    %916 = vmatpush1.msra.mxu0 0.0
    %917 = vmatprep.mubr.f32.mxu0 0.0
    %918 = vmatmul.mubr.f32.gmra.mrb[0].mxu0 %v851
    %v919 = vpop.f32.mrb[0].mxu0
    %v920 = vadd.f32 0.0, %v919
    %v921 = vpop.f32.mrb[0].mxu0
    %v922 = vadd.f32 0.0, %v921
    %923 = vdwg.mxu0
    %924 = vmatprep.subr.mxu0 0.0
    %925 = vmatpush1.msra.mxu0 %v779
    %926 = vmatprep.subr.mxu0 0.0
    %927 = vmatpush1.msra.mxu0 %v782
    %928 = vmatprep.subr.mxu0 0.0
    %929 = vmatpush1.msra.mxu0 %v785
    %930 = vmatprep.subr.mxu0 0.0
    %931 = vmatpush1.msra.mxu0 %v788
    %932 = vmatprep.subr.mxu0 0.0
    %933 = vmatpush1.msra.mxu0 %v791
    %934 = vmatprep.subr.mxu0 0.0
    %935 = vmatpush1.msra.mxu0 %v794
    %936 = vmatprep.subr.mxu0 0.0
    %937 = vmatpush1.msra.mxu0 %v797
    %938 = vmatprep.subr.mxu0 0.0
    %939 = vmatpush1.msra.mxu0 %v800
    %940 = vmatprep.subr.mxu0 0.0
    %941 = vmatpush1.msra.mxu0 %v803
    %942 = vmatprep.subr.mxu0 0.0
    %943 = vmatpush1.msra.mxu0 %v806
    %944 = vmatprep.subr.mxu0 0.0
    %945 = vmatpush1.msra.mxu0 %v809
    %946 = vmatprep.subr.mxu0 0.0
    %947 = vmatpush1.msra.mxu0 %v812
    %948 = vmatprep.subr.mxu0 0.0
    %949 = vmatpush1.msra.mxu0 0.0
    %950 = vmatprep.subr.mxu0 0.0
    %951 = vmatpush1.msra.mxu0 0.0
    %952 = vmatprep.subr.mxu0 0.0
    %953 = vmatpush1.msra.mxu0 0.0
    %954 = vmatprep.subr.mxu0 0.0
    %955 = vmatpush1.msra.mxu0 0.0
    %956 = vmatprep.subr.mxu0 0.0
    %957 = vmatpush1.msra.mxu0 0.0
    %958 = vmatprep.subr.mxu0 0.0
    %959 = vmatpush1.msra.mxu0 0.0
    %960 = vmatprep.subr.mxu0 0.0
    %961 = vmatpush1.msra.mxu0 0.0
    %962 = vmatprep.subr.mxu0 0.0
    %963 = vmatpush1.msra.mxu0 0.0
    %964 = vmatprep.subr.mxu0 0.0
    %965 = vmatpush1.msra.mxu0 0.0
    %966 = vmatprep.subr.mxu0 0.0
    %967 = vmatpush1.msra.mxu0 0.0
    %968 = vmatprep.subr.mxu0 0.0
    %969 = vmatpush1.msra.mxu0 0.0
    %970 = vmatprep.subr.mxu0 0.0
    %971 = vmatpush1.msra.mxu0 0.0
    %972 = vmatprep.subr.mxu0 0.0
    %973 = vmatpush1.msra.mxu0 0.0
    %974 = vmatprep.subr.mxu0 0.0
    %975 = vmatpush1.msra.mxu0 0.0
    %976 = vmatprep.subr.mxu0 0.0
    %977 = vmatpush1.msra.mxu0 0.0
    %978 = vmatprep.subr.mxu0 0.0
    %979 = vmatpush1.msra.mxu0 0.0
    %980 = vmatprep.subr.mxu0 0.0
    %981 = vmatpush1.msra.mxu0 0.0
    %982 = vmatprep.subr.mxu0 0.0
    %983 = vmatpush1.msra.mxu0 0.0
    %984 = vmatprep.subr.mxu0 0.0
    %985 = vmatpush1.msra.mxu0 0.0
    %986 = vmatprep.subr.mxu0 0.0
    %987 = vmatpush1.msra.mxu0 0.0
    %988 = vmatprep.mubr.f32.mxu0 0.0
    %989 = vmatmul.mubr.f32.gmra.mrb[0].mxu0 %v851
    %v990 = vpop.f32.mrb[0].mxu0
    %v991 = vadd.f32 0.0, %v990
    %v992 = vpop.f32.mrb[0].mxu0
    %993 = vdwg.mxu0
    %v994 = vadd.f32 %v517, %v920
    %v995 = vadd.f32 %v519, %v922
    %v996 = vadd.f32 %v594, %v991
    %v997 = vxor.u32 %v994, 2147483648
    %v998 = vmul.f32 %v997, 1.442695
    %v999 = vpow.pop %v998
    %v1000 = vadd.f32 %v999, 1.0
    %v1001 = vrcp.pop %v1000
    %v1002 = vmul.f32 1.0, %v1001
    %v1003 = vxor.u32 %v995, 2147483648
    %v1004 = vmul.f32 %v1003, 1.442695
    %v1005 = vpow.pop %v1004
    %v1006 = vadd.f32 %v1005, 1.0
    %v1007 = vrcp.pop %v1006
    %v1008 = vmul.f32 1.0, %v1007
    %v1009 = vtanh.pop %v995
    %v1010 = vtanh.pop %v996
    %v1011 = vxor.u32 %v996, 2147483648
    %v1012 = vmul.f32 %v1011, 1.442695
    %v1013 = vpow.pop %v1012
    %v1014 = vadd.f32 %v1013, 1.0
    %v1015 = vrcp.pop %v1014
    %v1016 = vmul.f32 1.0, %v1015
    %v1017 = vmul.f32 %v1002, 0.0
    %v1018 = vmul.f32 %v1008, 0.0
    %1021 = vrot.lane.b32.xlu0 %v1009, 64
    %v1022 = vpop.permute.xlu0 %1021
    %1023 = vrot.lane.b32.xlu0 %v1010, 64
    %v1024 = vpop.permute.xlu0 %1023
    %vm1025 = vcmask 523264
    %v1026 = vsel %vm1025, %v1022, %v1024
    %v1028 = vmul.f32 %v1002, %v1026
    %1030 = vrot.lane.b32.xlu0 %v1028, 96
    %v1031 = vpop.permute.xlu0 %1030
    %v1033 = vadd.f32 %v1017, %v1031
    %v1034 = vadd.f32 %v1018, %v1031
    %v1035 = vtanh.pop %v1033
    %v1036 = vtanh.pop %v1034
    %1039 = vrot.lane.b32.xlu0 %v1035, 64
    %v1040 = vpop.permute.xlu0 %1039
    %1041 = vrot.lane.b32.xlu0 %v1036, 64
    %v1042 = vpop.permute.xlu0 %1041
    %v1043 = vsel %vm1025, %v1040, %v1042
    %v1045 = vmul.f32 %v1016, %v1043
    %1046 = vmatprep.subr.mxu0 %v814
    %1047 = vmatpush1.msra.mxu0 %v813
    %1048 = vmatprep.subr.mxu0 %v817
    %1049 = vmatpush1.msra.mxu0 %v816
    %1050 = vmatprep.subr.mxu0 %v820
    %1051 = vmatpush1.msra.mxu0 %v819
    %1052 = vmatprep.subr.mxu0 %v823
    %1053 = vmatpush1.msra.mxu0 %v822
    %1054 = vmatprep.subr.mxu0 %v826
    %1055 = vmatpush1.msra.mxu0 %v825
    %1056 = vmatprep.subr.mxu0 %v829
    %1057 = vmatpush1.msra.mxu0 %v828
    %1058 = vmatprep.subr.mxu0 %v832
    %1059 = vmatpush1.msra.mxu0 %v831
    %1060 = vmatprep.subr.mxu0 %v835
    %1061 = vmatpush1.msra.mxu0 %v834
    %1062 = vmatprep.subr.mxu0 %v838
    %1063 = vmatpush1.msra.mxu0 %v837
    %1064 = vmatprep.subr.mxu0 %v841
    %1065 = vmatpush1.msra.mxu0 %v840
    %1066 = vmatprep.subr.mxu0 %v844
    %1067 = vmatpush1.msra.mxu0 %v843
    %1068 = vmatprep.subr.mxu0 %v847
    %1069 = vmatpush1.msra.mxu0 %v846
    %1070 = vmatprep.subr.mxu0 0.0
    %1071 = vmatpush1.msra.mxu0 0.0
    %1072 = vmatprep.subr.mxu0 0.0
    %1073 = vmatpush1.msra.mxu0 0.0
    %1074 = vmatprep.subr.mxu0 0.0
    %1075 = vmatpush1.msra.mxu0 0.0
    %1076 = vmatprep.subr.mxu0 0.0
    %1077 = vmatpush1.msra.mxu0 0.0
    %1078 = vmatprep.subr.mxu0 0.0
    %1079 = vmatpush1.msra.mxu0 0.0
    %1080 = vmatprep.subr.mxu0 0.0
    %1081 = vmatpush1.msra.mxu0 0.0
    %1082 = vmatprep.subr.mxu0 0.0
    %1083 = vmatpush1.msra.mxu0 0.0
    %1084 = vmatprep.subr.mxu0 0.0
    %1085 = vmatpush1.msra.mxu0 0.0
    %1086 = vmatprep.subr.mxu0 0.0
    %1087 = vmatpush1.msra.mxu0 0.0
    %1088 = vmatprep.subr.mxu0 0.0
    %1089 = vmatpush1.msra.mxu0 0.0
    %1090 = vmatprep.subr.mxu0 0.0
    %1091 = vmatpush1.msra.mxu0 0.0
    %1092 = vmatprep.subr.mxu0 0.0
    %1093 = vmatpush1.msra.mxu0 0.0
    %1094 = vmatprep.subr.mxu0 0.0
    %1095 = vmatpush1.msra.mxu0 0.0
    %1096 = vmatprep.subr.mxu0 0.0
    %1097 = vmatpush1.msra.mxu0 0.0
    %1098 = vmatprep.subr.mxu0 0.0
    %1099 = vmatpush1.msra.mxu0 0.0
    %1100 = vmatprep.subr.mxu0 0.0
    %1101 = vmatpush1.msra.mxu0 0.0
    %1102 = vmatprep.subr.mxu0 0.0
    %1103 = vmatpush1.msra.mxu0 0.0
    %1104 = vmatprep.subr.mxu0 0.0
    %1105 = vmatpush1.msra.mxu0 0.0
    %1106 = vmatprep.subr.mxu0 0.0
    %1107 = vmatpush1.msra.mxu0 0.0
    %1108 = vmatprep.subr.mxu0 0.0
    %1109 = vmatpush1.msra.mxu0 0.0
    %1110 = vmatprep.mubr.f32.mxu0 0.0
    %1111 = vmatmul.mubr.f32.gmra.mrb[0].mxu0 %v851
    %v1112 = vpop.f32.mrb[0].mxu0
    %v1113 = vadd.f32 0.0, %v1112
    %v1114 = vpop.f32.mrb[0].mxu0
    %v1115 = vadd.f32 0.0, %v1114
    %1116 = vdwg.mxu0
    %1117 = vmatprep.subr.mxu0 0.0
    %1118 = vmatpush1.msra.mxu0 %v815
    %1119 = vmatprep.subr.mxu0 0.0
    %1120 = vmatpush1.msra.mxu0 %v818
    %1121 = vmatprep.subr.mxu0 0.0
    %1122 = vmatpush1.msra.mxu0 %v821
    %1123 = vmatprep.subr.mxu0 0.0
    %1124 = vmatpush1.msra.mxu0 %v824
    %1125 = vmatprep.subr.mxu0 0.0
    %1126 = vmatpush1.msra.mxu0 %v827
    %1127 = vmatprep.subr.mxu0 0.0
    %1128 = vmatpush1.msra.mxu0 %v830
    %1129 = vmatprep.subr.mxu0 0.0
    %1130 = vmatpush1.msra.mxu0 %v833
    %1131 = vmatprep.subr.mxu0 0.0
    %1132 = vmatpush1.msra.mxu0 %v836
    %1133 = vmatprep.subr.mxu0 0.0
    %1134 = vmatpush1.msra.mxu0 %v839
    %1135 = vmatprep.subr.mxu0 0.0
    %1136 = vmatpush1.msra.mxu0 %v842
    %1137 = vmatprep.subr.mxu0 0.0
    %1138 = vmatpush1.msra.mxu0 %v845
    %1139 = vmatprep.subr.mxu0 0.0
    %1140 = vmatpush1.msra.mxu0 %v848
    %1141 = vmatprep.subr.mxu0 0.0
    %1142 = vmatpush1.msra.mxu0 0.0
    %1143 = vmatprep.subr.mxu0 0.0
    %1144 = vmatpush1.msra.mxu0 0.0
    %1145 = vmatprep.subr.mxu0 0.0
    %1146 = vmatpush1.msra.mxu0 0.0
    %1147 = vmatprep.subr.mxu0 0.0
    %1148 = vmatpush1.msra.mxu0 0.0
    %1149 = vmatprep.subr.mxu0 0.0
    %1150 = vmatpush1.msra.mxu0 0.0
    %1151 = vmatprep.subr.mxu0 0.0
    %1152 = vmatpush1.msra.mxu0 0.0
    %1153 = vmatprep.subr.mxu0 0.0
    %1154 = vmatpush1.msra.mxu0 0.0
    %1155 = vmatprep.subr.mxu0 0.0
    %1156 = vmatpush1.msra.mxu0 0.0
    %1157 = vmatprep.subr.mxu0 0.0
    %1158 = vmatpush1.msra.mxu0 0.0
    %1159 = vmatprep.subr.mxu0 0.0
    %1160 = vmatpush1.msra.mxu0 0.0
    %1161 = vmatprep.subr.mxu0 0.0
    %1162 = vmatpush1.msra.mxu0 0.0
    %1163 = vmatprep.subr.mxu0 0.0
    %1164 = vmatpush1.msra.mxu0 0.0
    %1165 = vmatprep.subr.mxu0 0.0
    %1166 = vmatpush1.msra.mxu0 0.0
    %1167 = vmatprep.subr.mxu0 0.0
    %1168 = vmatpush1.msra.mxu0 0.0
    %1169 = vmatprep.subr.mxu0 0.0
    %1170 = vmatpush1.msra.mxu0 0.0
    %1171 = vmatprep.subr.mxu0 0.0
    %1172 = vmatpush1.msra.mxu0 0.0
    %1173 = vmatprep.subr.mxu0 0.0
    %1174 = vmatpush1.msra.mxu0 0.0
    %1175 = vmatprep.subr.mxu0 0.0
    %1176 = vmatpush1.msra.mxu0 0.0
    %1177 = vmatprep.subr.mxu0 0.0
    %1178 = vmatpush1.msra.mxu0 0.0
    %1179 = vmatprep.subr.mxu0 0.0
    %1180 = vmatpush1.msra.mxu0 0.0
    %1181 = vmatprep.mubr.f32.mxu0 0.0
    %1182 = vmatmul.mubr.f32.gmra.mrb[0].mxu0 %v851
    %v1183 = vpop.f32.mrb[0].mxu0
    %v1184 = vadd.f32 0.0, %v1183
    %v1185 = vpop.f32.mrb[0].mxu0
    %1186 = vdwg.mxu0
    %v1190 = vrot.slane %v1113, 2
    %v1191 = vrot.slane %v1115, 2
    %v1192 = vrot.slane %v1184, 2
    %v1196 = vadd.f32 %v698, %v1190
    %v1197 = vadd.f32 %v700, %v1191
    %v1198 = vadd.f32 %v774, %v1192
    %v1199 = vxor.u32 %v1196, 2147483648
    %v1200 = vmul.f32 %v1199, 1.442695
    %v1201 = vpow.pop %v1200
    %v1202 = vadd.f32 %v1201, 1.0
    %v1203 = vrcp.pop %v1202
    %v1204 = vmul.f32 1.0, %v1203
    %v1205 = vxor.u32 %v1197, 2147483648
    %v1206 = vmul.f32 %v1205, 1.442695
    %v1207 = vpow.pop %v1206
    %v1208 = vadd.f32 %v1207, 1.0
    %v1209 = vrcp.pop %v1208
    %v1210 = vmul.f32 1.0, %v1209
    %v1211 = vtanh.pop %v1197
    %v1212 = vtanh.pop %v1198
    %v1213 = vxor.u32 %v1198, 2147483648
    %v1214 = vmul.f32 %v1213, 1.442695
    %v1215 = vpow.pop %v1214
    %v1216 = vadd.f32 %v1215, 1.0
    %v1217 = vrcp.pop %v1216
    %v1218 = vmul.f32 1.0, %v1217
    %v1219 = vmul.f32 %v1204, 0.0
    %v1220 = vmul.f32 %v1210, 0.0
    %1223 = vrot.lane.b32.xlu0 %v1211, 64
    %v1224 = vpop.permute.xlu0 %1223
    %1225 = vrot.lane.b32.xlu0 %v1212, 64
    %v1226 = vpop.permute.xlu0 %1225
    %v1227 = vsel %vm1025, %v1224, %v1226
    %v1229 = vmul.f32 %v1204, %v1227
    %1231 = vrot.lane.b32.xlu0 %v1229, 96
    %v1232 = vpop.permute.xlu0 %1231
    %v1234 = vadd.f32 %v1219, %v1232
    %v1235 = vadd.f32 %v1220, %v1232
    %v1236 = vtanh.pop %v1234
    %v1237 = vtanh.pop %v1235
    %1240 = vrot.lane.b32.xlu0 %v1236, 64
    %v1241 = vpop.permute.xlu0 %1240
    %1242 = vrot.lane.b32.xlu0 %v1237, 64
    %v1243 = vpop.permute.xlu0 %1242
    %v1244 = vsel %vm1025, %v1241, %v1243
    %v1246 = vmul.f32 %v1218, %v1244
    %1248 = vrot.lane.b32.xlu0 %v1045, 96
    %v1249 = vpop.permute.xlu0 %1248
    %v1250 = vsel %vm849, %v1249, 0
    %1252 = vmatprep.subr.mxu0 %v778
    %1253 = vmatpush1.msra.mxu0 %v777
    %1254 = vmatprep.subr.mxu0 %v781
    %1255 = vmatpush1.msra.mxu0 %v780
    %1256 = vmatprep.subr.mxu0 %v784
    %1257 = vmatpush1.msra.mxu0 %v783
    %1258 = vmatprep.subr.mxu0 %v787
    %1259 = vmatpush1.msra.mxu0 %v786
    %1260 = vmatprep.subr.mxu0 %v790
    %1261 = vmatpush1.msra.mxu0 %v789
    %1262 = vmatprep.subr.mxu0 %v793
    %1263 = vmatpush1.msra.mxu0 %v792
    %1264 = vmatprep.subr.mxu0 %v796
    %1265 = vmatpush1.msra.mxu0 %v795
    %1266 = vmatprep.subr.mxu0 %v799
    %1267 = vmatpush1.msra.mxu0 %v798
    %1268 = vmatprep.subr.mxu0 %v802
    %1269 = vmatpush1.msra.mxu0 %v801
    %1270 = vmatprep.subr.mxu0 %v805
    %1271 = vmatpush1.msra.mxu0 %v804
    %1272 = vmatprep.subr.mxu0 %v808
    %1273 = vmatpush1.msra.mxu0 %v807
    %1274 = vmatprep.subr.mxu0 %v811
    %1275 = vmatpush1.msra.mxu0 %v810
    %1276 = vmatprep.subr.mxu0 0.0
    %1277 = vmatpush1.msra.mxu0 0.0
    %1278 = vmatprep.subr.mxu0 0.0
    %1279 = vmatpush1.msra.mxu0 0.0
    %1280 = vmatprep.subr.mxu0 0.0
    %1281 = vmatpush1.msra.mxu0 0.0
    %1282 = vmatprep.subr.mxu0 0.0
    %1283 = vmatpush1.msra.mxu0 0.0
    %1284 = vmatprep.subr.mxu0 0.0
    %1285 = vmatpush1.msra.mxu0 0.0
    %1286 = vmatprep.subr.mxu0 0.0
    %1287 = vmatpush1.msra.mxu0 0.0
    %1288 = vmatprep.subr.mxu0 0.0
    %1289 = vmatpush1.msra.mxu0 0.0
    %1290 = vmatprep.subr.mxu0 0.0
    %1291 = vmatpush1.msra.mxu0 0.0
    %1292 = vmatprep.subr.mxu0 0.0
    %1293 = vmatpush1.msra.mxu0 0.0
    %1294 = vmatprep.subr.mxu0 0.0
    %1295 = vmatpush1.msra.mxu0 0.0
    %1296 = vmatprep.subr.mxu0 0.0
    %1297 = vmatpush1.msra.mxu0 0.0
    %1298 = vmatprep.subr.mxu0 0.0
    %1299 = vmatpush1.msra.mxu0 0.0
    %1300 = vmatprep.subr.mxu0 0.0
    %1301 = vmatpush1.msra.mxu0 0.0
    %1302 = vmatprep.subr.mxu0 0.0
    %1303 = vmatpush1.msra.mxu0 0.0
    %1304 = vmatprep.subr.mxu0 0.0
    %1305 = vmatpush1.msra.mxu0 0.0
    %1306 = vmatprep.subr.mxu0 0.0
    %1307 = vmatpush1.msra.mxu0 0.0
    %1308 = vmatprep.subr.mxu0 0.0
    %1309 = vmatpush1.msra.mxu0 0.0
    %1310 = vmatprep.subr.mxu0 0.0
    %1311 = vmatpush1.msra.mxu0 0.0
    %1312 = vmatprep.subr.mxu0 0.0
    %1313 = vmatpush1.msra.mxu0 0.0
    %1314 = vmatprep.subr.mxu0 0.0
    %1315 = vmatpush1.msra.mxu0 0.0
    %1316 = vmatprep.mubr.f32.mxu0 0.0
    %1317 = vmatmul.mubr.f32.gmra.mrb[0].mxu0 %v1250
    %v1318 = vpop.f32.mrb[0].mxu0
    %v1319 = vadd.f32 0.0, %v1318
    %v1320 = vpop.f32.mrb[0].mxu0
    %v1321 = vadd.f32 0.0, %v1320
    %1322 = vdwg.mxu0
    %1323 = vmatprep.subr.mxu0 0.0
    %1324 = vmatpush1.msra.mxu0 %v779
    %1325 = vmatprep.subr.mxu0 0.0
    %1326 = vmatpush1.msra.mxu0 %v782
    %1327 = vmatprep.subr.mxu0 0.0
    %1328 = vmatpush1.msra.mxu0 %v785
    %1329 = vmatprep.subr.mxu0 0.0
    %1330 = vmatpush1.msra.mxu0 %v788
    %1331 = vmatprep.subr.mxu0 0.0
    %1332 = vmatpush1.msra.mxu0 %v791
    %1333 = vmatprep.subr.mxu0 0.0
    %1334 = vmatpush1.msra.mxu0 %v794
    %1335 = vmatprep.subr.mxu0 0.0
    %1336 = vmatpush1.msra.mxu0 %v797
    %1337 = vmatprep.subr.mxu0 0.0
    %1338 = vmatpush1.msra.mxu0 %v800
    %1339 = vmatprep.subr.mxu0 0.0
    %1340 = vmatpush1.msra.mxu0 %v803
    %1341 = vmatprep.subr.mxu0 0.0
    %1342 = vmatpush1.msra.mxu0 %v806
    %1343 = vmatprep.subr.mxu0 0.0
    %1344 = vmatpush1.msra.mxu0 %v809
    %1345 = vmatprep.subr.mxu0 0.0
    %1346 = vmatpush1.msra.mxu0 %v812
    %1347 = vmatprep.subr.mxu0 0.0
    %1348 = vmatpush1.msra.mxu0 0.0
    %1349 = vmatprep.subr.mxu0 0.0
    %1350 = vmatpush1.msra.mxu0 0.0
    %1351 = vmatprep.subr.mxu0 0.0
    %1352 = vmatpush1.msra.mxu0 0.0
    %1353 = vmatprep.subr.mxu0 0.0
    %1354 = vmatpush1.msra.mxu0 0.0
    %1355 = vmatprep.subr.mxu0 0.0
    %1356 = vmatpush1.msra.mxu0 0.0
    %1357 = vmatprep.subr.mxu0 0.0
    %1358 = vmatpush1.msra.mxu0 0.0
    %1359 = vmatprep.subr.mxu0 0.0
    %1360 = vmatpush1.msra.mxu0 0.0
    %1361 = vmatprep.subr.mxu0 0.0
    %1362 = vmatpush1.msra.mxu0 0.0
    %1363 = vmatprep.subr.mxu0 0.0
    %1364 = vmatpush1.msra.mxu0 0.0
    %1365 = vmatprep.subr.mxu0 0.0
    %1366 = vmatpush1.msra.mxu0 0.0
    %1367 = vmatprep.subr.mxu0 0.0
    %1368 = vmatpush1.msra.mxu0 0.0
    %1369 = vmatprep.subr.mxu0 0.0
    %1370 = vmatpush1.msra.mxu0 0.0
    %1371 = vmatprep.subr.mxu0 0.0
    %1372 = vmatpush1.msra.mxu0 0.0
    %1373 = vmatprep.subr.mxu0 0.0
    %1374 = vmatpush1.msra.mxu0 0.0
    %1375 = vmatprep.subr.mxu0 0.0
    %1376 = vmatpush1.msra.mxu0 0.0
    %1377 = vmatprep.subr.mxu0 0.0
    %1378 = vmatpush1.msra.mxu0 0.0
    %1379 = vmatprep.subr.mxu0 0.0
    %1380 = vmatpush1.msra.mxu0 0.0
    %1381 = vmatprep.subr.mxu0 0.0
    %1382 = vmatpush1.msra.mxu0 0.0
    %1383 = vmatprep.subr.mxu0 0.0
    %1384 = vmatpush1.msra.mxu0 0.0
    %1385 = vmatprep.subr.mxu0 0.0
    %1386 = vmatpush1.msra.mxu0 0.0
    %1387 = vmatprep.mubr.f32.mxu0 0.0
    %1388 = vmatmul.mubr.f32.gmra.mrb[0].mxu0 %v1250
    %v1389 = vpop.f32.mrb[0].mxu0
    %v1390 = vadd.f32 0.0, %v1389
    %v1391 = vpop.f32.mrb[0].mxu0
    %1392 = vdwg.mxu0
    %v1396 = vrot.slane %v1319, 6
    %v1397 = vrot.slane %v1321, 6
    %v1398 = vrot.slane %v1390, 6
    %v1402 = vadd.f32 %v517, %v1396
    %v1403 = vadd.f32 %v519, %v1397
    %v1404 = vadd.f32 %v594, %v1398
    %v1405 = vxor.u32 %v1402, 2147483648
    %v1406 = vmul.f32 %v1405, 1.442695
    %v1407 = vpow.pop %v1406
    %v1408 = vadd.f32 %v1407, 1.0
    %v1409 = vrcp.pop %v1408
    %v1410 = vmul.f32 1.0, %v1409
    %v1411 = vxor.u32 %v1403, 2147483648
    %v1412 = vmul.f32 %v1411, 1.442695
    %v1413 = vpow.pop %v1412
    %v1414 = vadd.f32 %v1413, 1.0
    %v1415 = vrcp.pop %v1414
    %v1416 = vmul.f32 1.0, %v1415
    %v1417 = vtanh.pop %v1403
    %v1418 = vtanh.pop %v1404
    %v1419 = vxor.u32 %v1404, 2147483648
    %v1420 = vmul.f32 %v1419, 1.442695
    %v1421 = vpow.pop %v1420
    %v1422 = vadd.f32 %v1421, 1.0
    %v1423 = vrcp.pop %v1422
    %v1424 = vmul.f32 1.0, %v1423
    %v1427 = vrot.slane %v1033, 6
    %v1428 = vrot.slane %v1034, 6
    %v1431 = vmul.f32 %v1410, %v1427
    %v1432 = vmul.f32 %v1416, %v1428
    %1435 = vrot.lane.b32.xlu0 %v1417, 64
    %v1436 = vpop.permute.xlu0 %1435
    %1437 = vrot.lane.b32.xlu0 %v1418, 64
    %v1438 = vpop.permute.xlu0 %1437
    %v1439 = vsel %vm1025, %v1436, %v1438
    %v1441 = vmul.f32 %v1410, %v1439
    %1443 = vrot.lane.b32.xlu0 %v1441, 96
    %v1444 = vpop.permute.xlu0 %1443
    %v1446 = vadd.f32 %v1431, %v1444
    %v1447 = vadd.f32 %v1432, %v1444
    %v1448 = vtanh.pop %v1446
    %v1449 = vtanh.pop %v1447
    %1452 = vrot.lane.b32.xlu0 %v1448, 64
    %v1453 = vpop.permute.xlu0 %1452
    %1454 = vrot.lane.b32.xlu0 %v1449, 64
    %v1455 = vpop.permute.xlu0 %1454
    %v1456 = vsel %vm1025, %v1453, %v1455
    %v1458 = vmul.f32 %v1424, %v1456
    %v1460 = vrot.slane %v1246, 6
    %1461 = vrot.lane.b32.xlu0 %v1460, 96
    %v1462 = vpop.permute.xlu0 %1461
    %v1463 = vsel %vm849, %v1462, 0
    %1465 = vmatprep.subr.mxu0 %v814
    %1466 = vmatpush1.msra.mxu0 %v813
    %1467 = vmatprep.subr.mxu0 %v817
    %1468 = vmatpush1.msra.mxu0 %v816
    %1469 = vmatprep.subr.mxu0 %v820
    %1470 = vmatpush1.msra.mxu0 %v819
    %1471 = vmatprep.subr.mxu0 %v823
    %1472 = vmatpush1.msra.mxu0 %v822
    %1473 = vmatprep.subr.mxu0 %v826
    %1474 = vmatpush1.msra.mxu0 %v825
    %1475 = vmatprep.subr.mxu0 %v829
    %1476 = vmatpush1.msra.mxu0 %v828
    %1477 = vmatprep.subr.mxu0 %v832
    %1478 = vmatpush1.msra.mxu0 %v831
    %1479 = vmatprep.subr.mxu0 %v835
    %1480 = vmatpush1.msra.mxu0 %v834
    %1481 = vmatprep.subr.mxu0 %v838
    %1482 = vmatpush1.msra.mxu0 %v837
    %1483 = vmatprep.subr.mxu0 %v841
    %1484 = vmatpush1.msra.mxu0 %v840
    %1485 = vmatprep.subr.mxu0 %v844
    %1486 = vmatpush1.msra.mxu0 %v843
    %1487 = vmatprep.subr.mxu0 %v847
    %1488 = vmatpush1.msra.mxu0 %v846
    %1489 = vmatprep.subr.mxu0 0.0
    %1490 = vmatpush1.msra.mxu0 0.0
    %1491 = vmatprep.subr.mxu0 0.0
    %1492 = vmatpush1.msra.mxu0 0.0
    %1493 = vmatprep.subr.mxu0 0.0
    %1494 = vmatpush1.msra.mxu0 0.0
    %1495 = vmatprep.subr.mxu0 0.0
    %1496 = vmatpush1.msra.mxu0 0.0
    %1497 = vmatprep.subr.mxu0 0.0
    %1498 = vmatpush1.msra.mxu0 0.0
    %1499 = vmatprep.subr.mxu0 0.0
    %1500 = vmatpush1.msra.mxu0 0.0
    %1501 = vmatprep.subr.mxu0 0.0
    %1502 = vmatpush1.msra.mxu0 0.0
    %1503 = vmatprep.subr.mxu0 0.0
    %1504 = vmatpush1.msra.mxu0 0.0
    %1505 = vmatprep.subr.mxu0 0.0
    %1506 = vmatpush1.msra.mxu0 0.0
    %1507 = vmatprep.subr.mxu0 0.0
    %1508 = vmatpush1.msra.mxu0 0.0
    %1509 = vmatprep.subr.mxu0 0.0
    %1510 = vmatpush1.msra.mxu0 0.0
    %1511 = vmatprep.subr.mxu0 0.0
    %1512 = vmatpush1.msra.mxu0 0.0
    %1513 = vmatprep.subr.mxu0 0.0
    %1514 = vmatpush1.msra.mxu0 0.0
    %1515 = vmatprep.subr.mxu0 0.0
    %1516 = vmatpush1.msra.mxu0 0.0
    %1517 = vmatprep.subr.mxu0 0.0
    %1518 = vmatpush1.msra.mxu0 0.0
    %1519 = vmatprep.subr.mxu0 0.0
    %1520 = vmatpush1.msra.mxu0 0.0
    %1521 = vmatprep.subr.mxu0 0.0
    %1522 = vmatpush1.msra.mxu0 0.0
    %1523 = vmatprep.subr.mxu0 0.0
    %1524 = vmatpush1.msra.mxu0 0.0
    %1525 = vmatprep.subr.mxu0 0.0
    %1526 = vmatpush1.msra.mxu0 0.0
    %1527 = vmatprep.subr.mxu0 0.0
    %1528 = vmatpush1.msra.mxu0 0.0
    %1529 = vmatprep.mubr.f32.mxu0 0.0
    %1530 = vmatmul.mubr.f32.gmra.mrb[0].mxu0 %v1463
    %v1531 = vpop.f32.mrb[0].mxu0
    %v1532 = vadd.f32 0.0, %v1531
    %v1533 = vpop.f32.mrb[0].mxu0
    %v1534 = vadd.f32 0.0, %v1533
    %1535 = vdwg.mxu0
    %1536 = vmatprep.subr.mxu0 0.0
    %1537 = vmatpush1.msra.mxu0 %v815
    %1538 = vmatprep.subr.mxu0 0.0
    %1539 = vmatpush1.msra.mxu0 %v818
    %1540 = vmatprep.subr.mxu0 0.0
    %1541 = vmatpush1.msra.mxu0 %v821
    %1542 = vmatprep.subr.mxu0 0.0
    %1543 = vmatpush1.msra.mxu0 %v824
    %1544 = vmatprep.subr.mxu0 0.0
    %1545 = vmatpush1.msra.mxu0 %v827
    %1546 = vmatprep.subr.mxu0 0.0
    %1547 = vmatpush1.msra.mxu0 %v830
    %1548 = vmatprep.subr.mxu0 0.0
    %1549 = vmatpush1.msra.mxu0 %v833
    %1550 = vmatprep.subr.mxu0 0.0
    %1551 = vmatpush1.msra.mxu0 %v836
    %1552 = vmatprep.subr.mxu0 0.0
    %1553 = vmatpush1.msra.mxu0 %v839
    %1554 = vmatprep.subr.mxu0 0.0
    %1555 = vmatpush1.msra.mxu0 %v842
    %1556 = vmatprep.subr.mxu0 0.0
    %1557 = vmatpush1.msra.mxu0 %v845
    %1558 = vmatprep.subr.mxu0 0.0
    %1559 = vmatpush1.msra.mxu0 %v848
    %1560 = vmatprep.subr.mxu0 0.0
    %1561 = vmatpush1.msra.mxu0 0.0
    %1562 = vmatprep.subr.mxu0 0.0
    %1563 = vmatpush1.msra.mxu0 0.0
    %1564 = vmatprep.subr.mxu0 0.0
    %1565 = vmatpush1.msra.mxu0 0.0
    %1566 = vmatprep.subr.mxu0 0.0
    %1567 = vmatpush1.msra.mxu0 0.0
    %1568 = vmatprep.subr.mxu0 0.0
    %1569 = vmatpush1.msra.mxu0 0.0
    %1570 = vmatprep.subr.mxu0 0.0
    %1571 = vmatpush1.msra.mxu0 0.0
    %1572 = vmatprep.subr.mxu0 0.0
    %1573 = vmatpush1.msra.mxu0 0.0
    %1574 = vmatprep.subr.mxu0 0.0
    %1575 = vmatpush1.msra.mxu0 0.0
    %1576 = vmatprep.subr.mxu0 0.0
    %1577 = vmatpush1.msra.mxu0 0.0
    %1578 = vmatprep.subr.mxu0 0.0
    %1579 = vmatpush1.msra.mxu0 0.0
    %1580 = vmatprep.subr.mxu0 0.0
    %1581 = vmatpush1.msra.mxu0 0.0
    %1582 = vmatprep.subr.mxu0 0.0
    %1583 = vmatpush1.msra.mxu0 0.0
    %1584 = vmatprep.subr.mxu0 0.0
    %1585 = vmatpush1.msra.mxu0 0.0
    %1586 = vmatprep.subr.mxu0 0.0
    %1587 = vmatpush1.msra.mxu0 0.0
    %1588 = vmatprep.subr.mxu0 0.0
    %1589 = vmatpush1.msra.mxu0 0.0
    %1590 = vmatprep.subr.mxu0 0.0
    %1591 = vmatpush1.msra.mxu0 0.0
    %1592 = vmatprep.subr.mxu0 0.0
    %1593 = vmatpush1.msra.mxu0 0.0
    %1594 = vmatprep.subr.mxu0 0.0
    %1595 = vmatpush1.msra.mxu0 0.0
    %1596 = vmatprep.subr.mxu0 0.0
    %1597 = vmatpush1.msra.mxu0 0.0
    %1598 = vmatprep.subr.mxu0 0.0
    %1599 = vmatpush1.msra.mxu0 0.0
    %1600 = vmatprep.mubr.f32.mxu0 0.0
    %1601 = vmatmul.mubr.f32.gmra.mrb[0].mxu0 %v1463
    %v1602 = vpop.f32.mrb[0].mxu0
    %v1603 = vadd.f32 0.0, %v1602
    %v1604 = vpop.f32.mrb[0].mxu0
    %1605 = vdwg.mxu0
    %v1609 = vrot.slane %v1532, 4
    %v1610 = vrot.slane %v1534, 4
    %v1611 = vrot.slane %v1603, 4
    %v1615 = vadd.f32 %v698, %v1609
    %v1616 = vadd.f32 %v700, %v1610
    %v1617 = vadd.f32 %v774, %v1611
    %v1618 = vxor.u32 %v1615, 2147483648
    %v1619 = vmul.f32 %v1618, 1.442695
    %v1620 = vpow.pop %v1619
    %v1621 = vadd.f32 %v1620, 1.0
    %v1622 = vrcp.pop %v1621
    %v1623 = vmul.f32 1.0, %v1622
    %v1624 = vxor.u32 %v1616, 2147483648
    %v1625 = vmul.f32 %v1624, 1.442695
    %v1626 = vpow.pop %v1625
    %v1627 = vadd.f32 %v1626, 1.0
    %v1628 = vrcp.pop %v1627
    %v1629 = vmul.f32 1.0, %v1628
    %v1630 = vtanh.pop %v1616
    %v1631 = vtanh.pop %v1617
    %v1632 = vxor.u32 %v1617, 2147483648
    %v1633 = vmul.f32 %v1632, 1.442695
    %v1634 = vpow.pop %v1633
    %v1635 = vadd.f32 %v1634, 1.0
    %v1636 = vrcp.pop %v1635
    %v1637 = vmul.f32 1.0, %v1636
    %v1640 = vrot.slane %v1234, 2
    %v1641 = vrot.slane %v1235, 2
    %v1644 = vmul.f32 %v1623, %v1640
    %v1645 = vmul.f32 %v1629, %v1641
    %1648 = vrot.lane.b32.xlu0 %v1630, 64
    %v1649 = vpop.permute.xlu0 %1648
    %1650 = vrot.lane.b32.xlu0 %v1631, 64
    %v1651 = vpop.permute.xlu0 %1650
    %v1652 = vsel %vm1025, %v1649, %v1651
    %v1654 = vmul.f32 %v1623, %v1652
    %1656 = vrot.lane.b32.xlu0 %v1654, 96
    %v1657 = vpop.permute.xlu0 %1656
    %v1659 = vadd.f32 %v1644, %v1657
    %v1660 = vadd.f32 %v1645, %v1657
    %v1661 = vtanh.pop %v1659
    %v1662 = vtanh.pop %v1660
    %1665 = vrot.lane.b32.xlu0 %v1661, 64
    %v1666 = vpop.permute.xlu0 %1665
    %1667 = vrot.lane.b32.xlu0 %v1662, 64
    %v1668 = vpop.permute.xlu0 %1667
    %v1669 = vsel %vm1025, %v1666, %v1668
    %v1671 = vmul.f32 %v1637, %v1669
    %v1673 = vrot.slane %v1458, 2
    %1674 = vrot.lane.b32.xlu0 %v1673, 96
    %v1675 = vpop.permute.xlu0 %1674
    %v1676 = vsel %vm849, %v1675, 0
    %1678 = vmatprep.subr.mxu0 %v778
    %1679 = vmatpush1.msra.mxu0 %v777
    %1680 = vmatprep.subr.mxu0 %v781
    %1681 = vmatpush1.msra.mxu0 %v780
    %1682 = vmatprep.subr.mxu0 %v784
    %1683 = vmatpush1.msra.mxu0 %v783
    %1684 = vmatprep.subr.mxu0 %v787
    %1685 = vmatpush1.msra.mxu0 %v786
    %1686 = vmatprep.subr.mxu0 %v790
    %1687 = vmatpush1.msra.mxu0 %v789
    %1688 = vmatprep.subr.mxu0 %v793
    %1689 = vmatpush1.msra.mxu0 %v792
    %1690 = vmatprep.subr.mxu0 %v796
    %1691 = vmatpush1.msra.mxu0 %v795
    %1692 = vmatprep.subr.mxu0 %v799
    %1693 = vmatpush1.msra.mxu0 %v798
    %1694 = vmatprep.subr.mxu0 %v802
    %1695 = vmatpush1.msra.mxu0 %v801
    %1696 = vmatprep.subr.mxu0 %v805
    %1697 = vmatpush1.msra.mxu0 %v804
    %1698 = vmatprep.subr.mxu0 %v808
    %1699 = vmatpush1.msra.mxu0 %v807
    %1700 = vmatprep.subr.mxu0 %v811
    %1701 = vmatpush1.msra.mxu0 %v810
    %1702 = vmatprep.subr.mxu0 0.0
    %1703 = vmatpush1.msra.mxu0 0.0
    %1704 = vmatprep.subr.mxu0 0.0
    %1705 = vmatpush1.msra.mxu0 0.0
    %1706 = vmatprep.subr.mxu0 0.0
    %1707 = vmatpush1.msra.mxu0 0.0
    %1708 = vmatprep.subr.mxu0 0.0
    %1709 = vmatpush1.msra.mxu0 0.0
    %1710 = vmatprep.subr.mxu0 0.0
    %1711 = vmatpush1.msra.mxu0 0.0
    %1712 = vmatprep.subr.mxu0 0.0
    %1713 = vmatpush1.msra.mxu0 0.0
    %1714 = vmatprep.subr.mxu0 0.0
    %1715 = vmatpush1.msra.mxu0 0.0
    %1716 = vmatprep.subr.mxu0 0.0
    %1717 = vmatpush1.msra.mxu0 0.0
    %1718 = vmatprep.subr.mxu0 0.0
    %1719 = vmatpush1.msra.mxu0 0.0
    %1720 = vmatprep.subr.mxu0 0.0
    %1721 = vmatpush1.msra.mxu0 0.0
    %1722 = vmatprep.subr.mxu0 0.0
    %1723 = vmatpush1.msra.mxu0 0.0
    %1724 = vmatprep.subr.mxu0 0.0
    %1725 = vmatpush1.msra.mxu0 0.0
    %1726 = vmatprep.subr.mxu0 0.0
    %1727 = vmatpush1.msra.mxu0 0.0
    %1728 = vmatprep.subr.mxu0 0.0
    %1729 = vmatpush1.msra.mxu0 0.0
    %1730 = vmatprep.subr.mxu0 0.0
    %1731 = vmatpush1.msra.mxu0 0.0
    %1732 = vmatprep.subr.mxu0 0.0
    %1733 = vmatpush1.msra.mxu0 0.0
    %1734 = vmatprep.subr.mxu0 0.0
    %1735 = vmatpush1.msra.mxu0 0.0
    %1736 = vmatprep.subr.mxu0 0.0
    %1737 = vmatpush1.msra.mxu0 0.0
    %1738 = vmatprep.subr.mxu0 0.0
    %1739 = vmatpush1.msra.mxu0 0.0
    %1740 = vmatprep.subr.mxu0 0.0
    %1741 = vmatpush1.msra.mxu0 0.0
    %1742 = vmatprep.mubr.f32.mxu0 0.0
    %1743 = vmatmul.mubr.f32.gmra.mrb[0].mxu0 %v1676
    %v1744 = vpop.f32.mrb[0].mxu0
    %v1745 = vadd.f32 0.0, %v1744
    %v1746 = vpop.f32.mrb[0].mxu0
    %v1747 = vadd.f32 0.0, %v1746
    %1748 = vdwg.mxu0
    %1749 = vmatprep.subr.mxu0 0.0
    %1750 = vmatpush1.msra.mxu0 %v779
    %1751 = vmatprep.subr.mxu0 0.0
    %1752 = vmatpush1.msra.mxu0 %v782
    %1753 = vmatprep.subr.mxu0 0.0
    %1754 = vmatpush1.msra.mxu0 %v785
    %1755 = vmatprep.subr.mxu0 0.0
    %1756 = vmatpush1.msra.mxu0 %v788
    %1757 = vmatprep.subr.mxu0 0.0
    %1758 = vmatpush1.msra.mxu0 %v791
    %1759 = vmatprep.subr.mxu0 0.0
    %1760 = vmatpush1.msra.mxu0 %v794
    %1761 = vmatprep.subr.mxu0 0.0
    %1762 = vmatpush1.msra.mxu0 %v797
    %1763 = vmatprep.subr.mxu0 0.0
    %1764 = vmatpush1.msra.mxu0 %v800
    %1765 = vmatprep.subr.mxu0 0.0
    %1766 = vmatpush1.msra.mxu0 %v803
    %1767 = vmatprep.subr.mxu0 0.0
    %1768 = vmatpush1.msra.mxu0 %v806
    %1769 = vmatprep.subr.mxu0 0.0
    %1770 = vmatpush1.msra.mxu0 %v809
    %1771 = vmatprep.subr.mxu0 0.0
    %1772 = vmatpush1.msra.mxu0 %v812
    %1773 = vmatprep.subr.mxu0 0.0
    %1774 = vmatpush1.msra.mxu0 0.0
    %1775 = vmatprep.subr.mxu0 0.0
    %1776 = vmatpush1.msra.mxu0 0.0
    %1777 = vmatprep.subr.mxu0 0.0
    %1778 = vmatpush1.msra.mxu0 0.0
    %1779 = vmatprep.subr.mxu0 0.0
    %1780 = vmatpush1.msra.mxu0 0.0
    %1781 = vmatprep.subr.mxu0 0.0
    %1782 = vmatpush1.msra.mxu0 0.0
    %1783 = vmatprep.subr.mxu0 0.0
    %1784 = vmatpush1.msra.mxu0 0.0
    %1785 = vmatprep.subr.mxu0 0.0
    %1786 = vmatpush1.msra.mxu0 0.0
    %1787 = vmatprep.subr.mxu0 0.0
    %1788 = vmatpush1.msra.mxu0 0.0
    %1789 = vmatprep.subr.mxu0 0.0
    %1790 = vmatpush1.msra.mxu0 0.0
    %1791 = vmatprep.subr.mxu0 0.0
    %1792 = vmatpush1.msra.mxu0 0.0
    %1793 = vmatprep.subr.mxu0 0.0
    %1794 = vmatpush1.msra.mxu0 0.0
    %1795 = vmatprep.subr.mxu0 0.0
    %1796 = vmatpush1.msra.mxu0 0.0
    %1797 = vmatprep.subr.mxu0 0.0
    %1798 = vmatpush1.msra.mxu0 0.0
    %1799 = vmatprep.subr.mxu0 0.0
    %1800 = vmatpush1.msra.mxu0 0.0
    %1801 = vmatprep.subr.mxu0 0.0
    %1802 = vmatpush1.msra.mxu0 0.0
    %1803 = vmatprep.subr.mxu0 0.0
    %1804 = vmatpush1.msra.mxu0 0.0
    %1805 = vmatprep.subr.mxu0 0.0
    %1806 = vmatpush1.msra.mxu0 0.0
    %1807 = vmatprep.subr.mxu0 0.0
    %1808 = vmatpush1.msra.mxu0 0.0
    %1809 = vmatprep.subr.mxu0 0.0
    %1810 = vmatpush1.msra.mxu0 0.0
    %1811 = vmatprep.subr.mxu0 0.0
    %1812 = vmatpush1.msra.mxu0 0.0
    %1813 = vmatprep.mubr.f32.mxu0 0.0
    %1814 = vmatmul.mubr.f32.gmra.mrb[0].mxu0 %v1676
    %v1815 = vpop.f32.mrb[0].mxu0
    %v1816 = vadd.f32 0.0, %v1815
    %v1817 = vpop.f32.mrb[0].mxu0
    %1818 = vdwg.mxu0
    %v1822 = vrot.slane %v1745, 4
    %v1823 = vrot.slane %v1747, 4
    %v1824 = vrot.slane %v1816, 4
    %v1828 = vadd.f32 %v517, %v1822
    %v1829 = vadd.f32 %v519, %v1823
    %v1830 = vadd.f32 %v594, %v1824
    %v1831 = vxor.u32 %v1828, 2147483648
    %v1832 = vmul.f32 %v1831, 1.442695
    %v1833 = vpow.pop %v1832
    %v1834 = vadd.f32 %v1833, 1.0
    %v1835 = vrcp.pop %v1834
    %v1836 = vmul.f32 1.0, %v1835
    %v1837 = vxor.u32 %v1829, 2147483648
    %v1838 = vmul.f32 %v1837, 1.442695
    %v1839 = vpow.pop %v1838
    %v1840 = vadd.f32 %v1839, 1.0
    %v1841 = vrcp.pop %v1840
    %v1842 = vmul.f32 1.0, %v1841
    %v1843 = vtanh.pop %v1829
    %v1844 = vtanh.pop %v1830
    %v1845 = vxor.u32 %v1830, 2147483648
    %v1846 = vmul.f32 %v1845, 1.442695
    %v1847 = vpow.pop %v1846
    %v1848 = vadd.f32 %v1847, 1.0
    %v1849 = vrcp.pop %v1848
    %v1850 = vmul.f32 1.0, %v1849
    %v1853 = vrot.slane %v1446, 6
    %v1854 = vrot.slane %v1447, 6
    %v1857 = vmul.f32 %v1836, %v1853
    %v1858 = vmul.f32 %v1842, %v1854
    %1861 = vrot.lane.b32.xlu0 %v1843, 64
    %v1862 = vpop.permute.xlu0 %1861
    %1863 = vrot.lane.b32.xlu0 %v1844, 64
    %v1864 = vpop.permute.xlu0 %1863
    %v1865 = vsel %vm1025, %v1862, %v1864
    %v1867 = vmul.f32 %v1836, %v1865
    %1869 = vrot.lane.b32.xlu0 %v1867, 96
    %v1870 = vpop.permute.xlu0 %1869
    %v1872 = vadd.f32 %v1857, %v1870
    %v1873 = vadd.f32 %v1858, %v1870
    %v1874 = vtanh.pop %v1872
    %v1875 = vtanh.pop %v1873
    %1878 = vrot.lane.b32.xlu0 %v1874, 64
    %v1879 = vpop.permute.xlu0 %1878
    %1880 = vrot.lane.b32.xlu0 %v1875, 64
    %v1881 = vpop.permute.xlu0 %1880
    %v1882 = vsel %vm1025, %v1879, %v1881
    %v1884 = vmul.f32 %v1850, %v1882
    %v1886 = vrot.slane %v1671, 4
    %1887 = vrot.lane.b32.xlu0 %v1886, 96
    %v1888 = vpop.permute.xlu0 %1887
    %v1889 = vsel %vm849, %v1888, 0
    %1891 = vmatprep.subr.mxu0 %v814
    %1892 = vmatpush1.msra.mxu0 %v813
    %1893 = vmatprep.subr.mxu0 %v817
    %1894 = vmatpush1.msra.mxu0 %v816
    %1895 = vmatprep.subr.mxu0 %v820
    %1896 = vmatpush1.msra.mxu0 %v819
    %1897 = vmatprep.subr.mxu0 %v823
    %1898 = vmatpush1.msra.mxu0 %v822
    %1899 = vmatprep.subr.mxu0 %v826
    %1900 = vmatpush1.msra.mxu0 %v825
    %1901 = vmatprep.subr.mxu0 %v829
    %1902 = vmatpush1.msra.mxu0 %v828
    %1903 = vmatprep.subr.mxu0 %v832
    %1904 = vmatpush1.msra.mxu0 %v831
    %1905 = vmatprep.subr.mxu0 %v835
    %1906 = vmatpush1.msra.mxu0 %v834
    %1907 = vmatprep.subr.mxu0 %v838
    %1908 = vmatpush1.msra.mxu0 %v837
    %1909 = vmatprep.subr.mxu0 %v841
    %1910 = vmatpush1.msra.mxu0 %v840
    %1911 = vmatprep.subr.mxu0 %v844
    %1912 = vmatpush1.msra.mxu0 %v843
    %1913 = vmatprep.subr.mxu0 %v847
    %1914 = vmatpush1.msra.mxu0 %v846
    %1915 = vmatprep.subr.mxu0 0.0
    %1916 = vmatpush1.msra.mxu0 0.0
    %1917 = vmatprep.subr.mxu0 0.0
    %1918 = vmatpush1.msra.mxu0 0.0
    %1919 = vmatprep.subr.mxu0 0.0
    %1920 = vmatpush1.msra.mxu0 0.0
    %1921 = vmatprep.subr.mxu0 0.0
    %1922 = vmatpush1.msra.mxu0 0.0
    %1923 = vmatprep.subr.mxu0 0.0
    %1924 = vmatpush1.msra.mxu0 0.0
    %1925 = vmatprep.subr.mxu0 0.0
    %1926 = vmatpush1.msra.mxu0 0.0
    %1927 = vmatprep.subr.mxu0 0.0
    %1928 = vmatpush1.msra.mxu0 0.0
    %1929 = vmatprep.subr.mxu0 0.0
    %1930 = vmatpush1.msra.mxu0 0.0
    %1931 = vmatprep.subr.mxu0 0.0
    %1932 = vmatpush1.msra.mxu0 0.0
    %1933 = vmatprep.subr.mxu0 0.0
    %1934 = vmatpush1.msra.mxu0 0.0
    %1935 = vmatprep.subr.mxu0 0.0
    %1936 = vmatpush1.msra.mxu0 0.0
    %1937 = vmatprep.subr.mxu0 0.0
    %1938 = vmatpush1.msra.mxu0 0.0
    %1939 = vmatprep.subr.mxu0 0.0
    %1940 = vmatpush1.msra.mxu0 0.0
    %1941 = vmatprep.subr.mxu0 0.0
    %1942 = vmatpush1.msra.mxu0 0.0
    %1943 = vmatprep.subr.mxu0 0.0
    %1944 = vmatpush1.msra.mxu0 0.0
    %1945 = vmatprep.subr.mxu0 0.0
    %1946 = vmatpush1.msra.mxu0 0.0
    %1947 = vmatprep.subr.mxu0 0.0
    %1948 = vmatpush1.msra.mxu0 0.0
    %1949 = vmatprep.subr.mxu0 0.0
    %1950 = vmatpush1.msra.mxu0 0.0
    %1951 = vmatprep.subr.mxu0 0.0
    %1952 = vmatpush1.msra.mxu0 0.0
    %1953 = vmatprep.subr.mxu0 0.0
    %1954 = vmatpush1.msra.mxu0 0.0
    %1955 = vmatprep.mubr.f32.mxu0 0.0
    %1956 = vmatmul.mubr.f32.gmra.mrb[0].mxu0 %v1889
    %v1957 = vpop.f32.mrb[0].mxu0
    %v1958 = vadd.f32 0.0, %v1957
    %v1959 = vpop.f32.mrb[0].mxu0
    %v1960 = vadd.f32 0.0, %v1959
    %1961 = vdwg.mxu0
    %1962 = vmatprep.subr.mxu0 0.0
    %1963 = vmatpush1.msra.mxu0 %v815
    %1964 = vmatprep.subr.mxu0 0.0
    %1965 = vmatpush1.msra.mxu0 %v818
    %1966 = vmatprep.subr.mxu0 0.0
    %1967 = vmatpush1.msra.mxu0 %v821
    %1968 = vmatprep.subr.mxu0 0.0
    %1969 = vmatpush1.msra.mxu0 %v824
    %1970 = vmatprep.subr.mxu0 0.0
    %1971 = vmatpush1.msra.mxu0 %v827
    %1972 = vmatprep.subr.mxu0 0.0
    %1973 = vmatpush1.msra.mxu0 %v830
    %1974 = vmatprep.subr.mxu0 0.0
    %1975 = vmatpush1.msra.mxu0 %v833
    %1976 = vmatprep.subr.mxu0 0.0
    %1977 = vmatpush1.msra.mxu0 %v836
    %1978 = vmatprep.subr.mxu0 0.0
    %1979 = vmatpush1.msra.mxu0 %v839
    %1980 = vmatprep.subr.mxu0 0.0
    %1981 = vmatpush1.msra.mxu0 %v842
    %1982 = vmatprep.subr.mxu0 0.0
    %1983 = vmatpush1.msra.mxu0 %v845
    %1984 = vmatprep.subr.mxu0 0.0
    %1985 = vmatpush1.msra.mxu0 %v848
    %1986 = vmatprep.subr.mxu0 0.0
    %1987 = vmatpush1.msra.mxu0 0.0
    %1988 = vmatprep.subr.mxu0 0.0
    %1989 = vmatpush1.msra.mxu0 0.0
    %1990 = vmatprep.subr.mxu0 0.0
    %1991 = vmatpush1.msra.mxu0 0.0
    %1992 = vmatprep.subr.mxu0 0.0
    %1993 = vmatpush1.msra.mxu0 0.0
    %1994 = vmatprep.subr.mxu0 0.0
    %1995 = vmatpush1.msra.mxu0 0.0
    %1996 = vmatprep.subr.mxu0 0.0
    %1997 = vmatpush1.msra.mxu0 0.0
    %1998 = vmatprep.subr.mxu0 0.0
    %1999 = vmatpush1.msra.mxu0 0.0
    %2000 = vmatprep.subr.mxu0 0.0
    %2001 = vmatpush1.msra.mxu0 0.0
    %2002 = vmatprep.subr.mxu0 0.0
    %2003 = vmatpush1.msra.mxu0 0.0
    %2004 = vmatprep.subr.mxu0 0.0
    %2005 = vmatpush1.msra.mxu0 0.0
    %2006 = vmatprep.subr.mxu0 0.0
    %2007 = vmatpush1.msra.mxu0 0.0
    %2008 = vmatprep.subr.mxu0 0.0
    %2009 = vmatpush1.msra.mxu0 0.0
    %2010 = vmatprep.subr.mxu0 0.0
    %2011 = vmatpush1.msra.mxu0 0.0
    %2012 = vmatprep.subr.mxu0 0.0
    %2013 = vmatpush1.msra.mxu0 0.0
    %2014 = vmatprep.subr.mxu0 0.0
    %2015 = vmatpush1.msra.mxu0 0.0
    %2016 = vmatprep.subr.mxu0 0.0
    %2017 = vmatpush1.msra.mxu0 0.0
    %2018 = vmatprep.subr.mxu0 0.0
    %2019 = vmatpush1.msra.mxu0 0.0
    %2020 = vmatprep.subr.mxu0 0.0
    %2021 = vmatpush1.msra.mxu0 0.0
    %2022 = vmatprep.subr.mxu0 0.0
    %2023 = vmatpush1.msra.mxu0 0.0
    %2024 = vmatprep.subr.mxu0 0.0
    %2025 = vmatpush1.msra.mxu0 0.0
    %2026 = vmatprep.mubr.f32.mxu0 0.0
    %2027 = vmatmul.mubr.f32.gmra.mrb[0].mxu0 %v1889
    %v2028 = vpop.f32.mrb[0].mxu0
    %v2029 = vadd.f32 0.0, %v2028
    %v2030 = vpop.f32.mrb[0].mxu0
    %2031 = vdwg.mxu0
    %v2035 = vrot.slane %v1958, 6
    %v2036 = vrot.slane %v1960, 6
    %v2037 = vrot.slane %v2029, 6
    %v2041 = vadd.f32 %v698, %v2035
    %v2042 = vadd.f32 %v700, %v2036
    %v2043 = vadd.f32 %v774, %v2037
    %v2044 = vxor.u32 %v2041, 2147483648
    %v2045 = vmul.f32 %v2044, 1.442695
    %v2046 = vpow.pop %v2045
    %v2047 = vadd.f32 %v2046, 1.0
    %v2048 = vrcp.pop %v2047
    %v2049 = vmul.f32 1.0, %v2048
    %v2050 = vxor.u32 %v2042, 2147483648
    %v2051 = vmul.f32 %v2050, 1.442695
    %v2052 = vpow.pop %v2051
    %v2053 = vadd.f32 %v2052, 1.0
    %v2054 = vrcp.pop %v2053
    %v2055 = vmul.f32 1.0, %v2054
    %v2056 = vtanh.pop %v2042
    %v2057 = vtanh.pop %v2043
    %v2058 = vxor.u32 %v2043, 2147483648
    %v2059 = vmul.f32 %v2058, 1.442695
    %v2060 = vpow.pop %v2059
    %v2061 = vadd.f32 %v2060, 1.0
    %v2062 = vrcp.pop %v2061
    %v2063 = vmul.f32 1.0, %v2062
    %v2066 = vrot.slane %v1659, 2
    %v2067 = vrot.slane %v1660, 2
    %v2070 = vmul.f32 %v2049, %v2066
    %v2071 = vmul.f32 %v2055, %v2067
    %2074 = vrot.lane.b32.xlu0 %v2056, 64
    %v2075 = vpop.permute.xlu0 %2074
    %2076 = vrot.lane.b32.xlu0 %v2057, 64
    %v2077 = vpop.permute.xlu0 %2076
    %v2078 = vsel %vm1025, %v2075, %v2077
    %v2080 = vmul.f32 %v2049, %v2078
    %2082 = vrot.lane.b32.xlu0 %v2080, 96
    %v2083 = vpop.permute.xlu0 %2082
    %v2085 = vadd.f32 %v2070, %v2083
    %v2086 = vadd.f32 %v2071, %v2083
    %v2087 = vtanh.pop %v2085
    %v2088 = vtanh.pop %v2086
    %2091 = vrot.lane.b32.xlu0 %v2087, 64
    %v2092 = vpop.permute.xlu0 %2091
    %2093 = vrot.lane.b32.xlu0 %v2088, 64
    %v2094 = vpop.permute.xlu0 %2093
    %v2095 = vsel %vm1025, %v2092, %v2094
    %v2097 = vmul.f32 %v2063, %v2095
    %v2099 = vrot.slane %v1884, 4
    %2100 = vrot.lane.b32.xlu0 %v2099, 96
    %v2101 = vpop.permute.xlu0 %2100
    %v2102 = vsel %vm849, %v2101, 0
    %2104 = vmatprep.subr.mxu0 %v778
    %2105 = vmatpush1.msra.mxu0 %v777
    %2106 = vmatprep.subr.mxu0 %v781
    %2107 = vmatpush1.msra.mxu0 %v780
    %2108 = vmatprep.subr.mxu0 %v784
    %2109 = vmatpush1.msra.mxu0 %v783
    %2110 = vmatprep.subr.mxu0 %v787
    %2111 = vmatpush1.msra.mxu0 %v786
    %2112 = vmatprep.subr.mxu0 %v790
    %2113 = vmatpush1.msra.mxu0 %v789
    %2114 = vmatprep.subr.mxu0 %v793
    %2115 = vmatpush1.msra.mxu0 %v792
    %2116 = vmatprep.subr.mxu0 %v796
    %2117 = vmatpush1.msra.mxu0 %v795
    %2118 = vmatprep.subr.mxu0 %v799
    %2119 = vmatpush1.msra.mxu0 %v798
    %2120 = vmatprep.subr.mxu0 %v802
    %2121 = vmatpush1.msra.mxu0 %v801
    %2122 = vmatprep.subr.mxu0 %v805
    %2123 = vmatpush1.msra.mxu0 %v804
    %2124 = vmatprep.subr.mxu0 %v808
    %2125 = vmatpush1.msra.mxu0 %v807
    %2126 = vmatprep.subr.mxu0 %v811
    %2127 = vmatpush1.msra.mxu0 %v810
    %2128 = vmatprep.subr.mxu0 0.0
    %2129 = vmatpush1.msra.mxu0 0.0
    %2130 = vmatprep.subr.mxu0 0.0
    %2131 = vmatpush1.msra.mxu0 0.0
    %2132 = vmatprep.subr.mxu0 0.0
    %2133 = vmatpush1.msra.mxu0 0.0
    %2134 = vmatprep.subr.mxu0 0.0
    %2135 = vmatpush1.msra.mxu0 0.0
    %2136 = vmatprep.subr.mxu0 0.0
    %2137 = vmatpush1.msra.mxu0 0.0
    %2138 = vmatprep.subr.mxu0 0.0
    %2139 = vmatpush1.msra.mxu0 0.0
    %2140 = vmatprep.subr.mxu0 0.0
    %2141 = vmatpush1.msra.mxu0 0.0
    %2142 = vmatprep.subr.mxu0 0.0
    %2143 = vmatpush1.msra.mxu0 0.0
    %2144 = vmatprep.subr.mxu0 0.0
    %2145 = vmatpush1.msra.mxu0 0.0
    %2146 = vmatprep.subr.mxu0 0.0
    %2147 = vmatpush1.msra.mxu0 0.0
    %2148 = vmatprep.subr.mxu0 0.0
    %2149 = vmatpush1.msra.mxu0 0.0
    %2150 = vmatprep.subr.mxu0 0.0
    %2151 = vmatpush1.msra.mxu0 0.0
    %2152 = vmatprep.subr.mxu0 0.0
    %2153 = vmatpush1.msra.mxu0 0.0
    %2154 = vmatprep.subr.mxu0 0.0
    %2155 = vmatpush1.msra.mxu0 0.0
    %2156 = vmatprep.subr.mxu0 0.0
    %2157 = vmatpush1.msra.mxu0 0.0
    %2158 = vmatprep.subr.mxu0 0.0
    %2159 = vmatpush1.msra.mxu0 0.0
    %2160 = vmatprep.subr.mxu0 0.0
    %2161 = vmatpush1.msra.mxu0 0.0
    %2162 = vmatprep.subr.mxu0 0.0
    %2163 = vmatpush1.msra.mxu0 0.0
    %2164 = vmatprep.subr.mxu0 0.0
    %2165 = vmatpush1.msra.mxu0 0.0
    %2166 = vmatprep.subr.mxu0 0.0
    %2167 = vmatpush1.msra.mxu0 0.0
    %2168 = vmatprep.mubr.f32.mxu0 0.0
    %2169 = vmatmul.mubr.f32.gmra.mrb[0].mxu0 %v2102
    %v2170 = vpop.f32.mrb[0].mxu0
    %v2171 = vadd.f32 0.0, %v2170
    %v2172 = vpop.f32.mrb[0].mxu0
    %v2173 = vadd.f32 0.0, %v2172
    %2174 = vdwg.mxu0
    %2175 = vmatprep.subr.mxu0 0.0
    %2176 = vmatpush1.msra.mxu0 %v779
    %2177 = vmatprep.subr.mxu0 0.0
    %2178 = vmatpush1.msra.mxu0 %v782
    %2179 = vmatprep.subr.mxu0 0.0
    %2180 = vmatpush1.msra.mxu0 %v785
    %2181 = vmatprep.subr.mxu0 0.0
    %2182 = vmatpush1.msra.mxu0 %v788
    %2183 = vmatprep.subr.mxu0 0.0
    %2184 = vmatpush1.msra.mxu0 %v791
    %2185 = vmatprep.subr.mxu0 0.0
    %2186 = vmatpush1.msra.mxu0 %v794
    %2187 = vmatprep.subr.mxu0 0.0
    %2188 = vmatpush1.msra.mxu0 %v797
    %2189 = vmatprep.subr.mxu0 0.0
    %2190 = vmatpush1.msra.mxu0 %v800
    %2191 = vmatprep.subr.mxu0 0.0
    %2192 = vmatpush1.msra.mxu0 %v803
    %2193 = vmatprep.subr.mxu0 0.0
    %2194 = vmatpush1.msra.mxu0 %v806
    %2195 = vmatprep.subr.mxu0 0.0
    %2196 = vmatpush1.msra.mxu0 %v809
    %2197 = vmatprep.subr.mxu0 0.0
    %2198 = vmatpush1.msra.mxu0 %v812
    %2199 = vmatprep.subr.mxu0 0.0
    %2200 = vmatpush1.msra.mxu0 0.0
    %2201 = vmatprep.subr.mxu0 0.0
    %2202 = vmatpush1.msra.mxu0 0.0
    %2203 = vmatprep.subr.mxu0 0.0
    %2204 = vmatpush1.msra.mxu0 0.0
    %2205 = vmatprep.subr.mxu0 0.0
    %2206 = vmatpush1.msra.mxu0 0.0
    %2207 = vmatprep.subr.mxu0 0.0
    %2208 = vmatpush1.msra.mxu0 0.0
    %2209 = vmatprep.subr.mxu0 0.0
    %2210 = vmatpush1.msra.mxu0 0.0
    %2211 = vmatprep.subr.mxu0 0.0
    %2212 = vmatpush1.msra.mxu0 0.0
    %2213 = vmatprep.subr.mxu0 0.0
    %2214 = vmatpush1.msra.mxu0 0.0
    %2215 = vmatprep.subr.mxu0 0.0
    %2216 = vmatpush1.msra.mxu0 0.0
    %2217 = vmatprep.subr.mxu0 0.0
    %2218 = vmatpush1.msra.mxu0 0.0
    %2219 = vmatprep.subr.mxu0 0.0
    %2220 = vmatpush1.msra.mxu0 0.0
    %2221 = vmatprep.subr.mxu0 0.0
    %2222 = vmatpush1.msra.mxu0 0.0
    %2223 = vmatprep.subr.mxu0 0.0
    %2224 = vmatpush1.msra.mxu0 0.0
    %2225 = vmatprep.subr.mxu0 0.0
    %2226 = vmatpush1.msra.mxu0 0.0
    %2227 = vmatprep.subr.mxu0 0.0
    %2228 = vmatpush1.msra.mxu0 0.0
    %2229 = vmatprep.subr.mxu0 0.0
    %2230 = vmatpush1.msra.mxu0 0.0
    %2231 = vmatprep.subr.mxu0 0.0
    %2232 = vmatpush1.msra.mxu0 0.0
    %2233 = vmatprep.subr.mxu0 0.0
    %2234 = vmatpush1.msra.mxu0 0.0
    %2235 = vmatprep.subr.mxu0 0.0
    %2236 = vmatpush1.msra.mxu0 0.0
    %2237 = vmatprep.subr.mxu0 0.0
    %2238 = vmatpush1.msra.mxu0 0.0
    %2239 = vmatprep.mubr.f32.mxu0 0.0
    %2240 = vmatmul.mubr.f32.gmra.mrb[0].mxu0 %v2102
    %v2241 = vpop.f32.mrb[0].mxu0
    %v2242 = vadd.f32 0.0, %v2241
    %v2243 = vpop.f32.mrb[0].mxu0
    %2244 = vdwg.mxu0
    %v2248 = vrot.slane %v2171, 2
    %v2249 = vrot.slane %v2173, 2
    %v2250 = vrot.slane %v2242, 2
    %v2254 = vadd.f32 %v517, %v2248
    %v2255 = vadd.f32 %v519, %v2249
    %v2256 = vadd.f32 %v594, %v2250
    %v2257 = vxor.u32 %v2254, 2147483648
    %v2258 = vmul.f32 %v2257, 1.442695
    %v2259 = vpow.pop %v2258
    %v2260 = vadd.f32 %v2259, 1.0
    %v2261 = vrcp.pop %v2260
    %v2262 = vmul.f32 1.0, %v2261
    %v2263 = vxor.u32 %v2255, 2147483648
    %v2264 = vmul.f32 %v2263, 1.442695
    %v2265 = vpow.pop %v2264
    %v2266 = vadd.f32 %v2265, 1.0
    %v2267 = vrcp.pop %v2266
    %v2268 = vmul.f32 1.0, %v2267
    %v2269 = vtanh.pop %v2255
    %v2270 = vtanh.pop %v2256
    %v2271 = vxor.u32 %v2256, 2147483648
    %v2272 = vmul.f32 %v2271, 1.442695
    %v2273 = vpow.pop %v2272
    %v2274 = vadd.f32 %v2273, 1.0
    %v2275 = vrcp.pop %v2274
    %v2276 = vmul.f32 1.0, %v2275
    %v2279 = vrot.slane %v1872, 6
    %v2280 = vrot.slane %v1873, 6
    %v2283 = vmul.f32 %v2262, %v2279
    %v2284 = vmul.f32 %v2268, %v2280
    %2287 = vrot.lane.b32.xlu0 %v2269, 64
    %v2288 = vpop.permute.xlu0 %2287
    %2289 = vrot.lane.b32.xlu0 %v2270, 64
    %v2290 = vpop.permute.xlu0 %2289
    %v2291 = vsel %vm1025, %v2288, %v2290
    %v2293 = vmul.f32 %v2262, %v2291
    %2295 = vrot.lane.b32.xlu0 %v2293, 96
    %v2296 = vpop.permute.xlu0 %2295
    %v2298 = vadd.f32 %v2283, %v2296
    %v2299 = vadd.f32 %v2284, %v2296
    %v2300 = vtanh.pop %v2298
    %v2301 = vtanh.pop %v2299
    %2304 = vrot.lane.b32.xlu0 %v2300, 64
    %v2305 = vpop.permute.xlu0 %2304
    %2306 = vrot.lane.b32.xlu0 %v2301, 64
    %v2307 = vpop.permute.xlu0 %2306
    %v2308 = vsel %vm1025, %v2305, %v2307
    %v2310 = vmul.f32 %v2276, %v2308
    %v2312 = vrot.slane %v2097, 2
    %2313 = vrot.lane.b32.xlu0 %v2312, 96
    %v2314 = vpop.permute.xlu0 %2313
    %v2315 = vsel %vm849, %v2314, 0
    %2317 = vmatprep.subr.mxu0 %v814
    %2318 = vmatpush1.msra.mxu0 %v813
    %2319 = vmatprep.subr.mxu0 %v817
    %2320 = vmatpush1.msra.mxu0 %v816
    %2321 = vmatprep.subr.mxu0 %v820
    %2322 = vmatpush1.msra.mxu0 %v819
    %2323 = vmatprep.subr.mxu0 %v823
    %2324 = vmatpush1.msra.mxu0 %v822
    %2325 = vmatprep.subr.mxu0 %v826
    %2326 = vmatpush1.msra.mxu0 %v825
    %2327 = vmatprep.subr.mxu0 %v829
    %2328 = vmatpush1.msra.mxu0 %v828
    %2329 = vmatprep.subr.mxu0 %v832
    %2330 = vmatpush1.msra.mxu0 %v831
    %2331 = vmatprep.subr.mxu0 %v835
    %2332 = vmatpush1.msra.mxu0 %v834
    %2333 = vmatprep.subr.mxu0 %v838
    %2334 = vmatpush1.msra.mxu0 %v837
    %2335 = vmatprep.subr.mxu0 %v841
    %2336 = vmatpush1.msra.mxu0 %v840
    %2337 = vmatprep.subr.mxu0 %v844
    %2338 = vmatpush1.msra.mxu0 %v843
    %2339 = vmatprep.subr.mxu0 %v847
    %2340 = vmatpush1.msra.mxu0 %v846
    %2341 = vmatprep.subr.mxu0 0.0
    %2342 = vmatpush1.msra.mxu0 0.0
    %2343 = vmatprep.subr.mxu0 0.0
    %2344 = vmatpush1.msra.mxu0 0.0
    %2345 = vmatprep.subr.mxu0 0.0
    %2346 = vmatpush1.msra.mxu0 0.0
    %2347 = vmatprep.subr.mxu0 0.0
    %2348 = vmatpush1.msra.mxu0 0.0
    %2349 = vmatprep.subr.mxu0 0.0
    %2350 = vmatpush1.msra.mxu0 0.0
    %2351 = vmatprep.subr.mxu0 0.0
    %2352 = vmatpush1.msra.mxu0 0.0
    %2353 = vmatprep.subr.mxu0 0.0
    %2354 = vmatpush1.msra.mxu0 0.0
    %2355 = vmatprep.subr.mxu0 0.0
    %2356 = vmatpush1.msra.mxu0 0.0
    %2357 = vmatprep.subr.mxu0 0.0
    %2358 = vmatpush1.msra.mxu0 0.0
    %2359 = vmatprep.subr.mxu0 0.0
    %2360 = vmatpush1.msra.mxu0 0.0
    %2361 = vmatprep.subr.mxu0 0.0
    %2362 = vmatpush1.msra.mxu0 0.0
    %2363 = vmatprep.subr.mxu0 0.0
    %2364 = vmatpush1.msra.mxu0 0.0
    %2365 = vmatprep.subr.mxu0 0.0
    %2366 = vmatpush1.msra.mxu0 0.0
    %2367 = vmatprep.subr.mxu0 0.0
    %2368 = vmatpush1.msra.mxu0 0.0
    %2369 = vmatprep.subr.mxu0 0.0
    %2370 = vmatpush1.msra.mxu0 0.0
    %2371 = vmatprep.subr.mxu0 0.0
    %2372 = vmatpush1.msra.mxu0 0.0
    %2373 = vmatprep.subr.mxu0 0.0
    %2374 = vmatpush1.msra.mxu0 0.0
    %2375 = vmatprep.subr.mxu0 0.0
    %2376 = vmatpush1.msra.mxu0 0.0
    %2377 = vmatprep.subr.mxu0 0.0
    %2378 = vmatpush1.msra.mxu0 0.0
    %2379 = vmatprep.subr.mxu0 0.0
    %2380 = vmatpush1.msra.mxu0 0.0
    %2381 = vmatprep.mubr.f32.mxu0 0.0
    %2382 = vmatmul.mubr.f32.gmra.mrb[0].mxu0 %v2315
    %v2383 = vpop.f32.mrb[0].mxu0
    %v2384 = vadd.f32 0.0, %v2383
    %v2385 = vpop.f32.mrb[0].mxu0
    %v2386 = vadd.f32 0.0, %v2385
    %2387 = vdwg.mxu0
    %2388 = vmatprep.subr.mxu0 0.0
    %2389 = vmatpush1.msra.mxu0 %v815
    %2390 = vmatprep.subr.mxu0 0.0
    %2391 = vmatpush1.msra.mxu0 %v818
    %2392 = vmatprep.subr.mxu0 0.0
    %2393 = vmatpush1.msra.mxu0 %v821
    %2394 = vmatprep.subr.mxu0 0.0
    %2395 = vmatpush1.msra.mxu0 %v824
    %2396 = vmatprep.subr.mxu0 0.0
    %2397 = vmatpush1.msra.mxu0 %v827
    %2398 = vmatprep.subr.mxu0 0.0
    %2399 = vmatpush1.msra.mxu0 %v830
    %2400 = vmatprep.subr.mxu0 0.0
    %2401 = vmatpush1.msra.mxu0 %v833
    %2402 = vmatprep.subr.mxu0 0.0
    %2403 = vmatpush1.msra.mxu0 %v836
    %2404 = vmatprep.subr.mxu0 0.0
    %2405 = vmatpush1.msra.mxu0 %v839
    %2406 = vmatprep.subr.mxu0 0.0
    %2407 = vmatpush1.msra.mxu0 %v842
    %2408 = vmatprep.subr.mxu0 0.0
    %2409 = vmatpush1.msra.mxu0 %v845
    %2410 = vmatprep.subr.mxu0 0.0
    %2411 = vmatpush1.msra.mxu0 %v848
    %2412 = vmatprep.subr.mxu0 0.0
    %2413 = vmatpush1.msra.mxu0 0.0
    %2414 = vmatprep.subr.mxu0 0.0
    %2415 = vmatpush1.msra.mxu0 0.0
    %2416 = vmatprep.subr.mxu0 0.0
    %2417 = vmatpush1.msra.mxu0 0.0
    %2418 = vmatprep.subr.mxu0 0.0
    %2419 = vmatpush1.msra.mxu0 0.0
    %2420 = vmatprep.subr.mxu0 0.0
    %2421 = vmatpush1.msra.mxu0 0.0
    %2422 = vmatprep.subr.mxu0 0.0
    %2423 = vmatpush1.msra.mxu0 0.0
    %2424 = vmatprep.subr.mxu0 0.0
    %2425 = vmatpush1.msra.mxu0 0.0
    %2426 = vmatprep.subr.mxu0 0.0
    %2427 = vmatpush1.msra.mxu0 0.0
    %2428 = vmatprep.subr.mxu0 0.0
    %2429 = vmatpush1.msra.mxu0 0.0
    %2430 = vmatprep.subr.mxu0 0.0
    %2431 = vmatpush1.msra.mxu0 0.0
    %2432 = vmatprep.subr.mxu0 0.0
    %2433 = vmatpush1.msra.mxu0 0.0
    %2434 = vmatprep.subr.mxu0 0.0
    %2435 = vmatpush1.msra.mxu0 0.0
    %2436 = vmatprep.subr.mxu0 0.0
    %2437 = vmatpush1.msra.mxu0 0.0
    %2438 = vmatprep.subr.mxu0 0.0
    %2439 = vmatpush1.msra.mxu0 0.0
    %2440 = vmatprep.subr.mxu0 0.0
    %2441 = vmatpush1.msra.mxu0 0.0
    %2442 = vmatprep.subr.mxu0 0.0
    %2443 = vmatpush1.msra.mxu0 0.0
    %2444 = vmatprep.subr.mxu0 0.0
    %2445 = vmatpush1.msra.mxu0 0.0
    %2446 = vmatprep.subr.mxu0 0.0
    %2447 = vmatpush1.msra.mxu0 0.0
    %2448 = vmatprep.subr.mxu0 0.0
    %2449 = vmatpush1.msra.mxu0 0.0
    %2450 = vmatprep.subr.mxu0 0.0
    %2451 = vmatpush1.msra.mxu0 0.0
    %2452 = vmatprep.mubr.f32.mxu0 0.0
    %2453 = vmatmul.mubr.f32.gmra.mrb[0].mxu0 %v2315
    %v2454 = vpop.f32.mrb[0].mxu0
    %v2455 = vadd.f32 0.0, %v2454
    %v2456 = vpop.f32.mrb[0].mxu0
    %2457 = vdwg.mxu0
    %v2458 = vadd.f32 %v698, %v2384
    %v2459 = vadd.f32 %v700, %v2386
    %v2460 = vadd.f32 %v774, %v2455
    %v2461 = vxor.u32 %v2458, 2147483648
    %v2462 = vmul.f32 %v2461, 1.442695
    %v2463 = vpow.pop %v2462
    %v2464 = vadd.f32 %v2463, 1.0
    %v2465 = vrcp.pop %v2464
    %v2466 = vmul.f32 1.0, %v2465
    %v2467 = vxor.u32 %v2459, 2147483648
    %v2468 = vmul.f32 %v2467, 1.442695
    %v2469 = vpow.pop %v2468
    %v2470 = vadd.f32 %v2469, 1.0
    %v2471 = vrcp.pop %v2470
    %v2472 = vmul.f32 1.0, %v2471
    %v2473 = vtanh.pop %v2459
    %v2474 = vtanh.pop %v2460
    %v2475 = vxor.u32 %v2460, 2147483648
    %v2476 = vmul.f32 %v2475, 1.442695
    %v2477 = vpow.pop %v2476
    %v2478 = vadd.f32 %v2477, 1.0
    %v2479 = vrcp.pop %v2478
    %v2480 = vmul.f32 1.0, %v2479
    %v2483 = vrot.slane %v2085, 2
    %v2484 = vrot.slane %v2086, 2
    %v2487 = vmul.f32 %v2466, %v2483
    %v2488 = vmul.f32 %v2472, %v2484
    %2491 = vrot.lane.b32.xlu0 %v2473, 64
    %v2492 = vpop.permute.xlu0 %2491
    %2493 = vrot.lane.b32.xlu0 %v2474, 64
    %v2494 = vpop.permute.xlu0 %2493
    %v2495 = vsel %vm1025, %v2492, %v2494
    %v2497 = vmul.f32 %v2466, %v2495
    %2499 = vrot.lane.b32.xlu0 %v2497, 96
    %v2500 = vpop.permute.xlu0 %2499
    %v2502 = vadd.f32 %v2487, %v2500
    %v2503 = vadd.f32 %v2488, %v2500
    %v2504 = vtanh.pop %v2502
    %v2505 = vtanh.pop %v2503
    %2508 = vrot.lane.b32.xlu0 %v2504, 64
    %v2509 = vpop.permute.xlu0 %2508
    %2510 = vrot.lane.b32.xlu0 %v2505, 64
    %v2511 = vpop.permute.xlu0 %2510
    %v2512 = vsel %vm1025, %v2509, %v2511
    %v2514 = vmul.f32 %v2480, %v2512
    %v2516 = vrot.slane %v2310, 6
    %2517 = vrot.lane.b32.xlu0 %v2516, 96
    %v2518 = vpop.permute.xlu0 %2517
    %v2519 = vsel %vm849, %v2518, 0
    %2521 = vmatprep.subr.mxu0 %v778
    %2522 = vmatpush1.msra.mxu0 %v777
    %2523 = vmatprep.subr.mxu0 %v781
    %2524 = vmatpush1.msra.mxu0 %v780
    %2525 = vmatprep.subr.mxu0 %v784
    %2526 = vmatpush1.msra.mxu0 %v783
    %2527 = vmatprep.subr.mxu0 %v787
    %2528 = vmatpush1.msra.mxu0 %v786
    %2529 = vmatprep.subr.mxu0 %v790
    %2530 = vmatpush1.msra.mxu0 %v789
    %2531 = vmatprep.subr.mxu0 %v793
    %2532 = vmatpush1.msra.mxu0 %v792
    %2533 = vmatprep.subr.mxu0 %v796
    %2534 = vmatpush1.msra.mxu0 %v795
    %2535 = vmatprep.subr.mxu0 %v799
    %2536 = vmatpush1.msra.mxu0 %v798
    %2537 = vmatprep.subr.mxu0 %v802
    %2538 = vmatpush1.msra.mxu0 %v801
    %2539 = vmatprep.subr.mxu0 %v805
    %2540 = vmatpush1.msra.mxu0 %v804
    %2541 = vmatprep.subr.mxu0 %v808
    %2542 = vmatpush1.msra.mxu0 %v807
    %2543 = vmatprep.subr.mxu0 %v811
    %2544 = vmatpush1.msra.mxu0 %v810
    %2545 = vmatprep.subr.mxu0 0.0
    %2546 = vmatpush1.msra.mxu0 0.0
    %2547 = vmatprep.subr.mxu0 0.0
    %2548 = vmatpush1.msra.mxu0 0.0
    %2549 = vmatprep.subr.mxu0 0.0
    %2550 = vmatpush1.msra.mxu0 0.0
    %2551 = vmatprep.subr.mxu0 0.0
    %2552 = vmatpush1.msra.mxu0 0.0
    %2553 = vmatprep.subr.mxu0 0.0
    %2554 = vmatpush1.msra.mxu0 0.0
    %2555 = vmatprep.subr.mxu0 0.0
    %2556 = vmatpush1.msra.mxu0 0.0
    %2557 = vmatprep.subr.mxu0 0.0
    %2558 = vmatpush1.msra.mxu0 0.0
    %2559 = vmatprep.subr.mxu0 0.0
    %2560 = vmatpush1.msra.mxu0 0.0
    %2561 = vmatprep.subr.mxu0 0.0
    %2562 = vmatpush1.msra.mxu0 0.0
    %2563 = vmatprep.subr.mxu0 0.0
    %2564 = vmatpush1.msra.mxu0 0.0
    %2565 = vmatprep.subr.mxu0 0.0
    %2566 = vmatpush1.msra.mxu0 0.0
    %2567 = vmatprep.subr.mxu0 0.0
    %2568 = vmatpush1.msra.mxu0 0.0
    %2569 = vmatprep.subr.mxu0 0.0
    %2570 = vmatpush1.msra.mxu0 0.0
    %2571 = vmatprep.subr.mxu0 0.0
    %2572 = vmatpush1.msra.mxu0 0.0
    %2573 = vmatprep.subr.mxu0 0.0
    %2574 = vmatpush1.msra.mxu0 0.0
    %2575 = vmatprep.subr.mxu0 0.0
    %2576 = vmatpush1.msra.mxu0 0.0
    %2577 = vmatprep.subr.mxu0 0.0
    %2578 = vmatpush1.msra.mxu0 0.0
    %2579 = vmatprep.subr.mxu0 0.0
    %2580 = vmatpush1.msra.mxu0 0.0
    %2581 = vmatprep.subr.mxu0 0.0
    %2582 = vmatpush1.msra.mxu0 0.0
    %2583 = vmatprep.subr.mxu0 0.0
    %2584 = vmatpush1.msra.mxu0 0.0
    %2585 = vmatprep.mubr.f32.mxu0 0.0
    %2586 = vmatmul.mubr.f32.gmra.mrb[0].mxu0 %v2519
    %v2587 = vpop.f32.mrb[0].mxu0
    %v2588 = vadd.f32 0.0, %v2587
    %v2589 = vpop.f32.mrb[0].mxu0
    %v2590 = vadd.f32 0.0, %v2589
    %2591 = vdwg.mxu0
    %2592 = vmatprep.subr.mxu0 0.0
    %2593 = vmatpush1.msra.mxu0 %v779
    %2594 = vmatprep.subr.mxu0 0.0
    %2595 = vmatpush1.msra.mxu0 %v782
    %2596 = vmatprep.subr.mxu0 0.0
    %2597 = vmatpush1.msra.mxu0 %v785
    %2598 = vmatprep.subr.mxu0 0.0
    %2599 = vmatpush1.msra.mxu0 %v788
    %2600 = vmatprep.subr.mxu0 0.0
    %2601 = vmatpush1.msra.mxu0 %v791
    %2602 = vmatprep.subr.mxu0 0.0
    %2603 = vmatpush1.msra.mxu0 %v794
    %2604 = vmatprep.subr.mxu0 0.0
    %2605 = vmatpush1.msra.mxu0 %v797
    %2606 = vmatprep.subr.mxu0 0.0
    %2607 = vmatpush1.msra.mxu0 %v800
    %2608 = vmatprep.subr.mxu0 0.0
    %2609 = vmatpush1.msra.mxu0 %v803
    %2610 = vmatprep.subr.mxu0 0.0
    %2611 = vmatpush1.msra.mxu0 %v806
    %2612 = vmatprep.subr.mxu0 0.0
    %2613 = vmatpush1.msra.mxu0 %v809
    %2614 = vmatprep.subr.mxu0 0.0
    %2615 = vmatpush1.msra.mxu0 %v812
    %2616 = vmatprep.subr.mxu0 0.0
    %2617 = vmatpush1.msra.mxu0 0.0
    %2618 = vmatprep.subr.mxu0 0.0
    %2619 = vmatpush1.msra.mxu0 0.0
    %2620 = vmatprep.subr.mxu0 0.0
    %2621 = vmatpush1.msra.mxu0 0.0
    %2622 = vmatprep.subr.mxu0 0.0
    %2623 = vmatpush1.msra.mxu0 0.0
    %2624 = vmatprep.subr.mxu0 0.0
    %2625 = vmatpush1.msra.mxu0 0.0
    %2626 = vmatprep.subr.mxu0 0.0
    %2627 = vmatpush1.msra.mxu0 0.0
    %2628 = vmatprep.subr.mxu0 0.0
    %2629 = vmatpush1.msra.mxu0 0.0
    %2630 = vmatprep.subr.mxu0 0.0
    %2631 = vmatpush1.msra.mxu0 0.0
    %2632 = vmatprep.subr.mxu0 0.0
    %2633 = vmatpush1.msra.mxu0 0.0
    %2634 = vmatprep.subr.mxu0 0.0
    %2635 = vmatpush1.msra.mxu0 0.0
    %2636 = vmatprep.subr.mxu0 0.0
    %2637 = vmatpush1.msra.mxu0 0.0
    %2638 = vmatprep.subr.mxu0 0.0
    %2639 = vmatpush1.msra.mxu0 0.0
    %2640 = vmatprep.subr.mxu0 0.0
    %2641 = vmatpush1.msra.mxu0 0.0
    %2642 = vmatprep.subr.mxu0 0.0
    %2643 = vmatpush1.msra.mxu0 0.0
    %2644 = vmatprep.subr.mxu0 0.0
    %2645 = vmatpush1.msra.mxu0 0.0
    %2646 = vmatprep.subr.mxu0 0.0
    %2647 = vmatpush1.msra.mxu0 0.0
    %2648 = vmatprep.subr.mxu0 0.0
    %2649 = vmatpush1.msra.mxu0 0.0
    %2650 = vmatprep.subr.mxu0 0.0
    %2651 = vmatpush1.msra.mxu0 0.0
    %2652 = vmatprep.subr.mxu0 0.0
    %2653 = vmatpush1.msra.mxu0 0.0
    %2654 = vmatprep.subr.mxu0 0.0
    %2655 = vmatpush1.msra.mxu0 0.0
    %2656 = vmatprep.mubr.f32.mxu0 0.0
    %2657 = vmatmul.mubr.f32.gmra.mrb[0].mxu0 %v2519
    %v2658 = vpop.f32.mrb[0].mxu0
    %v2659 = vadd.f32 0.0, %v2658
    %v2660 = vpop.f32.mrb[0].mxu0
    %2661 = vdwg.mxu0
    %v2662 = vadd.f32 %v523, %v2588
    %v2663 = vadd.f32 %v525, %v2590
    %v2664 = vadd.f32 %v599, %v2659
    %v2665 = vxor.u32 %v2662, 2147483648
    %v2666 = vmul.f32 %v2665, 1.442695
    %v2667 = vpow.pop %v2666
    %v2668 = vadd.f32 %v2667, 1.0
    %v2669 = vrcp.pop %v2668
    %v2670 = vmul.f32 1.0, %v2669
    %v2671 = vxor.u32 %v2663, 2147483648
    %v2672 = vmul.f32 %v2671, 1.442695
    %v2673 = vpow.pop %v2672
    %v2674 = vadd.f32 %v2673, 1.0
    %v2675 = vrcp.pop %v2674
    %v2676 = vmul.f32 1.0, %v2675
    %v2677 = vtanh.pop %v2663
    %v2678 = vtanh.pop %v2664
    %v2679 = vxor.u32 %v2664, 2147483648
    %v2680 = vmul.f32 %v2679, 1.442695
    %v2681 = vpow.pop %v2680
    %v2682 = vadd.f32 %v2681, 1.0
    %v2683 = vrcp.pop %v2682
    %v2684 = vmul.f32 1.0, %v2683
    %v2687 = vrot.slane %v2298, 6
    %v2688 = vrot.slane %v2299, 6
    %v2691 = vmul.f32 %v2670, %v2687
    %v2692 = vmul.f32 %v2676, %v2688
    %2695 = vrot.lane.b32.xlu0 %v2677, 64
    %v2696 = vpop.permute.xlu0 %2695
    %2697 = vrot.lane.b32.xlu0 %v2678, 64
    %v2698 = vpop.permute.xlu0 %2697
    %v2699 = vsel %vm1025, %v2696, %v2698
    %v2701 = vmul.f32 %v2670, %v2699
    %2703 = vrot.lane.b32.xlu0 %v2701, 96
    %v2704 = vpop.permute.xlu0 %2703
    %v2706 = vadd.f32 %v2691, %v2704
    %v2707 = vadd.f32 %v2692, %v2704
    %v2708 = vtanh.pop %v2706
    %v2709 = vtanh.pop %v2707
    %2712 = vrot.lane.b32.xlu0 %v2708, 64
    %v2713 = vpop.permute.xlu0 %2712
    %2714 = vrot.lane.b32.xlu0 %v2709, 64
    %v2715 = vpop.permute.xlu0 %2714
    %v2716 = vsel %vm1025, %v2713, %v2715
    %v2718 = vmul.f32 %v2684, %v2716
    %2720 = vrot.lane.b32.xlu0 %v2514, 96
    %v2721 = vpop.permute.xlu0 %2720
    %v2722 = vsel %vm849, %v2721, 0
    %2724 = vmatprep.subr.mxu0 %v814
    %2725 = vmatpush1.msra.mxu0 %v813
    %2726 = vmatprep.subr.mxu0 %v817
    %2727 = vmatpush1.msra.mxu0 %v816
    %2728 = vmatprep.subr.mxu0 %v820
    %2729 = vmatpush1.msra.mxu0 %v819
    %2730 = vmatprep.subr.mxu0 %v823
    %2731 = vmatpush1.msra.mxu0 %v822
    %2732 = vmatprep.subr.mxu0 %v826
    %2733 = vmatpush1.msra.mxu0 %v825
    %2734 = vmatprep.subr.mxu0 %v829
    %2735 = vmatpush1.msra.mxu0 %v828
    %2736 = vmatprep.subr.mxu0 %v832
    %2737 = vmatpush1.msra.mxu0 %v831
    %2738 = vmatprep.subr.mxu0 %v835
    %2739 = vmatpush1.msra.mxu0 %v834
    %2740 = vmatprep.subr.mxu0 %v838
    %2741 = vmatpush1.msra.mxu0 %v837
    %2742 = vmatprep.subr.mxu0 %v841
    %2743 = vmatpush1.msra.mxu0 %v840
    %2744 = vmatprep.subr.mxu0 %v844
    %2745 = vmatpush1.msra.mxu0 %v843
    %2746 = vmatprep.subr.mxu0 %v847
    %2747 = vmatpush1.msra.mxu0 %v846
    %2748 = vmatprep.subr.mxu0 0.0
    %2749 = vmatpush1.msra.mxu0 0.0
    %2750 = vmatprep.subr.mxu0 0.0
    %2751 = vmatpush1.msra.mxu0 0.0
    %2752 = vmatprep.subr.mxu0 0.0
    %2753 = vmatpush1.msra.mxu0 0.0
    %2754 = vmatprep.subr.mxu0 0.0
    %2755 = vmatpush1.msra.mxu0 0.0
    %2756 = vmatprep.subr.mxu0 0.0
    %2757 = vmatpush1.msra.mxu0 0.0
    %2758 = vmatprep.subr.mxu0 0.0
    %2759 = vmatpush1.msra.mxu0 0.0
    %2760 = vmatprep.subr.mxu0 0.0
    %2761 = vmatpush1.msra.mxu0 0.0
    %2762 = vmatprep.subr.mxu0 0.0
    %2763 = vmatpush1.msra.mxu0 0.0
    %2764 = vmatprep.subr.mxu0 0.0
    %2765 = vmatpush1.msra.mxu0 0.0
    %2766 = vmatprep.subr.mxu0 0.0
    %2767 = vmatpush1.msra.mxu0 0.0
    %2768 = vmatprep.subr.mxu0 0.0
    %2769 = vmatpush1.msra.mxu0 0.0
    %2770 = vmatprep.subr.mxu0 0.0
    %2771 = vmatpush1.msra.mxu0 0.0
    %2772 = vmatprep.subr.mxu0 0.0
    %2773 = vmatpush1.msra.mxu0 0.0
    %2774 = vmatprep.subr.mxu0 0.0
    %2775 = vmatpush1.msra.mxu0 0.0
    %2776 = vmatprep.subr.mxu0 0.0
    %2777 = vmatpush1.msra.mxu0 0.0
    %2778 = vmatprep.subr.mxu0 0.0
    %2779 = vmatpush1.msra.mxu0 0.0
    %2780 = vmatprep.subr.mxu0 0.0
    %2781 = vmatpush1.msra.mxu0 0.0
    %2782 = vmatprep.subr.mxu0 0.0
    %2783 = vmatpush1.msra.mxu0 0.0
    %2784 = vmatprep.subr.mxu0 0.0
    %2785 = vmatpush1.msra.mxu0 0.0
    %2786 = vmatprep.subr.mxu0 0.0
    %2787 = vmatpush1.msra.mxu0 0.0
    %2788 = vmatprep.mubr.f32.mxu0 0.0
    %2789 = vmatmul.mubr.f32.gmra.mrb[0].mxu0 %v2722
    %v2790 = vpop.f32.mrb[0].mxu0
    %v2791 = vadd.f32 0.0, %v2790
    %v2792 = vpop.f32.mrb[0].mxu0
    %v2793 = vadd.f32 0.0, %v2792
    %2794 = vdwg.mxu0
    %2795 = vmatprep.subr.mxu0 0.0
    %2796 = vmatpush1.msra.mxu0 %v815
    %2797 = vmatprep.subr.mxu0 0.0
    %2798 = vmatpush1.msra.mxu0 %v818
    %2799 = vmatprep.subr.mxu0 0.0
    %2800 = vmatpush1.msra.mxu0 %v821
    %2801 = vmatprep.subr.mxu0 0.0
    %2802 = vmatpush1.msra.mxu0 %v824
    %2803 = vmatprep.subr.mxu0 0.0
    %2804 = vmatpush1.msra.mxu0 %v827
    %2805 = vmatprep.subr.mxu0 0.0
    %2806 = vmatpush1.msra.mxu0 %v830
    %2807 = vmatprep.subr.mxu0 0.0
    %2808 = vmatpush1.msra.mxu0 %v833
    %2809 = vmatprep.subr.mxu0 0.0
    %2810 = vmatpush1.msra.mxu0 %v836
    %2811 = vmatprep.subr.mxu0 0.0
    %2812 = vmatpush1.msra.mxu0 %v839
    %2813 = vmatprep.subr.mxu0 0.0
    %2814 = vmatpush1.msra.mxu0 %v842
    %2815 = vmatprep.subr.mxu0 0.0
    %2816 = vmatpush1.msra.mxu0 %v845
    %2817 = vmatprep.subr.mxu0 0.0
    %2818 = vmatpush1.msra.mxu0 %v848
    %2819 = vmatprep.subr.mxu0 0.0
    %2820 = vmatpush1.msra.mxu0 0.0
    %2821 = vmatprep.subr.mxu0 0.0
    %2822 = vmatpush1.msra.mxu0 0.0
    %2823 = vmatprep.subr.mxu0 0.0
    %2824 = vmatpush1.msra.mxu0 0.0
    %2825 = vmatprep.subr.mxu0 0.0
    %2826 = vmatpush1.msra.mxu0 0.0
    %2827 = vmatprep.subr.mxu0 0.0
    %2828 = vmatpush1.msra.mxu0 0.0
    %2829 = vmatprep.subr.mxu0 0.0
    %2830 = vmatpush1.msra.mxu0 0.0
    %2831 = vmatprep.subr.mxu0 0.0
    %2832 = vmatpush1.msra.mxu0 0.0
    %2833 = vmatprep.subr.mxu0 0.0
    %2834 = vmatpush1.msra.mxu0 0.0
    %2835 = vmatprep.subr.mxu0 0.0
    %2836 = vmatpush1.msra.mxu0 0.0
    %2837 = vmatprep.subr.mxu0 0.0
    %2838 = vmatpush1.msra.mxu0 0.0
    %2839 = vmatprep.subr.mxu0 0.0
    %2840 = vmatpush1.msra.mxu0 0.0
    %2841 = vmatprep.subr.mxu0 0.0
    %2842 = vmatpush1.msra.mxu0 0.0
    %2843 = vmatprep.subr.mxu0 0.0
    %2844 = vmatpush1.msra.mxu0 0.0
    %2845 = vmatprep.subr.mxu0 0.0
    %2846 = vmatpush1.msra.mxu0 0.0
    %2847 = vmatprep.subr.mxu0 0.0
    %2848 = vmatpush1.msra.mxu0 0.0
    %2849 = vmatprep.subr.mxu0 0.0
    %2850 = vmatpush1.msra.mxu0 0.0
    %2851 = vmatprep.subr.mxu0 0.0
    %2852 = vmatpush1.msra.mxu0 0.0
    %2853 = vmatprep.subr.mxu0 0.0
    %2854 = vmatpush1.msra.mxu0 0.0
    %2855 = vmatprep.subr.mxu0 0.0
    %2856 = vmatpush1.msra.mxu0 0.0
    %2857 = vmatprep.subr.mxu0 0.0
    %2858 = vmatpush1.msra.mxu0 0.0
    %2859 = vmatprep.mubr.f32.mxu0 0.0
    %2860 = vmatmul.mubr.f32.gmra.mrb[0].mxu0 %v2722
    %v2861 = vpop.f32.mrb[0].mxu0
    %v2862 = vadd.f32 0.0, %v2861
    %v2863 = vpop.f32.mrb[0].mxu0
    %2864 = vdwg.mxu0
    %v2868 = vrot.slane %v2791, 2
    %v2869 = vrot.slane %v2793, 2
    %v2870 = vrot.slane %v2862, 2
    %v2874 = vadd.f32 %v692, %v2868
    %v2875 = vadd.f32 %v694, %v2869
    %v2876 = vadd.f32 %v769, %v2870
    %v2877 = vxor.u32 %v2874, 2147483648
    %v2878 = vmul.f32 %v2877, 1.442695
    %v2879 = vpow.pop %v2878
    %v2880 = vadd.f32 %v2879, 1.0
    %v2881 = vrcp.pop %v2880
    %v2882 = vmul.f32 1.0, %v2881
    %v2883 = vxor.u32 %v2875, 2147483648
    %v2884 = vmul.f32 %v2883, 1.442695
    %v2885 = vpow.pop %v2884
    %v2886 = vadd.f32 %v2885, 1.0
    %v2887 = vrcp.pop %v2886
    %v2888 = vmul.f32 1.0, %v2887
    %v2889 = vtanh.pop %v2875
    %v2890 = vtanh.pop %v2876
    %v2891 = vxor.u32 %v2876, 2147483648
    %v2892 = vmul.f32 %v2891, 1.442695
    %v2893 = vpow.pop %v2892
    %v2894 = vadd.f32 %v2893, 1.0
    %v2895 = vrcp.pop %v2894
    %v2896 = vmul.f32 1.0, %v2895
    %v2899 = vrot.slane %v2502, 2
    %v2900 = vrot.slane %v2503, 2
    %v2903 = vmul.f32 %v2882, %v2899
    %v2904 = vmul.f32 %v2888, %v2900
    %2907 = vrot.lane.b32.xlu0 %v2889, 64
    %v2908 = vpop.permute.xlu0 %2907
    %2909 = vrot.lane.b32.xlu0 %v2890, 64
    %v2910 = vpop.permute.xlu0 %2909
    %v2911 = vsel %vm1025, %v2908, %v2910
    %v2913 = vmul.f32 %v2882, %v2911
    %2915 = vrot.lane.b32.xlu0 %v2913, 96
    %v2916 = vpop.permute.xlu0 %2915
    %v2918 = vadd.f32 %v2903, %v2916
    %v2919 = vadd.f32 %v2904, %v2916
    %v2920 = vtanh.pop %v2918
    %v2921 = vtanh.pop %v2919
    %2924 = vrot.lane.b32.xlu0 %v2920, 64
    %v2925 = vpop.permute.xlu0 %2924
    %2926 = vrot.lane.b32.xlu0 %v2921, 64
    %v2927 = vpop.permute.xlu0 %2926
    %v2928 = vsel %vm1025, %v2925, %v2927
    %v2930 = vmul.f32 %v2896, %v2928
    %2932 = vrot.lane.b32.xlu0 %v2718, 96
    %v2933 = vpop.permute.xlu0 %2932
    %v2934 = vsel %vm849, %v2933, 0
    %2936 = vmatprep.subr.mxu0 %v778
    %2937 = vmatpush1.msra.mxu0 %v777
    %2938 = vmatprep.subr.mxu0 %v781
    %2939 = vmatpush1.msra.mxu0 %v780
    %2940 = vmatprep.subr.mxu0 %v784
    %2941 = vmatpush1.msra.mxu0 %v783
    %2942 = vmatprep.subr.mxu0 %v787
    %2943 = vmatpush1.msra.mxu0 %v786
    %2944 = vmatprep.subr.mxu0 %v790
    %2945 = vmatpush1.msra.mxu0 %v789
    %2946 = vmatprep.subr.mxu0 %v793
    %2947 = vmatpush1.msra.mxu0 %v792
    %2948 = vmatprep.subr.mxu0 %v796
    %2949 = vmatpush1.msra.mxu0 %v795
    %2950 = vmatprep.subr.mxu0 %v799
    %2951 = vmatpush1.msra.mxu0 %v798
    %2952 = vmatprep.subr.mxu0 %v802
    %2953 = vmatpush1.msra.mxu0 %v801
    %2954 = vmatprep.subr.mxu0 %v805
    %2955 = vmatpush1.msra.mxu0 %v804
    %2956 = vmatprep.subr.mxu0 %v808
    %2957 = vmatpush1.msra.mxu0 %v807
    %2958 = vmatprep.subr.mxu0 %v811
    %2959 = vmatpush1.msra.mxu0 %v810
    %2960 = vmatprep.subr.mxu0 0.0
    %2961 = vmatpush1.msra.mxu0 0.0
    %2962 = vmatprep.subr.mxu0 0.0
    %2963 = vmatpush1.msra.mxu0 0.0
    %2964 = vmatprep.subr.mxu0 0.0
    %2965 = vmatpush1.msra.mxu0 0.0
    %2966 = vmatprep.subr.mxu0 0.0
    %2967 = vmatpush1.msra.mxu0 0.0
    %2968 = vmatprep.subr.mxu0 0.0
    %2969 = vmatpush1.msra.mxu0 0.0
    %2970 = vmatprep.subr.mxu0 0.0
    %2971 = vmatpush1.msra.mxu0 0.0
    %2972 = vmatprep.subr.mxu0 0.0
    %2973 = vmatpush1.msra.mxu0 0.0
    %2974 = vmatprep.subr.mxu0 0.0
    %2975 = vmatpush1.msra.mxu0 0.0
    %2976 = vmatprep.subr.mxu0 0.0
    %2977 = vmatpush1.msra.mxu0 0.0
    %2978 = vmatprep.subr.mxu0 0.0
    %2979 = vmatpush1.msra.mxu0 0.0
    %2980 = vmatprep.subr.mxu0 0.0
    %2981 = vmatpush1.msra.mxu0 0.0
    %2982 = vmatprep.subr.mxu0 0.0
    %2983 = vmatpush1.msra.mxu0 0.0
    %2984 = vmatprep.subr.mxu0 0.0
    %2985 = vmatpush1.msra.mxu0 0.0
    %2986 = vmatprep.subr.mxu0 0.0
    %2987 = vmatpush1.msra.mxu0 0.0
    %2988 = vmatprep.subr.mxu0 0.0
    %2989 = vmatpush1.msra.mxu0 0.0
    %2990 = vmatprep.subr.mxu0 0.0
    %2991 = vmatpush1.msra.mxu0 0.0
    %2992 = vmatprep.subr.mxu0 0.0
    %2993 = vmatpush1.msra.mxu0 0.0
    %2994 = vmatprep.subr.mxu0 0.0
    %2995 = vmatpush1.msra.mxu0 0.0
    %2996 = vmatprep.subr.mxu0 0.0
    %2997 = vmatpush1.msra.mxu0 0.0
    %2998 = vmatprep.subr.mxu0 0.0
    %2999 = vmatpush1.msra.mxu0 0.0
    %3000 = vmatprep.mubr.f32.mxu0 0.0
    %3001 = vmatmul.mubr.f32.gmra.mrb[0].mxu0 %v2934
    %v3002 = vpop.f32.mrb[0].mxu0
    %v3003 = vadd.f32 0.0, %v3002
    %v3004 = vpop.f32.mrb[0].mxu0
    %v3005 = vadd.f32 0.0, %v3004
    %3006 = vdwg.mxu0
    %3007 = vmatprep.subr.mxu0 0.0
    %3008 = vmatpush1.msra.mxu0 %v779
    %3009 = vmatprep.subr.mxu0 0.0
    %3010 = vmatpush1.msra.mxu0 %v782
    %3011 = vmatprep.subr.mxu0 0.0
    %3012 = vmatpush1.msra.mxu0 %v785
    %3013 = vmatprep.subr.mxu0 0.0
    %3014 = vmatpush1.msra.mxu0 %v788
    %3015 = vmatprep.subr.mxu0 0.0
    %3016 = vmatpush1.msra.mxu0 %v791
    %3017 = vmatprep.subr.mxu0 0.0
    %3018 = vmatpush1.msra.mxu0 %v794
    %3019 = vmatprep.subr.mxu0 0.0
    %3020 = vmatpush1.msra.mxu0 %v797
    %3021 = vmatprep.subr.mxu0 0.0
    %3022 = vmatpush1.msra.mxu0 %v800
    %3023 = vmatprep.subr.mxu0 0.0
    %3024 = vmatpush1.msra.mxu0 %v803
    %3025 = vmatprep.subr.mxu0 0.0
    %3026 = vmatpush1.msra.mxu0 %v806
    %3027 = vmatprep.subr.mxu0 0.0
    %3028 = vmatpush1.msra.mxu0 %v809
    %3029 = vmatprep.subr.mxu0 0.0
    %3030 = vmatpush1.msra.mxu0 %v812
    %3031 = vmatprep.subr.mxu0 0.0
    %3032 = vmatpush1.msra.mxu0 0.0
    %3033 = vmatprep.subr.mxu0 0.0
    %3034 = vmatpush1.msra.mxu0 0.0
    %3035 = vmatprep.subr.mxu0 0.0
    %3036 = vmatpush1.msra.mxu0 0.0
    %3037 = vmatprep.subr.mxu0 0.0
    %3038 = vmatpush1.msra.mxu0 0.0
    %3039 = vmatprep.subr.mxu0 0.0
    %3040 = vmatpush1.msra.mxu0 0.0
    %3041 = vmatprep.subr.mxu0 0.0
    %3042 = vmatpush1.msra.mxu0 0.0
    %3043 = vmatprep.subr.mxu0 0.0
    %3044 = vmatpush1.msra.mxu0 0.0
    %3045 = vmatprep.subr.mxu0 0.0
    %3046 = vmatpush1.msra.mxu0 0.0
    %3047 = vmatprep.subr.mxu0 0.0
    %3048 = vmatpush1.msra.mxu0 0.0
    %3049 = vmatprep.subr.mxu0 0.0
    %3050 = vmatpush1.msra.mxu0 0.0
    %3051 = vmatprep.subr.mxu0 0.0
    %3052 = vmatpush1.msra.mxu0 0.0
    %3053 = vmatprep.subr.mxu0 0.0
    %3054 = vmatpush1.msra.mxu0 0.0
    %3055 = vmatprep.subr.mxu0 0.0
    %3056 = vmatpush1.msra.mxu0 0.0
    %3057 = vmatprep.subr.mxu0 0.0
    %3058 = vmatpush1.msra.mxu0 0.0
    %3059 = vmatprep.subr.mxu0 0.0
    %3060 = vmatpush1.msra.mxu0 0.0
    %3061 = vmatprep.subr.mxu0 0.0
    %3062 = vmatpush1.msra.mxu0 0.0
    %3063 = vmatprep.subr.mxu0 0.0
    %3064 = vmatpush1.msra.mxu0 0.0
    %3065 = vmatprep.subr.mxu0 0.0
    %3066 = vmatpush1.msra.mxu0 0.0
    %3067 = vmatprep.subr.mxu0 0.0
    %3068 = vmatpush1.msra.mxu0 0.0
    %3069 = vmatprep.subr.mxu0 0.0
    %3070 = vmatpush1.msra.mxu0 0.0
    %3071 = vmatprep.mubr.f32.mxu0 0.0
    %3072 = vmatmul.mubr.f32.gmra.mrb[0].mxu0 %v2934
    %v3073 = vpop.f32.mrb[0].mxu0
    %v3074 = vadd.f32 0.0, %v3073
    %v3075 = vpop.f32.mrb[0].mxu0
    %3076 = vdwg.mxu0
    %v3080 = vrot.slane %v3003, 6
    %v3081 = vrot.slane %v3005, 6
    %v3082 = vrot.slane %v3074, 6
    %v3086 = vadd.f32 %v523, %v3080
    %v3087 = vadd.f32 %v525, %v3081
    %v3088 = vadd.f32 %v599, %v3082
    %v3089 = vxor.u32 %v3086, 2147483648
    %v3090 = vmul.f32 %v3089, 1.442695
    %v3091 = vpow.pop %v3090
    %v3092 = vadd.f32 %v3091, 1.0
    %v3093 = vrcp.pop %v3092
    %v3094 = vmul.f32 1.0, %v3093
    %v3095 = vxor.u32 %v3087, 2147483648
    %v3096 = vmul.f32 %v3095, 1.442695
    %v3097 = vpow.pop %v3096
    %v3098 = vadd.f32 %v3097, 1.0
    %v3099 = vrcp.pop %v3098
    %v3100 = vmul.f32 1.0, %v3099
    %v3101 = vtanh.pop %v3087
    %v3102 = vtanh.pop %v3088
    %v3103 = vxor.u32 %v3088, 2147483648
    %v3104 = vmul.f32 %v3103, 1.442695
    %v3105 = vpow.pop %v3104
    %v3106 = vadd.f32 %v3105, 1.0
    %v3107 = vrcp.pop %v3106
    %v3108 = vmul.f32 1.0, %v3107
    %v3111 = vrot.slane %v2706, 6
    %v3112 = vrot.slane %v2707, 6
    %v3115 = vmul.f32 %v3094, %v3111
    %v3116 = vmul.f32 %v3100, %v3112
    %3119 = vrot.lane.b32.xlu0 %v3101, 64
    %v3120 = vpop.permute.xlu0 %3119
    %3121 = vrot.lane.b32.xlu0 %v3102, 64
    %v3122 = vpop.permute.xlu0 %3121
    %v3123 = vsel %vm1025, %v3120, %v3122
    %v3125 = vmul.f32 %v3094, %v3123
    %3127 = vrot.lane.b32.xlu0 %v3125, 96
    %v3128 = vpop.permute.xlu0 %3127
    %v3130 = vadd.f32 %v3115, %v3128
    %v3131 = vadd.f32 %v3116, %v3128
    %v3132 = vtanh.pop %v3130
    %v3133 = vtanh.pop %v3131
    %3136 = vrot.lane.b32.xlu0 %v3132, 64
    %v3137 = vpop.permute.xlu0 %3136
    %3138 = vrot.lane.b32.xlu0 %v3133, 64
    %v3139 = vpop.permute.xlu0 %3138
    %v3140 = vsel %vm1025, %v3137, %v3139
    %v3142 = vmul.f32 %v3108, %v3140
    %v3144 = vrot.slane %v2930, 6
    %3145 = vrot.lane.b32.xlu0 %v3144, 96
    %v3146 = vpop.permute.xlu0 %3145
    %v3147 = vsel %vm849, %v3146, 0
    %3149 = vmatprep.subr.mxu0 %v814
    %3150 = vmatpush1.msra.mxu0 %v813
    %3151 = vmatprep.subr.mxu0 %v817
    %3152 = vmatpush1.msra.mxu0 %v816
    %3153 = vmatprep.subr.mxu0 %v820
    %3154 = vmatpush1.msra.mxu0 %v819
    %3155 = vmatprep.subr.mxu0 %v823
    %3156 = vmatpush1.msra.mxu0 %v822
    %3157 = vmatprep.subr.mxu0 %v826
    %3158 = vmatpush1.msra.mxu0 %v825
    %3159 = vmatprep.subr.mxu0 %v829
    %3160 = vmatpush1.msra.mxu0 %v828
    %3161 = vmatprep.subr.mxu0 %v832
    %3162 = vmatpush1.msra.mxu0 %v831
    %3163 = vmatprep.subr.mxu0 %v835
    %3164 = vmatpush1.msra.mxu0 %v834
    %3165 = vmatprep.subr.mxu0 %v838
    %3166 = vmatpush1.msra.mxu0 %v837
    %3167 = vmatprep.subr.mxu0 %v841
    %3168 = vmatpush1.msra.mxu0 %v840
    %3169 = vmatprep.subr.mxu0 %v844
    %3170 = vmatpush1.msra.mxu0 %v843
    %3171 = vmatprep.subr.mxu0 %v847
    %3172 = vmatpush1.msra.mxu0 %v846
    %3173 = vmatprep.subr.mxu0 0.0
    %3174 = vmatpush1.msra.mxu0 0.0
    %3175 = vmatprep.subr.mxu0 0.0
    %3176 = vmatpush1.msra.mxu0 0.0
    %3177 = vmatprep.subr.mxu0 0.0
    %3178 = vmatpush1.msra.mxu0 0.0
    %3179 = vmatprep.subr.mxu0 0.0
    %3180 = vmatpush1.msra.mxu0 0.0
    %3181 = vmatprep.subr.mxu0 0.0
    %3182 = vmatpush1.msra.mxu0 0.0
    %3183 = vmatprep.subr.mxu0 0.0
    %3184 = vmatpush1.msra.mxu0 0.0
    %3185 = vmatprep.subr.mxu0 0.0
    %3186 = vmatpush1.msra.mxu0 0.0
    %3187 = vmatprep.subr.mxu0 0.0
    %3188 = vmatpush1.msra.mxu0 0.0
    %3189 = vmatprep.subr.mxu0 0.0
    %3190 = vmatpush1.msra.mxu0 0.0
    %3191 = vmatprep.subr.mxu0 0.0
    %3192 = vmatpush1.msra.mxu0 0.0
    %3193 = vmatprep.subr.mxu0 0.0
    %3194 = vmatpush1.msra.mxu0 0.0
    %3195 = vmatprep.subr.mxu0 0.0
    %3196 = vmatpush1.msra.mxu0 0.0
    %3197 = vmatprep.subr.mxu0 0.0
    %3198 = vmatpush1.msra.mxu0 0.0
    %3199 = vmatprep.subr.mxu0 0.0
    %3200 = vmatpush1.msra.mxu0 0.0
    %3201 = vmatprep.subr.mxu0 0.0
    %3202 = vmatpush1.msra.mxu0 0.0
    %3203 = vmatprep.subr.mxu0 0.0
    %3204 = vmatpush1.msra.mxu0 0.0
    %3205 = vmatprep.subr.mxu0 0.0
    %3206 = vmatpush1.msra.mxu0 0.0
    %3207 = vmatprep.subr.mxu0 0.0
    %3208 = vmatpush1.msra.mxu0 0.0
    %3209 = vmatprep.subr.mxu0 0.0
    %3210 = vmatpush1.msra.mxu0 0.0
    %3211 = vmatprep.subr.mxu0 0.0
    %3212 = vmatpush1.msra.mxu0 0.0
    %3213 = vmatprep.mubr.f32.mxu0 0.0
    %3214 = vmatmul.mubr.f32.gmra.mrb[0].mxu0 %v3147
    %v3215 = vpop.f32.mrb[0].mxu0
    %v3216 = vadd.f32 0.0, %v3215
    %v3217 = vpop.f32.mrb[0].mxu0
    %v3218 = vadd.f32 0.0, %v3217
    %3219 = vdwg.mxu0
    %3220 = vmatprep.subr.mxu0 0.0
    %3221 = vmatpush1.msra.mxu0 %v815
    %3222 = vmatprep.subr.mxu0 0.0
    %3223 = vmatpush1.msra.mxu0 %v818
    %3224 = vmatprep.subr.mxu0 0.0
    %3225 = vmatpush1.msra.mxu0 %v821
    %3226 = vmatprep.subr.mxu0 0.0
    %3227 = vmatpush1.msra.mxu0 %v824
    %3228 = vmatprep.subr.mxu0 0.0
    %3229 = vmatpush1.msra.mxu0 %v827
    %3230 = vmatprep.subr.mxu0 0.0
    %3231 = vmatpush1.msra.mxu0 %v830
    %3232 = vmatprep.subr.mxu0 0.0
    %3233 = vmatpush1.msra.mxu0 %v833
    %3234 = vmatprep.subr.mxu0 0.0
    %3235 = vmatpush1.msra.mxu0 %v836
    %3236 = vmatprep.subr.mxu0 0.0
    %3237 = vmatpush1.msra.mxu0 %v839
    %3238 = vmatprep.subr.mxu0 0.0
    %3239 = vmatpush1.msra.mxu0 %v842
    %3240 = vmatprep.subr.mxu0 0.0
    %3241 = vmatpush1.msra.mxu0 %v845
    %3242 = vmatprep.subr.mxu0 0.0
    %3243 = vmatpush1.msra.mxu0 %v848
    %3244 = vmatprep.subr.mxu0 0.0
    %3245 = vmatpush1.msra.mxu0 0.0
    %3246 = vmatprep.subr.mxu0 0.0
    %3247 = vmatpush1.msra.mxu0 0.0
    %3248 = vmatprep.subr.mxu0 0.0
    %3249 = vmatpush1.msra.mxu0 0.0
    %3250 = vmatprep.subr.mxu0 0.0
    %3251 = vmatpush1.msra.mxu0 0.0
    %3252 = vmatprep.subr.mxu0 0.0
    %3253 = vmatpush1.msra.mxu0 0.0
    %3254 = vmatprep.subr.mxu0 0.0
    %3255 = vmatpush1.msra.mxu0 0.0
    %3256 = vmatprep.subr.mxu0 0.0
    %3257 = vmatpush1.msra.mxu0 0.0
    %3258 = vmatprep.subr.mxu0 0.0
    %3259 = vmatpush1.msra.mxu0 0.0
    %3260 = vmatprep.subr.mxu0 0.0
    %3261 = vmatpush1.msra.mxu0 0.0
    %3262 = vmatprep.subr.mxu0 0.0
    %3263 = vmatpush1.msra.mxu0 0.0
    %3264 = vmatprep.subr.mxu0 0.0
    %3265 = vmatpush1.msra.mxu0 0.0
    %3266 = vmatprep.subr.mxu0 0.0
    %3267 = vmatpush1.msra.mxu0 0.0
    %3268 = vmatprep.subr.mxu0 0.0
    %3269 = vmatpush1.msra.mxu0 0.0
    %3270 = vmatprep.subr.mxu0 0.0
    %3271 = vmatpush1.msra.mxu0 0.0
    %3272 = vmatprep.subr.mxu0 0.0
    %3273 = vmatpush1.msra.mxu0 0.0
    %3274 = vmatprep.subr.mxu0 0.0
    %3275 = vmatpush1.msra.mxu0 0.0
    %3276 = vmatprep.subr.mxu0 0.0
    %3277 = vmatpush1.msra.mxu0 0.0
    %3278 = vmatprep.subr.mxu0 0.0
    %3279 = vmatpush1.msra.mxu0 0.0
    %3280 = vmatprep.subr.mxu0 0.0
    %3281 = vmatpush1.msra.mxu0 0.0
    %3282 = vmatprep.subr.mxu0 0.0
    %3283 = vmatpush1.msra.mxu0 0.0
    %3284 = vmatprep.mubr.f32.mxu0 0.0
    %3285 = vmatmul.mubr.f32.gmra.mrb[0].mxu0 %v3147
    %v3286 = vpop.f32.mrb[0].mxu0
    %v3287 = vadd.f32 0.0, %v3286
    %v3288 = vpop.f32.mrb[0].mxu0
    %3289 = vdwg.mxu0
    %v3293 = vrot.slane %v3216, 4
    %v3294 = vrot.slane %v3218, 4
    %v3295 = vrot.slane %v3287, 4
    %v3299 = vadd.f32 %v692, %v3293
    %v3300 = vadd.f32 %v694, %v3294
    %v3301 = vadd.f32 %v769, %v3295
    %v3302 = vxor.u32 %v3299, 2147483648
    %v3303 = vmul.f32 %v3302, 1.442695
    %v3304 = vpow.pop %v3303
    %v3305 = vadd.f32 %v3304, 1.0
    %v3306 = vrcp.pop %v3305
    %v3307 = vmul.f32 1.0, %v3306
    %v3308 = vxor.u32 %v3300, 2147483648
    %v3309 = vmul.f32 %v3308, 1.442695
    %v3310 = vpow.pop %v3309
    %v3311 = vadd.f32 %v3310, 1.0
    %v3312 = vrcp.pop %v3311
    %v3313 = vmul.f32 1.0, %v3312
    %v3314 = vtanh.pop %v3300
    %v3315 = vtanh.pop %v3301
    %v3316 = vxor.u32 %v3301, 2147483648
    %v3317 = vmul.f32 %v3316, 1.442695
    %v3318 = vpow.pop %v3317
    %v3319 = vadd.f32 %v3318, 1.0
    %v3320 = vrcp.pop %v3319
    %v3321 = vmul.f32 1.0, %v3320
    %v3324 = vrot.slane %v2918, 2
    %v3325 = vrot.slane %v2919, 2
    %v3328 = vmul.f32 %v3307, %v3324
    %v3329 = vmul.f32 %v3313, %v3325
    %3332 = vrot.lane.b32.xlu0 %v3314, 64
    %v3333 = vpop.permute.xlu0 %3332
    %3334 = vrot.lane.b32.xlu0 %v3315, 64
    %v3335 = vpop.permute.xlu0 %3334
    %v3336 = vsel %vm1025, %v3333, %v3335
    %v3338 = vmul.f32 %v3307, %v3336
    %3340 = vrot.lane.b32.xlu0 %v3338, 96
    %v3341 = vpop.permute.xlu0 %3340
    %v3343 = vadd.f32 %v3328, %v3341
    %v3344 = vadd.f32 %v3329, %v3341
    %v3345 = vtanh.pop %v3343
    %v3346 = vtanh.pop %v3344
    %3349 = vrot.lane.b32.xlu0 %v3345, 64
    %v3350 = vpop.permute.xlu0 %3349
    %3351 = vrot.lane.b32.xlu0 %v3346, 64
    %v3352 = vpop.permute.xlu0 %3351
    %v3353 = vsel %vm1025, %v3350, %v3352
    %v3355 = vmul.f32 %v3321, %v3353
    %v3357 = vrot.slane %v3142, 2
    %3358 = vrot.lane.b32.xlu0 %v3357, 96
    %v3359 = vpop.permute.xlu0 %3358
    %v3360 = vsel %vm849, %v3359, 0
    %3362 = vmatprep.subr.mxu0 %v778
    %3363 = vmatpush1.msra.mxu0 %v777
    %3364 = vmatprep.subr.mxu0 %v781
    %3365 = vmatpush1.msra.mxu0 %v780
    %3366 = vmatprep.subr.mxu0 %v784
    %3367 = vmatpush1.msra.mxu0 %v783
    %3368 = vmatprep.subr.mxu0 %v787
    %3369 = vmatpush1.msra.mxu0 %v786
    %3370 = vmatprep.subr.mxu0 %v790
    %3371 = vmatpush1.msra.mxu0 %v789
    %3372 = vmatprep.subr.mxu0 %v793
    %3373 = vmatpush1.msra.mxu0 %v792
    %3374 = vmatprep.subr.mxu0 %v796
    %3375 = vmatpush1.msra.mxu0 %v795
    %3376 = vmatprep.subr.mxu0 %v799
    %3377 = vmatpush1.msra.mxu0 %v798
    %3378 = vmatprep.subr.mxu0 %v802
    %3379 = vmatpush1.msra.mxu0 %v801
    %3380 = vmatprep.subr.mxu0 %v805
    %3381 = vmatpush1.msra.mxu0 %v804
    %3382 = vmatprep.subr.mxu0 %v808
    %3383 = vmatpush1.msra.mxu0 %v807
    %3384 = vmatprep.subr.mxu0 %v811
    %3385 = vmatpush1.msra.mxu0 %v810
    %3386 = vmatprep.subr.mxu0 0.0
    %3387 = vmatpush1.msra.mxu0 0.0
    %3388 = vmatprep.subr.mxu0 0.0
    %3389 = vmatpush1.msra.mxu0 0.0
    %3390 = vmatprep.subr.mxu0 0.0
    %3391 = vmatpush1.msra.mxu0 0.0
    %3392 = vmatprep.subr.mxu0 0.0
    %3393 = vmatpush1.msra.mxu0 0.0
    %3394 = vmatprep.subr.mxu0 0.0
    %3395 = vmatpush1.msra.mxu0 0.0
    %3396 = vmatprep.subr.mxu0 0.0
    %3397 = vmatpush1.msra.mxu0 0.0
    %3398 = vmatprep.subr.mxu0 0.0
    %3399 = vmatpush1.msra.mxu0 0.0
    %3400 = vmatprep.subr.mxu0 0.0
    %3401 = vmatpush1.msra.mxu0 0.0
    %3402 = vmatprep.subr.mxu0 0.0
    %3403 = vmatpush1.msra.mxu0 0.0
    %3404 = vmatprep.subr.mxu0 0.0
    %3405 = vmatpush1.msra.mxu0 0.0
    %3406 = vmatprep.subr.mxu0 0.0
    %3407 = vmatpush1.msra.mxu0 0.0
    %3408 = vmatprep.subr.mxu0 0.0
    %3409 = vmatpush1.msra.mxu0 0.0
    %3410 = vmatprep.subr.mxu0 0.0
    %3411 = vmatpush1.msra.mxu0 0.0
    %3412 = vmatprep.subr.mxu0 0.0
    %3413 = vmatpush1.msra.mxu0 0.0
    %3414 = vmatprep.subr.mxu0 0.0
    %3415 = vmatpush1.msra.mxu0 0.0
    %3416 = vmatprep.subr.mxu0 0.0
    %3417 = vmatpush1.msra.mxu0 0.0
    %3418 = vmatprep.subr.mxu0 0.0
    %3419 = vmatpush1.msra.mxu0 0.0
    %3420 = vmatprep.subr.mxu0 0.0
    %3421 = vmatpush1.msra.mxu0 0.0
    %3422 = vmatprep.subr.mxu0 0.0
    %3423 = vmatpush1.msra.mxu0 0.0
    %3424 = vmatprep.subr.mxu0 0.0
    %3425 = vmatpush1.msra.mxu0 0.0
    %3426 = vmatprep.mubr.f32.mxu0 0.0
    %3427 = vmatmul.mubr.f32.gmra.mrb[0].mxu0 %v3360
    %v3428 = vpop.f32.mrb[0].mxu0
    %v3429 = vadd.f32 0.0, %v3428
    %v3430 = vpop.f32.mrb[0].mxu0
    %v3431 = vadd.f32 0.0, %v3430
    %3432 = vdwg.mxu0
    %3433 = vmatprep.subr.mxu0 0.0
    %3434 = vmatpush1.msra.mxu0 %v779
    %3435 = vmatprep.subr.mxu0 0.0
    %3436 = vmatpush1.msra.mxu0 %v782
    %3437 = vmatprep.subr.mxu0 0.0
    %3438 = vmatpush1.msra.mxu0 %v785
    %3439 = vmatprep.subr.mxu0 0.0
    %3440 = vmatpush1.msra.mxu0 %v788
    %3441 = vmatprep.subr.mxu0 0.0
    %3442 = vmatpush1.msra.mxu0 %v791
    %3443 = vmatprep.subr.mxu0 0.0
    %3444 = vmatpush1.msra.mxu0 %v794
    %3445 = vmatprep.subr.mxu0 0.0
    %3446 = vmatpush1.msra.mxu0 %v797
    %3447 = vmatprep.subr.mxu0 0.0
    %3448 = vmatpush1.msra.mxu0 %v800
    %3449 = vmatprep.subr.mxu0 0.0
    %3450 = vmatpush1.msra.mxu0 %v803
    %3451 = vmatprep.subr.mxu0 0.0
    %3452 = vmatpush1.msra.mxu0 %v806
    %3453 = vmatprep.subr.mxu0 0.0
    %3454 = vmatpush1.msra.mxu0 %v809
    %3455 = vmatprep.subr.mxu0 0.0
    %3456 = vmatpush1.msra.mxu0 %v812
    %3457 = vmatprep.subr.mxu0 0.0
    %3458 = vmatpush1.msra.mxu0 0.0
    %3459 = vmatprep.subr.mxu0 0.0
    %3460 = vmatpush1.msra.mxu0 0.0
    %3461 = vmatprep.subr.mxu0 0.0
    %3462 = vmatpush1.msra.mxu0 0.0
    %3463 = vmatprep.subr.mxu0 0.0
    %3464 = vmatpush1.msra.mxu0 0.0
    %3465 = vmatprep.subr.mxu0 0.0
    %3466 = vmatpush1.msra.mxu0 0.0
    %3467 = vmatprep.subr.mxu0 0.0
    %3468 = vmatpush1.msra.mxu0 0.0
    %3469 = vmatprep.subr.mxu0 0.0
    %3470 = vmatpush1.msra.mxu0 0.0
    %3471 = vmatprep.subr.mxu0 0.0
    %3472 = vmatpush1.msra.mxu0 0.0
    %3473 = vmatprep.subr.mxu0 0.0
    %3474 = vmatpush1.msra.mxu0 0.0
    %3475 = vmatprep.subr.mxu0 0.0
    %3476 = vmatpush1.msra.mxu0 0.0
    %3477 = vmatprep.subr.mxu0 0.0
    %3478 = vmatpush1.msra.mxu0 0.0
    %3479 = vmatprep.subr.mxu0 0.0
    %3480 = vmatpush1.msra.mxu0 0.0
    %3481 = vmatprep.subr.mxu0 0.0
    %3482 = vmatpush1.msra.mxu0 0.0
    %3483 = vmatprep.subr.mxu0 0.0
    %3484 = vmatpush1.msra.mxu0 0.0
    %3485 = vmatprep.subr.mxu0 0.0
    %3486 = vmatpush1.msra.mxu0 0.0
    %3487 = vmatprep.subr.mxu0 0.0
    %3488 = vmatpush1.msra.mxu0 0.0
    %3489 = vmatprep.subr.mxu0 0.0
    %3490 = vmatpush1.msra.mxu0 0.0
    %3491 = vmatprep.subr.mxu0 0.0
    %3492 = vmatpush1.msra.mxu0 0.0
    %3493 = vmatprep.subr.mxu0 0.0
    %3494 = vmatpush1.msra.mxu0 0.0
    %3495 = vmatprep.subr.mxu0 0.0
    %3496 = vmatpush1.msra.mxu0 0.0
    %3497 = vmatprep.mubr.f32.mxu0 0.0
    %3498 = vmatmul.mubr.f32.gmra.mrb[0].mxu0 %v3360
    %v3499 = vpop.f32.mrb[0].mxu0
    %v3500 = vadd.f32 0.0, %v3499
    %v3501 = vpop.f32.mrb[0].mxu0
    %3502 = vdwg.mxu0
    %v3506 = vrot.slane %v3429, 4
    %v3507 = vrot.slane %v3431, 4
    %v3508 = vrot.slane %v3500, 4
    %v3512 = vadd.f32 %v523, %v3506
    %v3513 = vadd.f32 %v525, %v3507
    %v3514 = vadd.f32 %v599, %v3508
    %v3515 = vxor.u32 %v3512, 2147483648
    %v3516 = vmul.f32 %v3515, 1.442695
    %v3517 = vpow.pop %v3516
    %v3518 = vadd.f32 %v3517, 1.0
    %v3519 = vrcp.pop %v3518
    %v3520 = vmul.f32 1.0, %v3519
    %v3521 = vxor.u32 %v3513, 2147483648
    %v3522 = vmul.f32 %v3521, 1.442695
    %v3523 = vpow.pop %v3522
    %v3524 = vadd.f32 %v3523, 1.0
    %v3525 = vrcp.pop %v3524
    %v3526 = vmul.f32 1.0, %v3525
    %v3527 = vtanh.pop %v3513
    %v3528 = vtanh.pop %v3514
    %v3529 = vxor.u32 %v3514, 2147483648
    %v3530 = vmul.f32 %v3529, 1.442695
    %v3531 = vpow.pop %v3530
    %v3532 = vadd.f32 %v3531, 1.0
    %v3533 = vrcp.pop %v3532
    %v3534 = vmul.f32 1.0, %v3533
    %v3537 = vrot.slane %v3130, 6
    %v3538 = vrot.slane %v3131, 6
    %v3541 = vmul.f32 %v3520, %v3537
    %v3542 = vmul.f32 %v3526, %v3538
    %3545 = vrot.lane.b32.xlu0 %v3527, 64
    %v3546 = vpop.permute.xlu0 %3545
    %3547 = vrot.lane.b32.xlu0 %v3528, 64
    %v3548 = vpop.permute.xlu0 %3547
    %v3549 = vsel %vm1025, %v3546, %v3548
    %v3551 = vmul.f32 %v3520, %v3549
    %3553 = vrot.lane.b32.xlu0 %v3551, 96
    %v3554 = vpop.permute.xlu0 %3553
    %v3556 = vadd.f32 %v3541, %v3554
    %v3557 = vadd.f32 %v3542, %v3554
    %v3558 = vtanh.pop %v3556
    %v3559 = vtanh.pop %v3557
    %3562 = vrot.lane.b32.xlu0 %v3558, 64
    %v3563 = vpop.permute.xlu0 %3562
    %3564 = vrot.lane.b32.xlu0 %v3559, 64
    %v3565 = vpop.permute.xlu0 %3564
    %v3566 = vsel %vm1025, %v3563, %v3565
    %v3568 = vmul.f32 %v3534, %v3566
    %v3570 = vrot.slane %v3355, 4
    %3571 = vrot.lane.b32.xlu0 %v3570, 96
    %v3572 = vpop.permute.xlu0 %3571
    %v3573 = vsel %vm849, %v3572, 0
    %3575 = vmatprep.subr.mxu0 %v814
    %3576 = vmatpush1.msra.mxu0 %v813
    %3577 = vmatprep.subr.mxu0 %v817
    %3578 = vmatpush1.msra.mxu0 %v816
    %3579 = vmatprep.subr.mxu0 %v820
    %3580 = vmatpush1.msra.mxu0 %v819
    %3581 = vmatprep.subr.mxu0 %v823
    %3582 = vmatpush1.msra.mxu0 %v822
    %3583 = vmatprep.subr.mxu0 %v826
    %3584 = vmatpush1.msra.mxu0 %v825
    %3585 = vmatprep.subr.mxu0 %v829
    %3586 = vmatpush1.msra.mxu0 %v828
    %3587 = vmatprep.subr.mxu0 %v832
    %3588 = vmatpush1.msra.mxu0 %v831
    %3589 = vmatprep.subr.mxu0 %v835
    %3590 = vmatpush1.msra.mxu0 %v834
    %3591 = vmatprep.subr.mxu0 %v838
    %3592 = vmatpush1.msra.mxu0 %v837
    %3593 = vmatprep.subr.mxu0 %v841
    %3594 = vmatpush1.msra.mxu0 %v840
    %3595 = vmatprep.subr.mxu0 %v844
    %3596 = vmatpush1.msra.mxu0 %v843
    %3597 = vmatprep.subr.mxu0 %v847
    %3598 = vmatpush1.msra.mxu0 %v846
    %3599 = vmatprep.subr.mxu0 0.0
    %3600 = vmatpush1.msra.mxu0 0.0
    %3601 = vmatprep.subr.mxu0 0.0
    %3602 = vmatpush1.msra.mxu0 0.0
    %3603 = vmatprep.subr.mxu0 0.0
    %3604 = vmatpush1.msra.mxu0 0.0
    %3605 = vmatprep.subr.mxu0 0.0
    %3606 = vmatpush1.msra.mxu0 0.0
    %3607 = vmatprep.subr.mxu0 0.0
    %3608 = vmatpush1.msra.mxu0 0.0
    %3609 = vmatprep.subr.mxu0 0.0
    %3610 = vmatpush1.msra.mxu0 0.0
    %3611 = vmatprep.subr.mxu0 0.0
    %3612 = vmatpush1.msra.mxu0 0.0
    %3613 = vmatprep.subr.mxu0 0.0
    %3614 = vmatpush1.msra.mxu0 0.0
    %3615 = vmatprep.subr.mxu0 0.0
    %3616 = vmatpush1.msra.mxu0 0.0
    %3617 = vmatprep.subr.mxu0 0.0
    %3618 = vmatpush1.msra.mxu0 0.0
    %3619 = vmatprep.subr.mxu0 0.0
    %3620 = vmatpush1.msra.mxu0 0.0
    %3621 = vmatprep.subr.mxu0 0.0
    %3622 = vmatpush1.msra.mxu0 0.0
    %3623 = vmatprep.subr.mxu0 0.0
    %3624 = vmatpush1.msra.mxu0 0.0
    %3625 = vmatprep.subr.mxu0 0.0
    %3626 = vmatpush1.msra.mxu0 0.0
    %3627 = vmatprep.subr.mxu0 0.0
    %3628 = vmatpush1.msra.mxu0 0.0
    %3629 = vmatprep.subr.mxu0 0.0
    %3630 = vmatpush1.msra.mxu0 0.0
    %3631 = vmatprep.subr.mxu0 0.0
    %3632 = vmatpush1.msra.mxu0 0.0
    %3633 = vmatprep.subr.mxu0 0.0
    %3634 = vmatpush1.msra.mxu0 0.0
    %3635 = vmatprep.subr.mxu0 0.0
    %3636 = vmatpush1.msra.mxu0 0.0
    %3637 = vmatprep.subr.mxu0 0.0
    %3638 = vmatpush1.msra.mxu0 0.0
    %3639 = vmatprep.mubr.f32.mxu0 0.0
    %3640 = vmatmul.mubr.f32.gmra.mrb[0].mxu0 %v3573
    %v3641 = vpop.f32.mrb[0].mxu0
    %v3642 = vadd.f32 0.0, %v3641
    %v3643 = vpop.f32.mrb[0].mxu0
    %v3644 = vadd.f32 0.0, %v3643
    %3645 = vdwg.mxu0
    %3646 = vmatprep.subr.mxu0 0.0
    %3647 = vmatpush1.msra.mxu0 %v815
    %3648 = vmatprep.subr.mxu0 0.0
    %3649 = vmatpush1.msra.mxu0 %v818
    %3650 = vmatprep.subr.mxu0 0.0
    %3651 = vmatpush1.msra.mxu0 %v821
    %3652 = vmatprep.subr.mxu0 0.0
    %3653 = vmatpush1.msra.mxu0 %v824
    %3654 = vmatprep.subr.mxu0 0.0
    %3655 = vmatpush1.msra.mxu0 %v827
    %3656 = vmatprep.subr.mxu0 0.0
    %3657 = vmatpush1.msra.mxu0 %v830
    %3658 = vmatprep.subr.mxu0 0.0
    %3659 = vmatpush1.msra.mxu0 %v833
    %3660 = vmatprep.subr.mxu0 0.0
    %3661 = vmatpush1.msra.mxu0 %v836
    %3662 = vmatprep.subr.mxu0 0.0
    %3663 = vmatpush1.msra.mxu0 %v839
    %3664 = vmatprep.subr.mxu0 0.0
    %3665 = vmatpush1.msra.mxu0 %v842
    %3666 = vmatprep.subr.mxu0 0.0
    %3667 = vmatpush1.msra.mxu0 %v845
    %3668 = vmatprep.subr.mxu0 0.0
    %3669 = vmatpush1.msra.mxu0 %v848
    %3670 = vmatprep.subr.mxu0 0.0
    %3671 = vmatpush1.msra.mxu0 0.0
    %3672 = vmatprep.subr.mxu0 0.0
    %3673 = vmatpush1.msra.mxu0 0.0
    %3674 = vmatprep.subr.mxu0 0.0
    %3675 = vmatpush1.msra.mxu0 0.0
    %3676 = vmatprep.subr.mxu0 0.0
    %3677 = vmatpush1.msra.mxu0 0.0
    %3678 = vmatprep.subr.mxu0 0.0
    %3679 = vmatpush1.msra.mxu0 0.0
    %3680 = vmatprep.subr.mxu0 0.0
    %3681 = vmatpush1.msra.mxu0 0.0
    %3682 = vmatprep.subr.mxu0 0.0
    %3683 = vmatpush1.msra.mxu0 0.0
    %3684 = vmatprep.subr.mxu0 0.0
    %3685 = vmatpush1.msra.mxu0 0.0
    %3686 = vmatprep.subr.mxu0 0.0
    %3687 = vmatpush1.msra.mxu0 0.0
    %3688 = vmatprep.subr.mxu0 0.0
    %3689 = vmatpush1.msra.mxu0 0.0
    %3690 = vmatprep.subr.mxu0 0.0
    %3691 = vmatpush1.msra.mxu0 0.0
    %3692 = vmatprep.subr.mxu0 0.0
    %3693 = vmatpush1.msra.mxu0 0.0
    %3694 = vmatprep.subr.mxu0 0.0
    %3695 = vmatpush1.msra.mxu0 0.0
    %3696 = vmatprep.subr.mxu0 0.0
    %3697 = vmatpush1.msra.mxu0 0.0
    %3698 = vmatprep.subr.mxu0 0.0
    %3699 = vmatpush1.msra.mxu0 0.0
    %3700 = vmatprep.subr.mxu0 0.0
    %3701 = vmatpush1.msra.mxu0 0.0
    %3702 = vmatprep.subr.mxu0 0.0
    %3703 = vmatpush1.msra.mxu0 0.0
    %3704 = vmatprep.subr.mxu0 0.0
    %3705 = vmatpush1.msra.mxu0 0.0
    %3706 = vmatprep.subr.mxu0 0.0
    %3707 = vmatpush1.msra.mxu0 0.0
    %3708 = vmatprep.subr.mxu0 0.0
    %3709 = vmatpush1.msra.mxu0 0.0
    %3710 = vmatprep.mubr.f32.mxu0 0.0
    %3711 = vmatmul.mubr.f32.gmra.mrb[0].mxu0 %v3573
    %v3712 = vpop.f32.mrb[0].mxu0
    %v3713 = vadd.f32 0.0, %v3712
    %v3714 = vpop.f32.mrb[0].mxu0
    %3715 = vdwg.mxu0
    %v3719 = vrot.slane %v3642, 6
    %v3720 = vrot.slane %v3644, 6
    %v3721 = vrot.slane %v3713, 6
    %v3725 = vadd.f32 %v692, %v3719
    %v3726 = vadd.f32 %v694, %v3720
    %v3727 = vadd.f32 %v769, %v3721
    %v3728 = vxor.u32 %v3725, 2147483648
    %v3729 = vmul.f32 %v3728, 1.442695
    %v3730 = vpow.pop %v3729
    %v3731 = vadd.f32 %v3730, 1.0
    %v3732 = vrcp.pop %v3731
    %v3733 = vmul.f32 1.0, %v3732
    %v3734 = vxor.u32 %v3726, 2147483648
    %v3735 = vmul.f32 %v3734, 1.442695
    %v3736 = vpow.pop %v3735
    %v3737 = vadd.f32 %v3736, 1.0
    %v3738 = vrcp.pop %v3737
    %v3739 = vmul.f32 1.0, %v3738
    %v3740 = vtanh.pop %v3726
    %v3741 = vtanh.pop %v3727
    %v3742 = vxor.u32 %v3727, 2147483648
    %v3743 = vmul.f32 %v3742, 1.442695
    %v3744 = vpow.pop %v3743
    %v3745 = vadd.f32 %v3744, 1.0
    %v3746 = vrcp.pop %v3745
    %v3747 = vmul.f32 1.0, %v3746
    %v3750 = vrot.slane %v3343, 2
    %v3751 = vrot.slane %v3344, 2
    %v3754 = vmul.f32 %v3733, %v3750
    %v3755 = vmul.f32 %v3739, %v3751
    %3758 = vrot.lane.b32.xlu0 %v3740, 64
    %v3759 = vpop.permute.xlu0 %3758
    %3760 = vrot.lane.b32.xlu0 %v3741, 64
    %v3761 = vpop.permute.xlu0 %3760
    %v3762 = vsel %vm1025, %v3759, %v3761
    %v3764 = vmul.f32 %v3733, %v3762
    %3766 = vrot.lane.b32.xlu0 %v3764, 96
    %v3767 = vpop.permute.xlu0 %3766
    %v3769 = vadd.f32 %v3754, %v3767
    %v3770 = vadd.f32 %v3755, %v3767
    %v3771 = vtanh.pop %v3769
    %v3772 = vtanh.pop %v3770
    %3775 = vrot.lane.b32.xlu0 %v3771, 64
    %v3776 = vpop.permute.xlu0 %3775
    %3777 = vrot.lane.b32.xlu0 %v3772, 64
    %v3778 = vpop.permute.xlu0 %3777
    %v3779 = vsel %vm1025, %v3776, %v3778
    %v3781 = vmul.f32 %v3747, %v3779
    %v3783 = vrot.slane %v3568, 4
    %3784 = vrot.lane.b32.xlu0 %v3783, 96
    %v3785 = vpop.permute.xlu0 %3784
    %v3786 = vsel %vm849, %v3785, 0
    %3788 = vmatprep.subr.mxu0 %v778
    %3789 = vmatpush1.msra.mxu0 %v777
    %3790 = vmatprep.subr.mxu0 %v781
    %3791 = vmatpush1.msra.mxu0 %v780
    %3792 = vmatprep.subr.mxu0 %v784
    %3793 = vmatpush1.msra.mxu0 %v783
    %3794 = vmatprep.subr.mxu0 %v787
    %3795 = vmatpush1.msra.mxu0 %v786
    %3796 = vmatprep.subr.mxu0 %v790
    %3797 = vmatpush1.msra.mxu0 %v789
    %3798 = vmatprep.subr.mxu0 %v793
    %3799 = vmatpush1.msra.mxu0 %v792
    %3800 = vmatprep.subr.mxu0 %v796
    %3801 = vmatpush1.msra.mxu0 %v795
    %3802 = vmatprep.subr.mxu0 %v799
    %3803 = vmatpush1.msra.mxu0 %v798
    %3804 = vmatprep.subr.mxu0 %v802
    %3805 = vmatpush1.msra.mxu0 %v801
    %3806 = vmatprep.subr.mxu0 %v805
    %3807 = vmatpush1.msra.mxu0 %v804
    %3808 = vmatprep.subr.mxu0 %v808
    %3809 = vmatpush1.msra.mxu0 %v807
    %3810 = vmatprep.subr.mxu0 %v811
    %3811 = vmatpush1.msra.mxu0 %v810
    %3812 = vmatprep.subr.mxu0 0.0
    %3813 = vmatpush1.msra.mxu0 0.0
    %3814 = vmatprep.subr.mxu0 0.0
    %3815 = vmatpush1.msra.mxu0 0.0
    %3816 = vmatprep.subr.mxu0 0.0
    %3817 = vmatpush1.msra.mxu0 0.0
    %3818 = vmatprep.subr.mxu0 0.0
    %3819 = vmatpush1.msra.mxu0 0.0
    %3820 = vmatprep.subr.mxu0 0.0
    %3821 = vmatpush1.msra.mxu0 0.0
    %3822 = vmatprep.subr.mxu0 0.0
    %3823 = vmatpush1.msra.mxu0 0.0
    %3824 = vmatprep.subr.mxu0 0.0
    %3825 = vmatpush1.msra.mxu0 0.0
    %3826 = vmatprep.subr.mxu0 0.0
    %3827 = vmatpush1.msra.mxu0 0.0
    %3828 = vmatprep.subr.mxu0 0.0
    %3829 = vmatpush1.msra.mxu0 0.0
    %3830 = vmatprep.subr.mxu0 0.0
    %3831 = vmatpush1.msra.mxu0 0.0
    %3832 = vmatprep.subr.mxu0 0.0
    %3833 = vmatpush1.msra.mxu0 0.0
    %3834 = vmatprep.subr.mxu0 0.0
    %3835 = vmatpush1.msra.mxu0 0.0
    %3836 = vmatprep.subr.mxu0 0.0
    %3837 = vmatpush1.msra.mxu0 0.0
    %3838 = vmatprep.subr.mxu0 0.0
    %3839 = vmatpush1.msra.mxu0 0.0
    %3840 = vmatprep.subr.mxu0 0.0
    %3841 = vmatpush1.msra.mxu0 0.0
    %3842 = vmatprep.subr.mxu0 0.0
    %3843 = vmatpush1.msra.mxu0 0.0
    %3844 = vmatprep.subr.mxu0 0.0
    %3845 = vmatpush1.msra.mxu0 0.0
    %3846 = vmatprep.subr.mxu0 0.0
    %3847 = vmatpush1.msra.mxu0 0.0
    %3848 = vmatprep.subr.mxu0 0.0
    %3849 = vmatpush1.msra.mxu0 0.0
    %3850 = vmatprep.subr.mxu0 0.0
    %3851 = vmatpush1.msra.mxu0 0.0
    %3852 = vmatprep.mubr.f32.mxu0 0.0
    %3853 = vmatmul.mubr.f32.gmra.mrb[0].mxu0 %v3786
    %v3854 = vpop.f32.mrb[0].mxu0
    %v3855 = vadd.f32 0.0, %v3854
    %v3856 = vpop.f32.mrb[0].mxu0
    %v3857 = vadd.f32 0.0, %v3856
    %3858 = vdwg.mxu0
    %3859 = vmatprep.subr.mxu0 0.0
    %3860 = vmatpush1.msra.mxu0 %v779
    %3861 = vmatprep.subr.mxu0 0.0
    %3862 = vmatpush1.msra.mxu0 %v782
    %3863 = vmatprep.subr.mxu0 0.0
    %3864 = vmatpush1.msra.mxu0 %v785
    %3865 = vmatprep.subr.mxu0 0.0
    %3866 = vmatpush1.msra.mxu0 %v788
    %3867 = vmatprep.subr.mxu0 0.0
    %3868 = vmatpush1.msra.mxu0 %v791
    %3869 = vmatprep.subr.mxu0 0.0
    %3870 = vmatpush1.msra.mxu0 %v794
    %3871 = vmatprep.subr.mxu0 0.0
    %3872 = vmatpush1.msra.mxu0 %v797
    %3873 = vmatprep.subr.mxu0 0.0
    %3874 = vmatpush1.msra.mxu0 %v800
    %3875 = vmatprep.subr.mxu0 0.0
    %3876 = vmatpush1.msra.mxu0 %v803
    %3877 = vmatprep.subr.mxu0 0.0
    %3878 = vmatpush1.msra.mxu0 %v806
    %3879 = vmatprep.subr.mxu0 0.0
    %3880 = vmatpush1.msra.mxu0 %v809
    %3881 = vmatprep.subr.mxu0 0.0
    %3882 = vmatpush1.msra.mxu0 %v812
    %3883 = vmatprep.subr.mxu0 0.0
    %3884 = vmatpush1.msra.mxu0 0.0
    %3885 = vmatprep.subr.mxu0 0.0
    %3886 = vmatpush1.msra.mxu0 0.0
    %3887 = vmatprep.subr.mxu0 0.0
    %3888 = vmatpush1.msra.mxu0 0.0
    %3889 = vmatprep.subr.mxu0 0.0
    %3890 = vmatpush1.msra.mxu0 0.0
    %3891 = vmatprep.subr.mxu0 0.0
    %3892 = vmatpush1.msra.mxu0 0.0
    %3893 = vmatprep.subr.mxu0 0.0
    %3894 = vmatpush1.msra.mxu0 0.0
    %3895 = vmatprep.subr.mxu0 0.0
    %3896 = vmatpush1.msra.mxu0 0.0
    %3897 = vmatprep.subr.mxu0 0.0
    %3898 = vmatpush1.msra.mxu0 0.0
    %3899 = vmatprep.subr.mxu0 0.0
    %3900 = vmatpush1.msra.mxu0 0.0
    %3901 = vmatprep.subr.mxu0 0.0
    %3902 = vmatpush1.msra.mxu0 0.0
    %3903 = vmatprep.subr.mxu0 0.0
    %3904 = vmatpush1.msra.mxu0 0.0
    %3905 = vmatprep.subr.mxu0 0.0
    %3906 = vmatpush1.msra.mxu0 0.0
    %3907 = vmatprep.subr.mxu0 0.0
    %3908 = vmatpush1.msra.mxu0 0.0
    %3909 = vmatprep.subr.mxu0 0.0
    %3910 = vmatpush1.msra.mxu0 0.0
    %3911 = vmatprep.subr.mxu0 0.0
    %3912 = vmatpush1.msra.mxu0 0.0
    %3913 = vmatprep.subr.mxu0 0.0
    %3914 = vmatpush1.msra.mxu0 0.0
    %3915 = vmatprep.subr.mxu0 0.0
    %3916 = vmatpush1.msra.mxu0 0.0
    %3917 = vmatprep.subr.mxu0 0.0
    %3918 = vmatpush1.msra.mxu0 0.0
    %3919 = vmatprep.subr.mxu0 0.0
    %3920 = vmatpush1.msra.mxu0 0.0
    %3921 = vmatprep.subr.mxu0 0.0
    %3922 = vmatpush1.msra.mxu0 0.0
    %3923 = vmatprep.mubr.f32.mxu0 0.0
    %3924 = vmatmul.mubr.f32.gmra.mrb[0].mxu0 %v3786
    %v3925 = vpop.f32.mrb[0].mxu0
    %v3926 = vadd.f32 0.0, %v3925
    %v3927 = vpop.f32.mrb[0].mxu0
    %3928 = vdwg.mxu0
    %v3932 = vrot.slane %v3855, 2
    %v3933 = vrot.slane %v3857, 2
    %v3934 = vrot.slane %v3926, 2
    %v3938 = vadd.f32 %v523, %v3932
    %v3939 = vadd.f32 %v525, %v3933
    %v3940 = vadd.f32 %v599, %v3934
    %v3941 = vxor.u32 %v3938, 2147483648
    %v3942 = vmul.f32 %v3941, 1.442695
    %v3943 = vpow.pop %v3942
    %v3944 = vadd.f32 %v3943, 1.0
    %v3945 = vrcp.pop %v3944
    %v3946 = vmul.f32 1.0, %v3945
    %v3947 = vxor.u32 %v3939, 2147483648
    %v3948 = vmul.f32 %v3947, 1.442695
    %v3949 = vpow.pop %v3948
    %v3950 = vadd.f32 %v3949, 1.0
    %v3951 = vrcp.pop %v3950
    %v3952 = vmul.f32 1.0, %v3951
    %v3953 = vtanh.pop %v3939
    %v3954 = vtanh.pop %v3940
    %v3955 = vxor.u32 %v3940, 2147483648
    %v3956 = vmul.f32 %v3955, 1.442695
    %v3957 = vpow.pop %v3956
    %v3958 = vadd.f32 %v3957, 1.0
    %v3959 = vrcp.pop %v3958
    %v3960 = vmul.f32 1.0, %v3959
    %v3963 = vrot.slane %v3556, 6
    %v3964 = vrot.slane %v3557, 6
    %v3967 = vmul.f32 %v3946, %v3963
    %v3968 = vmul.f32 %v3952, %v3964
    %3971 = vrot.lane.b32.xlu0 %v3953, 64
    %v3972 = vpop.permute.xlu0 %3971
    %3973 = vrot.lane.b32.xlu0 %v3954, 64
    %v3974 = vpop.permute.xlu0 %3973
    %v3975 = vsel %vm1025, %v3972, %v3974
    %v3977 = vmul.f32 %v3946, %v3975
    %3979 = vrot.lane.b32.xlu0 %v3977, 96
    %v3980 = vpop.permute.xlu0 %3979
    %v3982 = vadd.f32 %v3967, %v3980
    %v3983 = vadd.f32 %v3968, %v3980
    %v3984 = vtanh.pop %v3982
    %v3985 = vtanh.pop %v3983
    %3988 = vrot.lane.b32.xlu0 %v3984, 64
    %v3989 = vpop.permute.xlu0 %3988
    %3990 = vrot.lane.b32.xlu0 %v3985, 64
    %v3991 = vpop.permute.xlu0 %3990
    %v3992 = vsel %vm1025, %v3989, %v3991
    %v3994 = vmul.f32 %v3960, %v3992
    %v3996 = vrot.slane %v3781, 2
    %3997 = vrot.lane.b32.xlu0 %v3996, 96
    %v3998 = vpop.permute.xlu0 %3997
    %v3999 = vsel %vm849, %v3998, 0
    %4001 = vmatprep.subr.mxu0 %v814
    %4002 = vmatpush1.msra.mxu0 %v813
    %4003 = vmatprep.subr.mxu0 %v817
    %4004 = vmatpush1.msra.mxu0 %v816
    %4005 = vmatprep.subr.mxu0 %v820
    %4006 = vmatpush1.msra.mxu0 %v819
    %4007 = vmatprep.subr.mxu0 %v823
    %4008 = vmatpush1.msra.mxu0 %v822
    %4009 = vmatprep.subr.mxu0 %v826
    %4010 = vmatpush1.msra.mxu0 %v825
    %4011 = vmatprep.subr.mxu0 %v829
    %4012 = vmatpush1.msra.mxu0 %v828
    %4013 = vmatprep.subr.mxu0 %v832
    %4014 = vmatpush1.msra.mxu0 %v831
    %4015 = vmatprep.subr.mxu0 %v835
    %4016 = vmatpush1.msra.mxu0 %v834
    %4017 = vmatprep.subr.mxu0 %v838
    %4018 = vmatpush1.msra.mxu0 %v837
    %4019 = vmatprep.subr.mxu0 %v841
    %4020 = vmatpush1.msra.mxu0 %v840
    %4021 = vmatprep.subr.mxu0 %v844
    %4022 = vmatpush1.msra.mxu0 %v843
    %4023 = vmatprep.subr.mxu0 %v847
    %4024 = vmatpush1.msra.mxu0 %v846
    %4025 = vmatprep.subr.mxu0 0.0
    %4026 = vmatpush1.msra.mxu0 0.0
    %4027 = vmatprep.subr.mxu0 0.0
    %4028 = vmatpush1.msra.mxu0 0.0
    %4029 = vmatprep.subr.mxu0 0.0
    %4030 = vmatpush1.msra.mxu0 0.0
    %4031 = vmatprep.subr.mxu0 0.0
    %4032 = vmatpush1.msra.mxu0 0.0
    %4033 = vmatprep.subr.mxu0 0.0
    %4034 = vmatpush1.msra.mxu0 0.0
    %4035 = vmatprep.subr.mxu0 0.0
    %4036 = vmatpush1.msra.mxu0 0.0
    %4037 = vmatprep.subr.mxu0 0.0
    %4038 = vmatpush1.msra.mxu0 0.0
    %4039 = vmatprep.subr.mxu0 0.0
    %4040 = vmatpush1.msra.mxu0 0.0
    %4041 = vmatprep.subr.mxu0 0.0
    %4042 = vmatpush1.msra.mxu0 0.0
    %4043 = vmatprep.subr.mxu0 0.0
    %4044 = vmatpush1.msra.mxu0 0.0
    %4045 = vmatprep.subr.mxu0 0.0
    %4046 = vmatpush1.msra.mxu0 0.0
    %4047 = vmatprep.subr.mxu0 0.0
    %4048 = vmatpush1.msra.mxu0 0.0
    %4049 = vmatprep.subr.mxu0 0.0
    %4050 = vmatpush1.msra.mxu0 0.0
    %4051 = vmatprep.subr.mxu0 0.0
    %4052 = vmatpush1.msra.mxu0 0.0
    %4053 = vmatprep.subr.mxu0 0.0
    %4054 = vmatpush1.msra.mxu0 0.0
    %4055 = vmatprep.subr.mxu0 0.0
    %4056 = vmatpush1.msra.mxu0 0.0
    %4057 = vmatprep.subr.mxu0 0.0
    %4058 = vmatpush1.msra.mxu0 0.0
    %4059 = vmatprep.subr.mxu0 0.0
    %4060 = vmatpush1.msra.mxu0 0.0
    %4061 = vmatprep.subr.mxu0 0.0
    %4062 = vmatpush1.msra.mxu0 0.0
    %4063 = vmatprep.subr.mxu0 0.0
    %4064 = vmatpush1.msra.mxu0 0.0
    %4065 = vmatprep.mubr.f32.mxu0 0.0
    %4066 = vmatmul.mubr.f32.gmra.mrb[0].mxu0 %v3999
    %v4067 = vpop.f32.mrb[0].mxu0
    %v4068 = vadd.f32 0.0, %v4067
    %v4069 = vpop.f32.mrb[0].mxu0
    %v4070 = vadd.f32 0.0, %v4069
    %4071 = vdwg.mxu0
    %4072 = vmatprep.subr.mxu0 0.0
    %4073 = vmatpush1.msra.mxu0 %v815
    %4074 = vmatprep.subr.mxu0 0.0
    %4075 = vmatpush1.msra.mxu0 %v818
    %4076 = vmatprep.subr.mxu0 0.0
    %4077 = vmatpush1.msra.mxu0 %v821
    %4078 = vmatprep.subr.mxu0 0.0
    %4079 = vmatpush1.msra.mxu0 %v824
    %4080 = vmatprep.subr.mxu0 0.0
    %4081 = vmatpush1.msra.mxu0 %v827
    %4082 = vmatprep.subr.mxu0 0.0
    %4083 = vmatpush1.msra.mxu0 %v830
    %4084 = vmatprep.subr.mxu0 0.0
    %4085 = vmatpush1.msra.mxu0 %v833
    %4086 = vmatprep.subr.mxu0 0.0
    %4087 = vmatpush1.msra.mxu0 %v836
    %4088 = vmatprep.subr.mxu0 0.0
    %4089 = vmatpush1.msra.mxu0 %v839
    %4090 = vmatprep.subr.mxu0 0.0
    %4091 = vmatpush1.msra.mxu0 %v842
    %4092 = vmatprep.subr.mxu0 0.0
    %4093 = vmatpush1.msra.mxu0 %v845
    %4094 = vmatprep.subr.mxu0 0.0
    %4095 = vmatpush1.msra.mxu0 %v848
    %4096 = vmatprep.subr.mxu0 0.0
    %4097 = vmatpush1.msra.mxu0 0.0
    %4098 = vmatprep.subr.mxu0 0.0
    %4099 = vmatpush1.msra.mxu0 0.0
    %4100 = vmatprep.subr.mxu0 0.0
    %4101 = vmatpush1.msra.mxu0 0.0
    %4102 = vmatprep.subr.mxu0 0.0
    %4103 = vmatpush1.msra.mxu0 0.0
    %4104 = vmatprep.subr.mxu0 0.0
    %4105 = vmatpush1.msra.mxu0 0.0
    %4106 = vmatprep.subr.mxu0 0.0
    %4107 = vmatpush1.msra.mxu0 0.0
    %4108 = vmatprep.subr.mxu0 0.0
    %4109 = vmatpush1.msra.mxu0 0.0
    %4110 = vmatprep.subr.mxu0 0.0
    %4111 = vmatpush1.msra.mxu0 0.0
    %4112 = vmatprep.subr.mxu0 0.0
    %4113 = vmatpush1.msra.mxu0 0.0
    %4114 = vmatprep.subr.mxu0 0.0
    %4115 = vmatpush1.msra.mxu0 0.0
    %4116 = vmatprep.subr.mxu0 0.0
    %4117 = vmatpush1.msra.mxu0 0.0
    %4118 = vmatprep.subr.mxu0 0.0
    %4119 = vmatpush1.msra.mxu0 0.0
    %4120 = vmatprep.subr.mxu0 0.0
    %4121 = vmatpush1.msra.mxu0 0.0
    %4122 = vmatprep.subr.mxu0 0.0
    %4123 = vmatpush1.msra.mxu0 0.0
    %4124 = vmatprep.subr.mxu0 0.0
    %4125 = vmatpush1.msra.mxu0 0.0
    %4126 = vmatprep.subr.mxu0 0.0
    %4127 = vmatpush1.msra.mxu0 0.0
    %4128 = vmatprep.subr.mxu0 0.0
    %4129 = vmatpush1.msra.mxu0 0.0
    %4130 = vmatprep.subr.mxu0 0.0
    %4131 = vmatpush1.msra.mxu0 0.0
    %4132 = vmatprep.subr.mxu0 0.0
    %4133 = vmatpush1.msra.mxu0 0.0
    %4134 = vmatprep.subr.mxu0 0.0
    %4135 = vmatpush1.msra.mxu0 0.0
    %4136 = vmatprep.mubr.f32.mxu0 0.0
    %4137 = vmatmul.mubr.f32.gmra.mrb[0].mxu0 %v3999
    %v4138 = vpop.f32.mrb[0].mxu0
    %v4139 = vadd.f32 0.0, %v4138
    %v4140 = vpop.f32.mrb[0].mxu0
    %4141 = vdwg.mxu0
    %v4142 = vadd.f32 %v692, %v4068
    %v4143 = vadd.f32 %v694, %v4070
    %v4144 = vadd.f32 %v769, %v4139
    %v4145 = vxor.u32 %v4142, 2147483648
    %v4146 = vmul.f32 %v4145, 1.442695
    %v4147 = vpow.pop %v4146
    %v4148 = vadd.f32 %v4147, 1.0
    %v4149 = vrcp.pop %v4148
    %v4150 = vmul.f32 1.0, %v4149
    %v4151 = vxor.u32 %v4143, 2147483648
    %v4152 = vmul.f32 %v4151, 1.442695
    %v4153 = vpow.pop %v4152
    %v4154 = vadd.f32 %v4153, 1.0
    %v4155 = vrcp.pop %v4154
    %v4156 = vmul.f32 1.0, %v4155
    %v4157 = vtanh.pop %v4143
    %v4158 = vtanh.pop %v4144
    %v4159 = vxor.u32 %v4144, 2147483648
    %v4160 = vmul.f32 %v4159, 1.442695
    %v4161 = vpow.pop %v4160
    %v4162 = vadd.f32 %v4161, 1.0
    %v4163 = vrcp.pop %v4162
    %v4164 = vmul.f32 1.0, %v4163
    %v4167 = vrot.slane %v3769, 2
    %v4168 = vrot.slane %v3770, 2
    %v4171 = vmul.f32 %v4150, %v4167
    %v4172 = vmul.f32 %v4156, %v4168
    %4175 = vrot.lane.b32.xlu0 %v4157, 64
    %v4176 = vpop.permute.xlu0 %4175
    %4177 = vrot.lane.b32.xlu0 %v4158, 64
    %v4178 = vpop.permute.xlu0 %4177
    %v4179 = vsel %vm1025, %v4176, %v4178
    %v4181 = vmul.f32 %v4150, %v4179
    %4183 = vrot.lane.b32.xlu0 %v4181, 96
    %v4184 = vpop.permute.xlu0 %4183
    %v4186 = vadd.f32 %v4171, %v4184
    %v4187 = vadd.f32 %v4172, %v4184
    %v4188 = vtanh.pop %v4186
    %v4189 = vtanh.pop %v4187
    %4192 = vrot.lane.b32.xlu0 %v4188, 64
    %v4193 = vpop.permute.xlu0 %4192
    %4194 = vrot.lane.b32.xlu0 %v4189, 64
    %v4195 = vpop.permute.xlu0 %4194
    %v4196 = vsel %vm1025, %v4193, %v4195
    %v4198 = vmul.f32 %v4164, %v4196
    %vm4199 = vcmask 1041408
    %v4200 = vsel %vm4199, %v1045, %v1458
    %vm4201 = vcmask 1043456
    %v4202 = vsel %vm4201, %v4200, %v1884
    %vm4203 = vcmask 1045504
    %v4204 = vsel %vm4203, %v4202, %v2310
    %v4205 = vsel %vm4199, %v2718, %v3142
    %v4206 = vsel %vm4201, %v4205, %v3568
    %v4207 = vsel %vm4203, %v4206, %v3994
    %v4208 = vsel %vm4199, %v4198, %v3781
    %v4209 = vsel %vm4201, %v4208, %v3355
    %v4210 = vsel %vm4203, %v4209, %v2930
    %v4211 = vsel %vm4199, %v2514, %v2097
    %v4212 = vsel %vm4201, %v4211, %v1671
    %v4213 = vsel %vm4203, %v4212, %v1246
    %v4214 = vld [vmem:[%s15] sm:$0xff]
    %v4215 = vld [vmem:[%s15 + $0x8] sm:$0xff]
    %v4216 = vld [vmem:[%s15 + $0x10] sm:$0xff]
    %v4217 = vld [vmem:[%s15 + $0x18] sm:$0xff]
    %v4218 = vld [vmem:[%s15 + $0x20] sm:$0xff]
    %v4219 = vld [vmem:[%s15 + $0x28] sm:$0xff]
    %v4220 = vld [vmem:[%s15 + $0x30] sm:$0xff]
    %v4221 = vld [vmem:[%s15 + $0x38] sm:$0xff]
    %v4222 = vld [vmem:[%s15 + $0x40] sm:$0xff]
    %v4223 = vld [vmem:[%s15 + $0x48] sm:$0xff]
    %v4224 = vld [vmem:[%s15 + $0x50] sm:$0xff]
    %v4225 = vld [vmem:[%s15 + $0x58] sm:$0xff]
    %v4226 = vld [vmem:[%s17] sm:$0xff]
    %v4227 = vld [vmem:[%s17 + $0x8] sm:$0xff]
    %v4228 = vld [vmem:[%s17 + $0x10] sm:$0xff]
    %v4229 = vld [vmem:[%s17 + $0x18] sm:$0xff]
    %v4230 = vld [vmem:[%s17 + $0x20] sm:$0xff]
    %v4231 = vld [vmem:[%s17 + $0x28] sm:$0xff]
    %v4232 = vld [vmem:[%s17 + $0x30] sm:$0xff]
    %v4233 = vld [vmem:[%s17 + $0x38] sm:$0xff]
    %v4234 = vld [vmem:[%s17 + $0x40] sm:$0xff]
    %v4235 = vld [vmem:[%s17 + $0x48] sm:$0xff]
    %v4236 = vld [vmem:[%s17 + $0x50] sm:$0xff]
    %v4237 = vld [vmem:[%s17 + $0x58] sm:$0xff]
    %4240 = vrot.lane.b32.xlu0 %v4210, 96
    %v4241 = vpop.permute.xlu0 %4240
    %4242 = vrot.lane.b32.xlu0 %v4213, 96
    %v4243 = vpop.permute.xlu0 %4242
    %v4244 = vsel %vm849, %v4241, 0
    %v4246 = vsel %vm849, %v4243, 0
    %4248 = vmatprep.subr.mxu0 0.0
    %4249 = vmatpush1.msra.mxu0 %v4226
    %4250 = vmatprep.subr.mxu0 0.0
    %4251 = vmatpush1.msra.mxu0 %v4227
    %4252 = vmatprep.subr.mxu0 0.0
    %4253 = vmatpush1.msra.mxu0 %v4228
    %4254 = vmatprep.subr.mxu0 0.0
    %4255 = vmatpush1.msra.mxu0 %v4229
    %4256 = vmatprep.subr.mxu0 0.0
    %4257 = vmatpush1.msra.mxu0 %v4230
    %4258 = vmatprep.subr.mxu0 0.0
    %4259 = vmatpush1.msra.mxu0 %v4231
    %4260 = vmatprep.subr.mxu0 0.0
    %4261 = vmatpush1.msra.mxu0 %v4232
    %4262 = vmatprep.subr.mxu0 0.0
    %4263 = vmatpush1.msra.mxu0 %v4233
    %4264 = vmatprep.subr.mxu0 0.0
    %4265 = vmatpush1.msra.mxu0 %v4234
    %4266 = vmatprep.subr.mxu0 0.0
    %4267 = vmatpush1.msra.mxu0 %v4235
    %4268 = vmatprep.subr.mxu0 0.0
    %4269 = vmatpush1.msra.mxu0 %v4236
    %4270 = vmatprep.subr.mxu0 0.0
    %4271 = vmatpush1.msra.mxu0 %v4237
    %4272 = vmatprep.subr.mxu0 0.0
    %4273 = vmatpush1.msra.mxu0 0.0
    %4274 = vmatprep.subr.mxu0 0.0
    %4275 = vmatpush1.msra.mxu0 0.0
    %4276 = vmatprep.subr.mxu0 0.0
    %4277 = vmatpush1.msra.mxu0 0.0
    %4278 = vmatprep.subr.mxu0 0.0
    %4279 = vmatpush1.msra.mxu0 0.0
    %4280 = vmatprep.subr.mxu0 0.0
    %4281 = vmatpush1.msra.mxu0 0.0
    %4282 = vmatprep.subr.mxu0 0.0
    %4283 = vmatpush1.msra.mxu0 0.0
    %4284 = vmatprep.subr.mxu0 0.0
    %4285 = vmatpush1.msra.mxu0 0.0
    %4286 = vmatprep.subr.mxu0 0.0
    %4287 = vmatpush1.msra.mxu0 0.0
    %4288 = vmatprep.subr.mxu0 0.0
    %4289 = vmatpush1.msra.mxu0 0.0
    %4290 = vmatprep.subr.mxu0 0.0
    %4291 = vmatpush1.msra.mxu0 0.0
    %4292 = vmatprep.subr.mxu0 0.0
    %4293 = vmatpush1.msra.mxu0 0.0
    %4294 = vmatprep.subr.mxu0 0.0
    %4295 = vmatpush1.msra.mxu0 0.0
    %4296 = vmatprep.subr.mxu0 0.0
    %4297 = vmatpush1.msra.mxu0 0.0
    %4298 = vmatprep.subr.mxu0 0.0
    %4299 = vmatpush1.msra.mxu0 0.0
    %4300 = vmatprep.subr.mxu0 0.0
    %4301 = vmatpush1.msra.mxu0 0.0
    %4302 = vmatprep.subr.mxu0 0.0
    %4303 = vmatpush1.msra.mxu0 0.0
    %4304 = vmatprep.subr.mxu0 0.0
    %4305 = vmatpush1.msra.mxu0 0.0
    %4306 = vmatprep.subr.mxu0 0.0
    %4307 = vmatpush1.msra.mxu0 0.0
    %4308 = vmatprep.subr.mxu0 0.0
    %4309 = vmatpush1.msra.mxu0 0.0
    %4310 = vmatprep.subr.mxu0 0.0
    %4311 = vmatpush1.msra.mxu0 0.0
    %4312 = vmatprep.mubr.f32.mxu0 0.0
    %4313 = vmatmul.mubr.f32.gmra.mrb[0].mxu0 %v4244
    %v4314 = vpop.f32.mrb[0].mxu0
    %v4315 = vadd.f32 0.0, %v4314
    %v4316 = vpop.f32.mrb[0].mxu0
    %4317 = vmatprep.mubr.f32.mxu0 0.0
    %4318 = vmatmul.mubr.f32.gmra.mrb[0].mxu0 %v4246
    %v4319 = vpop.f32.mrb[0].mxu0
    %v4320 = vadd.f32 0.0, %v4319
    %v4321 = vpop.f32.mrb[0].mxu0
    %4322 = vdwg.mxu0
    %4325 = vrot.lane.b32.xlu0 %v4204, 96
    %v4326 = vpop.permute.xlu0 %4325
    %4327 = vrot.lane.b32.xlu0 %v4207, 96
    %v4328 = vpop.permute.xlu0 %4327
    %v4329 = vsel %vm849, %v4326, 0
    %v4331 = vsel %vm849, %v4328, 0
    %4333 = vmatprep.subr.mxu0 0.0
    %4334 = vmatpush1.msra.mxu0 %v4214
    %4335 = vmatprep.subr.mxu0 0.0
    %4336 = vmatpush1.msra.mxu0 %v4215
    %4337 = vmatprep.subr.mxu0 0.0
    %4338 = vmatpush1.msra.mxu0 %v4216
    %4339 = vmatprep.subr.mxu0 0.0
    %4340 = vmatpush1.msra.mxu0 %v4217
    %4341 = vmatprep.subr.mxu0 0.0
    %4342 = vmatpush1.msra.mxu0 %v4218
    %4343 = vmatprep.subr.mxu0 0.0
    %4344 = vmatpush1.msra.mxu0 %v4219
    %4345 = vmatprep.subr.mxu0 0.0
    %4346 = vmatpush1.msra.mxu0 %v4220
    %4347 = vmatprep.subr.mxu0 0.0
    %4348 = vmatpush1.msra.mxu0 %v4221
    %4349 = vmatprep.subr.mxu0 0.0
    %4350 = vmatpush1.msra.mxu0 %v4222
    %4351 = vmatprep.subr.mxu0 0.0
    %4352 = vmatpush1.msra.mxu0 %v4223
    %4353 = vmatprep.subr.mxu0 0.0
    %4354 = vmatpush1.msra.mxu0 %v4224
    %4355 = vmatprep.subr.mxu0 0.0
    %4356 = vmatpush1.msra.mxu0 %v4225
    %4357 = vmatprep.subr.mxu0 0.0
    %4358 = vmatpush1.msra.mxu0 0.0
    %4359 = vmatprep.subr.mxu0 0.0
    %4360 = vmatpush1.msra.mxu0 0.0
    %4361 = vmatprep.subr.mxu0 0.0
    %4362 = vmatpush1.msra.mxu0 0.0
    %4363 = vmatprep.subr.mxu0 0.0
    %4364 = vmatpush1.msra.mxu0 0.0
    %4365 = vmatprep.subr.mxu0 0.0
    %4366 = vmatpush1.msra.mxu0 0.0
    %4367 = vmatprep.subr.mxu0 0.0
    %4368 = vmatpush1.msra.mxu0 0.0
    %4369 = vmatprep.subr.mxu0 0.0
    %4370 = vmatpush1.msra.mxu0 0.0
    %4371 = vmatprep.subr.mxu0 0.0
    %4372 = vmatpush1.msra.mxu0 0.0
    %4373 = vmatprep.subr.mxu0 0.0
    %4374 = vmatpush1.msra.mxu0 0.0
    %4375 = vmatprep.subr.mxu0 0.0
    %4376 = vmatpush1.msra.mxu0 0.0
    %4377 = vmatprep.subr.mxu0 0.0
    %4378 = vmatpush1.msra.mxu0 0.0
    %4379 = vmatprep.subr.mxu0 0.0
    %4380 = vmatpush1.msra.mxu0 0.0
    %4381 = vmatprep.subr.mxu0 0.0
    %4382 = vmatpush1.msra.mxu0 0.0
    %4383 = vmatprep.subr.mxu0 0.0
    %4384 = vmatpush1.msra.mxu0 0.0
    %4385 = vmatprep.subr.mxu0 0.0
    %4386 = vmatpush1.msra.mxu0 0.0
    %4387 = vmatprep.subr.mxu0 0.0
    %4388 = vmatpush1.msra.mxu0 0.0
    %4389 = vmatprep.subr.mxu0 0.0
    %4390 = vmatpush1.msra.mxu0 0.0
    %4391 = vmatprep.subr.mxu0 0.0
    %4392 = vmatpush1.msra.mxu0 0.0
    %4393 = vmatprep.subr.mxu0 0.0
    %4394 = vmatpush1.msra.mxu0 0.0
    %4395 = vmatprep.subr.mxu0 0.0
    %4396 = vmatpush1.msra.mxu0 0.0
    %4397 = vmatprep.mubr.f32.mxu0 0.0
    %4398 = vmatmul.mubr.f32.gmra.mrb[0].mxu0 %v4329
    %v4399 = vpop.f32.mrb[0].mxu0
    %v4400 = vadd.f32 %v4315, %v4399
    %v4401 = vpop.f32.mrb[0].mxu0
    %4402 = vmatprep.mubr.f32.mxu0 0.0
    %4403 = vmatmul.mubr.f32.gmra.mrb[0].mxu0 %v4331
    %v4404 = vpop.f32.mrb[0].mxu0
    %v4405 = vadd.f32 %v4320, %v4404
    %v4406 = vpop.f32.mrb[0].mxu0
    %4407 = vdwg.mxu0
    %v4408 = vld [vmem:[#allocation14] sm:$0x1]
    %v4410 = vlaneseq
    %v4411 = vshrl.u32 %v4410, 7
    %v4412 = vsub.s32 0, %v4411
    %v4413 = vrot.slane %v4408, %v4412
    %v4415 = vadd.f32 %v4400, %v4413
    %v4416 = vadd.f32 %v4405, %v4413
    %vm4417 = vcmask 195584
    %v4418 = vsel %vm4417, %v4415, -inf
    %4419 = vmax.xlane.f32.xlu0 %v4418
    %v4420 = vpop.xlane.xlu0 %4419
    %v4421 = vsel %vm4417, %v4416, -inf
    %4422 = vmax.xlane.f32.xlu0 %v4421
    %v4423 = vpop.xlane.xlu0 %4422
    %v4424 = vmax.f32 %v4420, %v4423
    %v4425 = vrot.slane %v4424, 4
    %v4426 = vmax.f32 %v4424, %v4425
    %v4427 = vrot.slane %v4426, 2
    %v4428 = vmax.f32 %v4426, %v4427
    %v4429 = vrot.slane %v4428, 1
    %v4430 = vmax.f32 %v4428, %v4429
    %v4431 = vsub.f32 %v4415, %v4430
    %v4432 = vsub.f32 %v4416, %v4430
    %v4433 = vmul.f32 %v4431, 1.442695
    %v4434 = vpow.pop %v4433
    %v4435 = vmul.f32 %v4432, 1.442695
    %v4436 = vpow.pop %v4435
    %v4437 = vld [vmem:[#allocation17] sm:$0x3]
    %v4439 = vsel %vm443, %v4437, 0
    %4441 = vmatprep.subr.mxu0 0.0
    %4442 = vmatpush1.msra.mxu0 %v4434
    %4443 = vmatprep.subr.mxu0 0.0
    %4444 = vmatpush1.msra.mxu0 %v4436
    %4445 = vmatprep.subr.mxu0 0.0
    %4446 = vmatpush1.msra.mxu0 0.0
    %4447 = vmatprep.subr.mxu0 0.0
    %4448 = vmatpush1.msra.mxu0 0.0
    %4449 = vmatprep.subr.mxu0 0.0
    %4450 = vmatpush1.msra.mxu0 0.0
    %4451 = vmatprep.subr.mxu0 0.0
    %4452 = vmatpush1.msra.mxu0 0.0
    %4453 = vmatprep.subr.mxu0 0.0
    %4454 = vmatpush1.msra.mxu0 0.0
    %4455 = vmatprep.subr.mxu0 0.0
    %4456 = vmatpush1.msra.mxu0 0.0
    %4457 = vmatprep.subr.mxu0 0.0
    %4458 = vmatpush1.msra.mxu0 0.0
    %4459 = vmatprep.subr.mxu0 0.0
    %4460 = vmatpush1.msra.mxu0 0.0
    %4461 = vmatprep.subr.mxu0 0.0
    %4462 = vmatpush1.msra.mxu0 0.0
    %4463 = vmatprep.subr.mxu0 0.0
    %4464 = vmatpush1.msra.mxu0 0.0
    %4465 = vmatprep.subr.mxu0 0.0
    %4466 = vmatpush1.msra.mxu0 0.0
    %4467 = vmatprep.subr.mxu0 0.0
    %4468 = vmatpush1.msra.mxu0 0.0
    %4469 = vmatprep.subr.mxu0 0.0
    %4470 = vmatpush1.msra.mxu0 0.0
    %4471 = vmatprep.subr.mxu0 0.0
    %4472 = vmatpush1.msra.mxu0 0.0
    %4473 = vmatprep.subr.mxu0 0.0
    %4474 = vmatpush1.msra.mxu0 0.0
    %4475 = vmatprep.subr.mxu0 0.0
    %4476 = vmatpush1.msra.mxu0 0.0
    %4477 = vmatprep.subr.mxu0 0.0
    %4478 = vmatpush1.msra.mxu0 0.0
    %4479 = vmatprep.subr.mxu0 0.0
    %4480 = vmatpush1.msra.mxu0 0.0
    %4481 = vmatprep.subr.mxu0 0.0
    %4482 = vmatpush1.msra.mxu0 0.0
    %4483 = vmatprep.subr.mxu0 0.0
    %4484 = vmatpush1.msra.mxu0 0.0
    %4485 = vmatprep.subr.mxu0 0.0
    %4486 = vmatpush1.msra.mxu0 0.0
    %4487 = vmatprep.subr.mxu0 0.0
    %4488 = vmatpush1.msra.mxu0 0.0
    %4489 = vmatprep.subr.mxu0 0.0
    %4490 = vmatpush1.msra.mxu0 0.0
    %4491 = vmatprep.subr.mxu0 0.0
    %4492 = vmatpush1.msra.mxu0 0.0
    %4493 = vmatprep.subr.mxu0 0.0
    %4494 = vmatpush1.msra.mxu0 0.0
    %4495 = vmatprep.subr.mxu0 0.0
    %4496 = vmatpush1.msra.mxu0 0.0
    %4497 = vmatprep.subr.mxu0 0.0
    %4498 = vmatpush1.msra.mxu0 0.0
    %4499 = vmatprep.subr.mxu0 0.0
    %4500 = vmatpush1.msra.mxu0 0.0
    %4501 = vmatprep.subr.mxu0 0.0
    %4502 = vmatpush1.msra.mxu0 0.0
    %4503 = vmatprep.subr.mxu0 0.0
    %4504 = vmatpush1.msra.mxu0 0.0
    %4505 = vmatprep.mubr.f32.mxu0 0.0
    %4506 = vmatmul.mubr.f32.gmra.mrb[0].mxu0 %v4439
    %v4507 = vpop.f32.mrb[0].mxu0
    %v4508 = vadd.f32 0.0, %v4507
    %v4509 = vpop.f32.mrb[0].mxu0
    %4510 = vdwg.mxu0
    %v4511 = vrcp.pop %v4508
    %v4512 = vld [vmem:[%s29] sm:$0xff]
    %v4513 = vld [vmem:[%s29 + $0x8] sm:$0xff]
    %vm4514 = vcmask 15360
    %v4516 = vsel %vm4514, %v4512, 0
    %v4519 = vsel %vm4514, %v4513, 0
    %v4522 = vsel %vm4199, %v4511, 0
    %4524 = vmatprep.subr.mxu0 0.0
    %4525 = vmatpush1.msra.mxu0 %v4522
    %4526 = vmatprep.subr.mxu0 0.0
    %4527 = vmatpush1.msra.mxu0 0.0
    %4528 = vmatprep.subr.mxu0 0.0
    %4529 = vmatpush1.msra.mxu0 0.0
    %4530 = vmatprep.subr.mxu0 0.0
    %4531 = vmatpush1.msra.mxu0 0.0
    %4532 = vmatprep.subr.mxu0 0.0
    %4533 = vmatpush1.msra.mxu0 0.0
    %4534 = vmatprep.subr.mxu0 0.0
    %4535 = vmatpush1.msra.mxu0 0.0
    %4536 = vmatprep.subr.mxu0 0.0
    %4537 = vmatpush1.msra.mxu0 0.0
    %4538 = vmatprep.subr.mxu0 0.0
    %4539 = vmatpush1.msra.mxu0 0.0
    %4540 = vmatprep.subr.mxu0 0.0
    %4541 = vmatpush1.msra.mxu0 0.0
    %4542 = vmatprep.subr.mxu0 0.0
    %4543 = vmatpush1.msra.mxu0 0.0
    %4544 = vmatprep.subr.mxu0 0.0
    %4545 = vmatpush1.msra.mxu0 0.0
    %4546 = vmatprep.subr.mxu0 0.0
    %4547 = vmatpush1.msra.mxu0 0.0
    %4548 = vmatprep.subr.mxu0 0.0
    %4549 = vmatpush1.msra.mxu0 0.0
    %4550 = vmatprep.subr.mxu0 0.0
    %4551 = vmatpush1.msra.mxu0 0.0
    %4552 = vmatprep.subr.mxu0 0.0
    %4553 = vmatpush1.msra.mxu0 0.0
    %4554 = vmatprep.subr.mxu0 0.0
    %4555 = vmatpush1.msra.mxu0 0.0
    %4556 = vmatprep.subr.mxu0 0.0
    %4557 = vmatpush1.msra.mxu0 0.0
    %4558 = vmatprep.subr.mxu0 0.0
    %4559 = vmatpush1.msra.mxu0 0.0
    %4560 = vmatprep.subr.mxu0 0.0
    %4561 = vmatpush1.msra.mxu0 0.0
    %4562 = vmatprep.subr.mxu0 0.0
    %4563 = vmatpush1.msra.mxu0 0.0
    %4564 = vmatprep.subr.mxu0 0.0
    %4565 = vmatpush1.msra.mxu0 0.0
    %4566 = vmatprep.subr.mxu0 0.0
    %4567 = vmatpush1.msra.mxu0 0.0
    %4568 = vmatprep.subr.mxu0 0.0
    %4569 = vmatpush1.msra.mxu0 0.0
    %4570 = vmatprep.subr.mxu0 0.0
    %4571 = vmatpush1.msra.mxu0 0.0
    %4572 = vmatprep.subr.mxu0 0.0
    %4573 = vmatpush1.msra.mxu0 0.0
    %4574 = vmatprep.subr.mxu0 0.0
    %4575 = vmatpush1.msra.mxu0 0.0
    %4576 = vmatprep.subr.mxu0 0.0
    %4577 = vmatpush1.msra.mxu0 0.0
    %4578 = vmatprep.subr.mxu0 0.0
    %4579 = vmatpush1.msra.mxu0 0.0
    %4580 = vmatprep.subr.mxu0 0.0
    %4581 = vmatpush1.msra.mxu0 0.0
    %4582 = vmatprep.subr.mxu0 0.0
    %4583 = vmatpush1.msra.mxu0 0.0
    %4584 = vmatprep.subr.mxu0 0.0
    %4585 = vmatpush1.msra.mxu0 0.0
    %4586 = vmatprep.subr.mxu0 0.0
    %4587 = vmatpush1.msra.mxu0 0.0
    %4588 = vmatprep.mubr.f32.mxu0 0.0
    %4589 = vmatmul.mubr.f32.gmra.mrb[0].mxu0 %v4516
    %v4590 = vpop.f32.mrb[0].mxu0
    %v4591 = vadd.f32 0.0, %v4590
    %v4592 = vpop.f32.mrb[0].mxu0
    %4593 = vmatprep.mubr.f32.mxu0 0.0
    %4594 = vmatmul.mubr.f32.gmra.mrb[0].mxu0 %v4519
    %v4595 = vpop.f32.mrb[0].mxu0
    %v4596 = vadd.f32 0.0, %v4595
    %v4597 = vpop.f32.mrb[0].mxu0
    %4598 = vdwg.mxu0
    %v4599 = vmul.f32 %v4434, %v4591
    %v4600 = vmul.f32 %v4436, %v4596
    %v4601 = vld [vmem:[#allocation15] sm:$0xff]
    %v4602 = vld [vmem:[#allocation15 + $0x8] sm:$0xff]
    %v4603 = vld [vmem:[#allocation15 + $0x10] sm:$0xff]
    %v4604 = vld [vmem:[#allocation15 + $0x18] sm:$0xff]
    %v4605 = vld [vmem:[#allocation15 + $0x20] sm:$0xff]
    %v4606 = vld [vmem:[#allocation15 + $0x28] sm:$0xff]
    %v4607 = vld [vmem:[#allocation15 + $0x30] sm:$0xff]
    %v4608 = vld [vmem:[#allocation15 + $0x38] sm:$0xff]
    %v4609 = vld [vmem:[#allocation15 + $0x40] sm:$0xff]
    %v4610 = vld [vmem:[#allocation15 + $0x48] sm:$0xff]
    %v4611 = vld [vmem:[#allocation15 + $0x50] sm:$0xff]
    %v4612 = vld [vmem:[#allocation15 + $0x58] sm:$0xff]
    %v4613 = vld [vmem:[#allocation15 + $0x60] sm:$0xff]
    %v4614 = vld [vmem:[#allocation15 + $0x68] sm:$0xff]
    %v4615 = vld [vmem:[#allocation15 + $0x70] sm:$0xff]
    %v4616 = vld [vmem:[#allocation15 + $0x78] sm:$0xff]
    %v4617 = vld [vmem:[#allocation15 + $0x80] sm:$0xff]
    %v4618 = vld [vmem:[#allocation15 + $0x88] sm:$0xff]
    %v4619 = vld [vmem:[#allocation15 + $0x90] sm:$0xff]
    %v4620 = vld [vmem:[#allocation15 + $0x98] sm:$0xff]
    %v4621 = vld [vmem:[#allocation15 + $0xa0] sm:$0xff]
    %v4622 = vld [vmem:[#allocation15 + $0xa8] sm:$0xff]
    %v4623 = vld [vmem:[#allocation15 + $0xb0] sm:$0xff]
    %v4624 = vld [vmem:[#allocation15 + $0xb8] sm:$0xff]
    %v4625 = vld [vmem:[#allocation15 + $0xc0] sm:$0xff]
    %v4626 = vld [vmem:[#allocation15 + $0xc8] sm:$0xff]
    %v4627 = vld [vmem:[#allocation15 + $0xd0] sm:$0xff]
    %v4628 = vld [vmem:[#allocation15 + $0xd8] sm:$0xff]
    %v4629 = vld [vmem:[#allocation15 + $0xe0] sm:$0xff]
    %v4630 = vld [vmem:[#allocation15 + $0xe8] sm:$0xff]
    %v4631 = vld [vmem:[#allocation15 + $0xf0] sm:$0xff]
    %v4632 = vld [vmem:[#allocation15 + $0xf8] sm:$0xff]
    %v4633 = vld [vmem:[#allocation15 + $0x100] sm:$0xff]
    %v4634 = vld [vmem:[#allocation15 + $0x108] sm:$0xff]
    %v4635 = vld [vmem:[#allocation15 + $0x110] sm:$0xff]
    %v4636 = vld [vmem:[#allocation15 + $0x118] sm:$0xff]
    %v4638 = vsel %vm4417, %v4599, 0
    %v4641 = vsel %vm4417, %v4600, 0
    %4643 = vmatprep.subr.mxu0 %v4602
    %4644 = vmatpush1.msra.mxu0 %v4601
    %4645 = vmatprep.subr.mxu0 %v4614
    %4646 = vmatpush1.msra.mxu0 %v4613
    %4647 = vmatprep.subr.mxu0 %v4626
    %4648 = vmatpush1.msra.mxu0 %v4625
    %4649 = vmatprep.subr.mxu0 0.0
    %4650 = vmatpush1.msra.mxu0 0.0
    %4651 = vmatprep.subr.mxu0 0.0
    %4652 = vmatpush1.msra.mxu0 0.0
    %4653 = vmatprep.subr.mxu0 0.0
    %4654 = vmatpush1.msra.mxu0 0.0
    %4655 = vmatprep.subr.mxu0 0.0
    %4656 = vmatpush1.msra.mxu0 0.0
    %4657 = vmatprep.subr.mxu0 0.0
    %4658 = vmatpush1.msra.mxu0 0.0
    %4659 = vmatprep.subr.mxu0 0.0
    %4660 = vmatpush1.msra.mxu0 0.0
    %4661 = vmatprep.subr.mxu0 0.0
    %4662 = vmatpush1.msra.mxu0 0.0
    %4663 = vmatprep.subr.mxu0 0.0
    %4664 = vmatpush1.msra.mxu0 0.0
    %4665 = vmatprep.subr.mxu0 0.0
    %4666 = vmatpush1.msra.mxu0 0.0
    %4667 = vmatprep.subr.mxu0 0.0
    %4668 = vmatpush1.msra.mxu0 0.0
    %4669 = vmatprep.subr.mxu0 0.0
    %4670 = vmatpush1.msra.mxu0 0.0
    %4671 = vmatprep.subr.mxu0 0.0
    %4672 = vmatpush1.msra.mxu0 0.0
    %4673 = vmatprep.subr.mxu0 0.0
    %4674 = vmatpush1.msra.mxu0 0.0
    %4675 = vmatprep.subr.mxu0 0.0
    %4676 = vmatpush1.msra.mxu0 0.0
    %4677 = vmatprep.subr.mxu0 0.0
    %4678 = vmatpush1.msra.mxu0 0.0
    %4679 = vmatprep.subr.mxu0 0.0
    %4680 = vmatpush1.msra.mxu0 0.0
    %4681 = vmatprep.subr.mxu0 0.0
    %4682 = vmatpush1.msra.mxu0 0.0
    %4683 = vmatprep.subr.mxu0 0.0
    %4684 = vmatpush1.msra.mxu0 0.0
    %4685 = vmatprep.subr.mxu0 0.0
    %4686 = vmatpush1.msra.mxu0 0.0
    %4687 = vmatprep.subr.mxu0 0.0
    %4688 = vmatpush1.msra.mxu0 0.0
    %4689 = vmatprep.subr.mxu0 0.0
    %4690 = vmatpush1.msra.mxu0 0.0
    %4691 = vmatprep.subr.mxu0 0.0
    %4692 = vmatpush1.msra.mxu0 0.0
    %4693 = vmatprep.subr.mxu0 0.0
    %4694 = vmatpush1.msra.mxu0 0.0
    %4695 = vmatprep.subr.mxu0 0.0
    %4696 = vmatpush1.msra.mxu0 0.0
    %4697 = vmatprep.subr.mxu0 0.0
    %4698 = vmatpush1.msra.mxu0 0.0
    %4699 = vmatprep.subr.mxu0 0.0
    %4700 = vmatpush1.msra.mxu0 0.0
    %4701 = vmatprep.subr.mxu0 0.0
    %4702 = vmatpush1.msra.mxu0 0.0
    %4703 = vmatprep.subr.mxu0 0.0
    %4704 = vmatpush1.msra.mxu0 0.0
    %4705 = vmatprep.subr.mxu0 0.0
    %4706 = vmatpush1.msra.mxu0 0.0
    %4707 = vmatprep.mubr.f32.mxu0 0.0
    %4708 = vmatmul.mubr.f32.gmra.mrb[0].mxu0 %v4638
    %v4709 = vpop.f32.mrb[0].mxu0
    %v4710 = vadd.f32 0.0, %v4709
    %v4711 = vpop.f32.mrb[0].mxu0
    %v4712 = vadd.f32 0.0, %v4711
    %4713 = vmatprep.mubr.f32.mxu0 0.0
    %4714 = vmatmul.mubr.f32.gmra.mrb[0].mxu0 %v4641
    %v4715 = vpop.f32.mrb[0].mxu0
    %v4716 = vadd.f32 0.0, %v4715
    %v4717 = vpop.f32.mrb[0].mxu0
    %v4718 = vadd.f32 0.0, %v4717
    %4719 = vdwg.mxu0
    %4720 = vmatprep.subr.mxu0 %v4604
    %4721 = vmatpush1.msra.mxu0 %v4603
    %4722 = vmatprep.subr.mxu0 %v4616
    %4723 = vmatpush1.msra.mxu0 %v4615
    %4724 = vmatprep.subr.mxu0 %v4628
    %4725 = vmatpush1.msra.mxu0 %v4627
    %4726 = vmatprep.subr.mxu0 0.0
    %4727 = vmatpush1.msra.mxu0 0.0
    %4728 = vmatprep.subr.mxu0 0.0
    %4729 = vmatpush1.msra.mxu0 0.0
    %4730 = vmatprep.subr.mxu0 0.0
    %4731 = vmatpush1.msra.mxu0 0.0
    %4732 = vmatprep.subr.mxu0 0.0
    %4733 = vmatpush1.msra.mxu0 0.0
    %4734 = vmatprep.subr.mxu0 0.0
    %4735 = vmatpush1.msra.mxu0 0.0
    %4736 = vmatprep.subr.mxu0 0.0
    %4737 = vmatpush1.msra.mxu0 0.0
    %4738 = vmatprep.subr.mxu0 0.0
    %4739 = vmatpush1.msra.mxu0 0.0
    %4740 = vmatprep.subr.mxu0 0.0
    %4741 = vmatpush1.msra.mxu0 0.0
    %4742 = vmatprep.subr.mxu0 0.0
    %4743 = vmatpush1.msra.mxu0 0.0
    %4744 = vmatprep.subr.mxu0 0.0
    %4745 = vmatpush1.msra.mxu0 0.0
    %4746 = vmatprep.subr.mxu0 0.0
    %4747 = vmatpush1.msra.mxu0 0.0
    %4748 = vmatprep.subr.mxu0 0.0
    %4749 = vmatpush1.msra.mxu0 0.0
    %4750 = vmatprep.subr.mxu0 0.0
    %4751 = vmatpush1.msra.mxu0 0.0
    %4752 = vmatprep.subr.mxu0 0.0
    %4753 = vmatpush1.msra.mxu0 0.0
    %4754 = vmatprep.subr.mxu0 0.0
    %4755 = vmatpush1.msra.mxu0 0.0
    %4756 = vmatprep.subr.mxu0 0.0
    %4757 = vmatpush1.msra.mxu0 0.0
    %4758 = vmatprep.subr.mxu0 0.0
    %4759 = vmatpush1.msra.mxu0 0.0
    %4760 = vmatprep.subr.mxu0 0.0
    %4761 = vmatpush1.msra.mxu0 0.0
    %4762 = vmatprep.subr.mxu0 0.0
    %4763 = vmatpush1.msra.mxu0 0.0
    %4764 = vmatprep.subr.mxu0 0.0
    %4765 = vmatpush1.msra.mxu0 0.0
    %4766 = vmatprep.subr.mxu0 0.0
    %4767 = vmatpush1.msra.mxu0 0.0
    %4768 = vmatprep.subr.mxu0 0.0
    %4769 = vmatpush1.msra.mxu0 0.0
    %4770 = vmatprep.subr.mxu0 0.0
    %4771 = vmatpush1.msra.mxu0 0.0
    %4772 = vmatprep.subr.mxu0 0.0
    %4773 = vmatpush1.msra.mxu0 0.0
    %4774 = vmatprep.subr.mxu0 0.0
    %4775 = vmatpush1.msra.mxu0 0.0
    %4776 = vmatprep.subr.mxu0 0.0
    %4777 = vmatpush1.msra.mxu0 0.0
    %4778 = vmatprep.subr.mxu0 0.0
    %4779 = vmatpush1.msra.mxu0 0.0
    %4780 = vmatprep.subr.mxu0 0.0
    %4781 = vmatpush1.msra.mxu0 0.0
    %4782 = vmatprep.subr.mxu0 0.0
    %4783 = vmatpush1.msra.mxu0 0.0
    %4784 = vmatprep.mubr.f32.mxu0 0.0
    %4785 = vmatmul.mubr.f32.gmra.mrb[0].mxu0 %v4638
    %v4786 = vpop.f32.mrb[0].mxu0
    %v4787 = vadd.f32 0.0, %v4786
    %v4788 = vpop.f32.mrb[0].mxu0
    %v4789 = vadd.f32 0.0, %v4788
    %4790 = vmatprep.mubr.f32.mxu0 0.0
    %4791 = vmatmul.mubr.f32.gmra.mrb[0].mxu0 %v4641
    %v4792 = vpop.f32.mrb[0].mxu0
    %v4793 = vadd.f32 0.0, %v4792
    %v4794 = vpop.f32.mrb[0].mxu0
    %v4795 = vadd.f32 0.0, %v4794
    %4796 = vdwg.mxu0
    %4797 = vmatprep.subr.mxu0 %v4606
    %4798 = vmatpush1.msra.mxu0 %v4605
    %4799 = vmatprep.subr.mxu0 %v4618
    %4800 = vmatpush1.msra.mxu0 %v4617
    %4801 = vmatprep.subr.mxu0 %v4630
    %4802 = vmatpush1.msra.mxu0 %v4629
    %4803 = vmatprep.subr.mxu0 0.0
    %4804 = vmatpush1.msra.mxu0 0.0
    %4805 = vmatprep.subr.mxu0 0.0
    %4806 = vmatpush1.msra.mxu0 0.0
    %4807 = vmatprep.subr.mxu0 0.0
    %4808 = vmatpush1.msra.mxu0 0.0
    %4809 = vmatprep.subr.mxu0 0.0
    %4810 = vmatpush1.msra.mxu0 0.0
    %4811 = vmatprep.subr.mxu0 0.0
    %4812 = vmatpush1.msra.mxu0 0.0
    %4813 = vmatprep.subr.mxu0 0.0
    %4814 = vmatpush1.msra.mxu0 0.0
    %4815 = vmatprep.subr.mxu0 0.0
    %4816 = vmatpush1.msra.mxu0 0.0
    %4817 = vmatprep.subr.mxu0 0.0
    %4818 = vmatpush1.msra.mxu0 0.0
    %4819 = vmatprep.subr.mxu0 0.0
    %4820 = vmatpush1.msra.mxu0 0.0
    %4821 = vmatprep.subr.mxu0 0.0
    %4822 = vmatpush1.msra.mxu0 0.0
    %4823 = vmatprep.subr.mxu0 0.0
    %4824 = vmatpush1.msra.mxu0 0.0
    %4825 = vmatprep.subr.mxu0 0.0
    %4826 = vmatpush1.msra.mxu0 0.0
    %4827 = vmatprep.subr.mxu0 0.0
    %4828 = vmatpush1.msra.mxu0 0.0
    %4829 = vmatprep.subr.mxu0 0.0
    %4830 = vmatpush1.msra.mxu0 0.0
    %4831 = vmatprep.subr.mxu0 0.0
    %4832 = vmatpush1.msra.mxu0 0.0
    %4833 = vmatprep.subr.mxu0 0.0
    %4834 = vmatpush1.msra.mxu0 0.0
    %4835 = vmatprep.subr.mxu0 0.0
    %4836 = vmatpush1.msra.mxu0 0.0
    %4837 = vmatprep.subr.mxu0 0.0
    %4838 = vmatpush1.msra.mxu0 0.0
    %4839 = vmatprep.subr.mxu0 0.0
    %4840 = vmatpush1.msra.mxu0 0.0
    %4841 = vmatprep.subr.mxu0 0.0
    %4842 = vmatpush1.msra.mxu0 0.0
    %4843 = vmatprep.subr.mxu0 0.0
    %4844 = vmatpush1.msra.mxu0 0.0
    %4845 = vmatprep.subr.mxu0 0.0
    %4846 = vmatpush1.msra.mxu0 0.0
    %4847 = vmatprep.subr.mxu0 0.0
    %4848 = vmatpush1.msra.mxu0 0.0
    %4849 = vmatprep.subr.mxu0 0.0
    %4850 = vmatpush1.msra.mxu0 0.0
    %4851 = vmatprep.subr.mxu0 0.0
    %4852 = vmatpush1.msra.mxu0 0.0
    %4853 = vmatprep.subr.mxu0 0.0
    %4854 = vmatpush1.msra.mxu0 0.0
    %4855 = vmatprep.subr.mxu0 0.0
    %4856 = vmatpush1.msra.mxu0 0.0
    %4857 = vmatprep.subr.mxu0 0.0
    %4858 = vmatpush1.msra.mxu0 0.0
    %4859 = vmatprep.subr.mxu0 0.0
    %4860 = vmatpush1.msra.mxu0 0.0
    %4861 = vmatprep.mubr.f32.mxu0 0.0
    %4862 = vmatmul.mubr.f32.gmra.mrb[0].mxu0 %v4638
    %v4863 = vpop.f32.mrb[0].mxu0
    %v4864 = vadd.f32 0.0, %v4863
    %v4865 = vpop.f32.mrb[0].mxu0
    %v4866 = vadd.f32 0.0, %v4865
    %4867 = vmatprep.mubr.f32.mxu0 0.0
    %4868 = vmatmul.mubr.f32.gmra.mrb[0].mxu0 %v4641
    %v4869 = vpop.f32.mrb[0].mxu0
    %v4870 = vadd.f32 0.0, %v4869
    %v4871 = vpop.f32.mrb[0].mxu0
    %v4872 = vadd.f32 0.0, %v4871
    %4873 = vdwg.mxu0
    %4874 = vmatprep.subr.mxu0 %v4608
    %4875 = vmatpush1.msra.mxu0 %v4607
    %4876 = vmatprep.subr.mxu0 %v4620
    %4877 = vmatpush1.msra.mxu0 %v4619
    %4878 = vmatprep.subr.mxu0 %v4632
    %4879 = vmatpush1.msra.mxu0 %v4631
    %4880 = vmatprep.subr.mxu0 0.0
    %4881 = vmatpush1.msra.mxu0 0.0
    %4882 = vmatprep.subr.mxu0 0.0
    %4883 = vmatpush1.msra.mxu0 0.0
    %4884 = vmatprep.subr.mxu0 0.0
    %4885 = vmatpush1.msra.mxu0 0.0
    %4886 = vmatprep.subr.mxu0 0.0
    %4887 = vmatpush1.msra.mxu0 0.0
    %4888 = vmatprep.subr.mxu0 0.0
    %4889 = vmatpush1.msra.mxu0 0.0
    %4890 = vmatprep.subr.mxu0 0.0
    %4891 = vmatpush1.msra.mxu0 0.0
    %4892 = vmatprep.subr.mxu0 0.0
    %4893 = vmatpush1.msra.mxu0 0.0
    %4894 = vmatprep.subr.mxu0 0.0
    %4895 = vmatpush1.msra.mxu0 0.0
    %4896 = vmatprep.subr.mxu0 0.0
    %4897 = vmatpush1.msra.mxu0 0.0
    %4898 = vmatprep.subr.mxu0 0.0
    %4899 = vmatpush1.msra.mxu0 0.0
    %4900 = vmatprep.subr.mxu0 0.0
    %4901 = vmatpush1.msra.mxu0 0.0
    %4902 = vmatprep.subr.mxu0 0.0
    %4903 = vmatpush1.msra.mxu0 0.0
    %4904 = vmatprep.subr.mxu0 0.0
    %4905 = vmatpush1.msra.mxu0 0.0
    %4906 = vmatprep.subr.mxu0 0.0
    %4907 = vmatpush1.msra.mxu0 0.0
    %4908 = vmatprep.subr.mxu0 0.0
    %4909 = vmatpush1.msra.mxu0 0.0
    %4910 = vmatprep.subr.mxu0 0.0
    %4911 = vmatpush1.msra.mxu0 0.0
    %4912 = vmatprep.subr.mxu0 0.0
    %4913 = vmatpush1.msra.mxu0 0.0
    %4914 = vmatprep.subr.mxu0 0.0
    %4915 = vmatpush1.msra.mxu0 0.0
    %4916 = vmatprep.subr.mxu0 0.0
    %4917 = vmatpush1.msra.mxu0 0.0
    %4918 = vmatprep.subr.mxu0 0.0
    %4919 = vmatpush1.msra.mxu0 0.0
    %4920 = vmatprep.subr.mxu0 0.0
    %4921 = vmatpush1.msra.mxu0 0.0
    %4922 = vmatprep.subr.mxu0 0.0
    %4923 = vmatpush1.msra.mxu0 0.0
    %4924 = vmatprep.subr.mxu0 0.0
    %4925 = vmatpush1.msra.mxu0 0.0
    %4926 = vmatprep.subr.mxu0 0.0
    %4927 = vmatpush1.msra.mxu0 0.0
    %4928 = vmatprep.subr.mxu0 0.0
    %4929 = vmatpush1.msra.mxu0 0.0
    %4930 = vmatprep.subr.mxu0 0.0
    %4931 = vmatpush1.msra.mxu0 0.0
    %4932 = vmatprep.subr.mxu0 0.0
    %4933 = vmatpush1.msra.mxu0 0.0
    %4934 = vmatprep.subr.mxu0 0.0
    %4935 = vmatpush1.msra.mxu0 0.0
    %4936 = vmatprep.subr.mxu0 0.0
    %4937 = vmatpush1.msra.mxu0 0.0
    %4938 = vmatprep.mubr.f32.mxu0 0.0
    %4939 = vmatmul.mubr.f32.gmra.mrb[0].mxu0 %v4638
    %v4940 = vpop.f32.mrb[0].mxu0
    %v4941 = vadd.f32 0.0, %v4940
    %v4942 = vpop.f32.mrb[0].mxu0
    %v4943 = vadd.f32 0.0, %v4942
    %4944 = vmatprep.mubr.f32.mxu0 0.0
    %4945 = vmatmul.mubr.f32.gmra.mrb[0].mxu0 %v4641
    %v4946 = vpop.f32.mrb[0].mxu0
    %v4947 = vadd.f32 0.0, %v4946
    %v4948 = vpop.f32.mrb[0].mxu0
    %v4949 = vadd.f32 0.0, %v4948
    %4950 = vdwg.mxu0
    %4951 = vmatprep.subr.mxu0 %v4610
    %4952 = vmatpush1.msra.mxu0 %v4609
    %4953 = vmatprep.subr.mxu0 %v4622
    %4954 = vmatpush1.msra.mxu0 %v4621
    %4955 = vmatprep.subr.mxu0 %v4634
    %4956 = vmatpush1.msra.mxu0 %v4633
    %4957 = vmatprep.subr.mxu0 0.0
    %4958 = vmatpush1.msra.mxu0 0.0
    %4959 = vmatprep.subr.mxu0 0.0
    %4960 = vmatpush1.msra.mxu0 0.0
    %4961 = vmatprep.subr.mxu0 0.0
    %4962 = vmatpush1.msra.mxu0 0.0
    %4963 = vmatprep.subr.mxu0 0.0
    %4964 = vmatpush1.msra.mxu0 0.0
    %4965 = vmatprep.subr.mxu0 0.0
    %4966 = vmatpush1.msra.mxu0 0.0
    %4967 = vmatprep.subr.mxu0 0.0
    %4968 = vmatpush1.msra.mxu0 0.0
    %4969 = vmatprep.subr.mxu0 0.0
    %4970 = vmatpush1.msra.mxu0 0.0
    %4971 = vmatprep.subr.mxu0 0.0
    %4972 = vmatpush1.msra.mxu0 0.0
    %4973 = vmatprep.subr.mxu0 0.0
    %4974 = vmatpush1.msra.mxu0 0.0
    %4975 = vmatprep.subr.mxu0 0.0
    %4976 = vmatpush1.msra.mxu0 0.0
    %4977 = vmatprep.subr.mxu0 0.0
    %4978 = vmatpush1.msra.mxu0 0.0
    %4979 = vmatprep.subr.mxu0 0.0
    %4980 = vmatpush1.msra.mxu0 0.0
    %4981 = vmatprep.subr.mxu0 0.0
    %4982 = vmatpush1.msra.mxu0 0.0
    %4983 = vmatprep.subr.mxu0 0.0
    %4984 = vmatpush1.msra.mxu0 0.0
    %4985 = vmatprep.subr.mxu0 0.0
    %4986 = vmatpush1.msra.mxu0 0.0
    %4987 = vmatprep.subr.mxu0 0.0
    %4988 = vmatpush1.msra.mxu0 0.0
    %4989 = vmatprep.subr.mxu0 0.0
    %4990 = vmatpush1.msra.mxu0 0.0
    %4991 = vmatprep.subr.mxu0 0.0
    %4992 = vmatpush1.msra.mxu0 0.0
    %4993 = vmatprep.subr.mxu0 0.0
    %4994 = vmatpush1.msra.mxu0 0.0
    %4995 = vmatprep.subr.mxu0 0.0
    %4996 = vmatpush1.msra.mxu0 0.0
    %4997 = vmatprep.subr.mxu0 0.0
    %4998 = vmatpush1.msra.mxu0 0.0
    %4999 = vmatprep.subr.mxu0 0.0
    %5000 = vmatpush1.msra.mxu0 0.0
    %5001 = vmatprep.subr.mxu0 0.0
    %5002 = vmatpush1.msra.mxu0 0.0
    %5003 = vmatprep.subr.mxu0 0.0
    %5004 = vmatpush1.msra.mxu0 0.0
    %5005 = vmatprep.subr.mxu0 0.0
    %5006 = vmatpush1.msra.mxu0 0.0
    %5007 = vmatprep.subr.mxu0 0.0
    %5008 = vmatpush1.msra.mxu0 0.0
    %5009 = vmatprep.subr.mxu0 0.0
    %5010 = vmatpush1.msra.mxu0 0.0
    %5011 = vmatprep.subr.mxu0 0.0
    %5012 = vmatpush1.msra.mxu0 0.0
    %5013 = vmatprep.subr.mxu0 0.0
    %5014 = vmatpush1.msra.mxu0 0.0
    %5015 = vmatprep.mubr.f32.mxu0 0.0
    %5016 = vmatmul.mubr.f32.gmra.mrb[0].mxu0 %v4638
    %v5017 = vpop.f32.mrb[0].mxu0
    %v5018 = vadd.f32 0.0, %v5017
    %v5019 = vpop.f32.mrb[0].mxu0
    %v5020 = vadd.f32 0.0, %v5019
    %5021 = vmatprep.mubr.f32.mxu0 0.0
    %5022 = vmatmul.mubr.f32.gmra.mrb[0].mxu0 %v4641
    %v5023 = vpop.f32.mrb[0].mxu0
    %v5024 = vadd.f32 0.0, %v5023
    %v5025 = vpop.f32.mrb[0].mxu0
    %v5026 = vadd.f32 0.0, %v5025
    %5027 = vdwg.mxu0
    %5028 = vmatprep.subr.mxu0 %v4612
    %5029 = vmatpush1.msra.mxu0 %v4611
    %5030 = vmatprep.subr.mxu0 %v4624
    %5031 = vmatpush1.msra.mxu0 %v4623
    %5032 = vmatprep.subr.mxu0 %v4636
    %5033 = vmatpush1.msra.mxu0 %v4635
    %5034 = vmatprep.subr.mxu0 0.0
    %5035 = vmatpush1.msra.mxu0 0.0
    %5036 = vmatprep.subr.mxu0 0.0
    %5037 = vmatpush1.msra.mxu0 0.0
    %5038 = vmatprep.subr.mxu0 0.0
    %5039 = vmatpush1.msra.mxu0 0.0
    %5040 = vmatprep.subr.mxu0 0.0
    %5041 = vmatpush1.msra.mxu0 0.0
    %5042 = vmatprep.subr.mxu0 0.0
    %5043 = vmatpush1.msra.mxu0 0.0
    %5044 = vmatprep.subr.mxu0 0.0
    %5045 = vmatpush1.msra.mxu0 0.0
    %5046 = vmatprep.subr.mxu0 0.0
    %5047 = vmatpush1.msra.mxu0 0.0
    %5048 = vmatprep.subr.mxu0 0.0
    %5049 = vmatpush1.msra.mxu0 0.0
    %5050 = vmatprep.subr.mxu0 0.0
    %5051 = vmatpush1.msra.mxu0 0.0
    %5052 = vmatprep.subr.mxu0 0.0
    %5053 = vmatpush1.msra.mxu0 0.0
    %5054 = vmatprep.subr.mxu0 0.0
    %5055 = vmatpush1.msra.mxu0 0.0
    %5056 = vmatprep.subr.mxu0 0.0
    %5057 = vmatpush1.msra.mxu0 0.0
    %5058 = vmatprep.subr.mxu0 0.0
    %5059 = vmatpush1.msra.mxu0 0.0
    %5060 = vmatprep.subr.mxu0 0.0
    %5061 = vmatpush1.msra.mxu0 0.0
    %5062 = vmatprep.subr.mxu0 0.0
    %5063 = vmatpush1.msra.mxu0 0.0
    %5064 = vmatprep.subr.mxu0 0.0
    %5065 = vmatpush1.msra.mxu0 0.0
    %5066 = vmatprep.subr.mxu0 0.0
    %5067 = vmatpush1.msra.mxu0 0.0
    %5068 = vmatprep.subr.mxu0 0.0
    %5069 = vmatpush1.msra.mxu0 0.0
    %5070 = vmatprep.subr.mxu0 0.0
    %5071 = vmatpush1.msra.mxu0 0.0
    %5072 = vmatprep.subr.mxu0 0.0
    %5073 = vmatpush1.msra.mxu0 0.0
    %5074 = vmatprep.subr.mxu0 0.0
    %5075 = vmatpush1.msra.mxu0 0.0
    %5076 = vmatprep.subr.mxu0 0.0
    %5077 = vmatpush1.msra.mxu0 0.0
    %5078 = vmatprep.subr.mxu0 0.0
    %5079 = vmatpush1.msra.mxu0 0.0
    %5080 = vmatprep.subr.mxu0 0.0
    %5081 = vmatpush1.msra.mxu0 0.0
    %5082 = vmatprep.subr.mxu0 0.0
    %5083 = vmatpush1.msra.mxu0 0.0
    %5084 = vmatprep.subr.mxu0 0.0
    %5085 = vmatpush1.msra.mxu0 0.0
    %5086 = vmatprep.subr.mxu0 0.0
    %5087 = vmatpush1.msra.mxu0 0.0
    %5088 = vmatprep.subr.mxu0 0.0
    %5089 = vmatpush1.msra.mxu0 0.0
    %5090 = vmatprep.subr.mxu0 0.0
    %5091 = vmatpush1.msra.mxu0 0.0
    %5092 = vmatprep.mubr.f32.mxu0 0.0
    %5093 = vmatmul.mubr.f32.gmra.mrb[0].mxu0 %v4638
    %v5094 = vpop.f32.mrb[0].mxu0
    %v5095 = vadd.f32 0.0, %v5094
    %v5096 = vpop.f32.mrb[0].mxu0
    %v5097 = vadd.f32 0.0, %v5096
    %5098 = vmatprep.mubr.f32.mxu0 0.0
    %5099 = vmatmul.mubr.f32.gmra.mrb[0].mxu0 %v4641
    %v5100 = vpop.f32.mrb[0].mxu0
    %v5101 = vadd.f32 0.0, %v5100
    %v5102 = vpop.f32.mrb[0].mxu0
    %v5103 = vadd.f32 0.0, %v5102
    %5104 = vdwg.mxu0
    %v5105 = vld [vmem:[%s23] sm:$0xff]
    %v5106 = vld [vmem:[%s23 + $0x8] sm:$0xff]
    %v5107 = vld [vmem:[%s23 + $0x10] sm:$0xff]
    %v5108 = vld [vmem:[%s23 + $0x18] sm:$0xff]
    %v5109 = vld [vmem:[%s23 + $0x20] sm:$0xff]
    %v5110 = vld [vmem:[%s23 + $0x28] sm:$0xff]
    %v5111 = vld [vmem:[%s23 + $0x30] sm:$0xff]
    %v5112 = vld [vmem:[%s23 + $0x38] sm:$0xff]
    %v5113 = vld [vmem:[%s23 + $0x40] sm:$0xff]
    %v5114 = vld [vmem:[%s23 + $0x48] sm:$0xff]
    %v5115 = vld [vmem:[%s23 + $0x50] sm:$0xff]
    %v5116 = vld [vmem:[%s23 + $0x58] sm:$0xff]
    %v5117 = vld [vmem:[%s23 + $0x60] sm:$0xff]
    %v5118 = vld [vmem:[%s23 + $0x68] sm:$0xff]
    %v5119 = vld [vmem:[%s23 + $0x70] sm:$0xff]
    %v5120 = vld [vmem:[%s23 + $0x78] sm:$0xff]
    %v5121 = vld [vmem:[%s23 + $0x80] sm:$0xff]
    %v5122 = vld [vmem:[%s23 + $0x88] sm:$0xff]
    %v5123 = vld [vmem:[%s23 + $0x90] sm:$0xff]
    %v5124 = vld [vmem:[%s23 + $0x98] sm:$0xff]
    %v5125 = vld [vmem:[%s23 + $0xa0] sm:$0xff]
    %v5126 = vld [vmem:[%s23 + $0xa8] sm:$0xff]
    %v5127 = vld [vmem:[%s23 + $0xb0] sm:$0xff]
    %v5128 = vld [vmem:[%s23 + $0xb8] sm:$0xff]
    %v5129 = vld [vmem:[%s23 + $0xc0] sm:$0xff]
    %v5130 = vld [vmem:[%s23 + $0xc8] sm:$0xff]
    %v5131 = vld [vmem:[%s23 + $0xd0] sm:$0xff]
    %v5132 = vld [vmem:[%s23 + $0xd8] sm:$0xff]
    %v5133 = vld [vmem:[%s23 + $0xe0] sm:$0xff]
    %v5134 = vld [vmem:[%s23 + $0xe8] sm:$0xff]
    %v5135 = vld [vmem:[%s23 + $0xf0] sm:$0xff]
    %v5136 = vld [vmem:[%s23 + $0xf8] sm:$0xff]
    %v5137 = vld [vmem:[%s23 + $0x100] sm:$0xff]
    %v5138 = vld [vmem:[%s23 + $0x108] sm:$0xff]
    %v5139 = vld [vmem:[%s23 + $0x110] sm:$0xff]
    %v5140 = vld [vmem:[%s23 + $0x118] sm:$0xff]
    %v5141 = vld [vmem:[%s23 + $0x120] sm:$0xff]
    %v5142 = vld [vmem:[%s23 + $0x128] sm:$0xff]
    %v5143 = vld [vmem:[%s23 + $0x130] sm:$0xff]
    %v5144 = vld [vmem:[%s23 + $0x138] sm:$0xff]
    %v5145 = vld [vmem:[%s23 + $0x140] sm:$0xff]
    %v5146 = vld [vmem:[%s23 + $0x148] sm:$0xff]
    %v5147 = vld [vmem:[%s23 + $0x150] sm:$0xff]
    %v5148 = vld [vmem:[%s23 + $0x158] sm:$0xff]
    %v5149 = vld [vmem:[%s23 + $0x160] sm:$0xff]
    %v5150 = vld [vmem:[%s23 + $0x168] sm:$0xff]
    %v5151 = vld [vmem:[%s23 + $0x170] sm:$0xff]
    %v5152 = vld [vmem:[%s23 + $0x178] sm:$0xff]
    %v5153 = vld [vmem:[%s23 + $0x180] sm:$0xff]
    %v5154 = vld [vmem:[%s23 + $0x188] sm:$0xff]
    %v5155 = vld [vmem:[%s23 + $0x190] sm:$0xff]
    %v5156 = vld [vmem:[%s23 + $0x198] sm:$0xff]
    %v5157 = vld [vmem:[%s23 + $0x1a0] sm:$0xff]
    %v5158 = vld [vmem:[%s23 + $0x1a8] sm:$0xff]
    %v5159 = vld [vmem:[%s23 + $0x1b0] sm:$0xff]
    %v5160 = vld [vmem:[%s23 + $0x1b8] sm:$0xff]
    %v5161 = vld [vmem:[%s23 + $0x1c0] sm:$0xff]
    %v5162 = vld [vmem:[%s23 + $0x1c8] sm:$0xff]
    %v5163 = vld [vmem:[%s23 + $0x1d0] sm:$0xff]
    %v5164 = vld [vmem:[%s23 + $0x1d8] sm:$0xff]
    %v5165 = vld [vmem:[%s23 + $0x1e0] sm:$0xff]
    %v5166 = vld [vmem:[%s23 + $0x1e8] sm:$0xff]
    %v5167 = vld [vmem:[%s23 + $0x1f0] sm:$0xff]
    %v5168 = vld [vmem:[%s23 + $0x1f8] sm:$0xff]
    %v5169 = vld [vmem:[%s23 + $0x200] sm:$0xff]
    %v5170 = vld [vmem:[%s23 + $0x208] sm:$0xff]
    %v5171 = vld [vmem:[%s23 + $0x210] sm:$0xff]
    %v5172 = vld [vmem:[%s23 + $0x218] sm:$0xff]
    %v5173 = vld [vmem:[%s23 + $0x220] sm:$0xff]
    %v5174 = vld [vmem:[%s23 + $0x228] sm:$0xff]
    %v5175 = vld [vmem:[%s23 + $0x230] sm:$0xff]
    %v5176 = vld [vmem:[%s23 + $0x238] sm:$0xff]
    %v5177 = vld [vmem:[%s23 + $0x240] sm:$0xff]
    %v5178 = vld [vmem:[%s23 + $0x248] sm:$0xff]
    %v5179 = vld [vmem:[%s23 + $0x250] sm:$0xff]
    %v5180 = vld [vmem:[%s23 + $0x258] sm:$0xff]
    %v5181 = vld [vmem:[%s23 + $0x260] sm:$0xff]
    %v5182 = vld [vmem:[%s23 + $0x268] sm:$0xff]
    %v5183 = vld [vmem:[%s23 + $0x270] sm:$0xff]
    %v5184 = vld [vmem:[%s23 + $0x278] sm:$0xff]
    %v5185 = vld [vmem:[%s23 + $0x280] sm:$0xff]
    %v5186 = vld [vmem:[%s23 + $0x288] sm:$0xff]
    %v5187 = vld [vmem:[%s23 + $0x290] sm:$0xff]
    %v5188 = vld [vmem:[%s23 + $0x298] sm:$0xff]
    %v5189 = vld [vmem:[%s23 + $0x2a0] sm:$0xff]
    %v5190 = vld [vmem:[%s23 + $0x2a8] sm:$0xff]
    %v5191 = vld [vmem:[%s23 + $0x2b0] sm:$0xff]
    %v5192 = vld [vmem:[%s23 + $0x2b8] sm:$0xff]
    %v5193 = vld [vmem:[%s23 + $0x2c0] sm:$0xff]
    %v5194 = vld [vmem:[%s23 + $0x2c8] sm:$0xff]
    %v5195 = vld [vmem:[%s23 + $0x2d0] sm:$0xff]
    %v5196 = vld [vmem:[%s23 + $0x2d8] sm:$0xff]
    %v5197 = vld [vmem:[%s23 + $0x2e0] sm:$0xff]
    %v5198 = vld [vmem:[%s23 + $0x2e8] sm:$0xff]
    %v5199 = vld [vmem:[%s23 + $0x2f0] sm:$0xff]
    %v5200 = vld [vmem:[%s23 + $0x2f8] sm:$0xff]
    %v5201 = vld [vmem:[%s23 + $0x300] sm:$0xff]
    %v5202 = vld [vmem:[%s23 + $0x308] sm:$0xff]
    %v5203 = vld [vmem:[%s23 + $0x310] sm:$0xff]
    %v5204 = vld [vmem:[%s23 + $0x318] sm:$0xff]
    %v5205 = vld [vmem:[%s23 + $0x320] sm:$0xff]
    %v5206 = vld [vmem:[%s23 + $0x328] sm:$0xff]
    %v5207 = vld [vmem:[%s23 + $0x330] sm:$0xff]
    %v5208 = vld [vmem:[%s23 + $0x338] sm:$0xff]
    %v5209 = vld [vmem:[%s23 + $0x340] sm:$0xff]
    %v5210 = vld [vmem:[%s23 + $0x348] sm:$0xff]
    %v5211 = vld [vmem:[%s23 + $0x350] sm:$0xff]
    %v5212 = vld [vmem:[%s23 + $0x358] sm:$0xff]
    %v5213 = vld [vmem:[%s23 + $0x360] sm:$0xff]
    %v5214 = vld [vmem:[%s23 + $0x368] sm:$0xff]
    %v5215 = vld [vmem:[%s23 + $0x370] sm:$0xff]
    %v5216 = vld [vmem:[%s23 + $0x378] sm:$0xff]
    %v5217 = vld [vmem:[%s23 + $0x380] sm:$0xff]
    %v5218 = vld [vmem:[%s23 + $0x388] sm:$0xff]
    %v5219 = vld [vmem:[%s23 + $0x390] sm:$0xff]
    %v5220 = vld [vmem:[%s23 + $0x398] sm:$0xff]
    %v5221 = vld [vmem:[%s23 + $0x3a0] sm:$0xff]
    %v5222 = vld [vmem:[%s23 + $0x3a8] sm:$0xff]
    %v5223 = vld [vmem:[%s23 + $0x3b0] sm:$0xff]
    %v5224 = vld [vmem:[%s23 + $0x3b8] sm:$0xff]
    %v5225 = vld [vmem:[%s23 + $0x3c0] sm:$0xff]
    %v5226 = vld [vmem:[%s23 + $0x3c8] sm:$0xff]
    %v5227 = vld [vmem:[%s23 + $0x3d0] sm:$0xff]
    %v5228 = vld [vmem:[%s23 + $0x3d8] sm:$0xff]
    %v5229 = vld [vmem:[%s23 + $0x3e0] sm:$0xff]
    %v5230 = vld [vmem:[%s23 + $0x3e8] sm:$0xff]
    %v5231 = vld [vmem:[%s23 + $0x3f0] sm:$0xff]
    %v5232 = vld [vmem:[%s23 + $0x3f8] sm:$0xff]
    %v5233 = vld [vmem:[%s23 + $0x400] sm:$0xff]
    %v5234 = vld [vmem:[%s23 + $0x408] sm:$0xff]
    %v5235 = vld [vmem:[%s23 + $0x410] sm:$0xff]
    %v5236 = vld [vmem:[%s23 + $0x418] sm:$0xff]
    %v5237 = vld [vmem:[%s23 + $0x420] sm:$0xff]
    %v5238 = vld [vmem:[%s23 + $0x428] sm:$0xff]
    %v5239 = vld [vmem:[%s23 + $0x430] sm:$0xff]
    %v5240 = vld [vmem:[%s23 + $0x438] sm:$0xff]
    %v5241 = vld [vmem:[%s23 + $0x440] sm:$0xff]
    %v5242 = vld [vmem:[%s23 + $0x448] sm:$0xff]
    %v5243 = vld [vmem:[%s23 + $0x450] sm:$0xff]
    %v5244 = vld [vmem:[%s23 + $0x458] sm:$0xff]
    %v5245 = vld [vmem:[%s23 + $0x460] sm:$0xff]
    %v5246 = vld [vmem:[%s23 + $0x468] sm:$0xff]
    %v5247 = vld [vmem:[%s23 + $0x470] sm:$0xff]
    %v5248 = vld [vmem:[%s23 + $0x478] sm:$0xff]
    %v5249 = vld [vmem:[%s25] sm:$0xff]
    %v5250 = vld [vmem:[%s25 + $0x8] sm:$0xff]
    %v5251 = vld [vmem:[%s25 + $0x10] sm:$0xff]
    %v5252 = vld [vmem:[%s25 + $0x18] sm:$0xff]
    %v5253 = vld [vmem:[%s25 + $0x20] sm:$0xff]
    %v5254 = vld [vmem:[%s25 + $0x28] sm:$0xff]
    %v5255 = vld [vmem:[%s25 + $0x30] sm:$0xff]
    %v5256 = vld [vmem:[%s25 + $0x38] sm:$0xff]
    %v5257 = vld [vmem:[%s25 + $0x40] sm:$0xff]
    %v5258 = vld [vmem:[%s25 + $0x48] sm:$0xff]
    %v5259 = vld [vmem:[%s25 + $0x50] sm:$0xff]
    %v5260 = vld [vmem:[%s25 + $0x58] sm:$0xff]
    %v5261 = vld [vmem:[%s25 + $0x60] sm:$0xff]
    %v5262 = vld [vmem:[%s25 + $0x68] sm:$0xff]
    %v5263 = vld [vmem:[%s25 + $0x70] sm:$0xff]
    %v5264 = vld [vmem:[%s25 + $0x78] sm:$0xff]
    %v5265 = vld [vmem:[%s25 + $0x80] sm:$0xff]
    %v5266 = vld [vmem:[%s25 + $0x88] sm:$0xff]
    %v5267 = vld [vmem:[%s25 + $0x90] sm:$0xff]
    %v5268 = vld [vmem:[%s25 + $0x98] sm:$0xff]
    %v5269 = vld [vmem:[%s25 + $0xa0] sm:$0xff]
    %v5270 = vld [vmem:[%s25 + $0xa8] sm:$0xff]
    %v5271 = vld [vmem:[%s25 + $0xb0] sm:$0xff]
    %v5272 = vld [vmem:[%s25 + $0xb8] sm:$0xff]
    %v5273 = vld [vmem:[%s25 + $0xc0] sm:$0xff]
    %v5274 = vld [vmem:[%s25 + $0xc8] sm:$0xff]
    %v5275 = vld [vmem:[%s25 + $0xd0] sm:$0xff]
    %v5276 = vld [vmem:[%s25 + $0xd8] sm:$0xff]
    %v5277 = vld [vmem:[%s25 + $0xe0] sm:$0xff]
    %v5278 = vld [vmem:[%s25 + $0xe8] sm:$0xff]
    %v5279 = vld [vmem:[%s25 + $0xf0] sm:$0xff]
    %v5280 = vld [vmem:[%s25 + $0xf8] sm:$0xff]
    %v5281 = vld [vmem:[%s25 + $0x100] sm:$0xff]
    %v5282 = vld [vmem:[%s25 + $0x108] sm:$0xff]
    %v5283 = vld [vmem:[%s25 + $0x110] sm:$0xff]
    %v5284 = vld [vmem:[%s25 + $0x118] sm:$0xff]
    %v5285 = vld [vmem:[%s25 + $0x120] sm:$0xff]
    %v5286 = vld [vmem:[%s25 + $0x128] sm:$0xff]
    %v5287 = vld [vmem:[%s25 + $0x130] sm:$0xff]
    %v5288 = vld [vmem:[%s25 + $0x138] sm:$0xff]
    %v5289 = vld [vmem:[%s25 + $0x140] sm:$0xff]
    %v5290 = vld [vmem:[%s25 + $0x148] sm:$0xff]
    %v5291 = vld [vmem:[%s25 + $0x150] sm:$0xff]
    %v5292 = vld [vmem:[%s25 + $0x158] sm:$0xff]
    %v5293 = vld [vmem:[%s25 + $0x160] sm:$0xff]
    %v5294 = vld [vmem:[%s25 + $0x168] sm:$0xff]
    %v5295 = vld [vmem:[%s25 + $0x170] sm:$0xff]
    %v5296 = vld [vmem:[%s25 + $0x178] sm:$0xff]
    %v5297 = vld [vmem:[%s25 + $0x180] sm:$0xff]
    %v5298 = vld [vmem:[%s25 + $0x188] sm:$0xff]
    %v5299 = vld [vmem:[%s25 + $0x190] sm:$0xff]
    %v5300 = vld [vmem:[%s25 + $0x198] sm:$0xff]
    %v5301 = vld [vmem:[%s25 + $0x1a0] sm:$0xff]
    %v5302 = vld [vmem:[%s25 + $0x1a8] sm:$0xff]
    %v5303 = vld [vmem:[%s25 + $0x1b0] sm:$0xff]
    %v5304 = vld [vmem:[%s25 + $0x1b8] sm:$0xff]
    %v5305 = vld [vmem:[%s25 + $0x1c0] sm:$0xff]
    %v5306 = vld [vmem:[%s25 + $0x1c8] sm:$0xff]
    %v5307 = vld [vmem:[%s25 + $0x1d0] sm:$0xff]
    %v5308 = vld [vmem:[%s25 + $0x1d8] sm:$0xff]
    %v5309 = vld [vmem:[%s25 + $0x1e0] sm:$0xff]
    %v5310 = vld [vmem:[%s25 + $0x1e8] sm:$0xff]
    %v5311 = vld [vmem:[%s25 + $0x1f0] sm:$0xff]
    %v5312 = vld [vmem:[%s25 + $0x1f8] sm:$0xff]
    %v5313 = vld [vmem:[%s25 + $0x200] sm:$0xff]
    %v5314 = vld [vmem:[%s25 + $0x208] sm:$0xff]
    %v5315 = vld [vmem:[%s25 + $0x210] sm:$0xff]
    %v5316 = vld [vmem:[%s25 + $0x218] sm:$0xff]
    %v5317 = vld [vmem:[%s25 + $0x220] sm:$0xff]
    %v5318 = vld [vmem:[%s25 + $0x228] sm:$0xff]
    %v5319 = vld [vmem:[%s25 + $0x230] sm:$0xff]
    %v5320 = vld [vmem:[%s25 + $0x238] sm:$0xff]
    %v5321 = vld [vmem:[%s25 + $0x240] sm:$0xff]
    %v5322 = vld [vmem:[%s25 + $0x248] sm:$0xff]
    %v5323 = vld [vmem:[%s25 + $0x250] sm:$0xff]
    %v5324 = vld [vmem:[%s25 + $0x258] sm:$0xff]
    %v5325 = vld [vmem:[%s25 + $0x260] sm:$0xff]
    %v5326 = vld [vmem:[%s25 + $0x268] sm:$0xff]
    %v5327 = vld [vmem:[%s25 + $0x270] sm:$0xff]
    %v5328 = vld [vmem:[%s25 + $0x278] sm:$0xff]
    %v5329 = vld [vmem:[%s25 + $0x280] sm:$0xff]
    %v5330 = vld [vmem:[%s25 + $0x288] sm:$0xff]
    %v5331 = vld [vmem:[%s25 + $0x290] sm:$0xff]
    %v5332 = vld [vmem:[%s25 + $0x298] sm:$0xff]
    %v5333 = vld [vmem:[%s25 + $0x2a0] sm:$0xff]
    %v5334 = vld [vmem:[%s25 + $0x2a8] sm:$0xff]
    %v5335 = vld [vmem:[%s25 + $0x2b0] sm:$0xff]
    %v5336 = vld [vmem:[%s25 + $0x2b8] sm:$0xff]
    %v5337 = vld [vmem:[%s25 + $0x2c0] sm:$0xff]
    %v5338 = vld [vmem:[%s25 + $0x2c8] sm:$0xff]
    %v5339 = vld [vmem:[%s25 + $0x2d0] sm:$0xff]
    %v5340 = vld [vmem:[%s25 + $0x2d8] sm:$0xff]
    %v5341 = vld [vmem:[%s25 + $0x2e0] sm:$0xff]
    %v5342 = vld [vmem:[%s25 + $0x2e8] sm:$0xff]
    %v5343 = vld [vmem:[%s25 + $0x2f0] sm:$0xff]
    %v5344 = vld [vmem:[%s25 + $0x2f8] sm:$0xff]
    %v5345 = vld [vmem:[%s25 + $0x300] sm:$0xff]
    %v5346 = vld [vmem:[%s25 + $0x308] sm:$0xff]
    %v5347 = vld [vmem:[%s25 + $0x310] sm:$0xff]
    %v5348 = vld [vmem:[%s25 + $0x318] sm:$0xff]
    %v5349 = vld [vmem:[%s25 + $0x320] sm:$0xff]
    %v5350 = vld [vmem:[%s25 + $0x328] sm:$0xff]
    %v5351 = vld [vmem:[%s25 + $0x330] sm:$0xff]
    %v5352 = vld [vmem:[%s25 + $0x338] sm:$0xff]
    %v5353 = vld [vmem:[%s25 + $0x340] sm:$0xff]
    %v5354 = vld [vmem:[%s25 + $0x348] sm:$0xff]
    %v5355 = vld [vmem:[%s25 + $0x350] sm:$0xff]
    %v5356 = vld [vmem:[%s25 + $0x358] sm:$0xff]
    %v5357 = vld [vmem:[%s25 + $0x360] sm:$0xff]
    %v5358 = vld [vmem:[%s25 + $0x368] sm:$0xff]
    %v5359 = vld [vmem:[%s25 + $0x370] sm:$0xff]
    %v5360 = vld [vmem:[%s25 + $0x378] sm:$0xff]
    %v5361 = vld [vmem:[%s25 + $0x380] sm:$0xff]
    %v5362 = vld [vmem:[%s25 + $0x388] sm:$0xff]
    %v5363 = vld [vmem:[%s25 + $0x390] sm:$0xff]
    %v5364 = vld [vmem:[%s25 + $0x398] sm:$0xff]
    %v5365 = vld [vmem:[%s25 + $0x3a0] sm:$0xff]
    %v5366 = vld [vmem:[%s25 + $0x3a8] sm:$0xff]
    %v5367 = vld [vmem:[%s25 + $0x3b0] sm:$0xff]
    %v5368 = vld [vmem:[%s25 + $0x3b8] sm:$0xff]
    %v5369 = vld [vmem:[%s25 + $0x3c0] sm:$0xff]
    %v5370 = vld [vmem:[%s25 + $0x3c8] sm:$0xff]
    %v5371 = vld [vmem:[%s25 + $0x3d0] sm:$0xff]
    %v5372 = vld [vmem:[%s25 + $0x3d8] sm:$0xff]
    %v5373 = vld [vmem:[%s25 + $0x3e0] sm:$0xff]
    %v5374 = vld [vmem:[%s25 + $0x3e8] sm:$0xff]
    %v5375 = vld [vmem:[%s25 + $0x3f0] sm:$0xff]
    %v5376 = vld [vmem:[%s25 + $0x3f8] sm:$0xff]
    %v5377 = vld [vmem:[%s25 + $0x400] sm:$0xff]
    %v5378 = vld [vmem:[%s25 + $0x408] sm:$0xff]
    %v5379 = vld [vmem:[%s25 + $0x410] sm:$0xff]
    %v5380 = vld [vmem:[%s25 + $0x418] sm:$0xff]
    %v5381 = vld [vmem:[%s25 + $0x420] sm:$0xff]
    %v5382 = vld [vmem:[%s25 + $0x428] sm:$0xff]
    %v5383 = vld [vmem:[%s25 + $0x430] sm:$0xff]
    %v5384 = vld [vmem:[%s25 + $0x438] sm:$0xff]
    %v5385 = vld [vmem:[%s25 + $0x440] sm:$0xff]
    %v5386 = vld [vmem:[%s25 + $0x448] sm:$0xff]
    %v5387 = vld [vmem:[%s25 + $0x450] sm:$0xff]
    %v5388 = vld [vmem:[%s25 + $0x458] sm:$0xff]
    %v5389 = vld [vmem:[%s25 + $0x460] sm:$0xff]
    %v5390 = vld [vmem:[%s25 + $0x468] sm:$0xff]
    %v5391 = vld [vmem:[%s25 + $0x470] sm:$0xff]
    %v5392 = vld [vmem:[%s25 + $0x478] sm:$0xff]
    %5393 = vmatprep.subr.mxu0 %v5250
    %5394 = vmatpush1.msra.mxu0 %v5249
    %5395 = vmatprep.subr.mxu0 %v5262
    %5396 = vmatpush1.msra.mxu0 %v5261
    %5397 = vmatprep.subr.mxu0 %v5274
    %5398 = vmatpush1.msra.mxu0 %v5273
    %5399 = vmatprep.subr.mxu0 %v5286
    %5400 = vmatpush1.msra.mxu0 %v5285
    %5401 = vmatprep.subr.mxu0 %v5298
    %5402 = vmatpush1.msra.mxu0 %v5297
    %5403 = vmatprep.subr.mxu0 %v5310
    %5404 = vmatpush1.msra.mxu0 %v5309
    %5405 = vmatprep.subr.mxu0 %v5322
    %5406 = vmatpush1.msra.mxu0 %v5321
    %5407 = vmatprep.subr.mxu0 %v5334
    %5408 = vmatpush1.msra.mxu0 %v5333
    %5409 = vmatprep.subr.mxu0 %v5346
    %5410 = vmatpush1.msra.mxu0 %v5345
    %5411 = vmatprep.subr.mxu0 %v5358
    %5412 = vmatpush1.msra.mxu0 %v5357
    %5413 = vmatprep.subr.mxu0 %v5370
    %5414 = vmatpush1.msra.mxu0 %v5369
    %5415 = vmatprep.subr.mxu0 %v5382
    %5416 = vmatpush1.msra.mxu0 %v5381
    %5417 = vmatprep.subr.mxu0 0.0
    %5418 = vmatpush1.msra.mxu0 0.0
    %5419 = vmatprep.subr.mxu0 0.0
    %5420 = vmatpush1.msra.mxu0 0.0
    %5421 = vmatprep.subr.mxu0 0.0
    %5422 = vmatpush1.msra.mxu0 0.0
    %5423 = vmatprep.subr.mxu0 0.0
    %5424 = vmatpush1.msra.mxu0 0.0
    %5425 = vmatprep.subr.mxu0 0.0
    %5426 = vmatpush1.msra.mxu0 0.0
    %5427 = vmatprep.subr.mxu0 0.0
    %5428 = vmatpush1.msra.mxu0 0.0
    %5429 = vmatprep.subr.mxu0 0.0
    %5430 = vmatpush1.msra.mxu0 0.0
    %5431 = vmatprep.subr.mxu0 0.0
    %5432 = vmatpush1.msra.mxu0 0.0
    %5433 = vmatprep.subr.mxu0 0.0
    %5434 = vmatpush1.msra.mxu0 0.0
    %5435 = vmatprep.subr.mxu0 0.0
    %5436 = vmatpush1.msra.mxu0 0.0
    %5437 = vmatprep.subr.mxu0 0.0
    %5438 = vmatpush1.msra.mxu0 0.0
    %5439 = vmatprep.subr.mxu0 0.0
    %5440 = vmatpush1.msra.mxu0 0.0
    %5441 = vmatprep.subr.mxu0 0.0
    %5442 = vmatpush1.msra.mxu0 0.0
    %5443 = vmatprep.subr.mxu0 0.0
    %5444 = vmatpush1.msra.mxu0 0.0
    %5445 = vmatprep.subr.mxu0 0.0
    %5446 = vmatpush1.msra.mxu0 0.0
    %5447 = vmatprep.subr.mxu0 0.0
    %5448 = vmatpush1.msra.mxu0 0.0
    %5449 = vmatprep.subr.mxu0 0.0
    %5450 = vmatpush1.msra.mxu0 0.0
    %5451 = vmatprep.subr.mxu0 0.0
    %5452 = vmatpush1.msra.mxu0 0.0
    %5453 = vmatprep.subr.mxu0 0.0
    %5454 = vmatpush1.msra.mxu0 0.0
    %5455 = vmatprep.subr.mxu0 0.0
    %5456 = vmatpush1.msra.mxu0 0.0
    %5457 = vmatprep.mubr.f32.mxu0 0.0
    %5458 = vmatmul.mubr.f32.gmra.mrb[0].mxu0 %v4244
    %v5459 = vpop.f32.mrb[0].mxu0
    %v5460 = vadd.f32 0.0, %v5459
    %v5461 = vpop.f32.mrb[0].mxu0
    %v5462 = vadd.f32 0.0, %v5461
    %5463 = vmatprep.mubr.f32.mxu0 0.0
    %5464 = vmatmul.mubr.f32.gmra.mrb[0].mxu0 %v4246
    %v5465 = vpop.f32.mrb[0].mxu0
    %v5466 = vadd.f32 0.0, %v5465
    %v5467 = vpop.f32.mrb[0].mxu0
    %v5468 = vadd.f32 0.0, %v5467
    %5469 = vdwg.mxu0
    %5470 = vmatprep.subr.mxu0 %v5252
    %5471 = vmatpush1.msra.mxu0 %v5251
    %5472 = vmatprep.subr.mxu0 %v5264
    %5473 = vmatpush1.msra.mxu0 %v5263
    %5474 = vmatprep.subr.mxu0 %v5276
    %5475 = vmatpush1.msra.mxu0 %v5275
    %5476 = vmatprep.subr.mxu0 %v5288
    %5477 = vmatpush1.msra.mxu0 %v5287
    %5478 = vmatprep.subr.mxu0 %v5300
    %5479 = vmatpush1.msra.mxu0 %v5299
    %5480 = vmatprep.subr.mxu0 %v5312
    %5481 = vmatpush1.msra.mxu0 %v5311
    %5482 = vmatprep.subr.mxu0 %v5324
    %5483 = vmatpush1.msra.mxu0 %v5323
    %5484 = vmatprep.subr.mxu0 %v5336
    %5485 = vmatpush1.msra.mxu0 %v5335
    %5486 = vmatprep.subr.mxu0 %v5348
    %5487 = vmatpush1.msra.mxu0 %v5347
    %5488 = vmatprep.subr.mxu0 %v5360
    %5489 = vmatpush1.msra.mxu0 %v5359
    %5490 = vmatprep.subr.mxu0 %v5372
    %5491 = vmatpush1.msra.mxu0 %v5371
    %5492 = vmatprep.subr.mxu0 %v5384
    %5493 = vmatpush1.msra.mxu0 %v5383
    %5494 = vmatprep.subr.mxu0 0.0
    %5495 = vmatpush1.msra.mxu0 0.0
    %5496 = vmatprep.subr.mxu0 0.0
    %5497 = vmatpush1.msra.mxu0 0.0
    %5498 = vmatprep.subr.mxu0 0.0
    %5499 = vmatpush1.msra.mxu0 0.0
    %5500 = vmatprep.subr.mxu0 0.0
    %5501 = vmatpush1.msra.mxu0 0.0
    %5502 = vmatprep.subr.mxu0 0.0
    %5503 = vmatpush1.msra.mxu0 0.0
    %5504 = vmatprep.subr.mxu0 0.0
    %5505 = vmatpush1.msra.mxu0 0.0
    %5506 = vmatprep.subr.mxu0 0.0
    %5507 = vmatpush1.msra.mxu0 0.0
    %5508 = vmatprep.subr.mxu0 0.0
    %5509 = vmatpush1.msra.mxu0 0.0
    %5510 = vmatprep.subr.mxu0 0.0
    %5511 = vmatpush1.msra.mxu0 0.0
    %5512 = vmatprep.subr.mxu0 0.0
    %5513 = vmatpush1.msra.mxu0 0.0
    %5514 = vmatprep.subr.mxu0 0.0
    %5515 = vmatpush1.msra.mxu0 0.0
    %5516 = vmatprep.subr.mxu0 0.0
    %5517 = vmatpush1.msra.mxu0 0.0
    %5518 = vmatprep.subr.mxu0 0.0
    %5519 = vmatpush1.msra.mxu0 0.0
    %5520 = vmatprep.subr.mxu0 0.0
    %5521 = vmatpush1.msra.mxu0 0.0
    %5522 = vmatprep.subr.mxu0 0.0
    %5523 = vmatpush1.msra.mxu0 0.0
    %5524 = vmatprep.subr.mxu0 0.0
    %5525 = vmatpush1.msra.mxu0 0.0
    %5526 = vmatprep.subr.mxu0 0.0
    %5527 = vmatpush1.msra.mxu0 0.0
    %5528 = vmatprep.subr.mxu0 0.0
    %5529 = vmatpush1.msra.mxu0 0.0
    %5530 = vmatprep.subr.mxu0 0.0
    %5531 = vmatpush1.msra.mxu0 0.0
    %5532 = vmatprep.subr.mxu0 0.0
    %5533 = vmatpush1.msra.mxu0 0.0
    %5534 = vmatprep.mubr.f32.mxu0 0.0
    %5535 = vmatmul.mubr.f32.gmra.mrb[0].mxu0 %v4244
    %v5536 = vpop.f32.mrb[0].mxu0
    %v5537 = vadd.f32 0.0, %v5536
    %v5538 = vpop.f32.mrb[0].mxu0
    %v5539 = vadd.f32 0.0, %v5538
    %5540 = vmatprep.mubr.f32.mxu0 0.0
    %5541 = vmatmul.mubr.f32.gmra.mrb[0].mxu0 %v4246
    %v5542 = vpop.f32.mrb[0].mxu0
    %v5543 = vadd.f32 0.0, %v5542
    %v5544 = vpop.f32.mrb[0].mxu0
    %v5545 = vadd.f32 0.0, %v5544
    %5546 = vdwg.mxu0
    %5547 = vmatprep.subr.mxu0 %v5254
    %5548 = vmatpush1.msra.mxu0 %v5253
    %5549 = vmatprep.subr.mxu0 %v5266
    %5550 = vmatpush1.msra.mxu0 %v5265
    %5551 = vmatprep.subr.mxu0 %v5278
    %5552 = vmatpush1.msra.mxu0 %v5277
    %5553 = vmatprep.subr.mxu0 %v5290
    %5554 = vmatpush1.msra.mxu0 %v5289
    %5555 = vmatprep.subr.mxu0 %v5302
    %5556 = vmatpush1.msra.mxu0 %v5301
    %5557 = vmatprep.subr.mxu0 %v5314
    %5558 = vmatpush1.msra.mxu0 %v5313
    %5559 = vmatprep.subr.mxu0 %v5326
    %5560 = vmatpush1.msra.mxu0 %v5325
    %5561 = vmatprep.subr.mxu0 %v5338
    %5562 = vmatpush1.msra.mxu0 %v5337
    %5563 = vmatprep.subr.mxu0 %v5350
    %5564 = vmatpush1.msra.mxu0 %v5349
    %5565 = vmatprep.subr.mxu0 %v5362
    %5566 = vmatpush1.msra.mxu0 %v5361
    %5567 = vmatprep.subr.mxu0 %v5374
    %5568 = vmatpush1.msra.mxu0 %v5373
    %5569 = vmatprep.subr.mxu0 %v5386
    %5570 = vmatpush1.msra.mxu0 %v5385
    %5571 = vmatprep.subr.mxu0 0.0
    %5572 = vmatpush1.msra.mxu0 0.0
    %5573 = vmatprep.subr.mxu0 0.0
    %5574 = vmatpush1.msra.mxu0 0.0
    %5575 = vmatprep.subr.mxu0 0.0
    %5576 = vmatpush1.msra.mxu0 0.0
    %5577 = vmatprep.subr.mxu0 0.0
    %5578 = vmatpush1.msra.mxu0 0.0
    %5579 = vmatprep.subr.mxu0 0.0
    %5580 = vmatpush1.msra.mxu0 0.0
    %5581 = vmatprep.subr.mxu0 0.0
    %5582 = vmatpush1.msra.mxu0 0.0
    %5583 = vmatprep.subr.mxu0 0.0
    %5584 = vmatpush1.msra.mxu0 0.0
    %5585 = vmatprep.subr.mxu0 0.0
    %5586 = vmatpush1.msra.mxu0 0.0
    %5587 = vmatprep.subr.mxu0 0.0
    %5588 = vmatpush1.msra.mxu0 0.0
    %5589 = vmatprep.subr.mxu0 0.0
    %5590 = vmatpush1.msra.mxu0 0.0
    %5591 = vmatprep.subr.mxu0 0.0
    %5592 = vmatpush1.msra.mxu0 0.0
    %5593 = vmatprep.subr.mxu0 0.0
    %5594 = vmatpush1.msra.mxu0 0.0
    %5595 = vmatprep.subr.mxu0 0.0
    %5596 = vmatpush1.msra.mxu0 0.0
    %5597 = vmatprep.subr.mxu0 0.0
    %5598 = vmatpush1.msra.mxu0 0.0
    %5599 = vmatprep.subr.mxu0 0.0
    %5600 = vmatpush1.msra.mxu0 0.0
    %5601 = vmatprep.subr.mxu0 0.0
    %5602 = vmatpush1.msra.mxu0 0.0
    %5603 = vmatprep.subr.mxu0 0.0
    %5604 = vmatpush1.msra.mxu0 0.0
    %5605 = vmatprep.subr.mxu0 0.0
    %5606 = vmatpush1.msra.mxu0 0.0
    %5607 = vmatprep.subr.mxu0 0.0
    %5608 = vmatpush1.msra.mxu0 0.0
    %5609 = vmatprep.subr.mxu0 0.0
    %5610 = vmatpush1.msra.mxu0 0.0
    %5611 = vmatprep.mubr.f32.mxu0 0.0
    %5612 = vmatmul.mubr.f32.gmra.mrb[0].mxu0 %v4244
    %v5613 = vpop.f32.mrb[0].mxu0
    %v5614 = vadd.f32 0.0, %v5613
    %v5615 = vpop.f32.mrb[0].mxu0
    %v5616 = vadd.f32 0.0, %v5615
    %5617 = vmatprep.mubr.f32.mxu0 0.0
    %5618 = vmatmul.mubr.f32.gmra.mrb[0].mxu0 %v4246
    %v5619 = vpop.f32.mrb[0].mxu0
    %v5620 = vadd.f32 0.0, %v5619
    %v5621 = vpop.f32.mrb[0].mxu0
    %v5622 = vadd.f32 0.0, %v5621
    %5623 = vdwg.mxu0
    %5624 = vmatprep.subr.mxu0 %v5256
    %5625 = vmatpush1.msra.mxu0 %v5255
    %5626 = vmatprep.subr.mxu0 %v5268
    %5627 = vmatpush1.msra.mxu0 %v5267
    %5628 = vmatprep.subr.mxu0 %v5280
    %5629 = vmatpush1.msra.mxu0 %v5279
    %5630 = vmatprep.subr.mxu0 %v5292
    %5631 = vmatpush1.msra.mxu0 %v5291
    %5632 = vmatprep.subr.mxu0 %v5304
    %5633 = vmatpush1.msra.mxu0 %v5303
    %5634 = vmatprep.subr.mxu0 %v5316
    %5635 = vmatpush1.msra.mxu0 %v5315
    %5636 = vmatprep.subr.mxu0 %v5328
    %5637 = vmatpush1.msra.mxu0 %v5327
    %5638 = vmatprep.subr.mxu0 %v5340
    %5639 = vmatpush1.msra.mxu0 %v5339
    %5640 = vmatprep.subr.mxu0 %v5352
    %5641 = vmatpush1.msra.mxu0 %v5351
    %5642 = vmatprep.subr.mxu0 %v5364
    %5643 = vmatpush1.msra.mxu0 %v5363
    %5644 = vmatprep.subr.mxu0 %v5376
    %5645 = vmatpush1.msra.mxu0 %v5375
    %5646 = vmatprep.subr.mxu0 %v5388
    %5647 = vmatpush1.msra.mxu0 %v5387
    %5648 = vmatprep.subr.mxu0 0.0
    %5649 = vmatpush1.msra.mxu0 0.0
    %5650 = vmatprep.subr.mxu0 0.0
    %5651 = vmatpush1.msra.mxu0 0.0
    %5652 = vmatprep.subr.mxu0 0.0
    %5653 = vmatpush1.msra.mxu0 0.0
    %5654 = vmatprep.subr.mxu0 0.0
    %5655 = vmatpush1.msra.mxu0 0.0
    %5656 = vmatprep.subr.mxu0 0.0
    %5657 = vmatpush1.msra.mxu0 0.0
    %5658 = vmatprep.subr.mxu0 0.0
    %5659 = vmatpush1.msra.mxu0 0.0
    %5660 = vmatprep.subr.mxu0 0.0
    %5661 = vmatpush1.msra.mxu0 0.0
    %5662 = vmatprep.subr.mxu0 0.0
    %5663 = vmatpush1.msra.mxu0 0.0
    %5664 = vmatprep.subr.mxu0 0.0
    %5665 = vmatpush1.msra.mxu0 0.0
    %5666 = vmatprep.subr.mxu0 0.0
    %5667 = vmatpush1.msra.mxu0 0.0
    %5668 = vmatprep.subr.mxu0 0.0
    %5669 = vmatpush1.msra.mxu0 0.0
    %5670 = vmatprep.subr.mxu0 0.0
    %5671 = vmatpush1.msra.mxu0 0.0
    %5672 = vmatprep.subr.mxu0 0.0
    %5673 = vmatpush1.msra.mxu0 0.0
    %5674 = vmatprep.subr.mxu0 0.0
    %5675 = vmatpush1.msra.mxu0 0.0
    %5676 = vmatprep.subr.mxu0 0.0
    %5677 = vmatpush1.msra.mxu0 0.0
    %5678 = vmatprep.subr.mxu0 0.0
    %5679 = vmatpush1.msra.mxu0 0.0
    %5680 = vmatprep.subr.mxu0 0.0
    %5681 = vmatpush1.msra.mxu0 0.0
    %5682 = vmatprep.subr.mxu0 0.0
    %5683 = vmatpush1.msra.mxu0 0.0
    %5684 = vmatprep.subr.mxu0 0.0
    %5685 = vmatpush1.msra.mxu0 0.0
    %5686 = vmatprep.subr.mxu0 0.0
    %5687 = vmatpush1.msra.mxu0 0.0
    %5688 = vmatprep.mubr.f32.mxu0 0.0
    %5689 = vmatmul.mubr.f32.gmra.mrb[0].mxu0 %v4244
    %v5690 = vpop.f32.mrb[0].mxu0
    %v5691 = vadd.f32 0.0, %v5690
    %v5692 = vpop.f32.mrb[0].mxu0
    %v5693 = vadd.f32 0.0, %v5692
    %5694 = vmatprep.mubr.f32.mxu0 0.0
    %5695 = vmatmul.mubr.f32.gmra.mrb[0].mxu0 %v4246
    %v5696 = vpop.f32.mrb[0].mxu0
    %v5697 = vadd.f32 0.0, %v5696
    %v5698 = vpop.f32.mrb[0].mxu0
    %v5699 = vadd.f32 0.0, %v5698
    %5700 = vdwg.mxu0
    %5701 = vmatprep.subr.mxu0 %v5258
    %5702 = vmatpush1.msra.mxu0 %v5257
    %5703 = vmatprep.subr.mxu0 %v5270
    %5704 = vmatpush1.msra.mxu0 %v5269
    %5705 = vmatprep.subr.mxu0 %v5282
    %5706 = vmatpush1.msra.mxu0 %v5281
    %5707 = vmatprep.subr.mxu0 %v5294
    %5708 = vmatpush1.msra.mxu0 %v5293
    %5709 = vmatprep.subr.mxu0 %v5306
    %5710 = vmatpush1.msra.mxu0 %v5305
    %5711 = vmatprep.subr.mxu0 %v5318
    %5712 = vmatpush1.msra.mxu0 %v5317
    %5713 = vmatprep.subr.mxu0 %v5330
    %5714 = vmatpush1.msra.mxu0 %v5329
    %5715 = vmatprep.subr.mxu0 %v5342
    %5716 = vmatpush1.msra.mxu0 %v5341
    %5717 = vmatprep.subr.mxu0 %v5354
    %5718 = vmatpush1.msra.mxu0 %v5353
    %5719 = vmatprep.subr.mxu0 %v5366
    %5720 = vmatpush1.msra.mxu0 %v5365
    %5721 = vmatprep.subr.mxu0 %v5378
    %5722 = vmatpush1.msra.mxu0 %v5377
    %5723 = vmatprep.subr.mxu0 %v5390
    %5724 = vmatpush1.msra.mxu0 %v5389
    %5725 = vmatprep.subr.mxu0 0.0
    %5726 = vmatpush1.msra.mxu0 0.0
    %5727 = vmatprep.subr.mxu0 0.0
    %5728 = vmatpush1.msra.mxu0 0.0
    %5729 = vmatprep.subr.mxu0 0.0
    %5730 = vmatpush1.msra.mxu0 0.0
    %5731 = vmatprep.subr.mxu0 0.0
    %5732 = vmatpush1.msra.mxu0 0.0
    %5733 = vmatprep.subr.mxu0 0.0
    %5734 = vmatpush1.msra.mxu0 0.0
    %5735 = vmatprep.subr.mxu0 0.0
    %5736 = vmatpush1.msra.mxu0 0.0
    %5737 = vmatprep.subr.mxu0 0.0
    %5738 = vmatpush1.msra.mxu0 0.0
    %5739 = vmatprep.subr.mxu0 0.0
    %5740 = vmatpush1.msra.mxu0 0.0
    %5741 = vmatprep.subr.mxu0 0.0
    %5742 = vmatpush1.msra.mxu0 0.0
    %5743 = vmatprep.subr.mxu0 0.0
    %5744 = vmatpush1.msra.mxu0 0.0
    %5745 = vmatprep.subr.mxu0 0.0
    %5746 = vmatpush1.msra.mxu0 0.0
    %5747 = vmatprep.subr.mxu0 0.0
    %5748 = vmatpush1.msra.mxu0 0.0
    %5749 = vmatprep.subr.mxu0 0.0
    %5750 = vmatpush1.msra.mxu0 0.0
    %5751 = vmatprep.subr.mxu0 0.0
    %5752 = vmatpush1.msra.mxu0 0.0
    %5753 = vmatprep.subr.mxu0 0.0
    %5754 = vmatpush1.msra.mxu0 0.0
    %5755 = vmatprep.subr.mxu0 0.0
    %5756 = vmatpush1.msra.mxu0 0.0
    %5757 = vmatprep.subr.mxu0 0.0
    %5758 = vmatpush1.msra.mxu0 0.0
    %5759 = vmatprep.subr.mxu0 0.0
    %5760 = vmatpush1.msra.mxu0 0.0
    %5761 = vmatprep.subr.mxu0 0.0
    %5762 = vmatpush1.msra.mxu0 0.0
    %5763 = vmatprep.subr.mxu0 0.0
    %5764 = vmatpush1.msra.mxu0 0.0
    %5765 = vmatprep.mubr.f32.mxu0 0.0
    %5766 = vmatmul.mubr.f32.gmra.mrb[0].mxu0 %v4244
    %v5767 = vpop.f32.mrb[0].mxu0
    %v5768 = vadd.f32 0.0, %v5767
    %v5769 = vpop.f32.mrb[0].mxu0
    %v5770 = vadd.f32 0.0, %v5769
    %5771 = vmatprep.mubr.f32.mxu0 0.0
    %5772 = vmatmul.mubr.f32.gmra.mrb[0].mxu0 %v4246
    %v5773 = vpop.f32.mrb[0].mxu0
    %v5774 = vadd.f32 0.0, %v5773
    %v5775 = vpop.f32.mrb[0].mxu0
    %v5776 = vadd.f32 0.0, %v5775
    %5777 = vdwg.mxu0
    %5778 = vmatprep.subr.mxu0 %v5260
    %5779 = vmatpush1.msra.mxu0 %v5259
    %5780 = vmatprep.subr.mxu0 %v5272
    %5781 = vmatpush1.msra.mxu0 %v5271
    %5782 = vmatprep.subr.mxu0 %v5284
    %5783 = vmatpush1.msra.mxu0 %v5283
    %5784 = vmatprep.subr.mxu0 %v5296
    %5785 = vmatpush1.msra.mxu0 %v5295
    %5786 = vmatprep.subr.mxu0 %v5308
    %5787 = vmatpush1.msra.mxu0 %v5307
    %5788 = vmatprep.subr.mxu0 %v5320
    %5789 = vmatpush1.msra.mxu0 %v5319
    %5790 = vmatprep.subr.mxu0 %v5332
    %5791 = vmatpush1.msra.mxu0 %v5331
    %5792 = vmatprep.subr.mxu0 %v5344
    %5793 = vmatpush1.msra.mxu0 %v5343
    %5794 = vmatprep.subr.mxu0 %v5356
    %5795 = vmatpush1.msra.mxu0 %v5355
    %5796 = vmatprep.subr.mxu0 %v5368
    %5797 = vmatpush1.msra.mxu0 %v5367
    %5798 = vmatprep.subr.mxu0 %v5380
    %5799 = vmatpush1.msra.mxu0 %v5379
    %5800 = vmatprep.subr.mxu0 %v5392
    %5801 = vmatpush1.msra.mxu0 %v5391
    %5802 = vmatprep.subr.mxu0 0.0
    %5803 = vmatpush1.msra.mxu0 0.0
    %5804 = vmatprep.subr.mxu0 0.0
    %5805 = vmatpush1.msra.mxu0 0.0
    %5806 = vmatprep.subr.mxu0 0.0
    %5807 = vmatpush1.msra.mxu0 0.0
    %5808 = vmatprep.subr.mxu0 0.0
    %5809 = vmatpush1.msra.mxu0 0.0
    %5810 = vmatprep.subr.mxu0 0.0
    %5811 = vmatpush1.msra.mxu0 0.0
    %5812 = vmatprep.subr.mxu0 0.0
    %5813 = vmatpush1.msra.mxu0 0.0
    %5814 = vmatprep.subr.mxu0 0.0
    %5815 = vmatpush1.msra.mxu0 0.0
    %5816 = vmatprep.subr.mxu0 0.0
    %5817 = vmatpush1.msra.mxu0 0.0
    %5818 = vmatprep.subr.mxu0 0.0
    %5819 = vmatpush1.msra.mxu0 0.0
    %5820 = vmatprep.subr.mxu0 0.0
    %5821 = vmatpush1.msra.mxu0 0.0
    %5822 = vmatprep.subr.mxu0 0.0
    %5823 = vmatpush1.msra.mxu0 0.0
    %5824 = vmatprep.subr.mxu0 0.0
    %5825 = vmatpush1.msra.mxu0 0.0
    %5826 = vmatprep.subr.mxu0 0.0
    %5827 = vmatpush1.msra.mxu0 0.0
    %5828 = vmatprep.subr.mxu0 0.0
    %5829 = vmatpush1.msra.mxu0 0.0
    %5830 = vmatprep.subr.mxu0 0.0
    %5831 = vmatpush1.msra.mxu0 0.0
    %5832 = vmatprep.subr.mxu0 0.0
    %5833 = vmatpush1.msra.mxu0 0.0
    %5834 = vmatprep.subr.mxu0 0.0
    %5835 = vmatpush1.msra.mxu0 0.0
    %5836 = vmatprep.subr.mxu0 0.0
    %5837 = vmatpush1.msra.mxu0 0.0
    %5838 = vmatprep.subr.mxu0 0.0
    %5839 = vmatpush1.msra.mxu0 0.0
    %5840 = vmatprep.subr.mxu0 0.0
    %5841 = vmatpush1.msra.mxu0 0.0
    %5842 = vmatprep.mubr.f32.mxu0 0.0
    %5843 = vmatmul.mubr.f32.gmra.mrb[0].mxu0 %v4244
    %v5844 = vpop.f32.mrb[0].mxu0
    %v5845 = vadd.f32 0.0, %v5844
    %v5846 = vpop.f32.mrb[0].mxu0
    %v5847 = vadd.f32 0.0, %v5846
    %5848 = vmatprep.mubr.f32.mxu0 0.0
    %5849 = vmatmul.mubr.f32.gmra.mrb[0].mxu0 %v4246
    %v5850 = vpop.f32.mrb[0].mxu0
    %v5851 = vadd.f32 0.0, %v5850
    %v5852 = vpop.f32.mrb[0].mxu0
    %v5853 = vadd.f32 0.0, %v5852
    %5854 = vdwg.mxu0
    %5855 = vmatprep.subr.mxu0 %v5106
    %5856 = vmatpush1.msra.mxu0 %v5105
    %5857 = vmatprep.subr.mxu0 %v5118
    %5858 = vmatpush1.msra.mxu0 %v5117
    %5859 = vmatprep.subr.mxu0 %v5130
    %5860 = vmatpush1.msra.mxu0 %v5129
    %5861 = vmatprep.subr.mxu0 %v5142
    %5862 = vmatpush1.msra.mxu0 %v5141
    %5863 = vmatprep.subr.mxu0 %v5154
    %5864 = vmatpush1.msra.mxu0 %v5153
    %5865 = vmatprep.subr.mxu0 %v5166
    %5866 = vmatpush1.msra.mxu0 %v5165
    %5867 = vmatprep.subr.mxu0 %v5178
    %5868 = vmatpush1.msra.mxu0 %v5177
    %5869 = vmatprep.subr.mxu0 %v5190
    %5870 = vmatpush1.msra.mxu0 %v5189
    %5871 = vmatprep.subr.mxu0 %v5202
    %5872 = vmatpush1.msra.mxu0 %v5201
    %5873 = vmatprep.subr.mxu0 %v5214
    %5874 = vmatpush1.msra.mxu0 %v5213
    %5875 = vmatprep.subr.mxu0 %v5226
    %5876 = vmatpush1.msra.mxu0 %v5225
    %5877 = vmatprep.subr.mxu0 %v5238
    %5878 = vmatpush1.msra.mxu0 %v5237
    %5879 = vmatprep.subr.mxu0 0.0
    %5880 = vmatpush1.msra.mxu0 0.0
    %5881 = vmatprep.subr.mxu0 0.0
    %5882 = vmatpush1.msra.mxu0 0.0
    %5883 = vmatprep.subr.mxu0 0.0
    %5884 = vmatpush1.msra.mxu0 0.0
    %5885 = vmatprep.subr.mxu0 0.0
    %5886 = vmatpush1.msra.mxu0 0.0
    %5887 = vmatprep.subr.mxu0 0.0
    %5888 = vmatpush1.msra.mxu0 0.0
    %5889 = vmatprep.subr.mxu0 0.0
    %5890 = vmatpush1.msra.mxu0 0.0
    %5891 = vmatprep.subr.mxu0 0.0
    %5892 = vmatpush1.msra.mxu0 0.0
    %5893 = vmatprep.subr.mxu0 0.0
    %5894 = vmatpush1.msra.mxu0 0.0
    %5895 = vmatprep.subr.mxu0 0.0
    %5896 = vmatpush1.msra.mxu0 0.0
    %5897 = vmatprep.subr.mxu0 0.0
    %5898 = vmatpush1.msra.mxu0 0.0
    %5899 = vmatprep.subr.mxu0 0.0
    %5900 = vmatpush1.msra.mxu0 0.0
    %5901 = vmatprep.subr.mxu0 0.0
    %5902 = vmatpush1.msra.mxu0 0.0
    %5903 = vmatprep.subr.mxu0 0.0
    %5904 = vmatpush1.msra.mxu0 0.0
    %5905 = vmatprep.subr.mxu0 0.0
    %5906 = vmatpush1.msra.mxu0 0.0
    %5907 = vmatprep.subr.mxu0 0.0
    %5908 = vmatpush1.msra.mxu0 0.0
    %5909 = vmatprep.subr.mxu0 0.0
    %5910 = vmatpush1.msra.mxu0 0.0
    %5911 = vmatprep.subr.mxu0 0.0
    %5912 = vmatpush1.msra.mxu0 0.0
    %5913 = vmatprep.subr.mxu0 0.0
    %5914 = vmatpush1.msra.mxu0 0.0
    %5915 = vmatprep.subr.mxu0 0.0
    %5916 = vmatpush1.msra.mxu0 0.0
    %5917 = vmatprep.subr.mxu0 0.0
    %5918 = vmatpush1.msra.mxu0 0.0
    %5919 = vmatprep.mubr.f32.mxu0 0.0
    %5920 = vmatmul.mubr.f32.gmra.mrb[0].mxu0 %v4329
    %v5921 = vpop.f32.mrb[0].mxu0
    %v5922 = vadd.f32 %v5460, %v5921
    %v5923 = vpop.f32.mrb[0].mxu0
    %v5924 = vadd.f32 %v5462, %v5923
    %5925 = vmatprep.mubr.f32.mxu0 0.0
    %5926 = vmatmul.mubr.f32.gmra.mrb[0].mxu0 %v4331
    %v5927 = vpop.f32.mrb[0].mxu0
    %v5928 = vadd.f32 %v5466, %v5927
    %v5929 = vpop.f32.mrb[0].mxu0
    %v5930 = vadd.f32 %v5468, %v5929
    %5931 = vdwg.mxu0
    %5932 = vmatprep.subr.mxu0 %v5108
    %5933 = vmatpush1.msra.mxu0 %v5107
    %5934 = vmatprep.subr.mxu0 %v5120
    %5935 = vmatpush1.msra.mxu0 %v5119
    %5936 = vmatprep.subr.mxu0 %v5132
    %5937 = vmatpush1.msra.mxu0 %v5131
    %5938 = vmatprep.subr.mxu0 %v5144
    %5939 = vmatpush1.msra.mxu0 %v5143
    %5940 = vmatprep.subr.mxu0 %v5156
    %5941 = vmatpush1.msra.mxu0 %v5155
    %5942 = vmatprep.subr.mxu0 %v5168
    %5943 = vmatpush1.msra.mxu0 %v5167
    %5944 = vmatprep.subr.mxu0 %v5180
    %5945 = vmatpush1.msra.mxu0 %v5179
    %5946 = vmatprep.subr.mxu0 %v5192
    %5947 = vmatpush1.msra.mxu0 %v5191
    %5948 = vmatprep.subr.mxu0 %v5204
    %5949 = vmatpush1.msra.mxu0 %v5203
    %5950 = vmatprep.subr.mxu0 %v5216
    %5951 = vmatpush1.msra.mxu0 %v5215
    %5952 = vmatprep.subr.mxu0 %v5228
    %5953 = vmatpush1.msra.mxu0 %v5227
    %5954 = vmatprep.subr.mxu0 %v5240
    %5955 = vmatpush1.msra.mxu0 %v5239
    %5956 = vmatprep.subr.mxu0 0.0
    %5957 = vmatpush1.msra.mxu0 0.0
    %5958 = vmatprep.subr.mxu0 0.0
    %5959 = vmatpush1.msra.mxu0 0.0
    %5960 = vmatprep.subr.mxu0 0.0
    %5961 = vmatpush1.msra.mxu0 0.0
    %5962 = vmatprep.subr.mxu0 0.0
    %5963 = vmatpush1.msra.mxu0 0.0
    %5964 = vmatprep.subr.mxu0 0.0
    %5965 = vmatpush1.msra.mxu0 0.0
    %5966 = vmatprep.subr.mxu0 0.0
    %5967 = vmatpush1.msra.mxu0 0.0
    %5968 = vmatprep.subr.mxu0 0.0
    %5969 = vmatpush1.msra.mxu0 0.0
    %5970 = vmatprep.subr.mxu0 0.0
    %5971 = vmatpush1.msra.mxu0 0.0
    %5972 = vmatprep.subr.mxu0 0.0
    %5973 = vmatpush1.msra.mxu0 0.0
    %5974 = vmatprep.subr.mxu0 0.0
    %5975 = vmatpush1.msra.mxu0 0.0
    %5976 = vmatprep.subr.mxu0 0.0
    %5977 = vmatpush1.msra.mxu0 0.0
    %5978 = vmatprep.subr.mxu0 0.0
    %5979 = vmatpush1.msra.mxu0 0.0
    %5980 = vmatprep.subr.mxu0 0.0
    %5981 = vmatpush1.msra.mxu0 0.0
    %5982 = vmatprep.subr.mxu0 0.0
    %5983 = vmatpush1.msra.mxu0 0.0
    %5984 = vmatprep.subr.mxu0 0.0
    %5985 = vmatpush1.msra.mxu0 0.0
    %5986 = vmatprep.subr.mxu0 0.0
    %5987 = vmatpush1.msra.mxu0 0.0
    %5988 = vmatprep.subr.mxu0 0.0
    %5989 = vmatpush1.msra.mxu0 0.0
    %5990 = vmatprep.subr.mxu0 0.0
    %5991 = vmatpush1.msra.mxu0 0.0
    %5992 = vmatprep.subr.mxu0 0.0
    %5993 = vmatpush1.msra.mxu0 0.0
    %5994 = vmatprep.subr.mxu0 0.0
    %5995 = vmatpush1.msra.mxu0 0.0
    %5996 = vmatprep.mubr.f32.mxu0 0.0
    %5997 = vmatmul.mubr.f32.gmra.mrb[0].mxu0 %v4329
    %v5998 = vpop.f32.mrb[0].mxu0
    %v5999 = vadd.f32 %v5537, %v5998
    %v6000 = vpop.f32.mrb[0].mxu0
    %v6001 = vadd.f32 %v5539, %v6000
    %6002 = vmatprep.mubr.f32.mxu0 0.0
    %6003 = vmatmul.mubr.f32.gmra.mrb[0].mxu0 %v4331
    %v6004 = vpop.f32.mrb[0].mxu0
    %v6005 = vadd.f32 %v5543, %v6004
    %v6006 = vpop.f32.mrb[0].mxu0
    %v6007 = vadd.f32 %v5545, %v6006
    %6008 = vdwg.mxu0
    %6009 = vmatprep.subr.mxu0 %v5110
    %6010 = vmatpush1.msra.mxu0 %v5109
    %6011 = vmatprep.subr.mxu0 %v5122
    %6012 = vmatpush1.msra.mxu0 %v5121
    %6013 = vmatprep.subr.mxu0 %v5134
    %6014 = vmatpush1.msra.mxu0 %v5133
    %6015 = vmatprep.subr.mxu0 %v5146
    %6016 = vmatpush1.msra.mxu0 %v5145
    %6017 = vmatprep.subr.mxu0 %v5158
    %6018 = vmatpush1.msra.mxu0 %v5157
    %6019 = vmatprep.subr.mxu0 %v5170
    %6020 = vmatpush1.msra.mxu0 %v5169
    %6021 = vmatprep.subr.mxu0 %v5182
    %6022 = vmatpush1.msra.mxu0 %v5181
    %6023 = vmatprep.subr.mxu0 %v5194
    %6024 = vmatpush1.msra.mxu0 %v5193
    %6025 = vmatprep.subr.mxu0 %v5206
    %6026 = vmatpush1.msra.mxu0 %v5205
    %6027 = vmatprep.subr.mxu0 %v5218
    %6028 = vmatpush1.msra.mxu0 %v5217
    %6029 = vmatprep.subr.mxu0 %v5230
    %6030 = vmatpush1.msra.mxu0 %v5229
    %6031 = vmatprep.subr.mxu0 %v5242
    %6032 = vmatpush1.msra.mxu0 %v5241
    %6033 = vmatprep.subr.mxu0 0.0
    %6034 = vmatpush1.msra.mxu0 0.0
    %6035 = vmatprep.subr.mxu0 0.0
    %6036 = vmatpush1.msra.mxu0 0.0
    %6037 = vmatprep.subr.mxu0 0.0
    %6038 = vmatpush1.msra.mxu0 0.0
    %6039 = vmatprep.subr.mxu0 0.0
    %6040 = vmatpush1.msra.mxu0 0.0
    %6041 = vmatprep.subr.mxu0 0.0
    %6042 = vmatpush1.msra.mxu0 0.0
    %6043 = vmatprep.subr.mxu0 0.0
    %6044 = vmatpush1.msra.mxu0 0.0
    %6045 = vmatprep.subr.mxu0 0.0
    %6046 = vmatpush1.msra.mxu0 0.0
    %6047 = vmatprep.subr.mxu0 0.0
    %6048 = vmatpush1.msra.mxu0 0.0
    %6049 = vmatprep.subr.mxu0 0.0
    %6050 = vmatpush1.msra.mxu0 0.0
    %6051 = vmatprep.subr.mxu0 0.0
    %6052 = vmatpush1.msra.mxu0 0.0
    %6053 = vmatprep.subr.mxu0 0.0
    %6054 = vmatpush1.msra.mxu0 0.0
    %6055 = vmatprep.subr.mxu0 0.0
    %6056 = vmatpush1.msra.mxu0 0.0
    %6057 = vmatprep.subr.mxu0 0.0
    %6058 = vmatpush1.msra.mxu0 0.0
    %6059 = vmatprep.subr.mxu0 0.0
    %6060 = vmatpush1.msra.mxu0 0.0
    %6061 = vmatprep.subr.mxu0 0.0
    %6062 = vmatpush1.msra.mxu0 0.0
    %6063 = vmatprep.subr.mxu0 0.0
    %6064 = vmatpush1.msra.mxu0 0.0
    %6065 = vmatprep.subr.mxu0 0.0
    %6066 = vmatpush1.msra.mxu0 0.0
    %6067 = vmatprep.subr.mxu0 0.0
    %6068 = vmatpush1.msra.mxu0 0.0
    %6069 = vmatprep.subr.mxu0 0.0
    %6070 = vmatpush1.msra.mxu0 0.0
    %6071 = vmatprep.subr.mxu0 0.0
    %6072 = vmatpush1.msra.mxu0 0.0
    %6073 = vmatprep.mubr.f32.mxu0 0.0
    %6074 = vmatmul.mubr.f32.gmra.mrb[0].mxu0 %v4329
    %v6075 = vpop.f32.mrb[0].mxu0
    %v6076 = vadd.f32 %v5614, %v6075
    %v6077 = vpop.f32.mrb[0].mxu0
    %v6078 = vadd.f32 %v5616, %v6077
    %6079 = vmatprep.mubr.f32.mxu0 0.0
    %6080 = vmatmul.mubr.f32.gmra.mrb[0].mxu0 %v4331
    %v6081 = vpop.f32.mrb[0].mxu0
    %v6082 = vadd.f32 %v5620, %v6081
    %v6083 = vpop.f32.mrb[0].mxu0
    %v6084 = vadd.f32 %v5622, %v6083
    %6085 = vdwg.mxu0
    %6086 = vmatprep.subr.mxu0 %v5112
    %6087 = vmatpush1.msra.mxu0 %v5111
    %6088 = vmatprep.subr.mxu0 %v5124
    %6089 = vmatpush1.msra.mxu0 %v5123
    %6090 = vmatprep.subr.mxu0 %v5136
    %6091 = vmatpush1.msra.mxu0 %v5135
    %6092 = vmatprep.subr.mxu0 %v5148
    %6093 = vmatpush1.msra.mxu0 %v5147
    %6094 = vmatprep.subr.mxu0 %v5160
    %6095 = vmatpush1.msra.mxu0 %v5159
    %6096 = vmatprep.subr.mxu0 %v5172
    %6097 = vmatpush1.msra.mxu0 %v5171
    %6098 = vmatprep.subr.mxu0 %v5184
    %6099 = vmatpush1.msra.mxu0 %v5183
    %6100 = vmatprep.subr.mxu0 %v5196
    %6101 = vmatpush1.msra.mxu0 %v5195
    %6102 = vmatprep.subr.mxu0 %v5208
    %6103 = vmatpush1.msra.mxu0 %v5207
    %6104 = vmatprep.subr.mxu0 %v5220
    %6105 = vmatpush1.msra.mxu0 %v5219
    %6106 = vmatprep.subr.mxu0 %v5232
    %6107 = vmatpush1.msra.mxu0 %v5231
    %6108 = vmatprep.subr.mxu0 %v5244
    %6109 = vmatpush1.msra.mxu0 %v5243
    %6110 = vmatprep.subr.mxu0 0.0
    %6111 = vmatpush1.msra.mxu0 0.0
    %6112 = vmatprep.subr.mxu0 0.0
    %6113 = vmatpush1.msra.mxu0 0.0
    %6114 = vmatprep.subr.mxu0 0.0
    %6115 = vmatpush1.msra.mxu0 0.0
    %6116 = vmatprep.subr.mxu0 0.0
    %6117 = vmatpush1.msra.mxu0 0.0
    %6118 = vmatprep.subr.mxu0 0.0
    %6119 = vmatpush1.msra.mxu0 0.0
    %6120 = vmatprep.subr.mxu0 0.0
    %6121 = vmatpush1.msra.mxu0 0.0
    %6122 = vmatprep.subr.mxu0 0.0
    %6123 = vmatpush1.msra.mxu0 0.0
    %6124 = vmatprep.subr.mxu0 0.0
    %6125 = vmatpush1.msra.mxu0 0.0
    %6126 = vmatprep.subr.mxu0 0.0
    %6127 = vmatpush1.msra.mxu0 0.0
    %6128 = vmatprep.subr.mxu0 0.0
    %6129 = vmatpush1.msra.mxu0 0.0
    %6130 = vmatprep.subr.mxu0 0.0
    %6131 = vmatpush1.msra.mxu0 0.0
    %6132 = vmatprep.subr.mxu0 0.0
    %6133 = vmatpush1.msra.mxu0 0.0
    %6134 = vmatprep.subr.mxu0 0.0
    %6135 = vmatpush1.msra.mxu0 0.0
    %6136 = vmatprep.subr.mxu0 0.0
    %6137 = vmatpush1.msra.mxu0 0.0
    %6138 = vmatprep.subr.mxu0 0.0
    %6139 = vmatpush1.msra.mxu0 0.0
    %6140 = vmatprep.subr.mxu0 0.0
    %6141 = vmatpush1.msra.mxu0 0.0
    %6142 = vmatprep.subr.mxu0 0.0
    %6143 = vmatpush1.msra.mxu0 0.0
    %6144 = vmatprep.subr.mxu0 0.0
    %6145 = vmatpush1.msra.mxu0 0.0
    %6146 = vmatprep.subr.mxu0 0.0
    %6147 = vmatpush1.msra.mxu0 0.0
    %6148 = vmatprep.subr.mxu0 0.0
    %6149 = vmatpush1.msra.mxu0 0.0
    %6150 = vmatprep.mubr.f32.mxu0 0.0
    %6151 = vmatmul.mubr.f32.gmra.mrb[0].mxu0 %v4329
    %v6152 = vpop.f32.mrb[0].mxu0
    %v6153 = vadd.f32 %v5691, %v6152
    %v6154 = vpop.f32.mrb[0].mxu0
    %v6155 = vadd.f32 %v5693, %v6154
    %6156 = vmatprep.mubr.f32.mxu0 0.0
    %6157 = vmatmul.mubr.f32.gmra.mrb[0].mxu0 %v4331
    %v6158 = vpop.f32.mrb[0].mxu0
    %v6159 = vadd.f32 %v5697, %v6158
    %v6160 = vpop.f32.mrb[0].mxu0
    %v6161 = vadd.f32 %v5699, %v6160
    %6162 = vdwg.mxu0
    %6163 = vmatprep.subr.mxu0 %v5114
    %6164 = vmatpush1.msra.mxu0 %v5113
    %6165 = vmatprep.subr.mxu0 %v5126
    %6166 = vmatpush1.msra.mxu0 %v5125
    %6167 = vmatprep.subr.mxu0 %v5138
    %6168 = vmatpush1.msra.mxu0 %v5137
    %6169 = vmatprep.subr.mxu0 %v5150
    %6170 = vmatpush1.msra.mxu0 %v5149
    %6171 = vmatprep.subr.mxu0 %v5162
    %6172 = vmatpush1.msra.mxu0 %v5161
    %6173 = vmatprep.subr.mxu0 %v5174
    %6174 = vmatpush1.msra.mxu0 %v5173
    %6175 = vmatprep.subr.mxu0 %v5186
    %6176 = vmatpush1.msra.mxu0 %v5185
    %6177 = vmatprep.subr.mxu0 %v5198
    %6178 = vmatpush1.msra.mxu0 %v5197
    %6179 = vmatprep.subr.mxu0 %v5210
    %6180 = vmatpush1.msra.mxu0 %v5209
    %6181 = vmatprep.subr.mxu0 %v5222
    %6182 = vmatpush1.msra.mxu0 %v5221
    %6183 = vmatprep.subr.mxu0 %v5234
    %6184 = vmatpush1.msra.mxu0 %v5233
    %6185 = vmatprep.subr.mxu0 %v5246
    %6186 = vmatpush1.msra.mxu0 %v5245
    %6187 = vmatprep.subr.mxu0 0.0
    %6188 = vmatpush1.msra.mxu0 0.0
    %6189 = vmatprep.subr.mxu0 0.0
    %6190 = vmatpush1.msra.mxu0 0.0
    %6191 = vmatprep.subr.mxu0 0.0
    %6192 = vmatpush1.msra.mxu0 0.0
    %6193 = vmatprep.subr.mxu0 0.0
    %6194 = vmatpush1.msra.mxu0 0.0
    %6195 = vmatprep.subr.mxu0 0.0
    %6196 = vmatpush1.msra.mxu0 0.0
    %6197 = vmatprep.subr.mxu0 0.0
    %6198 = vmatpush1.msra.mxu0 0.0
    %6199 = vmatprep.subr.mxu0 0.0
    %6200 = vmatpush1.msra.mxu0 0.0
    %6201 = vmatprep.subr.mxu0 0.0
    %6202 = vmatpush1.msra.mxu0 0.0
    %6203 = vmatprep.subr.mxu0 0.0
    %6204 = vmatpush1.msra.mxu0 0.0
    %6205 = vmatprep.subr.mxu0 0.0
    %6206 = vmatpush1.msra.mxu0 0.0
    %6207 = vmatprep.subr.mxu0 0.0
    %6208 = vmatpush1.msra.mxu0 0.0
    %6209 = vmatprep.subr.mxu0 0.0
    %6210 = vmatpush1.msra.mxu0 0.0
    %6211 = vmatprep.subr.mxu0 0.0
    %6212 = vmatpush1.msra.mxu0 0.0
    %6213 = vmatprep.subr.mxu0 0.0
    %6214 = vmatpush1.msra.mxu0 0.0
    %6215 = vmatprep.subr.mxu0 0.0
    %6216 = vmatpush1.msra.mxu0 0.0
    %6217 = vmatprep.subr.mxu0 0.0
    %6218 = vmatpush1.msra.mxu0 0.0
    %6219 = vmatprep.subr.mxu0 0.0
    %6220 = vmatpush1.msra.mxu0 0.0
    %6221 = vmatprep.subr.mxu0 0.0
    %6222 = vmatpush1.msra.mxu0 0.0
    %6223 = vmatprep.subr.mxu0 0.0
    %6224 = vmatpush1.msra.mxu0 0.0
    %6225 = vmatprep.subr.mxu0 0.0
    %6226 = vmatpush1.msra.mxu0 0.0
    %6227 = vmatprep.mubr.f32.mxu0 0.0
    %6228 = vmatmul.mubr.f32.gmra.mrb[0].mxu0 %v4329
    %v6229 = vpop.f32.mrb[0].mxu0
    %v6230 = vadd.f32 %v5768, %v6229
    %v6231 = vpop.f32.mrb[0].mxu0
    %v6232 = vadd.f32 %v5770, %v6231
    %6233 = vmatprep.mubr.f32.mxu0 0.0
    %6234 = vmatmul.mubr.f32.gmra.mrb[0].mxu0 %v4331
    %v6235 = vpop.f32.mrb[0].mxu0
    %v6236 = vadd.f32 %v5774, %v6235
    %v6237 = vpop.f32.mrb[0].mxu0
    %v6238 = vadd.f32 %v5776, %v6237
    %6239 = vdwg.mxu0
    %6240 = vmatprep.subr.mxu0 %v5116
    %6241 = vmatpush1.msra.mxu0 %v5115
    %6242 = vmatprep.subr.mxu0 %v5128
    %6243 = vmatpush1.msra.mxu0 %v5127
    %6244 = vmatprep.subr.mxu0 %v5140
    %6245 = vmatpush1.msra.mxu0 %v5139
    %6246 = vmatprep.subr.mxu0 %v5152
    %6247 = vmatpush1.msra.mxu0 %v5151
    %6248 = vmatprep.subr.mxu0 %v5164
    %6249 = vmatpush1.msra.mxu0 %v5163
    %6250 = vmatprep.subr.mxu0 %v5176
    %6251 = vmatpush1.msra.mxu0 %v5175
    %6252 = vmatprep.subr.mxu0 %v5188
    %6253 = vmatpush1.msra.mxu0 %v5187
    %6254 = vmatprep.subr.mxu0 %v5200
    %6255 = vmatpush1.msra.mxu0 %v5199
    %6256 = vmatprep.subr.mxu0 %v5212
    %6257 = vmatpush1.msra.mxu0 %v5211
    %6258 = vmatprep.subr.mxu0 %v5224
    %6259 = vmatpush1.msra.mxu0 %v5223
    %6260 = vmatprep.subr.mxu0 %v5236
    %6261 = vmatpush1.msra.mxu0 %v5235
    %6262 = vmatprep.subr.mxu0 %v5248
    %6263 = vmatpush1.msra.mxu0 %v5247
    %6264 = vmatprep.subr.mxu0 0.0
    %6265 = vmatpush1.msra.mxu0 0.0
    %6266 = vmatprep.subr.mxu0 0.0
    %6267 = vmatpush1.msra.mxu0 0.0
    %6268 = vmatprep.subr.mxu0 0.0
    %6269 = vmatpush1.msra.mxu0 0.0
    %6270 = vmatprep.subr.mxu0 0.0
    %6271 = vmatpush1.msra.mxu0 0.0
    %6272 = vmatprep.subr.mxu0 0.0
    %6273 = vmatpush1.msra.mxu0 0.0
    %6274 = vmatprep.subr.mxu0 0.0
    %6275 = vmatpush1.msra.mxu0 0.0
    %6276 = vmatprep.subr.mxu0 0.0
    %6277 = vmatpush1.msra.mxu0 0.0
    %6278 = vmatprep.subr.mxu0 0.0
    %6279 = vmatpush1.msra.mxu0 0.0
    %6280 = vmatprep.subr.mxu0 0.0
    %6281 = vmatpush1.msra.mxu0 0.0
    %6282 = vmatprep.subr.mxu0 0.0
    %6283 = vmatpush1.msra.mxu0 0.0
    %6284 = vmatprep.subr.mxu0 0.0
    %6285 = vmatpush1.msra.mxu0 0.0
    %6286 = vmatprep.subr.mxu0 0.0
    %6287 = vmatpush1.msra.mxu0 0.0
    %6288 = vmatprep.subr.mxu0 0.0
    %6289 = vmatpush1.msra.mxu0 0.0
    %6290 = vmatprep.subr.mxu0 0.0
    %6291 = vmatpush1.msra.mxu0 0.0
    %6292 = vmatprep.subr.mxu0 0.0
    %6293 = vmatpush1.msra.mxu0 0.0
    %6294 = vmatprep.subr.mxu0 0.0
    %6295 = vmatpush1.msra.mxu0 0.0
    %6296 = vmatprep.subr.mxu0 0.0
    %6297 = vmatpush1.msra.mxu0 0.0
    %6298 = vmatprep.subr.mxu0 0.0
    %6299 = vmatpush1.msra.mxu0 0.0
    %6300 = vmatprep.subr.mxu0 0.0
    %6301 = vmatpush1.msra.mxu0 0.0
    %6302 = vmatprep.subr.mxu0 0.0
    %6303 = vmatpush1.msra.mxu0 0.0
    %6304 = vmatprep.mubr.f32.mxu0 0.0
    %6305 = vmatmul.mubr.f32.gmra.mrb[0].mxu0 %v4329
    %v6306 = vpop.f32.mrb[0].mxu0
    %v6307 = vadd.f32 %v5845, %v6306
    %v6308 = vpop.f32.mrb[0].mxu0
    %v6309 = vadd.f32 %v5847, %v6308
    %6310 = vmatprep.mubr.f32.mxu0 0.0
    %6311 = vmatmul.mubr.f32.gmra.mrb[0].mxu0 %v4331
    %v6312 = vpop.f32.mrb[0].mxu0
    %v6313 = vadd.f32 %v5851, %v6312
    %v6314 = vpop.f32.mrb[0].mxu0
    %v6315 = vadd.f32 %v5853, %v6314
    %6316 = vdwg.mxu0
    %v6317 = vmul.f32 %v4710, %v5922
    %v6318 = vmul.f32 %v4712, %v5924
    %v6319 = vmul.f32 %v4787, %v5999
    %v6320 = vmul.f32 %v4789, %v6001
    %v6321 = vmul.f32 %v4864, %v6076
    %v6322 = vmul.f32 %v4866, %v6078
    %v6323 = vmul.f32 %v4941, %v6153
    %v6324 = vmul.f32 %v4943, %v6155
    %v6325 = vmul.f32 %v5018, %v6230
    %v6326 = vmul.f32 %v5020, %v6232
    %v6327 = vmul.f32 %v5095, %v6307
    %v6328 = vmul.f32 %v5097, %v6309
    %v6329 = vmul.f32 %v4716, %v5928
    %v6330 = vmul.f32 %v4718, %v5930
    %v6331 = vmul.f32 %v4793, %v6005
    %v6332 = vmul.f32 %v4795, %v6007
    %v6333 = vmul.f32 %v4870, %v6082
    %v6334 = vmul.f32 %v4872, %v6084
    %v6335 = vmul.f32 %v4947, %v6159
    %v6336 = vmul.f32 %v4949, %v6161
    %v6337 = vmul.f32 %v5024, %v6236
    %v6338 = vmul.f32 %v5026, %v6238
    %v6339 = vmul.f32 %v5101, %v6313
    %v6340 = vmul.f32 %v5103, %v6315
    %6341 = vmatprep.subr.mxu0 %v6318
    %6342 = vmatpush1.msra.mxu0 %v6317
    %6343 = vmatprep.subr.mxu0 %v6330
    %6344 = vmatpush1.msra.mxu0 %v6329
    %6345 = vmatprep.subr.mxu0 0.0
    %6346 = vmatpush1.msra.mxu0 0.0
    %6347 = vmatprep.subr.mxu0 0.0
    %6348 = vmatpush1.msra.mxu0 0.0
    %6349 = vmatprep.subr.mxu0 0.0
    %6350 = vmatpush1.msra.mxu0 0.0
    %6351 = vmatprep.subr.mxu0 0.0
    %6352 = vmatpush1.msra.mxu0 0.0
    %6353 = vmatprep.subr.mxu0 0.0
    %6354 = vmatpush1.msra.mxu0 0.0
    %6355 = vmatprep.subr.mxu0 0.0
    %6356 = vmatpush1.msra.mxu0 0.0
    %6357 = vmatprep.subr.mxu0 0.0
    %6358 = vmatpush1.msra.mxu0 0.0
    %6359 = vmatprep.subr.mxu0 0.0
    %6360 = vmatpush1.msra.mxu0 0.0
    %6361 = vmatprep.subr.mxu0 0.0
    %6362 = vmatpush1.msra.mxu0 0.0
    %6363 = vmatprep.subr.mxu0 0.0
    %6364 = vmatpush1.msra.mxu0 0.0
    %6365 = vmatprep.subr.mxu0 0.0
    %6366 = vmatpush1.msra.mxu0 0.0
    %6367 = vmatprep.subr.mxu0 0.0
    %6368 = vmatpush1.msra.mxu0 0.0
    %6369 = vmatprep.subr.mxu0 0.0
    %6370 = vmatpush1.msra.mxu0 0.0
    %6371 = vmatprep.subr.mxu0 0.0
    %6372 = vmatpush1.msra.mxu0 0.0
    %6373 = vmatprep.subr.mxu0 0.0
    %6374 = vmatpush1.msra.mxu0 0.0
    %6375 = vmatprep.subr.mxu0 0.0
    %6376 = vmatpush1.msra.mxu0 0.0
    %6377 = vmatprep.subr.mxu0 0.0
    %6378 = vmatpush1.msra.mxu0 0.0
    %6379 = vmatprep.subr.mxu0 0.0
    %6380 = vmatpush1.msra.mxu0 0.0
    %6381 = vmatprep.subr.mxu0 0.0
    %6382 = vmatpush1.msra.mxu0 0.0
    %6383 = vmatprep.subr.mxu0 0.0
    %6384 = vmatpush1.msra.mxu0 0.0
    %6385 = vmatprep.subr.mxu0 0.0
    %6386 = vmatpush1.msra.mxu0 0.0
    %6387 = vmatprep.subr.mxu0 0.0
    %6388 = vmatpush1.msra.mxu0 0.0
    %6389 = vmatprep.subr.mxu0 0.0
    %6390 = vmatpush1.msra.mxu0 0.0
    %6391 = vmatprep.subr.mxu0 0.0
    %6392 = vmatpush1.msra.mxu0 0.0
    %6393 = vmatprep.subr.mxu0 0.0
    %6394 = vmatpush1.msra.mxu0 0.0
    %6395 = vmatprep.subr.mxu0 0.0
    %6396 = vmatpush1.msra.mxu0 0.0
    %6397 = vmatprep.subr.mxu0 0.0
    %6398 = vmatpush1.msra.mxu0 0.0
    %6399 = vmatprep.subr.mxu0 0.0
    %6400 = vmatpush1.msra.mxu0 0.0
    %6401 = vmatprep.subr.mxu0 0.0
    %6402 = vmatpush1.msra.mxu0 0.0
    %6403 = vmatprep.subr.mxu0 0.0
    %6404 = vmatpush1.msra.mxu0 0.0
    %6405 = vmatprep.mubr.f32.mxu0 0.0
    %6406 = vmatmul.mubr.f32.gmra.mrb[0].mxu0 %v4439
    %v6407 = vpop.f32.mrb[0].mxu0
    %v6408 = vadd.f32 0.0, %v6407
    %v6409 = vpop.f32.mrb[0].mxu0
    %v6410 = vadd.f32 0.0, %v6409
    %6411 = vdwg.mxu0
    %6412 = vmatprep.subr.mxu0 %v6320
    %6413 = vmatpush1.msra.mxu0 %v6319
    %6414 = vmatprep.subr.mxu0 %v6332
    %6415 = vmatpush1.msra.mxu0 %v6331
    %6416 = vmatprep.subr.mxu0 0.0
    %6417 = vmatpush1.msra.mxu0 0.0
    %6418 = vmatprep.subr.mxu0 0.0
    %6419 = vmatpush1.msra.mxu0 0.0
    %6420 = vmatprep.subr.mxu0 0.0
    %6421 = vmatpush1.msra.mxu0 0.0
    %6422 = vmatprep.subr.mxu0 0.0
    %6423 = vmatpush1.msra.mxu0 0.0
    %6424 = vmatprep.subr.mxu0 0.0
    %6425 = vmatpush1.msra.mxu0 0.0
    %6426 = vmatprep.subr.mxu0 0.0
    %6427 = vmatpush1.msra.mxu0 0.0
    %6428 = vmatprep.subr.mxu0 0.0
    %6429 = vmatpush1.msra.mxu0 0.0
    %6430 = vmatprep.subr.mxu0 0.0
    %6431 = vmatpush1.msra.mxu0 0.0
    %6432 = vmatprep.subr.mxu0 0.0
    %6433 = vmatpush1.msra.mxu0 0.0
    %6434 = vmatprep.subr.mxu0 0.0
    %6435 = vmatpush1.msra.mxu0 0.0
    %6436 = vmatprep.subr.mxu0 0.0
    %6437 = vmatpush1.msra.mxu0 0.0
    %6438 = vmatprep.subr.mxu0 0.0
    %6439 = vmatpush1.msra.mxu0 0.0
    %6440 = vmatprep.subr.mxu0 0.0
    %6441 = vmatpush1.msra.mxu0 0.0
    %6442 = vmatprep.subr.mxu0 0.0
    %6443 = vmatpush1.msra.mxu0 0.0
    %6444 = vmatprep.subr.mxu0 0.0
    %6445 = vmatpush1.msra.mxu0 0.0
    %6446 = vmatprep.subr.mxu0 0.0
    %6447 = vmatpush1.msra.mxu0 0.0
    %6448 = vmatprep.subr.mxu0 0.0
    %6449 = vmatpush1.msra.mxu0 0.0
    %6450 = vmatprep.subr.mxu0 0.0
    %6451 = vmatpush1.msra.mxu0 0.0
    %6452 = vmatprep.subr.mxu0 0.0
    %6453 = vmatpush1.msra.mxu0 0.0
    %6454 = vmatprep.subr.mxu0 0.0
    %6455 = vmatpush1.msra.mxu0 0.0
    %6456 = vmatprep.subr.mxu0 0.0
    %6457 = vmatpush1.msra.mxu0 0.0
    %6458 = vmatprep.subr.mxu0 0.0
    %6459 = vmatpush1.msra.mxu0 0.0
    %6460 = vmatprep.subr.mxu0 0.0
    %6461 = vmatpush1.msra.mxu0 0.0
    %6462 = vmatprep.subr.mxu0 0.0
    %6463 = vmatpush1.msra.mxu0 0.0
    %6464 = vmatprep.subr.mxu0 0.0
    %6465 = vmatpush1.msra.mxu0 0.0
    %6466 = vmatprep.subr.mxu0 0.0
    %6467 = vmatpush1.msra.mxu0 0.0
    %6468 = vmatprep.subr.mxu0 0.0
    %6469 = vmatpush1.msra.mxu0 0.0
    %6470 = vmatprep.subr.mxu0 0.0
    %6471 = vmatpush1.msra.mxu0 0.0
    %6472 = vmatprep.subr.mxu0 0.0
    %6473 = vmatpush1.msra.mxu0 0.0
    %6474 = vmatprep.subr.mxu0 0.0
    %6475 = vmatpush1.msra.mxu0 0.0
    %6476 = vmatprep.mubr.f32.mxu0 0.0
    %6477 = vmatmul.mubr.f32.gmra.mrb[0].mxu0 %v4439
    %v6478 = vpop.f32.mrb[0].mxu0
    %v6479 = vadd.f32 0.0, %v6478
    %v6480 = vpop.f32.mrb[0].mxu0
    %v6481 = vadd.f32 0.0, %v6480
    %6482 = vdwg.mxu0
    %6483 = vmatprep.subr.mxu0 %v6322
    %6484 = vmatpush1.msra.mxu0 %v6321
    %6485 = vmatprep.subr.mxu0 %v6334
    %6486 = vmatpush1.msra.mxu0 %v6333
    %6487 = vmatprep.subr.mxu0 0.0
    %6488 = vmatpush1.msra.mxu0 0.0
    %6489 = vmatprep.subr.mxu0 0.0
    %6490 = vmatpush1.msra.mxu0 0.0
    %6491 = vmatprep.subr.mxu0 0.0
    %6492 = vmatpush1.msra.mxu0 0.0
    %6493 = vmatprep.subr.mxu0 0.0
    %6494 = vmatpush1.msra.mxu0 0.0
    %6495 = vmatprep.subr.mxu0 0.0
    %6496 = vmatpush1.msra.mxu0 0.0
    %6497 = vmatprep.subr.mxu0 0.0
    %6498 = vmatpush1.msra.mxu0 0.0
    %6499 = vmatprep.subr.mxu0 0.0
    %6500 = vmatpush1.msra.mxu0 0.0
    %6501 = vmatprep.subr.mxu0 0.0
    %6502 = vmatpush1.msra.mxu0 0.0
    %6503 = vmatprep.subr.mxu0 0.0
    %6504 = vmatpush1.msra.mxu0 0.0
    %6505 = vmatprep.subr.mxu0 0.0
    %6506 = vmatpush1.msra.mxu0 0.0
    %6507 = vmatprep.subr.mxu0 0.0
    %6508 = vmatpush1.msra.mxu0 0.0
    %6509 = vmatprep.subr.mxu0 0.0
    %6510 = vmatpush1.msra.mxu0 0.0
    %6511 = vmatprep.subr.mxu0 0.0
    %6512 = vmatpush1.msra.mxu0 0.0
    %6513 = vmatprep.subr.mxu0 0.0
    %6514 = vmatpush1.msra.mxu0 0.0
    %6515 = vmatprep.subr.mxu0 0.0
    %6516 = vmatpush1.msra.mxu0 0.0
    %6517 = vmatprep.subr.mxu0 0.0
    %6518 = vmatpush1.msra.mxu0 0.0
    %6519 = vmatprep.subr.mxu0 0.0
    %6520 = vmatpush1.msra.mxu0 0.0
    %6521 = vmatprep.subr.mxu0 0.0
    %6522 = vmatpush1.msra.mxu0 0.0
    %6523 = vmatprep.subr.mxu0 0.0
    %6524 = vmatpush1.msra.mxu0 0.0
    %6525 = vmatprep.subr.mxu0 0.0
    %6526 = vmatpush1.msra.mxu0 0.0
    %6527 = vmatprep.subr.mxu0 0.0
    %6528 = vmatpush1.msra.mxu0 0.0
    %6529 = vmatprep.subr.mxu0 0.0
    %6530 = vmatpush1.msra.mxu0 0.0
    %6531 = vmatprep.subr.mxu0 0.0
    %6532 = vmatpush1.msra.mxu0 0.0
    %6533 = vmatprep.subr.mxu0 0.0
    %6534 = vmatpush1.msra.mxu0 0.0
    %6535 = vmatprep.subr.mxu0 0.0
    %6536 = vmatpush1.msra.mxu0 0.0
    %6537 = vmatprep.subr.mxu0 0.0
    %6538 = vmatpush1.msra.mxu0 0.0
    %6539 = vmatprep.subr.mxu0 0.0
    %6540 = vmatpush1.msra.mxu0 0.0
    %6541 = vmatprep.subr.mxu0 0.0
    %6542 = vmatpush1.msra.mxu0 0.0
    %6543 = vmatprep.subr.mxu0 0.0
    %6544 = vmatpush1.msra.mxu0 0.0
    %6545 = vmatprep.subr.mxu0 0.0
    %6546 = vmatpush1.msra.mxu0 0.0
    %6547 = vmatprep.mubr.f32.mxu0 0.0
    %6548 = vmatmul.mubr.f32.gmra.mrb[0].mxu0 %v4439
    %v6549 = vpop.f32.mrb[0].mxu0
    %v6550 = vadd.f32 0.0, %v6549
    %v6551 = vpop.f32.mrb[0].mxu0
    %v6552 = vadd.f32 0.0, %v6551
    %6553 = vdwg.mxu0
    %6554 = vmatprep.subr.mxu0 %v6324
    %6555 = vmatpush1.msra.mxu0 %v6323
    %6556 = vmatprep.subr.mxu0 %v6336
    %6557 = vmatpush1.msra.mxu0 %v6335
    %6558 = vmatprep.subr.mxu0 0.0
    %6559 = vmatpush1.msra.mxu0 0.0
    %6560 = vmatprep.subr.mxu0 0.0
    %6561 = vmatpush1.msra.mxu0 0.0
    %6562 = vmatprep.subr.mxu0 0.0
    %6563 = vmatpush1.msra.mxu0 0.0
    %6564 = vmatprep.subr.mxu0 0.0
    %6565 = vmatpush1.msra.mxu0 0.0
    %6566 = vmatprep.subr.mxu0 0.0
    %6567 = vmatpush1.msra.mxu0 0.0
    %6568 = vmatprep.subr.mxu0 0.0
    %6569 = vmatpush1.msra.mxu0 0.0
    %6570 = vmatprep.subr.mxu0 0.0
    %6571 = vmatpush1.msra.mxu0 0.0
    %6572 = vmatprep.subr.mxu0 0.0
    %6573 = vmatpush1.msra.mxu0 0.0
    %6574 = vmatprep.subr.mxu0 0.0
    %6575 = vmatpush1.msra.mxu0 0.0
    %6576 = vmatprep.subr.mxu0 0.0
    %6577 = vmatpush1.msra.mxu0 0.0
    %6578 = vmatprep.subr.mxu0 0.0
    %6579 = vmatpush1.msra.mxu0 0.0
    %6580 = vmatprep.subr.mxu0 0.0
    %6581 = vmatpush1.msra.mxu0 0.0
    %6582 = vmatprep.subr.mxu0 0.0
    %6583 = vmatpush1.msra.mxu0 0.0
    %6584 = vmatprep.subr.mxu0 0.0
    %6585 = vmatpush1.msra.mxu0 0.0
    %6586 = vmatprep.subr.mxu0 0.0
    %6587 = vmatpush1.msra.mxu0 0.0
    %6588 = vmatprep.subr.mxu0 0.0
    %6589 = vmatpush1.msra.mxu0 0.0
    %6590 = vmatprep.subr.mxu0 0.0
    %6591 = vmatpush1.msra.mxu0 0.0
    %6592 = vmatprep.subr.mxu0 0.0
    %6593 = vmatpush1.msra.mxu0 0.0
    %6594 = vmatprep.subr.mxu0 0.0
    %6595 = vmatpush1.msra.mxu0 0.0
    %6596 = vmatprep.subr.mxu0 0.0
    %6597 = vmatpush1.msra.mxu0 0.0
    %6598 = vmatprep.subr.mxu0 0.0
    %6599 = vmatpush1.msra.mxu0 0.0
    %6600 = vmatprep.subr.mxu0 0.0
    %6601 = vmatpush1.msra.mxu0 0.0
    %6602 = vmatprep.subr.mxu0 0.0
    %6603 = vmatpush1.msra.mxu0 0.0
    %6604 = vmatprep.subr.mxu0 0.0
    %6605 = vmatpush1.msra.mxu0 0.0
    %6606 = vmatprep.subr.mxu0 0.0
    %6607 = vmatpush1.msra.mxu0 0.0
    %6608 = vmatprep.subr.mxu0 0.0
    %6609 = vmatpush1.msra.mxu0 0.0
    %6610 = vmatprep.subr.mxu0 0.0
    %6611 = vmatpush1.msra.mxu0 0.0
    %6612 = vmatprep.subr.mxu0 0.0
    %6613 = vmatpush1.msra.mxu0 0.0
    %6614 = vmatprep.subr.mxu0 0.0
    %6615 = vmatpush1.msra.mxu0 0.0
    %6616 = vmatprep.subr.mxu0 0.0
    %6617 = vmatpush1.msra.mxu0 0.0
    %6618 = vmatprep.mubr.f32.mxu0 0.0
    %6619 = vmatmul.mubr.f32.gmra.mrb[0].mxu0 %v4439
    %v6620 = vpop.f32.mrb[0].mxu0
    %v6621 = vadd.f32 0.0, %v6620
    %v6622 = vpop.f32.mrb[0].mxu0
    %v6623 = vadd.f32 0.0, %v6622
    %6624 = vdwg.mxu0
    %6625 = vmatprep.subr.mxu0 %v6326
    %6626 = vmatpush1.msra.mxu0 %v6325
    %6627 = vmatprep.subr.mxu0 %v6338
    %6628 = vmatpush1.msra.mxu0 %v6337
    %6629 = vmatprep.subr.mxu0 0.0
    %6630 = vmatpush1.msra.mxu0 0.0
    %6631 = vmatprep.subr.mxu0 0.0
    %6632 = vmatpush1.msra.mxu0 0.0
    %6633 = vmatprep.subr.mxu0 0.0
    %6634 = vmatpush1.msra.mxu0 0.0
    %6635 = vmatprep.subr.mxu0 0.0
    %6636 = vmatpush1.msra.mxu0 0.0
    %6637 = vmatprep.subr.mxu0 0.0
    %6638 = vmatpush1.msra.mxu0 0.0
    %6639 = vmatprep.subr.mxu0 0.0
    %6640 = vmatpush1.msra.mxu0 0.0
    %6641 = vmatprep.subr.mxu0 0.0
    %6642 = vmatpush1.msra.mxu0 0.0
    %6643 = vmatprep.subr.mxu0 0.0
    %6644 = vmatpush1.msra.mxu0 0.0
    %6645 = vmatprep.subr.mxu0 0.0
    %6646 = vmatpush1.msra.mxu0 0.0
    %6647 = vmatprep.subr.mxu0 0.0
    %6648 = vmatpush1.msra.mxu0 0.0
    %6649 = vmatprep.subr.mxu0 0.0
    %6650 = vmatpush1.msra.mxu0 0.0
    %6651 = vmatprep.subr.mxu0 0.0
    %6652 = vmatpush1.msra.mxu0 0.0
    %6653 = vmatprep.subr.mxu0 0.0
    %6654 = vmatpush1.msra.mxu0 0.0
    %6655 = vmatprep.subr.mxu0 0.0
    %6656 = vmatpush1.msra.mxu0 0.0
    %6657 = vmatprep.subr.mxu0 0.0
    %6658 = vmatpush1.msra.mxu0 0.0
    %6659 = vmatprep.subr.mxu0 0.0
    %6660 = vmatpush1.msra.mxu0 0.0
    %6661 = vmatprep.subr.mxu0 0.0
    %6662 = vmatpush1.msra.mxu0 0.0
    %6663 = vmatprep.subr.mxu0 0.0
    %6664 = vmatpush1.msra.mxu0 0.0
    %6665 = vmatprep.subr.mxu0 0.0
    %6666 = vmatpush1.msra.mxu0 0.0
    %6667 = vmatprep.subr.mxu0 0.0
    %6668 = vmatpush1.msra.mxu0 0.0
    %6669 = vmatprep.subr.mxu0 0.0
    %6670 = vmatpush1.msra.mxu0 0.0
    %6671 = vmatprep.subr.mxu0 0.0
    %6672 = vmatpush1.msra.mxu0 0.0
    %6673 = vmatprep.subr.mxu0 0.0
    %6674 = vmatpush1.msra.mxu0 0.0
    %6675 = vmatprep.subr.mxu0 0.0
    %6676 = vmatpush1.msra.mxu0 0.0
    %6677 = vmatprep.subr.mxu0 0.0
    %6678 = vmatpush1.msra.mxu0 0.0
    %6679 = vmatprep.subr.mxu0 0.0
    %6680 = vmatpush1.msra.mxu0 0.0
    %6681 = vmatprep.subr.mxu0 0.0
    %6682 = vmatpush1.msra.mxu0 0.0
    %6683 = vmatprep.subr.mxu0 0.0
    %6684 = vmatpush1.msra.mxu0 0.0
    %6685 = vmatprep.subr.mxu0 0.0
    %6686 = vmatpush1.msra.mxu0 0.0
    %6687 = vmatprep.subr.mxu0 0.0
    %6688 = vmatpush1.msra.mxu0 0.0
    %6689 = vmatprep.mubr.f32.mxu0 0.0
    %6690 = vmatmul.mubr.f32.gmra.mrb[0].mxu0 %v4439
    %v6691 = vpop.f32.mrb[0].mxu0
    %v6692 = vadd.f32 0.0, %v6691
    %v6693 = vpop.f32.mrb[0].mxu0
    %v6694 = vadd.f32 0.0, %v6693
    %6695 = vdwg.mxu0
    %6696 = vmatprep.subr.mxu0 %v6328
    %6697 = vmatpush1.msra.mxu0 %v6327
    %6698 = vmatprep.subr.mxu0 %v6340
    %6699 = vmatpush1.msra.mxu0 %v6339
    %6700 = vmatprep.subr.mxu0 0.0
    %6701 = vmatpush1.msra.mxu0 0.0
    %6702 = vmatprep.subr.mxu0 0.0
    %6703 = vmatpush1.msra.mxu0 0.0
    %6704 = vmatprep.subr.mxu0 0.0
    %6705 = vmatpush1.msra.mxu0 0.0
    %6706 = vmatprep.subr.mxu0 0.0
    %6707 = vmatpush1.msra.mxu0 0.0
    %6708 = vmatprep.subr.mxu0 0.0
    %6709 = vmatpush1.msra.mxu0 0.0
    %6710 = vmatprep.subr.mxu0 0.0
    %6711 = vmatpush1.msra.mxu0 0.0
    %6712 = vmatprep.subr.mxu0 0.0
    %6713 = vmatpush1.msra.mxu0 0.0
    %6714 = vmatprep.subr.mxu0 0.0
    %6715 = vmatpush1.msra.mxu0 0.0
    %6716 = vmatprep.subr.mxu0 0.0
    %6717 = vmatpush1.msra.mxu0 0.0
    %6718 = vmatprep.subr.mxu0 0.0
    %6719 = vmatpush1.msra.mxu0 0.0
    %6720 = vmatprep.subr.mxu0 0.0
    %6721 = vmatpush1.msra.mxu0 0.0
    %6722 = vmatprep.subr.mxu0 0.0
    %6723 = vmatpush1.msra.mxu0 0.0
    %6724 = vmatprep.subr.mxu0 0.0
    %6725 = vmatpush1.msra.mxu0 0.0
    %6726 = vmatprep.subr.mxu0 0.0
    %6727 = vmatpush1.msra.mxu0 0.0
    %6728 = vmatprep.subr.mxu0 0.0
    %6729 = vmatpush1.msra.mxu0 0.0
    %6730 = vmatprep.subr.mxu0 0.0
    %6731 = vmatpush1.msra.mxu0 0.0
    %6732 = vmatprep.subr.mxu0 0.0
    %6733 = vmatpush1.msra.mxu0 0.0
    %6734 = vmatprep.subr.mxu0 0.0
    %6735 = vmatpush1.msra.mxu0 0.0
    %6736 = vmatprep.subr.mxu0 0.0
    %6737 = vmatpush1.msra.mxu0 0.0
    %6738 = vmatprep.subr.mxu0 0.0
    %6739 = vmatpush1.msra.mxu0 0.0
    %6740 = vmatprep.subr.mxu0 0.0
    %6741 = vmatpush1.msra.mxu0 0.0
    %6742 = vmatprep.subr.mxu0 0.0
    %6743 = vmatpush1.msra.mxu0 0.0
    %6744 = vmatprep.subr.mxu0 0.0
    %6745 = vmatpush1.msra.mxu0 0.0
    %6746 = vmatprep.subr.mxu0 0.0
    %6747 = vmatpush1.msra.mxu0 0.0
    %6748 = vmatprep.subr.mxu0 0.0
    %6749 = vmatpush1.msra.mxu0 0.0
    %6750 = vmatprep.subr.mxu0 0.0
    %6751 = vmatpush1.msra.mxu0 0.0
    %6752 = vmatprep.subr.mxu0 0.0
    %6753 = vmatpush1.msra.mxu0 0.0
    %6754 = vmatprep.subr.mxu0 0.0
    %6755 = vmatpush1.msra.mxu0 0.0
    %6756 = vmatprep.subr.mxu0 0.0
    %6757 = vmatpush1.msra.mxu0 0.0
    %6758 = vmatprep.subr.mxu0 0.0
    %6759 = vmatpush1.msra.mxu0 0.0
    %6760 = vmatprep.mubr.f32.mxu0 0.0
    %6761 = vmatmul.mubr.f32.gmra.mrb[0].mxu0 %v4439
    %v6762 = vpop.f32.mrb[0].mxu0
    %v6763 = vadd.f32 0.0, %v6762
    %v6764 = vpop.f32.mrb[0].mxu0
    %v6765 = vadd.f32 0.0, %v6764
    %6766 = vdwg.mxu0
    %v6767 = vld [vmem:[%s31] sm:$0xff]
    %v6768 = vld [vmem:[%s31 + $0x8] sm:$0xff]
    %v6769 = vld [vmem:[%s31 + $0x10] sm:$0xff]
    %v6770 = vld [vmem:[%s31 + $0x18] sm:$0xff]
    %v6771 = vld [vmem:[%s31 + $0x20] sm:$0xff]
    %v6772 = vld [vmem:[%s31 + $0x28] sm:$0xff]
    %v6773 = vld [vmem:[%s31 + $0x30] sm:$0xff]
    %v6774 = vld [vmem:[%s31 + $0x38] sm:$0xff]
    %v6775 = vld [vmem:[%s31 + $0x40] sm:$0xff]
    %v6776 = vld [vmem:[%s31 + $0x48] sm:$0xff]
    %v6777 = vld [vmem:[%s31 + $0x50] sm:$0xff]
    %v6778 = vld [vmem:[%s31 + $0x58] sm:$0xff]
    %v6779 = vld [vmem:[%s31 + $0x60] sm:$0xff]
    %v6780 = vld [vmem:[%s31 + $0x68] sm:$0xff]
    %v6781 = vld [vmem:[%s31 + $0x70] sm:$0xff]
    %v6782 = vld [vmem:[%s31 + $0x78] sm:$0xff]
    %v6783 = vld [vmem:[%s31 + $0x80] sm:$0xff]
    %v6784 = vld [vmem:[%s31 + $0x88] sm:$0xff]
    %v6785 = vld [vmem:[%s31 + $0x90] sm:$0xff]
    %v6786 = vld [vmem:[%s31 + $0x98] sm:$0xff]
    %v6787 = vld [vmem:[%s31 + $0xa0] sm:$0xff]
    %v6788 = vld [vmem:[%s31 + $0xa8] sm:$0xff]
    %v6789 = vld [vmem:[%s31 + $0xb0] sm:$0xff]
    %v6790 = vld [vmem:[%s31 + $0xb8] sm:$0xff]
    %v6791 = vld [vmem:[%s31 + $0xc0] sm:$0xff]
    %v6792 = vld [vmem:[%s31 + $0xc8] sm:$0xff]
    %v6793 = vld [vmem:[%s31 + $0xd0] sm:$0xff]
    %v6794 = vld [vmem:[%s31 + $0xd8] sm:$0xff]
    %v6795 = vld [vmem:[%s31 + $0xe0] sm:$0xff]
    %v6796 = vld [vmem:[%s31 + $0xe8] sm:$0xff]
    %v6797 = vld [vmem:[%s31 + $0xf0] sm:$0xff]
    %v6798 = vld [vmem:[%s31 + $0xf8] sm:$0xff]
    %v6799 = vld [vmem:[%s31 + $0x100] sm:$0xff]
    %v6800 = vld [vmem:[%s31 + $0x108] sm:$0xff]
    %v6801 = vld [vmem:[%s31 + $0x110] sm:$0xff]
    %v6802 = vld [vmem:[%s31 + $0x118] sm:$0xff]
    %v6803 = vld [vmem:[%s31 + $0x120] sm:$0xff]
    %v6804 = vld [vmem:[%s31 + $0x128] sm:$0xff]
    %v6805 = vld [vmem:[%s31 + $0x130] sm:$0xff]
    %v6806 = vld [vmem:[%s31 + $0x138] sm:$0xff]
    %v6807 = vld [vmem:[%s31 + $0x140] sm:$0xff]
    %v6808 = vld [vmem:[%s31 + $0x148] sm:$0xff]
    %v6809 = vld [vmem:[%s31 + $0x150] sm:$0xff]
    %v6810 = vld [vmem:[%s31 + $0x158] sm:$0xff]
    %v6811 = vld [vmem:[%s31 + $0x160] sm:$0xff]
    %v6812 = vld [vmem:[%s31 + $0x168] sm:$0xff]
    %v6813 = vld [vmem:[%s31 + $0x170] sm:$0xff]
    %v6814 = vld [vmem:[%s31 + $0x178] sm:$0xff]
    %v6815 = vld [vmem:[%s31 + $0x180] sm:$0xff]
    %v6816 = vld [vmem:[%s31 + $0x188] sm:$0xff]
    %v6817 = vld [vmem:[%s31 + $0x190] sm:$0xff]
    %v6818 = vld [vmem:[%s31 + $0x198] sm:$0xff]
    %v6819 = vld [vmem:[%s31 + $0x1a0] sm:$0xff]
    %v6820 = vld [vmem:[%s31 + $0x1a8] sm:$0xff]
    %v6821 = vld [vmem:[%s31 + $0x1b0] sm:$0xff]
    %v6822 = vld [vmem:[%s31 + $0x1b8] sm:$0xff]
    %v6823 = vld [vmem:[%s31 + $0x1c0] sm:$0xff]
    %v6824 = vld [vmem:[%s31 + $0x1c8] sm:$0xff]
    %v6825 = vld [vmem:[%s31 + $0x1d0] sm:$0xff]
    %v6826 = vld [vmem:[%s31 + $0x1d8] sm:$0xff]
    %v6827 = vld [vmem:[%s31 + $0x1e0] sm:$0xff]
    %v6828 = vld [vmem:[%s31 + $0x1e8] sm:$0xff]
    %v6829 = vld [vmem:[%s31 + $0x1f0] sm:$0xff]
    %v6830 = vld [vmem:[%s31 + $0x1f8] sm:$0xff]
    %v6831 = vld [vmem:[#allocation18] sm:$0x1]
    %v6833 = vlaneseq
    %v6834 = vshrl.u32 %v6833, 7
    %v6835 = vsub.s32 0, %v6834
    %v6836 = vrot.slane %v6831, %v6835
    %6838 = vmatprep.subr.mxu0 0.0
    %6839 = vmatpush1.msra.mxu0 %v6767
    %6840 = vmatprep.subr.mxu0 0.0
    %6841 = vmatpush1.msra.mxu0 %v6768
    %6842 = vmatprep.subr.mxu0 0.0
    %6843 = vmatpush1.msra.mxu0 %v6769
    %6844 = vmatprep.subr.mxu0 0.0
    %6845 = vmatpush1.msra.mxu0 %v6770
    %6846 = vmatprep.subr.mxu0 0.0
    %6847 = vmatpush1.msra.mxu0 %v6771
    %6848 = vmatprep.subr.mxu0 0.0
    %6849 = vmatpush1.msra.mxu0 %v6772
    %6850 = vmatprep.subr.mxu0 0.0
    %6851 = vmatpush1.msra.mxu0 %v6773
    %6852 = vmatprep.subr.mxu0 0.0
    %6853 = vmatpush1.msra.mxu0 %v6774
    %6854 = vmatprep.subr.mxu0 0.0
    %6855 = vmatpush1.msra.mxu0 %v6775
    %6856 = vmatprep.subr.mxu0 0.0
    %6857 = vmatpush1.msra.mxu0 %v6776
    %6858 = vmatprep.subr.mxu0 0.0
    %6859 = vmatpush1.msra.mxu0 %v6777
    %6860 = vmatprep.subr.mxu0 0.0
    %6861 = vmatpush1.msra.mxu0 %v6778
    %6862 = vmatprep.subr.mxu0 0.0
    %6863 = vmatpush1.msra.mxu0 %v6779
    %6864 = vmatprep.subr.mxu0 0.0
    %6865 = vmatpush1.msra.mxu0 %v6780
    %6866 = vmatprep.subr.mxu0 0.0
    %6867 = vmatpush1.msra.mxu0 %v6781
    %6868 = vmatprep.subr.mxu0 0.0
    %6869 = vmatpush1.msra.mxu0 %v6782
    %6870 = vmatprep.subr.mxu0 0.0
    %6871 = vmatpush1.msra.mxu0 %v6783
    %6872 = vmatprep.subr.mxu0 0.0
    %6873 = vmatpush1.msra.mxu0 %v6784
    %6874 = vmatprep.subr.mxu0 0.0
    %6875 = vmatpush1.msra.mxu0 %v6785
    %6876 = vmatprep.subr.mxu0 0.0
    %6877 = vmatpush1.msra.mxu0 %v6786
    %6878 = vmatprep.subr.mxu0 0.0
    %6879 = vmatpush1.msra.mxu0 %v6787
    %6880 = vmatprep.subr.mxu0 0.0
    %6881 = vmatpush1.msra.mxu0 %v6788
    %6882 = vmatprep.subr.mxu0 0.0
    %6883 = vmatpush1.msra.mxu0 %v6789
    %6884 = vmatprep.subr.mxu0 0.0
    %6885 = vmatpush1.msra.mxu0 %v6790
    %6886 = vmatprep.subr.mxu0 0.0
    %6887 = vmatpush1.msra.mxu0 %v6791
    %6888 = vmatprep.subr.mxu0 0.0
    %6889 = vmatpush1.msra.mxu0 %v6792
    %6890 = vmatprep.subr.mxu0 0.0
    %6891 = vmatpush1.msra.mxu0 %v6793
    %6892 = vmatprep.subr.mxu0 0.0
    %6893 = vmatpush1.msra.mxu0 %v6794
    %6894 = vmatprep.subr.mxu0 0.0
    %6895 = vmatpush1.msra.mxu0 %v6795
    %6896 = vmatprep.subr.mxu0 0.0
    %6897 = vmatpush1.msra.mxu0 %v6796
    %6898 = vmatprep.subr.mxu0 0.0
    %6899 = vmatpush1.msra.mxu0 %v6797
    %6900 = vmatprep.subr.mxu0 0.0
    %6901 = vmatpush1.msra.mxu0 %v6798
    %6902 = vmatprep.mubr.f32.mxu0 %v6410
    %6903 = vmatmul.mubr.f32.gmra.mrb[0].mxu0 %v6408
    %v6904 = vpop.f32.mrb[0].mxu0
    %v6905 = vadd.f32 %v6836, %v6904
    %v6906 = vpop.f32.mrb[0].mxu0
    %6907 = vdwg.mxu0
    %6908 = vmatprep.subr.mxu0 0.0
    %6909 = vmatpush1.msra.mxu0 %v6799
    %6910 = vmatprep.subr.mxu0 0.0
    %6911 = vmatpush1.msra.mxu0 %v6800
    %6912 = vmatprep.subr.mxu0 0.0
    %6913 = vmatpush1.msra.mxu0 %v6801
    %6914 = vmatprep.subr.mxu0 0.0
    %6915 = vmatpush1.msra.mxu0 %v6802
    %6916 = vmatprep.subr.mxu0 0.0
    %6917 = vmatpush1.msra.mxu0 %v6803
    %6918 = vmatprep.subr.mxu0 0.0
    %6919 = vmatpush1.msra.mxu0 %v6804
    %6920 = vmatprep.subr.mxu0 0.0
    %6921 = vmatpush1.msra.mxu0 %v6805
    %6922 = vmatprep.subr.mxu0 0.0
    %6923 = vmatpush1.msra.mxu0 %v6806
    %6924 = vmatprep.subr.mxu0 0.0
    %6925 = vmatpush1.msra.mxu0 %v6807
    %6926 = vmatprep.subr.mxu0 0.0
    %6927 = vmatpush1.msra.mxu0 %v6808
    %6928 = vmatprep.subr.mxu0 0.0
    %6929 = vmatpush1.msra.mxu0 %v6809
    %6930 = vmatprep.subr.mxu0 0.0
    %6931 = vmatpush1.msra.mxu0 %v6810
    %6932 = vmatprep.subr.mxu0 0.0
    %6933 = vmatpush1.msra.mxu0 %v6811
    %6934 = vmatprep.subr.mxu0 0.0
    %6935 = vmatpush1.msra.mxu0 %v6812
    %6936 = vmatprep.subr.mxu0 0.0
    %6937 = vmatpush1.msra.mxu0 %v6813
    %6938 = vmatprep.subr.mxu0 0.0
    %6939 = vmatpush1.msra.mxu0 %v6814
    %6940 = vmatprep.subr.mxu0 0.0
    %6941 = vmatpush1.msra.mxu0 %v6815
    %6942 = vmatprep.subr.mxu0 0.0
    %6943 = vmatpush1.msra.mxu0 %v6816
    %6944 = vmatprep.subr.mxu0 0.0
    %6945 = vmatpush1.msra.mxu0 %v6817
    %6946 = vmatprep.subr.mxu0 0.0
    %6947 = vmatpush1.msra.mxu0 %v6818
    %6948 = vmatprep.subr.mxu0 0.0
    %6949 = vmatpush1.msra.mxu0 %v6819
    %6950 = vmatprep.subr.mxu0 0.0
    %6951 = vmatpush1.msra.mxu0 %v6820
    %6952 = vmatprep.subr.mxu0 0.0
    %6953 = vmatpush1.msra.mxu0 %v6821
    %6954 = vmatprep.subr.mxu0 0.0
    %6955 = vmatpush1.msra.mxu0 %v6822
    %6956 = vmatprep.subr.mxu0 0.0
    %6957 = vmatpush1.msra.mxu0 %v6823
    %6958 = vmatprep.subr.mxu0 0.0
    %6959 = vmatpush1.msra.mxu0 %v6824
    %6960 = vmatprep.subr.mxu0 0.0
    %6961 = vmatpush1.msra.mxu0 %v6825
    %6962 = vmatprep.subr.mxu0 0.0
    %6963 = vmatpush1.msra.mxu0 %v6826
    %6964 = vmatprep.subr.mxu0 0.0
    %6965 = vmatpush1.msra.mxu0 %v6827
    %6966 = vmatprep.subr.mxu0 0.0
    %6967 = vmatpush1.msra.mxu0 %v6828
    %6968 = vmatprep.subr.mxu0 0.0
    %6969 = vmatpush1.msra.mxu0 %v6829
    %6970 = vmatprep.subr.mxu0 0.0
    %6971 = vmatpush1.msra.mxu0 %v6830
    %6972 = vmatprep.mubr.f32.mxu0 %v6481
    %6973 = vmatmul.mubr.f32.gmra.mrb[0].mxu0 %v6479
    %v6974 = vpop.f32.mrb[0].mxu0
    %v6975 = vadd.f32 %v6905, %v6974
    %v6976 = vpop.f32.mrb[0].mxu0
    %6977 = vdwg.mxu0
    %v6978 = vld [vmem:[%s35] sm:$0xff]
    %v6979 = vld [vmem:[%s35 + $0x8] sm:$0xff]
    %v6980 = vld [vmem:[%s35 + $0x10] sm:$0xff]
    %v6981 = vld [vmem:[%s35 + $0x18] sm:$0xff]
    %v6982 = vld [vmem:[%s35 + $0x20] sm:$0xff]
    %v6983 = vld [vmem:[%s35 + $0x28] sm:$0xff]
    %v6984 = vld [vmem:[%s35 + $0x30] sm:$0xff]
    %v6985 = vld [vmem:[%s35 + $0x38] sm:$0xff]
    %v6986 = vld [vmem:[#allocation20] sm:$0x1]
    %v6988 = vlaneseq
    %v6989 = vshrl.u32 %v6988, 7
    %v6990 = vsub.s32 0, %v6989
    %v6991 = vrot.slane %v6986, %v6990
    %v6994 = vsel %vm1025, %v6975, 0
    %6996 = vmatprep.subr.mxu0 0.0
    %6997 = vmatpush1.msra.mxu0 %v6978
    %6998 = vmatprep.subr.mxu0 0.0
    %6999 = vmatpush1.msra.mxu0 %v6979
    %7000 = vmatprep.subr.mxu0 0.0
    %7001 = vmatpush1.msra.mxu0 %v6980
    %7002 = vmatprep.subr.mxu0 0.0
    %7003 = vmatpush1.msra.mxu0 %v6981
    %7004 = vmatprep.subr.mxu0 0.0
    %7005 = vmatpush1.msra.mxu0 %v6982
    %7006 = vmatprep.subr.mxu0 0.0
    %7007 = vmatpush1.msra.mxu0 %v6983
    %7008 = vmatprep.subr.mxu0 0.0
    %7009 = vmatpush1.msra.mxu0 %v6984
    %7010 = vmatprep.subr.mxu0 0.0
    %7011 = vmatpush1.msra.mxu0 %v6985
    %7012 = vmatprep.subr.mxu0 0.0
    %7013 = vmatpush1.msra.mxu0 0.0
    %7014 = vmatprep.subr.mxu0 0.0
    %7015 = vmatpush1.msra.mxu0 0.0
    %7016 = vmatprep.subr.mxu0 0.0
    %7017 = vmatpush1.msra.mxu0 0.0
    %7018 = vmatprep.subr.mxu0 0.0
    %7019 = vmatpush1.msra.mxu0 0.0
    %7020 = vmatprep.subr.mxu0 0.0
    %7021 = vmatpush1.msra.mxu0 0.0
    %7022 = vmatprep.subr.mxu0 0.0
    %7023 = vmatpush1.msra.mxu0 0.0
    %7024 = vmatprep.subr.mxu0 0.0
    %7025 = vmatpush1.msra.mxu0 0.0
    %7026 = vmatprep.subr.mxu0 0.0
    %7027 = vmatpush1.msra.mxu0 0.0
    %7028 = vmatprep.subr.mxu0 0.0
    %7029 = vmatpush1.msra.mxu0 0.0
    %7030 = vmatprep.subr.mxu0 0.0
    %7031 = vmatpush1.msra.mxu0 0.0
    %7032 = vmatprep.subr.mxu0 0.0
    %7033 = vmatpush1.msra.mxu0 0.0
    %7034 = vmatprep.subr.mxu0 0.0
    %7035 = vmatpush1.msra.mxu0 0.0
    %7036 = vmatprep.subr.mxu0 0.0
    %7037 = vmatpush1.msra.mxu0 0.0
    %7038 = vmatprep.subr.mxu0 0.0
    %7039 = vmatpush1.msra.mxu0 0.0
    %7040 = vmatprep.subr.mxu0 0.0
    %7041 = vmatpush1.msra.mxu0 0.0
    %7042 = vmatprep.subr.mxu0 0.0
    %7043 = vmatpush1.msra.mxu0 0.0
    %7044 = vmatprep.subr.mxu0 0.0
    %7045 = vmatpush1.msra.mxu0 0.0
    %7046 = vmatprep.subr.mxu0 0.0
    %7047 = vmatpush1.msra.mxu0 0.0
    %7048 = vmatprep.subr.mxu0 0.0
    %7049 = vmatpush1.msra.mxu0 0.0
    %7050 = vmatprep.subr.mxu0 0.0
    %7051 = vmatpush1.msra.mxu0 0.0
    %7052 = vmatprep.subr.mxu0 0.0
    %7053 = vmatpush1.msra.mxu0 0.0
    %7054 = vmatprep.subr.mxu0 0.0
    %7055 = vmatpush1.msra.mxu0 0.0
    %7056 = vmatprep.subr.mxu0 0.0
    %7057 = vmatpush1.msra.mxu0 0.0
    %7058 = vmatprep.subr.mxu0 0.0
    %7059 = vmatpush1.msra.mxu0 0.0
    %7060 = vmatprep.mubr.f32.mxu0 0.0
    %7061 = vmatmul.mubr.f32.gmra.mrb[0].mxu0 %v6994
    %v7062 = vpop.f32.mrb[0].mxu0
    %v7063 = vadd.f32 %v6991, %v7062
    %v7064 = vpop.f32.mrb[0].mxu0
    %7065 = vdwg.mxu0
    %v7066 = vld [vmem:[#allocation21] sm:$0x1]
    %v7067 = vld [vmem:[#allocation23] sm:$0x1]
    %vm7068 = vcmask 254976
    %v7069 = vsel %vm7068, %v7063, 0.0
    %7070 = vadd.xlane.f32.xlu0 %v7069
    %v7071 = vpop.xlane.xlu0 %7070
    %v7072 = vrcp.pop 32.0
    %v7073 = vmul.f32 %v7071, %v7072
    %v7074 = vsub.f32 %v7063, %v7073
    %v7075 = vmul.f32 %v7074, %v7074
    %v7076 = vsel %vm7068, %v7075, 0.0
    %7077 = vadd.xlane.f32.xlu0 %v7076
    %v7078 = vpop.xlane.xlu0 %7077
    %v7079 = vmul.f32 %v7078, %v7072
    %v7080 = vadd.f32 %v7079, 1e-05
    %v7081 = vrsqrt.pop %v7080
    %v7082 = vmul.f32 %v7074, %v7081
    %v7084 = vlaneseq
    %v7085 = vshrl.u32 %v7084, 7
    %v7086 = vsub.s32 0, %v7085
    %v7087 = vrot.slane %v7066, %v7086
    %v7089 = vmul.f32 %v7082, %v7087
    %v7091 = vlaneseq
    %v7092 = vshrl.u32 %v7091, 7
    %v7093 = vsub.s32 0, %v7092
    %v7094 = vrot.slane %v7067, %v7093
    %v7096 = vadd.f32 %v7089, %v7094
    %v7097 = vmax.f32 %v7096, 0.0
    %v7098 = vld [vmem:[%s43] sm:$0xff]
    %v7099 = vld [vmem:[%s43 + $0x8] sm:$0xff]
    %v7100 = vld [vmem:[%s43 + $0x10] sm:$0xff]
    %v7101 = vld [vmem:[%s43 + $0x18] sm:$0xff]
    %v7102 = vld [vmem:[%s43 + $0x20] sm:$0xff]
    %v7103 = vld [vmem:[%s43 + $0x28] sm:$0xff]
    %v7104 = vld [vmem:[%s43 + $0x30] sm:$0xff]
    %v7105 = vld [vmem:[%s43 + $0x38] sm:$0xff]
    %7106 = vmatprep.subr.mxu0 0.0
    %7107 = vmatpush1.msra.mxu0 %v7098
    %7108 = vmatprep.subr.mxu0 0.0
    %7109 = vmatpush1.msra.mxu0 %v7099
    %7110 = vmatprep.subr.mxu0 0.0
    %7111 = vmatpush1.msra.mxu0 %v7100
    %7112 = vmatprep.subr.mxu0 0.0
    %7113 = vmatpush1.msra.mxu0 %v7101
    %7114 = vmatprep.subr.mxu0 0.0
    %7115 = vmatpush1.msra.mxu0 %v7102
    %7116 = vmatprep.subr.mxu0 0.0
    %7117 = vmatpush1.msra.mxu0 %v7103
    %7118 = vmatprep.subr.mxu0 0.0
    %7119 = vmatpush1.msra.mxu0 %v7104
    %7120 = vmatprep.subr.mxu0 0.0
    %7121 = vmatpush1.msra.mxu0 %v7105
    %7122 = vmatprep.subr.mxu0 0.0
    %7123 = vmatpush1.msra.mxu0 0.0
    %7124 = vmatprep.subr.mxu0 0.0
    %7125 = vmatpush1.msra.mxu0 0.0
    %7126 = vmatprep.subr.mxu0 0.0
    %7127 = vmatpush1.msra.mxu0 0.0
    %7128 = vmatprep.subr.mxu0 0.0
    %7129 = vmatpush1.msra.mxu0 0.0
    %7130 = vmatprep.subr.mxu0 0.0
    %7131 = vmatpush1.msra.mxu0 0.0
    %7132 = vmatprep.subr.mxu0 0.0
    %7133 = vmatpush1.msra.mxu0 0.0
    %7134 = vmatprep.subr.mxu0 0.0
    %7135 = vmatpush1.msra.mxu0 0.0
    %7136 = vmatprep.subr.mxu0 0.0
    %7137 = vmatpush1.msra.mxu0 0.0
    %7138 = vmatprep.subr.mxu0 0.0
    %7139 = vmatpush1.msra.mxu0 0.0
    %7140 = vmatprep.subr.mxu0 0.0
    %7141 = vmatpush1.msra.mxu0 0.0
    %7142 = vmatprep.subr.mxu0 0.0
    %7143 = vmatpush1.msra.mxu0 0.0
    %7144 = vmatprep.subr.mxu0 0.0
    %7145 = vmatpush1.msra.mxu0 0.0
    %7146 = vmatprep.subr.mxu0 0.0
    %7147 = vmatpush1.msra.mxu0 0.0
    %7148 = vmatprep.subr.mxu0 0.0
    %7149 = vmatpush1.msra.mxu0 0.0
    %7150 = vmatprep.subr.mxu0 0.0
    %7151 = vmatpush1.msra.mxu0 0.0
    %7152 = vmatprep.subr.mxu0 0.0
    %7153 = vmatpush1.msra.mxu0 0.0
    %7154 = vmatprep.subr.mxu0 0.0
    %7155 = vmatpush1.msra.mxu0 0.0
    %7156 = vmatprep.subr.mxu0 0.0
    %7157 = vmatpush1.msra.mxu0 0.0
    %7158 = vmatprep.subr.mxu0 0.0
    %7159 = vmatpush1.msra.mxu0 0.0
    %7160 = vmatprep.subr.mxu0 0.0
    %7161 = vmatpush1.msra.mxu0 0.0
    %7162 = vmatprep.subr.mxu0 0.0
    %7163 = vmatpush1.msra.mxu0 0.0
    %7164 = vmatprep.subr.mxu0 0.0
    %7165 = vmatpush1.msra.mxu0 0.0
    %7166 = vmatprep.subr.mxu0 0.0
    %7167 = vmatpush1.msra.mxu0 0.0
    %7168 = vmatprep.subr.mxu0 0.0
    %7169 = vmatpush1.msra.mxu0 0.0
    %7170 = vmatprep.mubr.f32.mxu0 0.0
    %7171 = vmatmul.mubr.f32.gmra.mrb[0].mxu0 %v6994
    %v7172 = vpop.f32.mrb[0].mxu0
    %v7173 = vadd.f32 0.0, %v7172
    %v7174 = vpop.f32.mrb[0].mxu0
    %7175 = vdwg.mxu0
    %v7176 = vadd.f32 %v7097, %v7173
    %v7177 = vld [vmem:[#allocation24] sm:$0x1]
    %v7179 = vlaneseq
    %v7180 = vshrl.u32 %v7179, 7
    %v7181 = vsub.s32 0, %v7180
    %v7182 = vrot.slane %v7177, %v7181
    %v7184 = vadd.f32 %v7176, %v7182
    %v7185 = vld [vmem:[%s47] sm:$0xff]
    %v7186 = vld [vmem:[%s47 + $0x8] sm:$0xff]
    %v7187 = vld [vmem:[%s47 + $0x10] sm:$0xff]
    %v7188 = vld [vmem:[%s47 + $0x18] sm:$0xff]
    %v7189 = vld [vmem:[#allocation26] sm:$0x1]
    %v7191 = vlaneseq
    %v7192 = vshrl.u32 %v7191, 7
    %v7193 = vsub.s32 0, %v7192
    %v7194 = vrot.slane %v7189, %v7193
    %vm7196 = vcmask 261120
    %v7198 = vsel %vm7196, %v7184, 0
    %7200 = vmatprep.subr.mxu0 0.0
    %7201 = vmatpush1.msra.mxu0 %v7185
    %7202 = vmatprep.subr.mxu0 0.0
    %7203 = vmatpush1.msra.mxu0 %v7186
    %7204 = vmatprep.subr.mxu0 0.0
    %7205 = vmatpush1.msra.mxu0 %v7187
    %7206 = vmatprep.subr.mxu0 0.0
    %7207 = vmatpush1.msra.mxu0 %v7188
    %7208 = vmatprep.subr.mxu0 0.0
    %7209 = vmatpush1.msra.mxu0 0.0
    %7210 = vmatprep.subr.mxu0 0.0
    %7211 = vmatpush1.msra.mxu0 0.0
    %7212 = vmatprep.subr.mxu0 0.0
    %7213 = vmatpush1.msra.mxu0 0.0
    %7214 = vmatprep.subr.mxu0 0.0
    %7215 = vmatpush1.msra.mxu0 0.0
    %7216 = vmatprep.subr.mxu0 0.0
    %7217 = vmatpush1.msra.mxu0 0.0
    %7218 = vmatprep.subr.mxu0 0.0
    %7219 = vmatpush1.msra.mxu0 0.0
    %7220 = vmatprep.subr.mxu0 0.0
    %7221 = vmatpush1.msra.mxu0 0.0
    %7222 = vmatprep.subr.mxu0 0.0
    %7223 = vmatpush1.msra.mxu0 0.0
    %7224 = vmatprep.subr.mxu0 0.0
    %7225 = vmatpush1.msra.mxu0 0.0
    %7226 = vmatprep.subr.mxu0 0.0
    %7227 = vmatpush1.msra.mxu0 0.0
    %7228 = vmatprep.subr.mxu0 0.0
    %7229 = vmatpush1.msra.mxu0 0.0
    %7230 = vmatprep.subr.mxu0 0.0
    %7231 = vmatpush1.msra.mxu0 0.0
    %7232 = vmatprep.subr.mxu0 0.0
    %7233 = vmatpush1.msra.mxu0 0.0
    %7234 = vmatprep.subr.mxu0 0.0
    %7235 = vmatpush1.msra.mxu0 0.0
    %7236 = vmatprep.subr.mxu0 0.0
    %7237 = vmatpush1.msra.mxu0 0.0
    %7238 = vmatprep.subr.mxu0 0.0
    %7239 = vmatpush1.msra.mxu0 0.0
    %7240 = vmatprep.subr.mxu0 0.0
    %7241 = vmatpush1.msra.mxu0 0.0
    %7242 = vmatprep.subr.mxu0 0.0
    %7243 = vmatpush1.msra.mxu0 0.0
    %7244 = vmatprep.subr.mxu0 0.0
    %7245 = vmatpush1.msra.mxu0 0.0
    %7246 = vmatprep.subr.mxu0 0.0
    %7247 = vmatpush1.msra.mxu0 0.0
    %7248 = vmatprep.subr.mxu0 0.0
    %7249 = vmatpush1.msra.mxu0 0.0
    %7250 = vmatprep.subr.mxu0 0.0
    %7251 = vmatpush1.msra.mxu0 0.0
    %7252 = vmatprep.subr.mxu0 0.0
    %7253 = vmatpush1.msra.mxu0 0.0
    %7254 = vmatprep.subr.mxu0 0.0
    %7255 = vmatpush1.msra.mxu0 0.0
    %7256 = vmatprep.subr.mxu0 0.0
    %7257 = vmatpush1.msra.mxu0 0.0
    %7258 = vmatprep.subr.mxu0 0.0
    %7259 = vmatpush1.msra.mxu0 0.0
    %7260 = vmatprep.subr.mxu0 0.0
    %7261 = vmatpush1.msra.mxu0 0.0
    %7262 = vmatprep.subr.mxu0 0.0
    %7263 = vmatpush1.msra.mxu0 0.0
    %7264 = vmatprep.mubr.f32.mxu0 0.0
    %7265 = vmatmul.mubr.f32.gmra.mrb[0].mxu0 %v7198
    %v7266 = vpop.f32.mrb[0].mxu0
    %v7267 = vadd.f32 %v7194, %v7266
    %v7268 = vpop.f32.mrb[0].mxu0
    %7269 = vdwg.mxu0
    %v7270 = vmax.f32 %v7267, 0.0
    %v7271 = vld [vmem:[#allocation27] sm:$0x1]
    %v7272 = vld [vmem:[#allocation29] sm:$0x1]
    %vm7273 = vcmask 123904
    %v7274 = vsel %vm7273, %v7270, 0.0
    %7275 = vadd.xlane.f32.xlu0 %v7274
    %v7276 = vpop.xlane.xlu0 %7275
    %v7277 = vrcp.pop 16.0
    %v7278 = vmul.f32 %v7276, %v7277
    %v7279 = vsub.f32 %v7270, %v7278
    %v7280 = vmul.f32 %v7279, %v7279
    %v7281 = vsel %vm7273, %v7280, 0.0
    %7282 = vadd.xlane.f32.xlu0 %v7281
    %v7283 = vpop.xlane.xlu0 %7282
    %v7284 = vmul.f32 %v7283, %v7277
    %v7285 = vadd.f32 %v7284, 1e-05
    %v7286 = vrsqrt.pop %v7285
    %v7287 = vmul.f32 %v7279, %v7286
    %v7289 = vlaneseq
    %v7290 = vshrl.u32 %v7289, 7
    %v7291 = vsub.s32 0, %v7290
    %v7292 = vrot.slane %v7271, %v7291
    %v7294 = vmul.f32 %v7287, %v7292
    %v7296 = vlaneseq
    %v7297 = vshrl.u32 %v7296, 7
    %v7298 = vsub.s32 0, %v7297
    %v7299 = vrot.slane %v7272, %v7298
    %v7301 = vadd.f32 %v7294, %v7299
    %v7302 = vld [vmem:[%s55] sm:$0xff]
    %v7303 = vld [vmem:[%s55 + $0x8] sm:$0xff]
    %v7304 = vld [vmem:[#allocation30] sm:$0x1]
    %v7306 = vlaneseq
    %v7307 = vshrl.u32 %v7306, 7
    %v7308 = vsub.s32 0, %v7307
    %v7309 = vrot.slane %v7304, %v7308
    %v7312 = vsel %vm443, %v7301, 0
    %7314 = vmatprep.subr.mxu0 0.0
    %7315 = vmatpush1.msra.mxu0 %v7302
    %7316 = vmatprep.subr.mxu0 0.0
    %7317 = vmatpush1.msra.mxu0 %v7303
    %7318 = vmatprep.subr.mxu0 0.0
    %7319 = vmatpush1.msra.mxu0 0.0
    %7320 = vmatprep.subr.mxu0 0.0
    %7321 = vmatpush1.msra.mxu0 0.0
    %7322 = vmatprep.subr.mxu0 0.0
    %7323 = vmatpush1.msra.mxu0 0.0
    %7324 = vmatprep.subr.mxu0 0.0
    %7325 = vmatpush1.msra.mxu0 0.0
    %7326 = vmatprep.subr.mxu0 0.0
    %7327 = vmatpush1.msra.mxu0 0.0
    %7328 = vmatprep.subr.mxu0 0.0
    %7329 = vmatpush1.msra.mxu0 0.0
    %7330 = vmatprep.subr.mxu0 0.0
    %7331 = vmatpush1.msra.mxu0 0.0
    %7332 = vmatprep.subr.mxu0 0.0
    %7333 = vmatpush1.msra.mxu0 0.0
    %7334 = vmatprep.subr.mxu0 0.0
    %7335 = vmatpush1.msra.mxu0 0.0
    %7336 = vmatprep.subr.mxu0 0.0
    %7337 = vmatpush1.msra.mxu0 0.0
    %7338 = vmatprep.subr.mxu0 0.0
    %7339 = vmatpush1.msra.mxu0 0.0
    %7340 = vmatprep.subr.mxu0 0.0
    %7341 = vmatpush1.msra.mxu0 0.0
    %7342 = vmatprep.subr.mxu0 0.0
    %7343 = vmatpush1.msra.mxu0 0.0
    %7344 = vmatprep.subr.mxu0 0.0
    %7345 = vmatpush1.msra.mxu0 0.0
    %7346 = vmatprep.subr.mxu0 0.0
    %7347 = vmatpush1.msra.mxu0 0.0
    %7348 = vmatprep.subr.mxu0 0.0
    %7349 = vmatpush1.msra.mxu0 0.0
    %7350 = vmatprep.subr.mxu0 0.0
    %7351 = vmatpush1.msra.mxu0 0.0
    %7352 = vmatprep.subr.mxu0 0.0
    %7353 = vmatpush1.msra.mxu0 0.0
    %7354 = vmatprep.subr.mxu0 0.0
    %7355 = vmatpush1.msra.mxu0 0.0
    %7356 = vmatprep.subr.mxu0 0.0
    %7357 = vmatpush1.msra.mxu0 0.0
    %7358 = vmatprep.subr.mxu0 0.0
    %7359 = vmatpush1.msra.mxu0 0.0
    %7360 = vmatprep.subr.mxu0 0.0
    %7361 = vmatpush1.msra.mxu0 0.0
    %7362 = vmatprep.subr.mxu0 0.0
    %7363 = vmatpush1.msra.mxu0 0.0
    %7364 = vmatprep.subr.mxu0 0.0
    %7365 = vmatpush1.msra.mxu0 0.0
    %7366 = vmatprep.subr.mxu0 0.0
    %7367 = vmatpush1.msra.mxu0 0.0
    %7368 = vmatprep.subr.mxu0 0.0
    %7369 = vmatpush1.msra.mxu0 0.0
    %7370 = vmatprep.subr.mxu0 0.0
    %7371 = vmatpush1.msra.mxu0 0.0
    %7372 = vmatprep.subr.mxu0 0.0
    %7373 = vmatpush1.msra.mxu0 0.0
    %7374 = vmatprep.subr.mxu0 0.0
    %7375 = vmatpush1.msra.mxu0 0.0
    %7376 = vmatprep.subr.mxu0 0.0
    %7377 = vmatpush1.msra.mxu0 0.0
    %7378 = vmatprep.mubr.f32.mxu0 0.0
    %7379 = vmatmul.mubr.f32.gmra.mrb[0].mxu0 %v7312
    %v7380 = vpop.f32.mrb[0].mxu0
    %v7381 = vadd.f32 %v7309, %v7380
    %v7382 = vpop.f32.mrb[0].mxu0
    %7383 = vdwg.mxu0
    %vm7384 = vcmask 17408
    %v7385 = vsel %vm7384, %v7381, -inf
    %7386 = vmax.xlane.f32.xlu0 %v7385
    %v7387 = vpop.xlane.xlu0 %7386
    %v7388 = vsub.f32 %v7381, %v7387
    %v7389 = vmul.f32 %v7388, 1.442695
    %v7390 = vpow.pop %v7389
    %v7391 = vsel %vm7384, %v7390, 0.0
    %7392 = vadd.xlane.f32.xlu0 %v7391
    %v7393 = vpop.xlane.xlu0 %7392
    %v7394 = vrcp.pop %v7393
    %v7395 = vmul.f32 %v7390, %v7394
    %s7396 = scalar_lea.vmem %s31, 512
    %v7397 = vld [vmem:[%s7396] sm:$0xff]
    %v7398 = vld [vmem:[%s7396 + $0x8] sm:$0xff]
    %v7399 = vld [vmem:[%s7396 + $0x10] sm:$0xff]
    %v7400 = vld [vmem:[%s7396 + $0x18] sm:$0xff]
    %v7401 = vld [vmem:[%s7396 + $0x20] sm:$0xff]
    %v7402 = vld [vmem:[%s7396 + $0x28] sm:$0xff]
    %v7403 = vld [vmem:[%s7396 + $0x30] sm:$0xff]
    %v7404 = vld [vmem:[%s7396 + $0x38] sm:$0xff]
    %v7405 = vld [vmem:[%s7396 + $0x40] sm:$0xff]
    %v7406 = vld [vmem:[%s7396 + $0x48] sm:$0xff]
    %v7407 = vld [vmem:[%s7396 + $0x50] sm:$0xff]
    %v7408 = vld [vmem:[%s7396 + $0x58] sm:$0xff]
    %v7409 = vld [vmem:[%s7396 + $0x60] sm:$0xff]
    %v7410 = vld [vmem:[%s7396 + $0x68] sm:$0xff]
    %v7411 = vld [vmem:[%s7396 + $0x70] sm:$0xff]
    %v7412 = vld [vmem:[%s7396 + $0x78] sm:$0xff]
    %v7413 = vld [vmem:[%s7396 + $0x80] sm:$0xff]
    %v7414 = vld [vmem:[%s7396 + $0x88] sm:$0xff]
    %v7415 = vld [vmem:[%s7396 + $0x90] sm:$0xff]
    %v7416 = vld [vmem:[%s7396 + $0x98] sm:$0xff]
    %v7417 = vld [vmem:[%s7396 + $0xa0] sm:$0xff]
    %v7418 = vld [vmem:[%s7396 + $0xa8] sm:$0xff]
    %v7419 = vld [vmem:[%s7396 + $0xb0] sm:$0xff]
    %v7420 = vld [vmem:[%s7396 + $0xb8] sm:$0xff]
    %v7421 = vld [vmem:[%s7396 + $0xc0] sm:$0xff]
    %v7422 = vld [vmem:[%s7396 + $0xc8] sm:$0xff]
    %v7423 = vld [vmem:[%s7396 + $0xd0] sm:$0xff]
    %v7424 = vld [vmem:[%s7396 + $0xd8] sm:$0xff]
    %v7425 = vld [vmem:[%s7396 + $0xe0] sm:$0xff]
    %v7426 = vld [vmem:[%s7396 + $0xe8] sm:$0xff]
    %v7427 = vld [vmem:[%s7396 + $0xf0] sm:$0xff]
    %v7428 = vld [vmem:[%s7396 + $0xf8] sm:$0xff]
    %v7429 = vld [vmem:[%s7396 + $0x100] sm:$0xff]
    %v7430 = vld [vmem:[%s7396 + $0x108] sm:$0xff]
    %v7431 = vld [vmem:[%s7396 + $0x110] sm:$0xff]
    %v7432 = vld [vmem:[%s7396 + $0x118] sm:$0xff]
    %v7433 = vld [vmem:[%s7396 + $0x120] sm:$0xff]
    %v7434 = vld [vmem:[%s7396 + $0x128] sm:$0xff]
    %v7435 = vld [vmem:[%s7396 + $0x130] sm:$0xff]
    %v7436 = vld [vmem:[%s7396 + $0x138] sm:$0xff]
    %v7437 = vld [vmem:[%s7396 + $0x140] sm:$0xff]
    %v7438 = vld [vmem:[%s7396 + $0x148] sm:$0xff]
    %v7439 = vld [vmem:[%s7396 + $0x150] sm:$0xff]
    %v7440 = vld [vmem:[%s7396 + $0x158] sm:$0xff]
    %v7441 = vld [vmem:[%s7396 + $0x160] sm:$0xff]
    %v7442 = vld [vmem:[%s7396 + $0x168] sm:$0xff]
    %v7443 = vld [vmem:[%s7396 + $0x170] sm:$0xff]
    %v7444 = vld [vmem:[%s7396 + $0x178] sm:$0xff]
    %v7445 = vld [vmem:[%s7396 + $0x180] sm:$0xff]
    %v7446 = vld [vmem:[%s7396 + $0x188] sm:$0xff]
    %v7447 = vld [vmem:[%s7396 + $0x190] sm:$0xff]
    %v7448 = vld [vmem:[%s7396 + $0x198] sm:$0xff]
    %v7449 = vld [vmem:[%s7396 + $0x1a0] sm:$0xff]
    %v7450 = vld [vmem:[%s7396 + $0x1a8] sm:$0xff]
    %v7451 = vld [vmem:[%s7396 + $0x1b0] sm:$0xff]
    %v7452 = vld [vmem:[%s7396 + $0x1b8] sm:$0xff]
    %v7453 = vld [vmem:[%s7396 + $0x1c0] sm:$0xff]
    %v7454 = vld [vmem:[%s7396 + $0x1c8] sm:$0xff]
    %v7455 = vld [vmem:[%s7396 + $0x1d0] sm:$0xff]
    %v7456 = vld [vmem:[%s7396 + $0x1d8] sm:$0xff]
    %v7457 = vld [vmem:[%s7396 + $0x1e0] sm:$0xff]
    %v7458 = vld [vmem:[%s7396 + $0x1e8] sm:$0xff]
    %v7459 = vld [vmem:[%s7396 + $0x1f0] sm:$0xff]
    %v7460 = vld [vmem:[%s7396 + $0x1f8] sm:$0xff]
    %s7461 = scalar_lea.vmem [#allocation18], 1
    %v7462 = vld [vmem:[%s7461] sm:$0x1]
    %v7464 = vlaneseq
    %v7465 = vshrl.u32 %v7464, 7
    %v7466 = vsub.s32 0, %v7465
    %v7467 = vrot.slane %v7462, %v7466
    %7469 = vmatprep.subr.mxu0 0.0
    %7470 = vmatpush1.msra.mxu0 %v7397
    %7471 = vmatprep.subr.mxu0 0.0
    %7472 = vmatpush1.msra.mxu0 %v7398
    %7473 = vmatprep.subr.mxu0 0.0
    %7474 = vmatpush1.msra.mxu0 %v7399
    %7475 = vmatprep.subr.mxu0 0.0
    %7476 = vmatpush1.msra.mxu0 %v7400
    %7477 = vmatprep.subr.mxu0 0.0
    %7478 = vmatpush1.msra.mxu0 %v7401
    %7479 = vmatprep.subr.mxu0 0.0
    %7480 = vmatpush1.msra.mxu0 %v7402
    %7481 = vmatprep.subr.mxu0 0.0
    %7482 = vmatpush1.msra.mxu0 %v7403
    %7483 = vmatprep.subr.mxu0 0.0
    %7484 = vmatpush1.msra.mxu0 %v7404
    %7485 = vmatprep.subr.mxu0 0.0
    %7486 = vmatpush1.msra.mxu0 %v7405
    %7487 = vmatprep.subr.mxu0 0.0
    %7488 = vmatpush1.msra.mxu0 %v7406
    %7489 = vmatprep.subr.mxu0 0.0
    %7490 = vmatpush1.msra.mxu0 %v7407
    %7491 = vmatprep.subr.mxu0 0.0
    %7492 = vmatpush1.msra.mxu0 %v7408
    %7493 = vmatprep.subr.mxu0 0.0
    %7494 = vmatpush1.msra.mxu0 %v7409
    %7495 = vmatprep.subr.mxu0 0.0
    %7496 = vmatpush1.msra.mxu0 %v7410
    %7497 = vmatprep.subr.mxu0 0.0
    %7498 = vmatpush1.msra.mxu0 %v7411
    %7499 = vmatprep.subr.mxu0 0.0
    %7500 = vmatpush1.msra.mxu0 %v7412
    %7501 = vmatprep.subr.mxu0 0.0
    %7502 = vmatpush1.msra.mxu0 %v7413
    %7503 = vmatprep.subr.mxu0 0.0
    %7504 = vmatpush1.msra.mxu0 %v7414
    %7505 = vmatprep.subr.mxu0 0.0
    %7506 = vmatpush1.msra.mxu0 %v7415
    %7507 = vmatprep.subr.mxu0 0.0
    %7508 = vmatpush1.msra.mxu0 %v7416
    %7509 = vmatprep.subr.mxu0 0.0
    %7510 = vmatpush1.msra.mxu0 %v7417
    %7511 = vmatprep.subr.mxu0 0.0
    %7512 = vmatpush1.msra.mxu0 %v7418
    %7513 = vmatprep.subr.mxu0 0.0
    %7514 = vmatpush1.msra.mxu0 %v7419
    %7515 = vmatprep.subr.mxu0 0.0
    %7516 = vmatpush1.msra.mxu0 %v7420
    %7517 = vmatprep.subr.mxu0 0.0
    %7518 = vmatpush1.msra.mxu0 %v7421
    %7519 = vmatprep.subr.mxu0 0.0
    %7520 = vmatpush1.msra.mxu0 %v7422
    %7521 = vmatprep.subr.mxu0 0.0
    %7522 = vmatpush1.msra.mxu0 %v7423
    %7523 = vmatprep.subr.mxu0 0.0
    %7524 = vmatpush1.msra.mxu0 %v7424
    %7525 = vmatprep.subr.mxu0 0.0
    %7526 = vmatpush1.msra.mxu0 %v7425
    %7527 = vmatprep.subr.mxu0 0.0
    %7528 = vmatpush1.msra.mxu0 %v7426
    %7529 = vmatprep.subr.mxu0 0.0
    %7530 = vmatpush1.msra.mxu0 %v7427
    %7531 = vmatprep.subr.mxu0 0.0
    %7532 = vmatpush1.msra.mxu0 %v7428
    %7533 = vmatprep.mubr.f32.mxu0 %v6552
    %7534 = vmatmul.mubr.f32.gmra.mrb[0].mxu0 %v6550
    %v7535 = vpop.f32.mrb[0].mxu0
    %v7536 = vadd.f32 %v7467, %v7535
    %v7537 = vpop.f32.mrb[0].mxu0
    %7538 = vdwg.mxu0
    %7539 = vmatprep.subr.mxu0 0.0
    %7540 = vmatpush1.msra.mxu0 %v7429
    %7541 = vmatprep.subr.mxu0 0.0
    %7542 = vmatpush1.msra.mxu0 %v7430
    %7543 = vmatprep.subr.mxu0 0.0
    %7544 = vmatpush1.msra.mxu0 %v7431
    %7545 = vmatprep.subr.mxu0 0.0
    %7546 = vmatpush1.msra.mxu0 %v7432
    %7547 = vmatprep.subr.mxu0 0.0
    %7548 = vmatpush1.msra.mxu0 %v7433
    %7549 = vmatprep.subr.mxu0 0.0
    %7550 = vmatpush1.msra.mxu0 %v7434
    %7551 = vmatprep.subr.mxu0 0.0
    %7552 = vmatpush1.msra.mxu0 %v7435
    %7553 = vmatprep.subr.mxu0 0.0
    %7554 = vmatpush1.msra.mxu0 %v7436
    %7555 = vmatprep.subr.mxu0 0.0
    %7556 = vmatpush1.msra.mxu0 %v7437
    %7557 = vmatprep.subr.mxu0 0.0
    %7558 = vmatpush1.msra.mxu0 %v7438
    %7559 = vmatprep.subr.mxu0 0.0
    %7560 = vmatpush1.msra.mxu0 %v7439
    %7561 = vmatprep.subr.mxu0 0.0
    %7562 = vmatpush1.msra.mxu0 %v7440
    %7563 = vmatprep.subr.mxu0 0.0
    %7564 = vmatpush1.msra.mxu0 %v7441
    %7565 = vmatprep.subr.mxu0 0.0
    %7566 = vmatpush1.msra.mxu0 %v7442
    %7567 = vmatprep.subr.mxu0 0.0
    %7568 = vmatpush1.msra.mxu0 %v7443
    %7569 = vmatprep.subr.mxu0 0.0
    %7570 = vmatpush1.msra.mxu0 %v7444
    %7571 = vmatprep.subr.mxu0 0.0
    %7572 = vmatpush1.msra.mxu0 %v7445
    %7573 = vmatprep.subr.mxu0 0.0
    %7574 = vmatpush1.msra.mxu0 %v7446
    %7575 = vmatprep.subr.mxu0 0.0
    %7576 = vmatpush1.msra.mxu0 %v7447
    %7577 = vmatprep.subr.mxu0 0.0
    %7578 = vmatpush1.msra.mxu0 %v7448
    %7579 = vmatprep.subr.mxu0 0.0
    %7580 = vmatpush1.msra.mxu0 %v7449
    %7581 = vmatprep.subr.mxu0 0.0
    %7582 = vmatpush1.msra.mxu0 %v7450
    %7583 = vmatprep.subr.mxu0 0.0
    %7584 = vmatpush1.msra.mxu0 %v7451
    %7585 = vmatprep.subr.mxu0 0.0
    %7586 = vmatpush1.msra.mxu0 %v7452
    %7587 = vmatprep.subr.mxu0 0.0
    %7588 = vmatpush1.msra.mxu0 %v7453
    %7589 = vmatprep.subr.mxu0 0.0
    %7590 = vmatpush1.msra.mxu0 %v7454
    %7591 = vmatprep.subr.mxu0 0.0
    %7592 = vmatpush1.msra.mxu0 %v7455
    %7593 = vmatprep.subr.mxu0 0.0
    %7594 = vmatpush1.msra.mxu0 %v7456
    %7595 = vmatprep.subr.mxu0 0.0
    %7596 = vmatpush1.msra.mxu0 %v7457
    %7597 = vmatprep.subr.mxu0 0.0
    %7598 = vmatpush1.msra.mxu0 %v7458
    %7599 = vmatprep.subr.mxu0 0.0
    %7600 = vmatpush1.msra.mxu0 %v7459
    %7601 = vmatprep.subr.mxu0 0.0
    %7602 = vmatpush1.msra.mxu0 %v7460
    %7603 = vmatprep.mubr.f32.mxu0 %v6623
    %7604 = vmatmul.mubr.f32.gmra.mrb[0].mxu0 %v6621
    %v7605 = vpop.f32.mrb[0].mxu0
    %v7606 = vadd.f32 %v7536, %v7605
    %v7607 = vpop.f32.mrb[0].mxu0
    %7608 = vdwg.mxu0
    %s7609 = scalar_lea.vmem %s35, 64
    %v7610 = vld [vmem:[%s7609] sm:$0xff]
    %v7611 = vld [vmem:[%s7609 + $0x8] sm:$0xff]
    %v7612 = vld [vmem:[%s7609 + $0x10] sm:$0xff]
    %v7613 = vld [vmem:[%s7609 + $0x18] sm:$0xff]
    %v7614 = vld [vmem:[%s7609 + $0x20] sm:$0xff]
    %v7615 = vld [vmem:[%s7609 + $0x28] sm:$0xff]
    %v7616 = vld [vmem:[%s7609 + $0x30] sm:$0xff]
    %v7617 = vld [vmem:[%s7609 + $0x38] sm:$0xff]
    %s7618 = scalar_lea.vmem [#allocation20], 1
    %v7619 = vld [vmem:[%s7618] sm:$0x1]
    %v7621 = vlaneseq
    %v7622 = vshrl.u32 %v7621, 7
    %v7623 = vsub.s32 0, %v7622
    %v7624 = vrot.slane %v7619, %v7623
    %v7627 = vsel %vm1025, %v7606, 0
    %7629 = vmatprep.subr.mxu0 0.0
    %7630 = vmatpush1.msra.mxu0 %v7610
    %7631 = vmatprep.subr.mxu0 0.0
    %7632 = vmatpush1.msra.mxu0 %v7611
    %7633 = vmatprep.subr.mxu0 0.0
    %7634 = vmatpush1.msra.mxu0 %v7612
    %7635 = vmatprep.subr.mxu0 0.0
    %7636 = vmatpush1.msra.mxu0 %v7613
    %7637 = vmatprep.subr.mxu0 0.0
    %7638 = vmatpush1.msra.mxu0 %v7614
    %7639 = vmatprep.subr.mxu0 0.0
    %7640 = vmatpush1.msra.mxu0 %v7615
    %7641 = vmatprep.subr.mxu0 0.0
    %7642 = vmatpush1.msra.mxu0 %v7616
    %7643 = vmatprep.subr.mxu0 0.0
    %7644 = vmatpush1.msra.mxu0 %v7617
    %7645 = vmatprep.subr.mxu0 0.0
    %7646 = vmatpush1.msra.mxu0 0.0
    %7647 = vmatprep.subr.mxu0 0.0
    %7648 = vmatpush1.msra.mxu0 0.0
    %7649 = vmatprep.subr.mxu0 0.0
    %7650 = vmatpush1.msra.mxu0 0.0
    %7651 = vmatprep.subr.mxu0 0.0
    %7652 = vmatpush1.msra.mxu0 0.0
    %7653 = vmatprep.subr.mxu0 0.0
    %7654 = vmatpush1.msra.mxu0 0.0
    %7655 = vmatprep.subr.mxu0 0.0
    %7656 = vmatpush1.msra.mxu0 0.0
    %7657 = vmatprep.subr.mxu0 0.0
    %7658 = vmatpush1.msra.mxu0 0.0
    %7659 = vmatprep.subr.mxu0 0.0
    %7660 = vmatpush1.msra.mxu0 0.0
    %7661 = vmatprep.subr.mxu0 0.0
    %7662 = vmatpush1.msra.mxu0 0.0
    %7663 = vmatprep.subr.mxu0 0.0
    %7664 = vmatpush1.msra.mxu0 0.0
    %7665 = vmatprep.subr.mxu0 0.0
    %7666 = vmatpush1.msra.mxu0 0.0
    %7667 = vmatprep.subr.mxu0 0.0
    %7668 = vmatpush1.msra.mxu0 0.0
    %7669 = vmatprep.subr.mxu0 0.0
    %7670 = vmatpush1.msra.mxu0 0.0
    %7671 = vmatprep.subr.mxu0 0.0
    %7672 = vmatpush1.msra.mxu0 0.0
    %7673 = vmatprep.subr.mxu0 0.0
    %7674 = vmatpush1.msra.mxu0 0.0
    %7675 = vmatprep.subr.mxu0 0.0
    %7676 = vmatpush1.msra.mxu0 0.0
    %7677 = vmatprep.subr.mxu0 0.0
    %7678 = vmatpush1.msra.mxu0 0.0
    %7679 = vmatprep.subr.mxu0 0.0
    %7680 = vmatpush1.msra.mxu0 0.0
    %7681 = vmatprep.subr.mxu0 0.0
    %7682 = vmatpush1.msra.mxu0 0.0
    %7683 = vmatprep.subr.mxu0 0.0
    %7684 = vmatpush1.msra.mxu0 0.0
    %7685 = vmatprep.subr.mxu0 0.0
    %7686 = vmatpush1.msra.mxu0 0.0
    %7687 = vmatprep.subr.mxu0 0.0
    %7688 = vmatpush1.msra.mxu0 0.0
    %7689 = vmatprep.subr.mxu0 0.0
    %7690 = vmatpush1.msra.mxu0 0.0
    %7691 = vmatprep.subr.mxu0 0.0
    %7692 = vmatpush1.msra.mxu0 0.0
    %7693 = vmatprep.mubr.f32.mxu0 0.0
    %7694 = vmatmul.mubr.f32.gmra.mrb[0].mxu0 %v7627
    %v7695 = vpop.f32.mrb[0].mxu0
    %v7696 = vadd.f32 %v7624, %v7695
    %v7697 = vpop.f32.mrb[0].mxu0
    %7698 = vdwg.mxu0
    %s7699 = scalar_lea.vmem [#allocation21], 1
    %v7700 = vld [vmem:[%s7699] sm:$0x1]
    %s7701 = scalar_lea.vmem [#allocation23], 1
    %v7702 = vld [vmem:[%s7701] sm:$0x1]
    %v7703 = vsel %vm7068, %v7696, 0.0
    %7704 = vadd.xlane.f32.xlu0 %v7703
    %v7705 = vpop.xlane.xlu0 %7704
    %v7706 = vmul.f32 %v7705, %v7072
    %v7707 = vsub.f32 %v7696, %v7706
    %v7708 = vmul.f32 %v7707, %v7707
    %v7709 = vsel %vm7068, %v7708, 0.0
    %7710 = vadd.xlane.f32.xlu0 %v7709
    %v7711 = vpop.xlane.xlu0 %7710
    %v7712 = vmul.f32 %v7711, %v7072
    %v7713 = vadd.f32 %v7712, 1e-05
    %v7714 = vrsqrt.pop %v7713
    %v7715 = vmul.f32 %v7707, %v7714
    %v7717 = vlaneseq
    %v7718 = vshrl.u32 %v7717, 7
    %v7719 = vsub.s32 0, %v7718
    %v7720 = vrot.slane %v7700, %v7719
    %v7722 = vmul.f32 %v7715, %v7720
    %v7724 = vlaneseq
    %v7725 = vshrl.u32 %v7724, 7
    %v7726 = vsub.s32 0, %v7725
    %v7727 = vrot.slane %v7702, %v7726
    %v7729 = vadd.f32 %v7722, %v7727
    %v7730 = vmax.f32 %v7729, 0.0
    %s7731 = scalar_lea.vmem %s43, 64
    %v7732 = vld [vmem:[%s7731] sm:$0xff]
    %v7733 = vld [vmem:[%s7731 + $0x8] sm:$0xff]
    %v7734 = vld [vmem:[%s7731 + $0x10] sm:$0xff]
    %v7735 = vld [vmem:[%s7731 + $0x18] sm:$0xff]
    %v7736 = vld [vmem:[%s7731 + $0x20] sm:$0xff]
    %v7737 = vld [vmem:[%s7731 + $0x28] sm:$0xff]
    %v7738 = vld [vmem:[%s7731 + $0x30] sm:$0xff]
    %v7739 = vld [vmem:[%s7731 + $0x38] sm:$0xff]
    %7740 = vmatprep.subr.mxu0 0.0
    %7741 = vmatpush1.msra.mxu0 %v7732
    %7742 = vmatprep.subr.mxu0 0.0
    %7743 = vmatpush1.msra.mxu0 %v7733
    %7744 = vmatprep.subr.mxu0 0.0
    %7745 = vmatpush1.msra.mxu0 %v7734
    %7746 = vmatprep.subr.mxu0 0.0
    %7747 = vmatpush1.msra.mxu0 %v7735
    %7748 = vmatprep.subr.mxu0 0.0
    %7749 = vmatpush1.msra.mxu0 %v7736
    %7750 = vmatprep.subr.mxu0 0.0
    %7751 = vmatpush1.msra.mxu0 %v7737
    %7752 = vmatprep.subr.mxu0 0.0
    %7753 = vmatpush1.msra.mxu0 %v7738
    %7754 = vmatprep.subr.mxu0 0.0
    %7755 = vmatpush1.msra.mxu0 %v7739
    %7756 = vmatprep.subr.mxu0 0.0
    %7757 = vmatpush1.msra.mxu0 0.0
    %7758 = vmatprep.subr.mxu0 0.0
    %7759 = vmatpush1.msra.mxu0 0.0
    %7760 = vmatprep.subr.mxu0 0.0
    %7761 = vmatpush1.msra.mxu0 0.0
    %7762 = vmatprep.subr.mxu0 0.0
    %7763 = vmatpush1.msra.mxu0 0.0
    %7764 = vmatprep.subr.mxu0 0.0
    %7765 = vmatpush1.msra.mxu0 0.0
    %7766 = vmatprep.subr.mxu0 0.0
    %7767 = vmatpush1.msra.mxu0 0.0
    %7768 = vmatprep.subr.mxu0 0.0
    %7769 = vmatpush1.msra.mxu0 0.0
    %7770 = vmatprep.subr.mxu0 0.0
    %7771 = vmatpush1.msra.mxu0 0.0
    %7772 = vmatprep.subr.mxu0 0.0
    %7773 = vmatpush1.msra.mxu0 0.0
    %7774 = vmatprep.subr.mxu0 0.0
    %7775 = vmatpush1.msra.mxu0 0.0
    %7776 = vmatprep.subr.mxu0 0.0
    %7777 = vmatpush1.msra.mxu0 0.0
    %7778 = vmatprep.subr.mxu0 0.0
    %7779 = vmatpush1.msra.mxu0 0.0
    %7780 = vmatprep.subr.mxu0 0.0
    %7781 = vmatpush1.msra.mxu0 0.0
    %7782 = vmatprep.subr.mxu0 0.0
    %7783 = vmatpush1.msra.mxu0 0.0
    %7784 = vmatprep.subr.mxu0 0.0
    %7785 = vmatpush1.msra.mxu0 0.0
    %7786 = vmatprep.subr.mxu0 0.0
    %7787 = vmatpush1.msra.mxu0 0.0
    %7788 = vmatprep.subr.mxu0 0.0
    %7789 = vmatpush1.msra.mxu0 0.0
    %7790 = vmatprep.subr.mxu0 0.0
    %7791 = vmatpush1.msra.mxu0 0.0
    %7792 = vmatprep.subr.mxu0 0.0
    %7793 = vmatpush1.msra.mxu0 0.0
    %7794 = vmatprep.subr.mxu0 0.0
    %7795 = vmatpush1.msra.mxu0 0.0
    %7796 = vmatprep.subr.mxu0 0.0
    %7797 = vmatpush1.msra.mxu0 0.0
    %7798 = vmatprep.subr.mxu0 0.0
    %7799 = vmatpush1.msra.mxu0 0.0
    %7800 = vmatprep.subr.mxu0 0.0
    %7801 = vmatpush1.msra.mxu0 0.0
    %7802 = vmatprep.subr.mxu0 0.0
    %7803 = vmatpush1.msra.mxu0 0.0
    %7804 = vmatprep.mubr.f32.mxu0 0.0
    %7805 = vmatmul.mubr.f32.gmra.mrb[0].mxu0 %v7627
    %v7806 = vpop.f32.mrb[0].mxu0
    %v7807 = vadd.f32 0.0, %v7806
    %v7808 = vpop.f32.mrb[0].mxu0
    %7809 = vdwg.mxu0
    %v7810 = vadd.f32 %v7730, %v7807
    %s7811 = scalar_lea.vmem [#allocation24], 1
    %v7812 = vld [vmem:[%s7811] sm:$0x1]
    %v7814 = vlaneseq
    %v7815 = vshrl.u32 %v7814, 7
    %v7816 = vsub.s32 0, %v7815
    %v7817 = vrot.slane %v7812, %v7816
    %v7819 = vadd.f32 %v7810, %v7817
    %s7820 = scalar_lea.vmem %s47, 32
    %v7821 = vld [vmem:[%s7820] sm:$0xff]
    %v7822 = vld [vmem:[%s7820 + $0x8] sm:$0xff]
    %v7823 = vld [vmem:[%s7820 + $0x10] sm:$0xff]
    %v7824 = vld [vmem:[%s7820 + $0x18] sm:$0xff]
    %s7825 = scalar_lea.vmem [#allocation26], 1
    %v7826 = vld [vmem:[%s7825] sm:$0x1]
    %v7828 = vlaneseq
    %v7829 = vshrl.u32 %v7828, 7
    %v7830 = vsub.s32 0, %v7829
    %v7831 = vrot.slane %v7826, %v7830
    %v7834 = vsel %vm7196, %v7819, 0
    %7836 = vmatprep.subr.mxu0 0.0
    %7837 = vmatpush1.msra.mxu0 %v7821
    %7838 = vmatprep.subr.mxu0 0.0
    %7839 = vmatpush1.msra.mxu0 %v7822
    %7840 = vmatprep.subr.mxu0 0.0
    %7841 = vmatpush1.msra.mxu0 %v7823
    %7842 = vmatprep.subr.mxu0 0.0
    %7843 = vmatpush1.msra.mxu0 %v7824
    %7844 = vmatprep.subr.mxu0 0.0
    %7845 = vmatpush1.msra.mxu0 0.0
    %7846 = vmatprep.subr.mxu0 0.0
    %7847 = vmatpush1.msra.mxu0 0.0
    %7848 = vmatprep.subr.mxu0 0.0
    %7849 = vmatpush1.msra.mxu0 0.0
    %7850 = vmatprep.subr.mxu0 0.0
    %7851 = vmatpush1.msra.mxu0 0.0
    %7852 = vmatprep.subr.mxu0 0.0
    %7853 = vmatpush1.msra.mxu0 0.0
    %7854 = vmatprep.subr.mxu0 0.0
    %7855 = vmatpush1.msra.mxu0 0.0
    %7856 = vmatprep.subr.mxu0 0.0
    %7857 = vmatpush1.msra.mxu0 0.0
    %7858 = vmatprep.subr.mxu0 0.0
    %7859 = vmatpush1.msra.mxu0 0.0
    %7860 = vmatprep.subr.mxu0 0.0
    %7861 = vmatpush1.msra.mxu0 0.0
    %7862 = vmatprep.subr.mxu0 0.0
    %7863 = vmatpush1.msra.mxu0 0.0
    %7864 = vmatprep.subr.mxu0 0.0
    %7865 = vmatpush1.msra.mxu0 0.0
    %7866 = vmatprep.subr.mxu0 0.0
    %7867 = vmatpush1.msra.mxu0 0.0
    %7868 = vmatprep.subr.mxu0 0.0
    %7869 = vmatpush1.msra.mxu0 0.0
    %7870 = vmatprep.subr.mxu0 0.0
    %7871 = vmatpush1.msra.mxu0 0.0
    %7872 = vmatprep.subr.mxu0 0.0
    %7873 = vmatpush1.msra.mxu0 0.0
    %7874 = vmatprep.subr.mxu0 0.0
    %7875 = vmatpush1.msra.mxu0 0.0
    %7876 = vmatprep.subr.mxu0 0.0
    %7877 = vmatpush1.msra.mxu0 0.0
    %7878 = vmatprep.subr.mxu0 0.0
    %7879 = vmatpush1.msra.mxu0 0.0
    %7880 = vmatprep.subr.mxu0 0.0
    %7881 = vmatpush1.msra.mxu0 0.0
    %7882 = vmatprep.subr.mxu0 0.0
    %7883 = vmatpush1.msra.mxu0 0.0
    %7884 = vmatprep.subr.mxu0 0.0
    %7885 = vmatpush1.msra.mxu0 0.0
    %7886 = vmatprep.subr.mxu0 0.0
    %7887 = vmatpush1.msra.mxu0 0.0
    %7888 = vmatprep.subr.mxu0 0.0
    %7889 = vmatpush1.msra.mxu0 0.0
    %7890 = vmatprep.subr.mxu0 0.0
    %7891 = vmatpush1.msra.mxu0 0.0
    %7892 = vmatprep.subr.mxu0 0.0
    %7893 = vmatpush1.msra.mxu0 0.0
    %7894 = vmatprep.subr.mxu0 0.0
    %7895 = vmatpush1.msra.mxu0 0.0
    %7896 = vmatprep.subr.mxu0 0.0
    %7897 = vmatpush1.msra.mxu0 0.0
    %7898 = vmatprep.subr.mxu0 0.0
    %7899 = vmatpush1.msra.mxu0 0.0
    %7900 = vmatprep.mubr.f32.mxu0 0.0
    %7901 = vmatmul.mubr.f32.gmra.mrb[0].mxu0 %v7834
    %v7902 = vpop.f32.mrb[0].mxu0
    %v7903 = vadd.f32 %v7831, %v7902
    %v7904 = vpop.f32.mrb[0].mxu0
    %7905 = vdwg.mxu0
    %v7906 = vmax.f32 %v7903, 0.0
    %s7907 = scalar_lea.vmem [#allocation27], 1
    %v7908 = vld [vmem:[%s7907] sm:$0x1]
    %s7909 = scalar_lea.vmem [#allocation29], 1
    %v7910 = vld [vmem:[%s7909] sm:$0x1]
    %v7911 = vsel %vm7273, %v7906, 0.0
    %7912 = vadd.xlane.f32.xlu0 %v7911
    %v7913 = vpop.xlane.xlu0 %7912
    %v7914 = vmul.f32 %v7913, %v7277
    %v7915 = vsub.f32 %v7906, %v7914
    %v7916 = vmul.f32 %v7915, %v7915
    %v7917 = vsel %vm7273, %v7916, 0.0
    %7918 = vadd.xlane.f32.xlu0 %v7917
    %v7919 = vpop.xlane.xlu0 %7918
    %v7920 = vmul.f32 %v7919, %v7277
    %v7921 = vadd.f32 %v7920, 1e-05
    %v7922 = vrsqrt.pop %v7921
    %v7923 = vmul.f32 %v7915, %v7922
    %v7925 = vlaneseq
    %v7926 = vshrl.u32 %v7925, 7
    %v7927 = vsub.s32 0, %v7926
    %v7928 = vrot.slane %v7908, %v7927
    %v7930 = vmul.f32 %v7923, %v7928
    %v7932 = vlaneseq
    %v7933 = vshrl.u32 %v7932, 7
    %v7934 = vsub.s32 0, %v7933
    %v7935 = vrot.slane %v7910, %v7934
    %v7937 = vadd.f32 %v7930, %v7935
    %s7938 = scalar_lea.vmem %s55, 16
    %v7939 = vld [vmem:[%s7938] sm:$0xff]
    %v7940 = vld [vmem:[%s7938 + $0x8] sm:$0xff]
    %s7941 = scalar_lea.vmem [#allocation30], 1
    %v7942 = vld [vmem:[%s7941] sm:$0x1]
    %v7944 = vlaneseq
    %v7945 = vshrl.u32 %v7944, 7
    %v7946 = vsub.s32 0, %v7945
    %v7947 = vrot.slane %v7942, %v7946
    %v7950 = vsel %vm443, %v7937, 0
    %7952 = vmatprep.subr.mxu0 0.0
    %7953 = vmatpush1.msra.mxu0 %v7939
    %7954 = vmatprep.subr.mxu0 0.0
    %7955 = vmatpush1.msra.mxu0 %v7940
    %7956 = vmatprep.subr.mxu0 0.0
    %7957 = vmatpush1.msra.mxu0 0.0
    %7958 = vmatprep.subr.mxu0 0.0
    %7959 = vmatpush1.msra.mxu0 0.0
    %7960 = vmatprep.subr.mxu0 0.0
    %7961 = vmatpush1.msra.mxu0 0.0
    %7962 = vmatprep.subr.mxu0 0.0
    %7963 = vmatpush1.msra.mxu0 0.0
    %7964 = vmatprep.subr.mxu0 0.0
    %7965 = vmatpush1.msra.mxu0 0.0
    %7966 = vmatprep.subr.mxu0 0.0
    %7967 = vmatpush1.msra.mxu0 0.0
    %7968 = vmatprep.subr.mxu0 0.0
    %7969 = vmatpush1.msra.mxu0 0.0
    %7970 = vmatprep.subr.mxu0 0.0
    %7971 = vmatpush1.msra.mxu0 0.0
    %7972 = vmatprep.subr.mxu0 0.0
    %7973 = vmatpush1.msra.mxu0 0.0
    %7974 = vmatprep.subr.mxu0 0.0
    %7975 = vmatpush1.msra.mxu0 0.0
    %7976 = vmatprep.subr.mxu0 0.0
    %7977 = vmatpush1.msra.mxu0 0.0
    %7978 = vmatprep.subr.mxu0 0.0
    %7979 = vmatpush1.msra.mxu0 0.0
    %7980 = vmatprep.subr.mxu0 0.0
    %7981 = vmatpush1.msra.mxu0 0.0
    %7982 = vmatprep.subr.mxu0 0.0
    %7983 = vmatpush1.msra.mxu0 0.0
    %7984 = vmatprep.subr.mxu0 0.0
    %7985 = vmatpush1.msra.mxu0 0.0
    %7986 = vmatprep.subr.mxu0 0.0
    %7987 = vmatpush1.msra.mxu0 0.0
    %7988 = vmatprep.subr.mxu0 0.0
    %7989 = vmatpush1.msra.mxu0 0.0
    %7990 = vmatprep.subr.mxu0 0.0
    %7991 = vmatpush1.msra.mxu0 0.0
    %7992 = vmatprep.subr.mxu0 0.0
    %7993 = vmatpush1.msra.mxu0 0.0
    %7994 = vmatprep.subr.mxu0 0.0
    %7995 = vmatpush1.msra.mxu0 0.0
    %7996 = vmatprep.subr.mxu0 0.0
    %7997 = vmatpush1.msra.mxu0 0.0
    %7998 = vmatprep.subr.mxu0 0.0
    %7999 = vmatpush1.msra.mxu0 0.0
    %8000 = vmatprep.subr.mxu0 0.0
    %8001 = vmatpush1.msra.mxu0 0.0
    %8002 = vmatprep.subr.mxu0 0.0
    %8003 = vmatpush1.msra.mxu0 0.0
    %8004 = vmatprep.subr.mxu0 0.0
    %8005 = vmatpush1.msra.mxu0 0.0
    %8006 = vmatprep.subr.mxu0 0.0
    %8007 = vmatpush1.msra.mxu0 0.0
    %8008 = vmatprep.subr.mxu0 0.0
    %8009 = vmatpush1.msra.mxu0 0.0
    %8010 = vmatprep.subr.mxu0 0.0
    %8011 = vmatpush1.msra.mxu0 0.0
    %8012 = vmatprep.subr.mxu0 0.0
    %8013 = vmatpush1.msra.mxu0 0.0
    %8014 = vmatprep.subr.mxu0 0.0
    %8015 = vmatpush1.msra.mxu0 0.0
    %8016 = vmatprep.mubr.f32.mxu0 0.0
    %8017 = vmatmul.mubr.f32.gmra.mrb[0].mxu0 %v7950
    %v8018 = vpop.f32.mrb[0].mxu0
    %v8019 = vadd.f32 %v7947, %v8018
    %v8020 = vpop.f32.mrb[0].mxu0
    %8021 = vdwg.mxu0
    %v8022 = vsel %vm7384, %v8019, -inf
    %8023 = vmax.xlane.f32.xlu0 %v8022
    %v8024 = vpop.xlane.xlu0 %8023
    %v8025 = vsub.f32 %v8019, %v8024
    %v8026 = vmul.f32 %v8025, 1.442695
    %v8027 = vpow.pop %v8026
    %v8028 = vsel %vm7384, %v8027, 0.0
    %8029 = vadd.xlane.f32.xlu0 %v8028
    %v8030 = vpop.xlane.xlu0 %8029
    %v8031 = vrcp.pop %v8030
    %v8032 = vmul.f32 %v8027, %v8031
    %s8033 = scalar_lea.vmem %s31, 1024
    %v8034 = vld [vmem:[%s8033] sm:$0xff]
    %v8035 = vld [vmem:[%s8033 + $0x8] sm:$0xff]
    %v8036 = vld [vmem:[%s8033 + $0x10] sm:$0xff]
    %v8037 = vld [vmem:[%s8033 + $0x18] sm:$0xff]
    %v8038 = vld [vmem:[%s8033 + $0x20] sm:$0xff]
    %v8039 = vld [vmem:[%s8033 + $0x28] sm:$0xff]
    %v8040 = vld [vmem:[%s8033 + $0x30] sm:$0xff]
    %v8041 = vld [vmem:[%s8033 + $0x38] sm:$0xff]
    %v8042 = vld [vmem:[%s8033 + $0x40] sm:$0xff]
    %v8043 = vld [vmem:[%s8033 + $0x48] sm:$0xff]
    %v8044 = vld [vmem:[%s8033 + $0x50] sm:$0xff]
    %v8045 = vld [vmem:[%s8033 + $0x58] sm:$0xff]
    %v8046 = vld [vmem:[%s8033 + $0x60] sm:$0xff]
    %v8047 = vld [vmem:[%s8033 + $0x68] sm:$0xff]
    %v8048 = vld [vmem:[%s8033 + $0x70] sm:$0xff]
    %v8049 = vld [vmem:[%s8033 + $0x78] sm:$0xff]
    %v8050 = vld [vmem:[%s8033 + $0x80] sm:$0xff]
    %v8051 = vld [vmem:[%s8033 + $0x88] sm:$0xff]
    %v8052 = vld [vmem:[%s8033 + $0x90] sm:$0xff]
    %v8053 = vld [vmem:[%s8033 + $0x98] sm:$0xff]
    %v8054 = vld [vmem:[%s8033 + $0xa0] sm:$0xff]
    %v8055 = vld [vmem:[%s8033 + $0xa8] sm:$0xff]
    %v8056 = vld [vmem:[%s8033 + $0xb0] sm:$0xff]
    %v8057 = vld [vmem:[%s8033 + $0xb8] sm:$0xff]
    %v8058 = vld [vmem:[%s8033 + $0xc0] sm:$0xff]
    %v8059 = vld [vmem:[%s8033 + $0xc8] sm:$0xff]
    %v8060 = vld [vmem:[%s8033 + $0xd0] sm:$0xff]
    %v8061 = vld [vmem:[%s8033 + $0xd8] sm:$0xff]
    %v8062 = vld [vmem:[%s8033 + $0xe0] sm:$0xff]
    %v8063 = vld [vmem:[%s8033 + $0xe8] sm:$0xff]
    %v8064 = vld [vmem:[%s8033 + $0xf0] sm:$0xff]
    %v8065 = vld [vmem:[%s8033 + $0xf8] sm:$0xff]
    %v8066 = vld [vmem:[%s8033 + $0x100] sm:$0xff]
    %v8067 = vld [vmem:[%s8033 + $0x108] sm:$0xff]
    %v8068 = vld [vmem:[%s8033 + $0x110] sm:$0xff]
    %v8069 = vld [vmem:[%s8033 + $0x118] sm:$0xff]
    %v8070 = vld [vmem:[%s8033 + $0x120] sm:$0xff]
    %v8071 = vld [vmem:[%s8033 + $0x128] sm:$0xff]
    %v8072 = vld [vmem:[%s8033 + $0x130] sm:$0xff]
    %v8073 = vld [vmem:[%s8033 + $0x138] sm:$0xff]
    %v8074 = vld [vmem:[%s8033 + $0x140] sm:$0xff]
    %v8075 = vld [vmem:[%s8033 + $0x148] sm:$0xff]
    %v8076 = vld [vmem:[%s8033 + $0x150] sm:$0xff]
    %v8077 = vld [vmem:[%s8033 + $0x158] sm:$0xff]
    %v8078 = vld [vmem:[%s8033 + $0x160] sm:$0xff]
    %v8079 = vld [vmem:[%s8033 + $0x168] sm:$0xff]
    %v8080 = vld [vmem:[%s8033 + $0x170] sm:$0xff]
    %v8081 = vld [vmem:[%s8033 + $0x178] sm:$0xff]
    %v8082 = vld [vmem:[%s8033 + $0x180] sm:$0xff]
    %v8083 = vld [vmem:[%s8033 + $0x188] sm:$0xff]
    %v8084 = vld [vmem:[%s8033 + $0x190] sm:$0xff]
    %v8085 = vld [vmem:[%s8033 + $0x198] sm:$0xff]
    %v8086 = vld [vmem:[%s8033 + $0x1a0] sm:$0xff]
    %v8087 = vld [vmem:[%s8033 + $0x1a8] sm:$0xff]
    %v8088 = vld [vmem:[%s8033 + $0x1b0] sm:$0xff]
    %v8089 = vld [vmem:[%s8033 + $0x1b8] sm:$0xff]
    %v8090 = vld [vmem:[%s8033 + $0x1c0] sm:$0xff]
    %v8091 = vld [vmem:[%s8033 + $0x1c8] sm:$0xff]
    %v8092 = vld [vmem:[%s8033 + $0x1d0] sm:$0xff]
    %v8093 = vld [vmem:[%s8033 + $0x1d8] sm:$0xff]
    %v8094 = vld [vmem:[%s8033 + $0x1e0] sm:$0xff]
    %v8095 = vld [vmem:[%s8033 + $0x1e8] sm:$0xff]
    %v8096 = vld [vmem:[%s8033 + $0x1f0] sm:$0xff]
    %v8097 = vld [vmem:[%s8033 + $0x1f8] sm:$0xff]
    %s8098 = scalar_lea.vmem [#allocation18], 2
    %v8099 = vld [vmem:[%s8098] sm:$0x1]
    %v8101 = vlaneseq
    %v8102 = vshrl.u32 %v8101, 7
    %v8103 = vsub.s32 0, %v8102
    %v8104 = vrot.slane %v8099, %v8103
    %8106 = vmatprep.subr.mxu0 0.0
    %8107 = vmatpush1.msra.mxu0 %v8034
    %8108 = vmatprep.subr.mxu0 0.0
    %8109 = vmatpush1.msra.mxu0 %v8035
    %8110 = vmatprep.subr.mxu0 0.0
    %8111 = vmatpush1.msra.mxu0 %v8036
    %8112 = vmatprep.subr.mxu0 0.0
    %8113 = vmatpush1.msra.mxu0 %v8037
    %8114 = vmatprep.subr.mxu0 0.0
    %8115 = vmatpush1.msra.mxu0 %v8038
    %8116 = vmatprep.subr.mxu0 0.0
    %8117 = vmatpush1.msra.mxu0 %v8039
    %8118 = vmatprep.subr.mxu0 0.0
    %8119 = vmatpush1.msra.mxu0 %v8040
    %8120 = vmatprep.subr.mxu0 0.0
    %8121 = vmatpush1.msra.mxu0 %v8041
    %8122 = vmatprep.subr.mxu0 0.0
    %8123 = vmatpush1.msra.mxu0 %v8042
    %8124 = vmatprep.subr.mxu0 0.0
    %8125 = vmatpush1.msra.mxu0 %v8043
    %8126 = vmatprep.subr.mxu0 0.0
    %8127 = vmatpush1.msra.mxu0 %v8044
    %8128 = vmatprep.subr.mxu0 0.0
    %8129 = vmatpush1.msra.mxu0 %v8045
    %8130 = vmatprep.subr.mxu0 0.0
    %8131 = vmatpush1.msra.mxu0 %v8046
    %8132 = vmatprep.subr.mxu0 0.0
    %8133 = vmatpush1.msra.mxu0 %v8047
    %8134 = vmatprep.subr.mxu0 0.0
    %8135 = vmatpush1.msra.mxu0 %v8048
    %8136 = vmatprep.subr.mxu0 0.0
    %8137 = vmatpush1.msra.mxu0 %v8049
    %8138 = vmatprep.subr.mxu0 0.0
    %8139 = vmatpush1.msra.mxu0 %v8050
    %8140 = vmatprep.subr.mxu0 0.0
    %8141 = vmatpush1.msra.mxu0 %v8051
    %8142 = vmatprep.subr.mxu0 0.0
    %8143 = vmatpush1.msra.mxu0 %v8052
    %8144 = vmatprep.subr.mxu0 0.0
    %8145 = vmatpush1.msra.mxu0 %v8053
    %8146 = vmatprep.subr.mxu0 0.0
    %8147 = vmatpush1.msra.mxu0 %v8054
    %8148 = vmatprep.subr.mxu0 0.0
    %8149 = vmatpush1.msra.mxu0 %v8055
    %8150 = vmatprep.subr.mxu0 0.0
    %8151 = vmatpush1.msra.mxu0 %v8056
    %8152 = vmatprep.subr.mxu0 0.0
    %8153 = vmatpush1.msra.mxu0 %v8057
    %8154 = vmatprep.subr.mxu0 0.0
    %8155 = vmatpush1.msra.mxu0 %v8058
    %8156 = vmatprep.subr.mxu0 0.0
    %8157 = vmatpush1.msra.mxu0 %v8059
    %8158 = vmatprep.subr.mxu0 0.0
    %8159 = vmatpush1.msra.mxu0 %v8060
    %8160 = vmatprep.subr.mxu0 0.0
    %8161 = vmatpush1.msra.mxu0 %v8061
    %8162 = vmatprep.subr.mxu0 0.0
    %8163 = vmatpush1.msra.mxu0 %v8062
    %8164 = vmatprep.subr.mxu0 0.0
    %8165 = vmatpush1.msra.mxu0 %v8063
    %8166 = vmatprep.subr.mxu0 0.0
    %8167 = vmatpush1.msra.mxu0 %v8064
    %8168 = vmatprep.subr.mxu0 0.0
    %8169 = vmatpush1.msra.mxu0 %v8065
    %8170 = vmatprep.mubr.f32.mxu0 %v6694
    %8171 = vmatmul.mubr.f32.gmra.mrb[0].mxu0 %v6692
    %v8172 = vpop.f32.mrb[0].mxu0
    %v8173 = vadd.f32 %v8104, %v8172
    %v8174 = vpop.f32.mrb[0].mxu0
    %8175 = vdwg.mxu0
    %8176 = vmatprep.subr.mxu0 0.0
    %8177 = vmatpush1.msra.mxu0 %v8066
    %8178 = vmatprep.subr.mxu0 0.0
    %8179 = vmatpush1.msra.mxu0 %v8067
    %8180 = vmatprep.subr.mxu0 0.0
    %8181 = vmatpush1.msra.mxu0 %v8068
    %8182 = vmatprep.subr.mxu0 0.0
    %8183 = vmatpush1.msra.mxu0 %v8069
    %8184 = vmatprep.subr.mxu0 0.0
    %8185 = vmatpush1.msra.mxu0 %v8070
    %8186 = vmatprep.subr.mxu0 0.0
    %8187 = vmatpush1.msra.mxu0 %v8071
    %8188 = vmatprep.subr.mxu0 0.0
    %8189 = vmatpush1.msra.mxu0 %v8072
    %8190 = vmatprep.subr.mxu0 0.0
    %8191 = vmatpush1.msra.mxu0 %v8073
    %8192 = vmatprep.subr.mxu0 0.0
    %8193 = vmatpush1.msra.mxu0 %v8074
    %8194 = vmatprep.subr.mxu0 0.0
    %8195 = vmatpush1.msra.mxu0 %v8075
    %8196 = vmatprep.subr.mxu0 0.0
    %8197 = vmatpush1.msra.mxu0 %v8076
    %8198 = vmatprep.subr.mxu0 0.0
    %8199 = vmatpush1.msra.mxu0 %v8077
    %8200 = vmatprep.subr.mxu0 0.0
    %8201 = vmatpush1.msra.mxu0 %v8078
    %8202 = vmatprep.subr.mxu0 0.0
    %8203 = vmatpush1.msra.mxu0 %v8079
    %8204 = vmatprep.subr.mxu0 0.0
    %8205 = vmatpush1.msra.mxu0 %v8080
    %8206 = vmatprep.subr.mxu0 0.0
    %8207 = vmatpush1.msra.mxu0 %v8081
    %8208 = vmatprep.subr.mxu0 0.0
    %8209 = vmatpush1.msra.mxu0 %v8082
    %8210 = vmatprep.subr.mxu0 0.0
    %8211 = vmatpush1.msra.mxu0 %v8083
    %8212 = vmatprep.subr.mxu0 0.0
    %8213 = vmatpush1.msra.mxu0 %v8084
    %8214 = vmatprep.subr.mxu0 0.0
    %8215 = vmatpush1.msra.mxu0 %v8085
    %8216 = vmatprep.subr.mxu0 0.0
    %8217 = vmatpush1.msra.mxu0 %v8086
    %8218 = vmatprep.subr.mxu0 0.0
    %8219 = vmatpush1.msra.mxu0 %v8087
    %8220 = vmatprep.subr.mxu0 0.0
    %8221 = vmatpush1.msra.mxu0 %v8088
    %8222 = vmatprep.subr.mxu0 0.0
    %8223 = vmatpush1.msra.mxu0 %v8089
    %8224 = vmatprep.subr.mxu0 0.0
    %8225 = vmatpush1.msra.mxu0 %v8090
    %8226 = vmatprep.subr.mxu0 0.0
    %8227 = vmatpush1.msra.mxu0 %v8091
    %8228 = vmatprep.subr.mxu0 0.0
    %8229 = vmatpush1.msra.mxu0 %v8092
    %8230 = vmatprep.subr.mxu0 0.0
    %8231 = vmatpush1.msra.mxu0 %v8093
    %8232 = vmatprep.subr.mxu0 0.0
    %8233 = vmatpush1.msra.mxu0 %v8094
    %8234 = vmatprep.subr.mxu0 0.0
    %8235 = vmatpush1.msra.mxu0 %v8095
    %8236 = vmatprep.subr.mxu0 0.0
    %8237 = vmatpush1.msra.mxu0 %v8096
    %8238 = vmatprep.subr.mxu0 0.0
    %8239 = vmatpush1.msra.mxu0 %v8097
    %8240 = vmatprep.mubr.f32.mxu0 %v6765
    %8241 = vmatmul.mubr.f32.gmra.mrb[0].mxu0 %v6763
    %v8242 = vpop.f32.mrb[0].mxu0
    %v8243 = vadd.f32 %v8173, %v8242
    %v8244 = vpop.f32.mrb[0].mxu0
    %8245 = vdwg.mxu0
    %s8246 = scalar_lea.vmem %s35, 128
    %v8247 = vld [vmem:[%s8246] sm:$0xff]
    %v8248 = vld [vmem:[%s8246 + $0x8] sm:$0xff]
    %v8249 = vld [vmem:[%s8246 + $0x10] sm:$0xff]
    %v8250 = vld [vmem:[%s8246 + $0x18] sm:$0xff]
    %v8251 = vld [vmem:[%s8246 + $0x20] sm:$0xff]
    %v8252 = vld [vmem:[%s8246 + $0x28] sm:$0xff]
    %v8253 = vld [vmem:[%s8246 + $0x30] sm:$0xff]
    %v8254 = vld [vmem:[%s8246 + $0x38] sm:$0xff]
    %s8255 = scalar_lea.vmem [#allocation20], 2
    %v8256 = vld [vmem:[%s8255] sm:$0x1]
    %v8258 = vlaneseq
    %v8259 = vshrl.u32 %v8258, 7
    %v8260 = vsub.s32 0, %v8259
    %v8261 = vrot.slane %v8256, %v8260
    %v8264 = vsel %vm1025, %v8243, 0
    %8266 = vmatprep.subr.mxu0 0.0
    %8267 = vmatpush1.msra.mxu0 %v8247
    %8268 = vmatprep.subr.mxu0 0.0
    %8269 = vmatpush1.msra.mxu0 %v8248
    %8270 = vmatprep.subr.mxu0 0.0
    %8271 = vmatpush1.msra.mxu0 %v8249
    %8272 = vmatprep.subr.mxu0 0.0
    %8273 = vmatpush1.msra.mxu0 %v8250
    %8274 = vmatprep.subr.mxu0 0.0
    %8275 = vmatpush1.msra.mxu0 %v8251
    %8276 = vmatprep.subr.mxu0 0.0
    %8277 = vmatpush1.msra.mxu0 %v8252
    %8278 = vmatprep.subr.mxu0 0.0
    %8279 = vmatpush1.msra.mxu0 %v8253
    %8280 = vmatprep.subr.mxu0 0.0
    %8281 = vmatpush1.msra.mxu0 %v8254
    %8282 = vmatprep.subr.mxu0 0.0
    %8283 = vmatpush1.msra.mxu0 0.0
    %8284 = vmatprep.subr.mxu0 0.0
    %8285 = vmatpush1.msra.mxu0 0.0
    %8286 = vmatprep.subr.mxu0 0.0
    %8287 = vmatpush1.msra.mxu0 0.0
    %8288 = vmatprep.subr.mxu0 0.0
    %8289 = vmatpush1.msra.mxu0 0.0
    %8290 = vmatprep.subr.mxu0 0.0
    %8291 = vmatpush1.msra.mxu0 0.0
    %8292 = vmatprep.subr.mxu0 0.0
    %8293 = vmatpush1.msra.mxu0 0.0
    %8294 = vmatprep.subr.mxu0 0.0
    %8295 = vmatpush1.msra.mxu0 0.0
    %8296 = vmatprep.subr.mxu0 0.0
    %8297 = vmatpush1.msra.mxu0 0.0
    %8298 = vmatprep.subr.mxu0 0.0
    %8299 = vmatpush1.msra.mxu0 0.0
    %8300 = vmatprep.subr.mxu0 0.0
    %8301 = vmatpush1.msra.mxu0 0.0
    %8302 = vmatprep.subr.mxu0 0.0
    %8303 = vmatpush1.msra.mxu0 0.0
    %8304 = vmatprep.subr.mxu0 0.0
    %8305 = vmatpush1.msra.mxu0 0.0
    %8306 = vmatprep.subr.mxu0 0.0
    %8307 = vmatpush1.msra.mxu0 0.0
    %8308 = vmatprep.subr.mxu0 0.0
    %8309 = vmatpush1.msra.mxu0 0.0
    %8310 = vmatprep.subr.mxu0 0.0
    %8311 = vmatpush1.msra.mxu0 0.0
    %8312 = vmatprep.subr.mxu0 0.0
    %8313 = vmatpush1.msra.mxu0 0.0
    %8314 = vmatprep.subr.mxu0 0.0
    %8315 = vmatpush1.msra.mxu0 0.0
    %8316 = vmatprep.subr.mxu0 0.0
    %8317 = vmatpush1.msra.mxu0 0.0
    %8318 = vmatprep.subr.mxu0 0.0
    %8319 = vmatpush1.msra.mxu0 0.0
    %8320 = vmatprep.subr.mxu0 0.0
    %8321 = vmatpush1.msra.mxu0 0.0
    %8322 = vmatprep.subr.mxu0 0.0
    %8323 = vmatpush1.msra.mxu0 0.0
    %8324 = vmatprep.subr.mxu0 0.0
    %8325 = vmatpush1.msra.mxu0 0.0
    %8326 = vmatprep.subr.mxu0 0.0
    %8327 = vmatpush1.msra.mxu0 0.0
    %8328 = vmatprep.subr.mxu0 0.0
    %8329 = vmatpush1.msra.mxu0 0.0
    %8330 = vmatprep.mubr.f32.mxu0 0.0
    %8331 = vmatmul.mubr.f32.gmra.mrb[0].mxu0 %v8264
    %v8332 = vpop.f32.mrb[0].mxu0
    %v8333 = vadd.f32 %v8261, %v8332
    %v8334 = vpop.f32.mrb[0].mxu0
    %8335 = vdwg.mxu0
    %s8336 = scalar_lea.vmem [#allocation21], 2
    %v8337 = vld [vmem:[%s8336] sm:$0x1]
    %s8338 = scalar_lea.vmem [#allocation23], 2
    %v8339 = vld [vmem:[%s8338] sm:$0x1]
    %v8340 = vsel %vm7068, %v8333, 0.0
    %8341 = vadd.xlane.f32.xlu0 %v8340
    %v8342 = vpop.xlane.xlu0 %8341
    %v8343 = vmul.f32 %v8342, %v7072
    %v8344 = vsub.f32 %v8333, %v8343
    %v8345 = vmul.f32 %v8344, %v8344
    %v8346 = vsel %vm7068, %v8345, 0.0
    %8347 = vadd.xlane.f32.xlu0 %v8346
    %v8348 = vpop.xlane.xlu0 %8347
    %v8349 = vmul.f32 %v8348, %v7072
    %v8350 = vadd.f32 %v8349, 1e-05
    %v8351 = vrsqrt.pop %v8350
    %v8352 = vmul.f32 %v8344, %v8351
    %v8354 = vlaneseq
    %v8355 = vshrl.u32 %v8354, 7
    %v8356 = vsub.s32 0, %v8355
    %v8357 = vrot.slane %v8337, %v8356
    %v8359 = vmul.f32 %v8352, %v8357
    %v8361 = vlaneseq
    %v8362 = vshrl.u32 %v8361, 7
    %v8363 = vsub.s32 0, %v8362
    %v8364 = vrot.slane %v8339, %v8363
    %v8366 = vadd.f32 %v8359, %v8364
    %v8367 = vmax.f32 %v8366, 0.0
    %s8368 = scalar_lea.vmem %s43, 128
    %v8369 = vld [vmem:[%s8368] sm:$0xff]
    %v8370 = vld [vmem:[%s8368 + $0x8] sm:$0xff]
    %v8371 = vld [vmem:[%s8368 + $0x10] sm:$0xff]
    %v8372 = vld [vmem:[%s8368 + $0x18] sm:$0xff]
    %v8373 = vld [vmem:[%s8368 + $0x20] sm:$0xff]
    %v8374 = vld [vmem:[%s8368 + $0x28] sm:$0xff]
    %v8375 = vld [vmem:[%s8368 + $0x30] sm:$0xff]
    %v8376 = vld [vmem:[%s8368 + $0x38] sm:$0xff]
    %8377 = vmatprep.subr.mxu0 0.0
    %8378 = vmatpush1.msra.mxu0 %v8369
    %8379 = vmatprep.subr.mxu0 0.0
    %8380 = vmatpush1.msra.mxu0 %v8370
    %8381 = vmatprep.subr.mxu0 0.0
    %8382 = vmatpush1.msra.mxu0 %v8371
    %8383 = vmatprep.subr.mxu0 0.0
    %8384 = vmatpush1.msra.mxu0 %v8372
    %8385 = vmatprep.subr.mxu0 0.0
    %8386 = vmatpush1.msra.mxu0 %v8373
    %8387 = vmatprep.subr.mxu0 0.0
    %8388 = vmatpush1.msra.mxu0 %v8374
    %8389 = vmatprep.subr.mxu0 0.0
    %8390 = vmatpush1.msra.mxu0 %v8375
    %8391 = vmatprep.subr.mxu0 0.0
    %8392 = vmatpush1.msra.mxu0 %v8376
    %8393 = vmatprep.subr.mxu0 0.0
    %8394 = vmatpush1.msra.mxu0 0.0
    %8395 = vmatprep.subr.mxu0 0.0
    %8396 = vmatpush1.msra.mxu0 0.0
    %8397 = vmatprep.subr.mxu0 0.0
    %8398 = vmatpush1.msra.mxu0 0.0
    %8399 = vmatprep.subr.mxu0 0.0
    %8400 = vmatpush1.msra.mxu0 0.0
    %8401 = vmatprep.subr.mxu0 0.0
    %8402 = vmatpush1.msra.mxu0 0.0
    %8403 = vmatprep.subr.mxu0 0.0
    %8404 = vmatpush1.msra.mxu0 0.0
    %8405 = vmatprep.subr.mxu0 0.0
    %8406 = vmatpush1.msra.mxu0 0.0
    %8407 = vmatprep.subr.mxu0 0.0
    %8408 = vmatpush1.msra.mxu0 0.0
    %8409 = vmatprep.subr.mxu0 0.0
    %8410 = vmatpush1.msra.mxu0 0.0
    %8411 = vmatprep.subr.mxu0 0.0
    %8412 = vmatpush1.msra.mxu0 0.0
    %8413 = vmatprep.subr.mxu0 0.0
    %8414 = vmatpush1.msra.mxu0 0.0
    %8415 = vmatprep.subr.mxu0 0.0
    %8416 = vmatpush1.msra.mxu0 0.0
    %8417 = vmatprep.subr.mxu0 0.0
    %8418 = vmatpush1.msra.mxu0 0.0
    %8419 = vmatprep.subr.mxu0 0.0
    %8420 = vmatpush1.msra.mxu0 0.0
    %8421 = vmatprep.subr.mxu0 0.0
    %8422 = vmatpush1.msra.mxu0 0.0
    %8423 = vmatprep.subr.mxu0 0.0
    %8424 = vmatpush1.msra.mxu0 0.0
    %8425 = vmatprep.subr.mxu0 0.0
    %8426 = vmatpush1.msra.mxu0 0.0
    %8427 = vmatprep.subr.mxu0 0.0
    %8428 = vmatpush1.msra.mxu0 0.0
    %8429 = vmatprep.subr.mxu0 0.0
    %8430 = vmatpush1.msra.mxu0 0.0
    %8431 = vmatprep.subr.mxu0 0.0
    %8432 = vmatpush1.msra.mxu0 0.0
    %8433 = vmatprep.subr.mxu0 0.0
    %8434 = vmatpush1.msra.mxu0 0.0
    %8435 = vmatprep.subr.mxu0 0.0
    %8436 = vmatpush1.msra.mxu0 0.0
    %8437 = vmatprep.subr.mxu0 0.0
    %8438 = vmatpush1.msra.mxu0 0.0
    %8439 = vmatprep.subr.mxu0 0.0
    %8440 = vmatpush1.msra.mxu0 0.0
    %8441 = vmatprep.mubr.f32.mxu0 0.0
    %8442 = vmatmul.mubr.f32.gmra.mrb[0].mxu0 %v8264
    %v8443 = vpop.f32.mrb[0].mxu0
    %v8444 = vadd.f32 0.0, %v8443
    %v8445 = vpop.f32.mrb[0].mxu0
    %8446 = vdwg.mxu0
    %v8447 = vadd.f32 %v8367, %v8444
    %s8448 = scalar_lea.vmem [#allocation24], 2
    %v8449 = vld [vmem:[%s8448] sm:$0x1]
    %v8451 = vlaneseq
    %v8452 = vshrl.u32 %v8451, 7
    %v8453 = vsub.s32 0, %v8452
    %v8454 = vrot.slane %v8449, %v8453
    %v8456 = vadd.f32 %v8447, %v8454
    %s8457 = scalar_lea.vmem %s47, 64
    %v8458 = vld [vmem:[%s8457] sm:$0xff]
    %v8459 = vld [vmem:[%s8457 + $0x8] sm:$0xff]
    %v8460 = vld [vmem:[%s8457 + $0x10] sm:$0xff]
    %v8461 = vld [vmem:[%s8457 + $0x18] sm:$0xff]
    %s8462 = scalar_lea.vmem [#allocation26], 2
    %v8463 = vld [vmem:[%s8462] sm:$0x1]
    %v8465 = vlaneseq
    %v8466 = vshrl.u32 %v8465, 7
    %v8467 = vsub.s32 0, %v8466
    %v8468 = vrot.slane %v8463, %v8467
    %v8471 = vsel %vm7196, %v8456, 0
    %8473 = vmatprep.subr.mxu0 0.0
    %8474 = vmatpush1.msra.mxu0 %v8458
    %8475 = vmatprep.subr.mxu0 0.0
    %8476 = vmatpush1.msra.mxu0 %v8459
    %8477 = vmatprep.subr.mxu0 0.0
    %8478 = vmatpush1.msra.mxu0 %v8460
    %8479 = vmatprep.subr.mxu0 0.0
    %8480 = vmatpush1.msra.mxu0 %v8461
    %8481 = vmatprep.subr.mxu0 0.0
    %8482 = vmatpush1.msra.mxu0 0.0
    %8483 = vmatprep.subr.mxu0 0.0
    %8484 = vmatpush1.msra.mxu0 0.0
    %8485 = vmatprep.subr.mxu0 0.0
    %8486 = vmatpush1.msra.mxu0 0.0
    %8487 = vmatprep.subr.mxu0 0.0
    %8488 = vmatpush1.msra.mxu0 0.0
    %8489 = vmatprep.subr.mxu0 0.0
    %8490 = vmatpush1.msra.mxu0 0.0
    %8491 = vmatprep.subr.mxu0 0.0
    %8492 = vmatpush1.msra.mxu0 0.0
    %8493 = vmatprep.subr.mxu0 0.0
    %8494 = vmatpush1.msra.mxu0 0.0
    %8495 = vmatprep.subr.mxu0 0.0
    %8496 = vmatpush1.msra.mxu0 0.0
    %8497 = vmatprep.subr.mxu0 0.0
    %8498 = vmatpush1.msra.mxu0 0.0
    %8499 = vmatprep.subr.mxu0 0.0
    %8500 = vmatpush1.msra.mxu0 0.0
    %8501 = vmatprep.subr.mxu0 0.0
    %8502 = vmatpush1.msra.mxu0 0.0
    %8503 = vmatprep.subr.mxu0 0.0
    %8504 = vmatpush1.msra.mxu0 0.0
    %8505 = vmatprep.subr.mxu0 0.0
    %8506 = vmatpush1.msra.mxu0 0.0
    %8507 = vmatprep.subr.mxu0 0.0
    %8508 = vmatpush1.msra.mxu0 0.0
    %8509 = vmatprep.subr.mxu0 0.0
    %8510 = vmatpush1.msra.mxu0 0.0
    %8511 = vmatprep.subr.mxu0 0.0
    %8512 = vmatpush1.msra.mxu0 0.0
    %8513 = vmatprep.subr.mxu0 0.0
    %8514 = vmatpush1.msra.mxu0 0.0
    %8515 = vmatprep.subr.mxu0 0.0
    %8516 = vmatpush1.msra.mxu0 0.0
    %8517 = vmatprep.subr.mxu0 0.0
    %8518 = vmatpush1.msra.mxu0 0.0
    %8519 = vmatprep.subr.mxu0 0.0
    %8520 = vmatpush1.msra.mxu0 0.0
    %8521 = vmatprep.subr.mxu0 0.0
    %8522 = vmatpush1.msra.mxu0 0.0
    %8523 = vmatprep.subr.mxu0 0.0
    %8524 = vmatpush1.msra.mxu0 0.0
    %8525 = vmatprep.subr.mxu0 0.0
    %8526 = vmatpush1.msra.mxu0 0.0
    %8527 = vmatprep.subr.mxu0 0.0
    %8528 = vmatpush1.msra.mxu0 0.0
    %8529 = vmatprep.subr.mxu0 0.0
    %8530 = vmatpush1.msra.mxu0 0.0
    %8531 = vmatprep.subr.mxu0 0.0
    %8532 = vmatpush1.msra.mxu0 0.0
    %8533 = vmatprep.subr.mxu0 0.0
    %8534 = vmatpush1.msra.mxu0 0.0
    %8535 = vmatprep.subr.mxu0 0.0
    %8536 = vmatpush1.msra.mxu0 0.0
    %8537 = vmatprep.mubr.f32.mxu0 0.0
    %8538 = vmatmul.mubr.f32.gmra.mrb[0].mxu0 %v8471
    %v8539 = vpop.f32.mrb[0].mxu0
    %v8540 = vadd.f32 %v8468, %v8539
    %v8541 = vpop.f32.mrb[0].mxu0
    %8542 = vdwg.mxu0
    %v8543 = vmax.f32 %v8540, 0.0
    %s8544 = scalar_lea.vmem [#allocation27], 2
    %v8545 = vld [vmem:[%s8544] sm:$0x1]
    %s8546 = scalar_lea.vmem [#allocation29], 2
    %v8547 = vld [vmem:[%s8546] sm:$0x1]
    %v8548 = vsel %vm7273, %v8543, 0.0
    %8549 = vadd.xlane.f32.xlu0 %v8548
    %v8550 = vpop.xlane.xlu0 %8549
    %v8551 = vmul.f32 %v8550, %v7277
    %v8552 = vsub.f32 %v8543, %v8551
    %v8553 = vmul.f32 %v8552, %v8552
    %v8554 = vsel %vm7273, %v8553, 0.0
    %8555 = vadd.xlane.f32.xlu0 %v8554
    %v8556 = vpop.xlane.xlu0 %8555
    %v8557 = vmul.f32 %v8556, %v7277
    %v8558 = vadd.f32 %v8557, 1e-05
    %v8559 = vrsqrt.pop %v8558
    %v8560 = vmul.f32 %v8552, %v8559
    %v8562 = vlaneseq
    %v8563 = vshrl.u32 %v8562, 7
    %v8564 = vsub.s32 0, %v8563
    %v8565 = vrot.slane %v8545, %v8564
    %v8567 = vmul.f32 %v8560, %v8565
    %v8569 = vlaneseq
    %v8570 = vshrl.u32 %v8569, 7
    %v8571 = vsub.s32 0, %v8570
    %v8572 = vrot.slane %v8547, %v8571
    %v8574 = vadd.f32 %v8567, %v8572
    %s8575 = scalar_lea.vmem %s55, 32
    %v8576 = vld [vmem:[%s8575] sm:$0xff]
    %v8577 = vld [vmem:[%s8575 + $0x8] sm:$0xff]
    %s8578 = scalar_lea.vmem [#allocation30], 2
    %v8579 = vld [vmem:[%s8578] sm:$0x1]
    %v8581 = vlaneseq
    %v8582 = vshrl.u32 %v8581, 7
    %v8583 = vsub.s32 0, %v8582
    %v8584 = vrot.slane %v8579, %v8583
    %v8587 = vsel %vm443, %v8574, 0
    %8589 = vmatprep.subr.mxu0 0.0
    %8590 = vmatpush1.msra.mxu0 %v8576
    %8591 = vmatprep.subr.mxu0 0.0
    %8592 = vmatpush1.msra.mxu0 %v8577
    %8593 = vmatprep.subr.mxu0 0.0
    %8594 = vmatpush1.msra.mxu0 0.0
    %8595 = vmatprep.subr.mxu0 0.0
    %8596 = vmatpush1.msra.mxu0 0.0
    %8597 = vmatprep.subr.mxu0 0.0
    %8598 = vmatpush1.msra.mxu0 0.0
    %8599 = vmatprep.subr.mxu0 0.0
    %8600 = vmatpush1.msra.mxu0 0.0
    %8601 = vmatprep.subr.mxu0 0.0
    %8602 = vmatpush1.msra.mxu0 0.0
    %8603 = vmatprep.subr.mxu0 0.0
    %8604 = vmatpush1.msra.mxu0 0.0
    %8605 = vmatprep.subr.mxu0 0.0
    %8606 = vmatpush1.msra.mxu0 0.0
    %8607 = vmatprep.subr.mxu0 0.0
    %8608 = vmatpush1.msra.mxu0 0.0
    %8609 = vmatprep.subr.mxu0 0.0
    %8610 = vmatpush1.msra.mxu0 0.0
    %8611 = vmatprep.subr.mxu0 0.0
    %8612 = vmatpush1.msra.mxu0 0.0
    %8613 = vmatprep.subr.mxu0 0.0
    %8614 = vmatpush1.msra.mxu0 0.0
    %8615 = vmatprep.subr.mxu0 0.0
    %8616 = vmatpush1.msra.mxu0 0.0
    %8617 = vmatprep.subr.mxu0 0.0
    %8618 = vmatpush1.msra.mxu0 0.0
    %8619 = vmatprep.subr.mxu0 0.0
    %8620 = vmatpush1.msra.mxu0 0.0
    %8621 = vmatprep.subr.mxu0 0.0
    %8622 = vmatpush1.msra.mxu0 0.0
    %8623 = vmatprep.subr.mxu0 0.0
    %8624 = vmatpush1.msra.mxu0 0.0
    %8625 = vmatprep.subr.mxu0 0.0
    %8626 = vmatpush1.msra.mxu0 0.0
    %8627 = vmatprep.subr.mxu0 0.0
    %8628 = vmatpush1.msra.mxu0 0.0
    %8629 = vmatprep.subr.mxu0 0.0
    %8630 = vmatpush1.msra.mxu0 0.0
    %8631 = vmatprep.subr.mxu0 0.0
    %8632 = vmatpush1.msra.mxu0 0.0
    %8633 = vmatprep.subr.mxu0 0.0
    %8634 = vmatpush1.msra.mxu0 0.0
    %8635 = vmatprep.subr.mxu0 0.0
    %8636 = vmatpush1.msra.mxu0 0.0
    %8637 = vmatprep.subr.mxu0 0.0
    %8638 = vmatpush1.msra.mxu0 0.0
    %8639 = vmatprep.subr.mxu0 0.0
    %8640 = vmatpush1.msra.mxu0 0.0
    %8641 = vmatprep.subr.mxu0 0.0
    %8642 = vmatpush1.msra.mxu0 0.0
    %8643 = vmatprep.subr.mxu0 0.0
    %8644 = vmatpush1.msra.mxu0 0.0
    %8645 = vmatprep.subr.mxu0 0.0
    %8646 = vmatpush1.msra.mxu0 0.0
    %8647 = vmatprep.subr.mxu0 0.0
    %8648 = vmatpush1.msra.mxu0 0.0
    %8649 = vmatprep.subr.mxu0 0.0
    %8650 = vmatpush1.msra.mxu0 0.0
    %8651 = vmatprep.subr.mxu0 0.0
    %8652 = vmatpush1.msra.mxu0 0.0
    %8653 = vmatprep.mubr.f32.mxu0 0.0
    %8654 = vmatmul.mubr.f32.gmra.mrb[0].mxu0 %v8587
    %v8655 = vpop.f32.mrb[0].mxu0
    %v8656 = vadd.f32 %v8584, %v8655
    %v8657 = vpop.f32.mrb[0].mxu0
    %8658 = vdwg.mxu0
    %v8659 = vsel %vm7384, %v8656, -inf
    %8660 = vmax.xlane.f32.xlu0 %v8659
    %v8661 = vpop.xlane.xlu0 %8660
    %v8662 = vsub.f32 %v8656, %v8661
    %v8663 = vmul.f32 %v8662, 1.442695
    %v8664 = vpow.pop %v8663
    %v8665 = vsel %vm7384, %v8664, 0.0
    %8666 = vadd.xlane.f32.xlu0 %v8665
    %v8667 = vpop.xlane.xlu0 %8666
    %v8668 = vrcp.pop %v8667
    %v8669 = vmul.f32 %v8664, %v8668
    %8671 = vrot.lane.b32.xlu0 %v8032, 3
    %v8672 = vpop.permute.xlu0 %8671
    %8675 = vrot.lane.b32.xlu0 %v8669, 6
    %v8676 = vpop.permute.xlu0 %8675
    %vm8678 = vcmask 23552
    %v8679 = vsel %vm8678, %v7395, %v8672
    %vm8680 = vcmask 48128
    %v8681 = vsel %vm8680, %v8679, %v8676
    %v8682 = vld [vmem:[%s59] sm:$0xff]
    %v8683 = vld [vmem:[%s59 + $0x8] sm:$0x1]
    %v8684 = vld [vmem:[#allocation32] sm:$0x1]
    %v8686 = vlaneseq
    %v8687 = vshrl.u32 %v8686, 7
    %v8688 = vsub.s32 0, %v8687
    %v8689 = vrot.slane %v8684, %v8688
    %vm8691 = vcmask 72704
    %v8693 = vsel %vm8691, %v8681, 0
    %vm8695 = vcmask 1040384
    %v8697 = vsel %vm8695, %v8683, 0
    %8699 = vmatprep.subr.mxu0 0.0
    %8700 = vmatpush1.msra.mxu0 %v8682
    %8701 = vmatprep.subr.mxu0 0.0
    %8702 = vmatpush1.msra.mxu0 %v8697
    %8703 = vmatprep.subr.mxu0 0.0
    %8704 = vmatpush1.msra.mxu0 0.0
    %8705 = vmatprep.subr.mxu0 0.0
    %8706 = vmatpush1.msra.mxu0 0.0
    %8707 = vmatprep.subr.mxu0 0.0
    %8708 = vmatpush1.msra.mxu0 0.0
    %8709 = vmatprep.subr.mxu0 0.0
    %8710 = vmatpush1.msra.mxu0 0.0
    %8711 = vmatprep.subr.mxu0 0.0
    %8712 = vmatpush1.msra.mxu0 0.0
    %8713 = vmatprep.subr.mxu0 0.0
    %8714 = vmatpush1.msra.mxu0 0.0
    %8715 = vmatprep.subr.mxu0 0.0
    %8716 = vmatpush1.msra.mxu0 0.0
    %8717 = vmatprep.subr.mxu0 0.0
    %8718 = vmatpush1.msra.mxu0 0.0
    %8719 = vmatprep.subr.mxu0 0.0
    %8720 = vmatpush1.msra.mxu0 0.0
    %8721 = vmatprep.subr.mxu0 0.0
    %8722 = vmatpush1.msra.mxu0 0.0
    %8723 = vmatprep.subr.mxu0 0.0
    %8724 = vmatpush1.msra.mxu0 0.0
    %8725 = vmatprep.subr.mxu0 0.0
    %8726 = vmatpush1.msra.mxu0 0.0
    %8727 = vmatprep.subr.mxu0 0.0
    %8728 = vmatpush1.msra.mxu0 0.0
    %8729 = vmatprep.subr.mxu0 0.0
    %8730 = vmatpush1.msra.mxu0 0.0
    %8731 = vmatprep.subr.mxu0 0.0
    %8732 = vmatpush1.msra.mxu0 0.0
    %8733 = vmatprep.subr.mxu0 0.0
    %8734 = vmatpush1.msra.mxu0 0.0
    %8735 = vmatprep.subr.mxu0 0.0
    %8736 = vmatpush1.msra.mxu0 0.0
    %8737 = vmatprep.subr.mxu0 0.0
    %8738 = vmatpush1.msra.mxu0 0.0
    %8739 = vmatprep.subr.mxu0 0.0
    %8740 = vmatpush1.msra.mxu0 0.0
    %8741 = vmatprep.subr.mxu0 0.0
    %8742 = vmatpush1.msra.mxu0 0.0
    %8743 = vmatprep.subr.mxu0 0.0
    %8744 = vmatpush1.msra.mxu0 0.0
    %8745 = vmatprep.subr.mxu0 0.0
    %8746 = vmatpush1.msra.mxu0 0.0
    %8747 = vmatprep.subr.mxu0 0.0
    %8748 = vmatpush1.msra.mxu0 0.0
    %8749 = vmatprep.subr.mxu0 0.0
    %8750 = vmatpush1.msra.mxu0 0.0
    %8751 = vmatprep.subr.mxu0 0.0
    %8752 = vmatpush1.msra.mxu0 0.0
    %8753 = vmatprep.subr.mxu0 0.0
    %8754 = vmatpush1.msra.mxu0 0.0
    %8755 = vmatprep.subr.mxu0 0.0
    %8756 = vmatpush1.msra.mxu0 0.0
    %8757 = vmatprep.subr.mxu0 0.0
    %8758 = vmatpush1.msra.mxu0 0.0
    %8759 = vmatprep.subr.mxu0 0.0
    %8760 = vmatpush1.msra.mxu0 0.0
    %8761 = vmatprep.subr.mxu0 0.0
    %8762 = vmatpush1.msra.mxu0 0.0
    %8763 = vmatprep.mubr.f32.mxu0 0.0
    %8764 = vmatmul.mubr.f32.gmra.mrb[0].mxu0 %v8693
    %v8765 = vpop.f32.mrb[0].mxu0
    %v8766 = vadd.f32 %v8689, %v8765
    %v8767 = vpop.f32.mrb[0].mxu0
    %8768 = vdwg.mxu0
    %v8769 = vmax.f32 %v8766, 0.0
    %v8770 = vld [vmem:[%s63] sm:$0xff]
    %v8771 = vld [vmem:[%s63 + $0x8] sm:$0xff]
    %v8772 = vld [vmem:[%s63 + $0x10] sm:$0xff]
    %v8773 = vld [vmem:[%s63 + $0x18] sm:$0xff]
    %v8774 = vld [vmem:[#allocation33] sm:$0x1]
    %v8776 = vlaneseq
    %v8777 = vshrl.u32 %v8776, 7
    %v8778 = vsub.s32 0, %v8777
    %v8779 = vrot.slane %v8774, %v8778
    %v8782 = vsel %vm7196, %v8769, 0
    %8784 = vmatprep.subr.mxu0 0.0
    %8785 = vmatpush1.msra.mxu0 %v8770
    %8786 = vmatprep.subr.mxu0 0.0
    %8787 = vmatpush1.msra.mxu0 %v8771
    %8788 = vmatprep.subr.mxu0 0.0
    %8789 = vmatpush1.msra.mxu0 %v8772
    %8790 = vmatprep.subr.mxu0 0.0
    %8791 = vmatpush1.msra.mxu0 %v8773
    %8792 = vmatprep.subr.mxu0 0.0
    %8793 = vmatpush1.msra.mxu0 0.0
    %8794 = vmatprep.subr.mxu0 0.0
    %8795 = vmatpush1.msra.mxu0 0.0
    %8796 = vmatprep.subr.mxu0 0.0
    %8797 = vmatpush1.msra.mxu0 0.0
    %8798 = vmatprep.subr.mxu0 0.0
    %8799 = vmatpush1.msra.mxu0 0.0
    %8800 = vmatprep.subr.mxu0 0.0
    %8801 = vmatpush1.msra.mxu0 0.0
    %8802 = vmatprep.subr.mxu0 0.0
    %8803 = vmatpush1.msra.mxu0 0.0
    %8804 = vmatprep.subr.mxu0 0.0
    %8805 = vmatpush1.msra.mxu0 0.0
    %8806 = vmatprep.subr.mxu0 0.0
    %8807 = vmatpush1.msra.mxu0 0.0
    %8808 = vmatprep.subr.mxu0 0.0
    %8809 = vmatpush1.msra.mxu0 0.0
    %8810 = vmatprep.subr.mxu0 0.0
    %8811 = vmatpush1.msra.mxu0 0.0
    %8812 = vmatprep.subr.mxu0 0.0
    %8813 = vmatpush1.msra.mxu0 0.0
    %8814 = vmatprep.subr.mxu0 0.0
    %8815 = vmatpush1.msra.mxu0 0.0
    %8816 = vmatprep.subr.mxu0 0.0
    %8817 = vmatpush1.msra.mxu0 0.0
    %8818 = vmatprep.subr.mxu0 0.0
    %8819 = vmatpush1.msra.mxu0 0.0
    %8820 = vmatprep.subr.mxu0 0.0
    %8821 = vmatpush1.msra.mxu0 0.0
    %8822 = vmatprep.subr.mxu0 0.0
    %8823 = vmatpush1.msra.mxu0 0.0
    %8824 = vmatprep.subr.mxu0 0.0
    %8825 = vmatpush1.msra.mxu0 0.0
    %8826 = vmatprep.subr.mxu0 0.0
    %8827 = vmatpush1.msra.mxu0 0.0
    %8828 = vmatprep.subr.mxu0 0.0
    %8829 = vmatpush1.msra.mxu0 0.0
    %8830 = vmatprep.subr.mxu0 0.0
    %8831 = vmatpush1.msra.mxu0 0.0
    %8832 = vmatprep.subr.mxu0 0.0
    %8833 = vmatpush1.msra.mxu0 0.0
    %8834 = vmatprep.subr.mxu0 0.0
    %8835 = vmatpush1.msra.mxu0 0.0
    %8836 = vmatprep.subr.mxu0 0.0
    %8837 = vmatpush1.msra.mxu0 0.0
    %8838 = vmatprep.subr.mxu0 0.0
    %8839 = vmatpush1.msra.mxu0 0.0
    %8840 = vmatprep.subr.mxu0 0.0
    %8841 = vmatpush1.msra.mxu0 0.0
    %8842 = vmatprep.subr.mxu0 0.0
    %8843 = vmatpush1.msra.mxu0 0.0
    %8844 = vmatprep.subr.mxu0 0.0
    %8845 = vmatpush1.msra.mxu0 0.0
    %8846 = vmatprep.subr.mxu0 0.0
    %8847 = vmatpush1.msra.mxu0 0.0
    %8848 = vmatprep.mubr.f32.mxu0 0.0
    %8849 = vmatmul.mubr.f32.gmra.mrb[0].mxu0 %v8782
    %v8850 = vpop.f32.mrb[0].mxu0
    %v8851 = vadd.f32 %v8779, %v8850
    %v8852 = vpop.f32.mrb[0].mxu0
    %8853 = vdwg.mxu0
    %v8854 = vsel %vm7384, %v8851, -inf
    %8855 = vmax.xlane.f32.xlu0 %v8854
    %v8856 = vpop.xlane.xlu0 %8855
    %v8857 = vsub.f32 %v8851, %v8856
    %v8858 = vmul.f32 %v8857, 1.442695
    %v8859 = vpow.pop %v8858
    %v8860 = vsel %vm7384, %v8859, 0.0
    %8861 = vadd.xlane.f32.xlu0 %v8860
    %v8862 = vpop.xlane.xlu0 %8861
    %v8863 = vrcp.pop %v8862
    %v8864 = vmul.f32 %v8859, %v8863
    %v8865 = vld [vmem:[#allocation35] sm:$0x1]
    %s8866 = sld [smem:[#allocation2]]
    %v8867 = vstv %s8866
    %v8868 = vrcp.pop %v8867
    %v8869 = vmul.f32 %v8865, %v8868
    %vm8870 = vcmask 16384
    %v8871 = vsel %vm8870, %v8869, -inf
    %8872 = vmax.xlane.f32.xlu0 %v8871
    %v8873 = vpop.xlane.xlu0 %8872
    %v8874 = vsub.f32 %v8869, %v8873
    %v8875 = vmul.f32 %v8874, 1.442695
    %v8876 = vpow.pop %v8875
    %v8877 = vsel %vm8870, %v8876, 0.0
    %8878 = vadd.xlane.f32.xlu0 %v8877
    %v8879 = vpop.xlane.xlu0 %8878
    %v8880 = vrcp.pop %v8879
    %v8881 = vmul.f32 %v8876, %v8880
    %v8883 = vlaneseq
    %v8884 = vshrl.u32 %v8883, 7
    %v8885 = vsub.s32 0, %v8884
    %v8886 = vrot.slane %v8881, %v8885
    %8887 = vset.pattern.permute.xlu0 0
    %8888 = vperm.xlu0 %8887, %v8886
    %v8889 = vpop.permute.xlu0 %8888
    %v8891 = vmul.f32 %v8889, %v7395
    %8892 = vset.pattern.permute.xlu0 1
    %8893 = vperm.xlu0 %8892, %v8886
    %v8894 = vpop.permute.xlu0 %8893
    %v8896 = vmul.f32 %v8894, %v8032
    %v8897 = vadd.f32 %v8891, %v8896
    %8898 = vset.pattern.permute.xlu0 2
    %8899 = vperm.xlu0 %8898, %v8886
    %v8900 = vpop.permute.xlu0 %8899
    %v8902 = vmul.f32 %v8900, %v8669
    %v8903 = vadd.f32 %v8897, %v8902
    %v8904 = vmul.f32 %v8864, 0.7
    %v8905 = vmul.f32 %v8903, 0.3
    %v8906 = vadd.f32 %v8904, %v8905
    %8907 = vst.msk [vmem:[#allocation36] sm:$0x3] %vm7384, %v8906
    // Predicated region
    $region226: #{tpu_custom_call.1} parent=1 // pred_check
      _
    $region227: #{tpu_custom_call.1} parent=1 // pred_check_branch
      %8909 = sbr.rel (0) target = $region229
    $region228: #{tpu_custom_call.1} parent=1 // pred_region
      %s8911 = ssub.s32 32, 32
      %8912 = vsyncadd [#allocation5], %s8911
      %s8914 = sshll.u32 [#allocation36], 4
      %s8915 = int_to_ptr.vmem [resolvable:$true] %s8914
      %8917 = dma.vmem_to_hbm [thread:$0]  %s8915, 32, %s71, [#allocation5]
    $region229: #{tpu_custom_call.1} parent=1 // pred_fallthru
      _
    // Predicated region
    $region230: #{tpu_custom_call.1} parent=1 // pred_check
      _
    $region231: #{tpu_custom_call.1} parent=1 // pred_check_branch
      %8919 = sbr.rel (0) target = $region233
    $region232: #{tpu_custom_call.1} parent=1 // pred_region
      %8920 = dma.done [#allocation5], 32
    $region233: #{tpu_custom_call.1} parent=1 // pred_fallthru
      _
    %8921 = vsyncpa [#allocation4], 1
    %8922 = vsyncpa [#allocation7], 1
    %8923 = vsyncpa [#allocation10], 1
    %8924 = vsyncpa [#allocation13], 1
    %8925 = vsyncpa [#allocation16], 1
    %8926 = vsyncpa [#allocation19], 1
    %8927 = vsyncpa [#allocation22], 1
    %8928 = vsyncpa [#allocation25], 1
    %8929 = vsyncpa [#allocation28], 1
    %8930 = vsyncpa [#allocation31], 1
    %8931 = vsyncpa [#allocation34], 1
    %8932 = vsyncpa [#allocation5], 1

</llo_original>
